<compile_context>
chip_gen: v6e
topology: v6e:2x2x1
jax: 0.10.0
libtpu: 0.0.40
codegen_flags: <defaults>
</compile_context>

<pallas_src>
import jax
import jax.numpy as jnp
from jax.experimental import pallas as pl
from jax.experimental.pallas import tpu as pltpu


def _round_up(x, m):
    return (x + m - 1) // m * m


# ---------------------------------------------------------------------------
# Kernel 1: fused conv-as-GEMM + bias + ReLU + 2x2 maxpool
#   a{00,01,10,11}: (tm, Kp) bf16 im2col rows for the four positions of each 2x2 window
#   w: (Kp, 128) bf16, b: (1, 128) f32, o: (tm, 128) bf16
#   max_pq relu(A_pq @ W + b) == relu(max_pq(A_pq @ W) + b)  (bias shared, relu monotone)
# ---------------------------------------------------------------------------
def _conv_pool_kernel(a00_ref, a01_ref, a10_ref, a11_ref, w_ref, b_ref, o_ref):
    w = w_ref[...]
    z = jnp.dot(a00_ref[...], w, preferred_element_type=jnp.float32)
    z = jnp.maximum(z, jnp.dot(a01_ref[...], w, preferred_element_type=jnp.float32))
    z = jnp.maximum(z, jnp.dot(a10_ref[...], w, preferred_element_type=jnp.float32))
    z = jnp.maximum(z, jnp.dot(a11_ref[...], w, preferred_element_type=jnp.float32))
    z = jnp.maximum(z + b_ref[...], 0.0)
    o_ref[...] = z.astype(o_ref.dtype)


def conv_pool(v00, v01, v10, v11, w, b, *, tm=512):
    """v*: (M, Kp) bf16, w: (Kp, N=128) bf16, b: (1, N) f32 -> (M, N) bf16."""
    M, Kp = v00.shape
    N = w.shape[1]
    tm = min(tm, _round_up(M, 8))
    Mp = _round_up(M, tm)
    if Mp != M:
        pad = lambda a: jnp.pad(a, ((0, Mp - M), (0, 0)))
        v00, v01, v10, v11 = pad(v00), pad(v01), pad(v10), pad(v11)

    a_spec = pl.BlockSpec((tm, Kp), lambda i: (i, 0))
    out = pl.pallas_call(
        _conv_pool_kernel,
        out_shape=jax.ShapeDtypeStruct((Mp, N), jnp.bfloat16),
        grid_spec=pltpu.PrefetchScalarGridSpec(
            num_scalar_prefetch=0,
            grid=(Mp // tm,),
            in_specs=[a_spec, a_spec, a_spec, a_spec,
                      pl.BlockSpec((Kp, N), lambda i: (0, 0)),
                      pl.BlockSpec((1, N), lambda i: (0, 0))],
            out_specs=pl.BlockSpec((tm, N), lambda i: (i, 0)),
        ),
        compiler_params=pltpu.CompilerParams(dimension_semantics=("parallel",)),
    )(v00, v01, v10, v11, w, b)
    return out[:M]


# ---------------------------------------------------------------------------
# Kernel 2: fused fc1 + ReLU + fc2
#   x: (tb, 6272) bf16, w1: (6272, 128) bf16, b1: (1, 128) f32,
#   w2: (128, 128) bf16 (only col 0 real), b2: (1, 128) f32, o: (tb, 128) f32
# ---------------------------------------------------------------------------
def _fc_kernel(x_ref, w1_ref, b1_ref, w2_ref, b2_ref, o_ref):
    h = jnp.dot(x_ref[...], w1_ref[...], preferred_element_type=jnp.float32)
    h = jnp.maximum(h + b1_ref[...], 0.0)
    o = jnp.dot(h.astype(jnp.bfloat16), w2_ref[...], preferred_element_type=jnp.float32)
    o_ref[...] = (o + b2_ref[...]).astype(o_ref.dtype)


def fc_fused(x, w1, b1, w2, b2, *, tb=256):
    B, K = x.shape
    N1 = w1.shape[1]
    N2 = w2.shape[1]
    tb = min(tb, _round_up(B, 8))
    Bp = _round_up(B, tb)
    if Bp != B:
        x = jnp.pad(x, ((0, Bp - B), (0, 0)))

    out = pl.pallas_call(
        _fc_kernel,
        out_shape=jax.ShapeDtypeStruct((Bp, N2), jnp.float32),
        grid_spec=pltpu.PrefetchScalarGridSpec(
            num_scalar_prefetch=0,
            grid=(Bp // tb,),
            in_specs=[pl.BlockSpec((tb, K), lambda i: (i, 0)),
                      pl.BlockSpec((K, N1), lambda i: (0, 0)),
                      pl.BlockSpec((1, N1), lambda i: (0, 0)),
                      pl.BlockSpec((N1, N2), lambda i: (0, 0)),
                      pl.BlockSpec((1, N2), lambda i: (0, 0))],
            out_specs=pl.BlockSpec((tb, N2), lambda i: (i, 0)),
        ),
        compiler_params=pltpu.CompilerParams(dimension_semantics=("parallel",)),
    )(x, w1, b1, w2, b2)
    return out[:B]


# ---------------------------------------------------------------------------
# Glue: im2col (5x5, stride 1, pad 2) and 2x2-pool window views
# ---------------------------------------------------------------------------
def im2col(x_nhwc, k=5, pad=2):
    B, H, W, C = x_nhwc.shape
    xp = jnp.pad(x_nhwc, ((0, 0), (pad, pad), (pad, pad), (0, 0)))
    cols = []
    for dh in range(k):
        for dw in range(k):
            cols.append(xp[:, dh:dh + H, dw:dw + W, :])
    patches = jnp.stack(cols, axis=3)                    # (B, H, W, k*k, C)
    return patches.reshape(B, H, W, k * k * C)


def conv_stage_inputs(x_nhwc, k, pad, k_pad):
    """im2col + K-padding + bf16 cast + split into the four 2x2 pool-window views."""
    p = im2col(x_nhwc, k, pad)                           # (B, H, W, K)
    K = p.shape[-1]
    if k_pad > K:
        p = jnp.pad(p, ((0, 0), (0, 0), (0, 0), (0, k_pad - K)))
    p = p.astype(jnp.bfloat16)
    B, H, W, _ = p.shape
    Ho, Wo = H // 2, W // 2

    def view(ro, co):
        return p[:, ro::2, co::2, :].reshape(B * Ho * Wo, k_pad)

    return (view(0, 0), view(0, 1), view(1, 0), view(1, 1)), (Ho, Wo)


# ---------------------------------------------------------------------------
# Parameter packing (one-time, outside the per-call forward)
# ---------------------------------------------------------------------------
def prepare_params(p):
    def conv_mat(w_oihw, k_pad, n_pad):
        # PyTorch (Cout, Cin, KH, KW) -> (KH*KW*Cin, Cout), zero-padded to (k_pad, n_pad)
        Cout, Cin, KH, KW = w_oihw.shape
        m = jnp.transpose(w_oihw, (2, 3, 1, 0)).reshape(KH * KW * Cin, Cout)
        m = jnp.pad(m, ((0, k_pad - m.shape[0]), (0, n_pad - Cout)))
        return m.astype(jnp.bfloat16)

    def pad_bias(b, n_pad):
        return jnp.pad(b, (0, n_pad - b.shape[0])).reshape(1, n_pad).astype(jnp.float32)

    # fc1: fold the NCHW flatten into the weight: rows reordered (c,h,w) -> (h,w,c),
    # channel axis zero-padded 64 -> 128 (matches the padded conv2 output kept in NHWC).
    fc1 = p["fc1_w"].T.reshape(64, 7, 7, 128)            # (C, H, W, N)
    fc1 = jnp.transpose(fc1, (1, 2, 0, 3))               # (H, W, C, N)
    fc1 = jnp.pad(fc1, ((0, 0), (0, 0), (0, 128 - 64), (0, 0))).reshape(7 * 7 * 128, 128)

    fc2 = jnp.pad(p["fc2_w"].T, ((0, 0), (0, 128 - 1)))  # (128, 128), only col 0 real

    return {
        "w1": conv_mat(p["w1"], 128, 128),               # (128, 128) bf16
        "b1": pad_bias(p["b1"], 128),                    # (1, 128) f32
        "w2": conv_mat(p["w2"], 896, 128),               # (896, 128) bf16
        "b2": pad_bias(p["b2"], 128),                    # (1, 128) f32
        "fc1_w": fc1.astype(jnp.bfloat16),               # (6272, 128) bf16
        "fc1_b": p["fc1_b"].reshape(1, 128).astype(jnp.float32),
        "fc2_w": fc2.astype(jnp.bfloat16),               # (128, 128) bf16
        "fc2_b": pad_bias(p["fc2_b"], 128),              # (1, 128) f32
    }


# ---------------------------------------------------------------------------
# GCNNet forward
# ---------------------------------------------------------------------------
def gcn_forward(x_nchw, packed):
    B = x_nchw.shape[0]
    x = jnp.transpose(x_nchw, (0, 2, 3, 1))              # NCHW -> NHWC, (B, 28, 28, 1)

    # conv1: Conv2d(1, 32, 5, 1, 2) + ReLU + MaxPool(2)   (fused in one kernel)
    views, (Ho, Wo) = conv_stage_inputs(x, 5, 2, 128)    # 4 x (B*14*14, 128)
    y = conv_pool(*views, packed["w1"], packed["b1"])    # (B*196, 128) bf16, cols >=32 are 0
    y = y.reshape(B, Ho, Wo, 128)[..., :32]              # drop padded channels -> (B,14,14,32)

    # conv2: Conv2d(32, 64, 5, 1, 2) + ReLU + MaxPool(2)  (fused in one kernel)
    views, (Ho, Wo) = conv_stage_inputs(y, 5, 2, 896)    # 4 x (B*49, 896)
    y = conv_pool(*views, packed["w2"], packed["b2"])    # (B*49, 128) bf16, cols >=64 are 0

    # flatten: padded channels stay (zero rows in fc1_w absorb them); no transpose needed.
    feat = y.reshape(B, Ho * Wo * 128)                   # (B, 6272)

    # out: Linear(3136, 128) + ReLU + Linear(128, 1)      (fused in one kernel)
    o = fc_fused(feat, packed["fc1_w"], packed["fc1_b"],
                 packed["fc2_w"], packed["fc2_b"])       # (B, 128) f32, only col 0 real

    # torch.unsqueeze(..., dim=0)
    return o[:, :1][None, :, :]                          # (1, B, 1)


# ---------------------------------------------------------------------------
# Deterministic parameter init (shapes from GCNNet.__init__, sample_num = 1)
# ---------------------------------------------------------------------------
def init_params(key):
    ks = jax.random.split(key, 8)

    def uni(k, shape, fan_in):
        bound = 1.0 / (fan_in ** 0.5)
        return jax.random.uniform(k, shape, jnp.float32, -bound, bound)

    return {
        "w1": uni(ks[0], (32, 1, 5, 5), 1 * 25),
        "b1": uni(ks[1], (32,), 1 * 25),
        "w2": uni(ks[2], (64, 32, 5, 5), 32 * 25),
        "b2": uni(ks[3], (64,), 32 * 25),
        "fc1_w": uni(ks[4], (128, 64 * 7 * 7), 64 * 7 * 7),
        "fc1_b": uni(ks[5], (128,), 64 * 7 * 7),
        "fc2_w": uni(ks[6], (1, 128), 128),
        "fc2_b": uni(ks[7], (1,), 128),
    }


if __name__ == "__main__":
    key = jax.random.PRNGKey(0)
    pkey, xkey = jax.random.split(key)
    params = init_params(pkey)
    packed = prepare_params(params)

    B = 2  # sample_num = 1 -> in_channels = 1, out_features = 1; input is 28x28
    x = jax.random.normal(xkey, (B, 1, 28, 28), jnp.float32)   # NCHW like PyTorch

    out = jax.jit(gcn_forward)(x, packed)
    out = jax.block_until_ready(out)

    assert out.shape == (1, B, 1), out.shape
    assert out.dtype == jnp.float32
    assert bool(jnp.all(jnp.isfinite(out)))
    print("KERNEL_OK")
</pallas_src>

<mosaic_0001>
module attributes {stable_mosaic.version = 11 : i64} {
  func.func @_conv_pool_kernel(%arg0: i32, %arg1: memref<392x128xbf16, #tpu.memory_space<vmem>>, %arg2: memref<392x128xbf16, #tpu.memory_space<vmem>>, %arg3: memref<392x128xbf16, #tpu.memory_space<vmem>>, %arg4: memref<392x128xbf16, #tpu.memory_space<vmem>>, %arg5: memref<128x128xbf16, #tpu.memory_space<vmem>>, %arg6: memref<1x128xf32, #tpu.memory_space<vmem>>, %arg7: memref<392x128xbf16, #tpu.memory_space<vmem>>) attributes {dimension_semantics = [#tpu.dimension_semantics<parallel>], iteration_bounds = array<i64: 1>, scalar_prefetch = 0 : i64, scratch_operands = 0 : i64, tpu.core_type = #tpu.core_type<tc>, window_params = [{transform_indices = @transform_0, window_bounds = array<i64: 392, 128>}, {transform_indices = @transform_1, window_bounds = array<i64: 392, 128>}, {transform_indices = @transform_2, window_bounds = array<i64: 392, 128>}, {transform_indices = @transform_3, window_bounds = array<i64: 392, 128>}, {pipeline_mode = #tpu.pipeline_mode<synchronous>, transform_indices = @transform_4, window_bounds = array<i64: 128, 128>}, {pipeline_mode = #tpu.pipeline_mode<synchronous>, transform_indices = @transform_5, window_bounds = array<i64: 1, 128>}, {transform_indices = @transform_6, window_bounds = array<i64: 392, 128>}]} {
    %c0 = arith.constant 0 : index
    %c0_0 = arith.constant 0 : index
    %0 = vector.load %arg5[%c0, %c0_0] : memref<128x128xbf16, #tpu.memory_space<vmem>>, vector<128x128xbf16>
    %c0_1 = arith.constant 0 : index
    %c0_2 = arith.constant 0 : index
    %1 = vector.load %arg1[%c0_1, %c0_2] : memref<392x128xbf16, #tpu.memory_space<vmem>>, vector<392x128xbf16>
    %cst = arith.constant dense<0.000000e+00> : vector<392x128xf32>
    %2 = tpu.matmul %1, %0, %cst {dimension_numbers = #tpu.dot_dimension_numbers<[1], [0], [0], [1], [0, 0, 1, 1], [], []>} : vector<392x128xbf16>, vector<128x128xbf16>, vector<392x128xf32> -> vector<392x128xf32>
    %c0_3 = arith.constant 0 : index
    %c0_4 = arith.constant 0 : index
    %3 = vector.load %arg2[%c0_3, %c0_4] : memref<392x128xbf16, #tpu.memory_space<vmem>>, vector<392x128xbf16>
    %cst_5 = arith.constant dense<0.000000e+00> : vector<392x128xf32>
    %4 = tpu.matmul %3, %0, %cst_5 {dimension_numbers = #tpu.dot_dimension_numbers<[1], [0], [0], [1], [0, 0, 1, 1], [], []>} : vector<392x128xbf16>, vector<128x128xbf16>, vector<392x128xf32> -> vector<392x128xf32>
    %5 = arith.maximumf %2, %4 : vector<392x128xf32>
    %c0_6 = arith.constant 0 : index
    %c0_7 = arith.constant 0 : index
    %6 = vector.load %arg3[%c0_6, %c0_7] : memref<392x128xbf16, #tpu.memory_space<vmem>>, vector<392x128xbf16>
    %cst_8 = arith.constant dense<0.000000e+00> : vector<392x128xf32>
    %7 = tpu.matmul %6, %0, %cst_8 {dimension_numbers = #tpu.dot_dimension_numbers<[1], [0], [0], [1], [0, 0, 1, 1], [], []>} : vector<392x128xbf16>, vector<128x128xbf16>, vector<392x128xf32> -> vector<392x128xf32>
    %8 = arith.maximumf %5, %7 : vector<392x128xf32>
    %c0_9 = arith.constant 0 : index
    %c0_10 = arith.constant 0 : index
    %9 = vector.load %arg4[%c0_9, %c0_10] : memref<392x128xbf16, #tpu.memory_space<vmem>>, vector<392x128xbf16>
    %cst_11 = arith.constant dense<0.000000e+00> : vector<392x128xf32>
    %10 = tpu.matmul %9, %0, %cst_11 {dimension_numbers = #tpu.dot_dimension_numbers<[1], [0], [0], [1], [0, 0, 1, 1], [], []>} : vector<392x128xbf16>, vector<128x128xbf16>, vector<392x128xf32> -> vector<392x128xf32>
    %11 = arith.maximumf %8, %10 : vector<392x128xf32>
    %c0_12 = arith.constant 0 : index
    %c0_13 = arith.constant 0 : index
    %12 = vector.load %arg6[%c0_12, %c0_13] : memref<1x128xf32, #tpu.memory_space<vmem>>, vector<1x128xf32>
    %13 = vector.broadcast %12 : vector<1x128xf32> to vector<392x128xf32>
    %14 = arith.addf %11, %13 : vector<392x128xf32>
    %cst_14 = arith.constant 0.000000e+00 : f32
    %15 = vector.broadcast %cst_14 : f32 to vector<392x128xf32>
    %16 = arith.maximumf %14, %15 : vector<392x128xf32>
    %17 = arith.truncf %16 : vector<392x128xf32> to vector<392x128xbf16>
    %c0_15 = arith.constant 0 : index
    %c0_16 = arith.constant 0 : index
    %18 = vector.load %arg7[%c0_15, %c0_16] : memref<392x128xbf16, #tpu.memory_space<vmem>>, vector<392x128xbf16>
    tpu.vector_store %arg7[%c0_15, %c0_16], %17 {strides = array<i32>} : memref<392x128xbf16, #tpu.memory_space<vmem>>, vector<392x128xbf16>,
    return
  }
  func.func @transform_0(%arg0: i32) -> (i32, i32) {
    %c0_i32 = arith.constant 0 : i32
    %c0_i32_0 = arith.constant 0 : i32
    return %arg0, %c0_i32 : i32, i32
  }
  func.func @transform_1(%arg0: i32) -> (i32, i32) {
    %c0_i32 = arith.constant 0 : i32
    %c0_i32_0 = arith.constant 0 : i32
    return %arg0, %c0_i32 : i32, i32
  }
  func.func @transform_2(%arg0: i32) -> (i32, i32) {
    %c0_i32 = arith.constant 0 : i32
    %c0_i32_0 = arith.constant 0 : i32
    return %arg0, %c0_i32 : i32, i32
  }
  func.func @transform_3(%arg0: i32) -> (i32, i32) {
    %c0_i32 = arith.constant 0 : i32
    %c0_i32_0 = arith.constant 0 : i32
    return %arg0, %c0_i32 : i32, i32
  }
  func.func @transform_4(%arg0: i32) -> (i32, i32) {
    %c0_i32 = arith.constant 0 : i32
    %c0_i32_0 = arith.constant 0 : i32
    %c0_i32_1 = arith.constant 0 : i32
    return %c0_i32, %c0_i32_0 : i32, i32
  }
  func.func @transform_5(%arg0: i32) -> (i32, i32) {
    %c0_i32 = arith.constant 0 : i32
    %c0_i32_0 = arith.constant 0 : i32
    %c0_i32_1 = arith.constant 0 : i32
    return %c0_i32, %c0_i32_0 : i32, i32
  }
  func.func @transform_6(%arg0: i32) -> (i32, i32) {
    %c0_i32 = arith.constant 0 : i32
    %c0_i32_0 = arith.constant 0 : i32
    return %arg0, %c0_i32 : i32, i32
  }
}

module attributes {stable_mosaic.version = 11 : i64} {
  func.func @_conv_pool_kernel(%arg0: i32, %arg1: memref<104x896xbf16, #tpu.memory_space<vmem>>, %arg2: memref<104x896xbf16, #tpu.memory_space<vmem>>, %arg3: memref<104x896xbf16, #tpu.memory_space<vmem>>, %arg4: memref<104x896xbf16, #tpu.memory_space<vmem>>, %arg5: memref<896x128xbf16, #tpu.memory_space<vmem>>, %arg6: memref<1x128xf32, #tpu.memory_space<vmem>>, %arg7: memref<104x128xbf16, #tpu.memory_space<vmem>>) attributes {dimension_semantics = [#tpu.dimension_semantics<parallel>], iteration_bounds = array<i64: 1>, scalar_prefetch = 0 : i64, scratch_operands = 0 : i64, tpu.core_type = #tpu.core_type<tc>, window_params = [{transform_indices = @transform_0, window_bounds = array<i64: 104, 896>}, {transform_indices = @transform_1, window_bounds = array<i64: 104, 896>}, {transform_indices = @transform_2, window_bounds = array<i64: 104, 896>}, {transform_indices = @transform_3, window_bounds = array<i64: 104, 896>}, {pipeline_mode = #tpu.pipeline_mode<synchronous>, transform_indices = @transform_4, window_bounds = array<i64: 896, 128>}, {pipeline_mode = #tpu.pipeline_mode<synchronous>, transform_indices = @transform_5, window_bounds = array<i64: 1, 128>}, {transform_indices = @transform_6, window_bounds = array<i64: 104, 128>}]} {
    %c0 = arith.constant 0 : index
    %c0_0 = arith.constant 0 : index
    %0 = vector.load %arg5[%c0, %c0_0] : memref<896x128xbf16, #tpu.memory_space<vmem>>, vector<896x128xbf16>
    %c0_1 = arith.constant 0 : index
    %c0_2 = arith.constant 0 : index
    %1 = vector.load %arg1[%c0_1, %c0_2] : memref<104x896xbf16, #tpu.memory_space<vmem>>, vector<104x896xbf16>
    %cst = arith.constant dense<0.000000e+00> : vector<104x128xf32>
    %2 = tpu.matmul %1, %0, %cst {dimension_numbers = #tpu.dot_dimension_numbers<[1], [0], [0], [1], [0, 0, 1, 1], [], []>} : vector<104x896xbf16>, vector<896x128xbf16>, vector<104x128xf32> -> vector<104x128xf32>
    %c0_3 = arith.constant 0 : index
    %c0_4 = arith.constant 0 : index
    %3 = vector.load %arg2[%c0_3, %c0_4] : memref<104x896xbf16, #tpu.memory_space<vmem>>, vector<104x896xbf16>
    %cst_5 = arith.constant dense<0.000000e+00> : vector<104x128xf32>
    %4 = tpu.matmul %3, %0, %cst_5 {dimension_numbers = #tpu.dot_dimension_numbers<[1], [0], [0], [1], [0, 0, 1, 1], [], []>} : vector<104x896xbf16>, vector<896x128xbf16>, vector<104x128xf32> -> vector<104x128xf32>
    %5 = arith.maximumf %2, %4 : vector<104x128xf32>
    %c0_6 = arith.constant 0 : index
    %c0_7 = arith.constant 0 : index
    %6 = vector.load %arg3[%c0_6, %c0_7] : memref<104x896xbf16, #tpu.memory_space<vmem>>, vector<104x896xbf16>
    %cst_8 = arith.constant dense<0.000000e+00> : vector<104x128xf32>
    %7 = tpu.matmul %6, %0, %cst_8 {dimension_numbers = #tpu.dot_dimension_numbers<[1], [0], [0], [1], [0, 0, 1, 1], [], []>} : vector<104x896xbf16>, vector<896x128xbf16>, vector<104x128xf32> -> vector<104x128xf32>
    %8 = arith.maximumf %5, %7 : vector<104x128xf32>
    %c0_9 = arith.constant 0 : index
    %c0_10 = arith.constant 0 : index
    %9 = vector.load %arg4[%c0_9, %c0_10] : memref<104x896xbf16, #tpu.memory_space<vmem>>, vector<104x896xbf16>
    %cst_11 = arith.constant dense<0.000000e+00> : vector<104x128xf32>
    %10 = tpu.matmul %9, %0, %cst_11 {dimension_numbers = #tpu.dot_dimension_numbers<[1], [0], [0], [1], [0, 0, 1, 1], [], []>} : vector<104x896xbf16>, vector<896x128xbf16>, vector<104x128xf32> -> vector<104x128xf32>
    %11 = arith.maximumf %8, %10 : vector<104x128xf32>
    %c0_12 = arith.constant 0 : index
    %c0_13 = arith.constant 0 : index
    %12 = vector.load %arg6[%c0_12, %c0_13] : memref<1x128xf32, #tpu.memory_space<vmem>>, vector<1x128xf32>
    %13 = vector.broadcast %12 : vector<1x128xf32> to vector<104x128xf32>
    %14 = arith.addf %11, %13 : vector<104x128xf32>
    %cst_14 = arith.constant 0.000000e+00 : f32
    %15 = vector.broadcast %cst_14 : f32 to vector<104x128xf32>
    %16 = arith.maximumf %14, %15 : vector<104x128xf32>
    %17 = arith.truncf %16 : vector<104x128xf32> to vector<104x128xbf16>
    %c0_15 = arith.constant 0 : index
    %c0_16 = arith.constant 0 : index
    %18 = vector.load %arg7[%c0_15, %c0_16] : memref<104x128xbf16, #tpu.memory_space<vmem>>, vector<104x128xbf16>
    tpu.vector_store %arg7[%c0_15, %c0_16], %17 {strides = array<i32>} : memref<104x128xbf16, #tpu.memory_space<vmem>>, vector<104x128xbf16>,
    return
  }
  func.func @transform_0(%arg0: i32) -> (i32, i32) {
    %c0_i32 = arith.constant 0 : i32
    %c0_i32_0 = arith.constant 0 : i32
    return %arg0, %c0_i32 : i32, i32
  }
  func.func @transform_1(%arg0: i32) -> (i32, i32) {
    %c0_i32 = arith.constant 0 : i32
    %c0_i32_0 = arith.constant 0 : i32
    return %arg0, %c0_i32 : i32, i32
  }
  func.func @transform_2(%arg0: i32) -> (i32, i32) {
    %c0_i32 = arith.constant 0 : i32
    %c0_i32_0 = arith.constant 0 : i32
    return %arg0, %c0_i32 : i32, i32
  }
  func.func @transform_3(%arg0: i32) -> (i32, i32) {
    %c0_i32 = arith.constant 0 : i32
    %c0_i32_0 = arith.constant 0 : i32
    return %arg0, %c0_i32 : i32, i32
  }
  func.func @transform_4(%arg0: i32) -> (i32, i32) {
    %c0_i32 = arith.constant 0 : i32
    %c0_i32_0 = arith.constant 0 : i32
    %c0_i32_1 = arith.constant 0 : i32
    return %c0_i32, %c0_i32_0 : i32, i32
  }
  func.func @transform_5(%arg0: i32) -> (i32, i32) {
    %c0_i32 = arith.constant 0 : i32
    %c0_i32_0 = arith.constant 0 : i32
    %c0_i32_1 = arith.constant 0 : i32
    return %c0_i32, %c0_i32_0 : i32, i32
  }
  func.func @transform_6(%arg0: i32) -> (i32, i32) {
    %c0_i32 = arith.constant 0 : i32
    %c0_i32_0 = arith.constant 0 : i32
    return %arg0, %c0_i32 : i32, i32
  }
}

module attributes {stable_mosaic.version = 11 : i64} {
  func.func @_fc_kernel(%arg0: i32, %arg1: memref<8x6272xbf16, #tpu.memory_space<vmem>>, %arg2: memref<6272x128xbf16, #tpu.memory_space<vmem>>, %arg3: memref<1x128xf32, #tpu.memory_space<vmem>>, %arg4: memref<128x128xbf16, #tpu.memory_space<vmem>>, %arg5: memref<1x128xf32, #tpu.memory_space<vmem>>, %arg6: memref<8x128xf32, #tpu.memory_space<vmem>>) attributes {dimension_semantics = [#tpu.dimension_semantics<parallel>], iteration_bounds = array<i64: 1>, scalar_prefetch = 0 : i64, scratch_operands = 0 : i64, tpu.core_type = #tpu.core_type<tc>, window_params = [{transform_indices = @transform_0, window_bounds = array<i64: 8, 6272>}, {pipeline_mode = #tpu.pipeline_mode<synchronous>, transform_indices = @transform_1, window_bounds = array<i64: 6272, 128>}, {pipeline_mode = #tpu.pipeline_mode<synchronous>, transform_indices = @transform_2, window_bounds = array<i64: 1, 128>}, {pipeline_mode = #tpu.pipeline_mode<synchronous>, transform_indices = @transform_3, window_bounds = array<i64: 128, 128>}, {pipeline_mode = #tpu.pipeline_mode<synchronous>, transform_indices = @transform_4, window_bounds = array<i64: 1, 128>}, {transform_indices = @transform_5, window_bounds = array<i64: 8, 128>}]} {
    %c0 = arith.constant 0 : index
    %c0_0 = arith.constant 0 : index
    %0 = vector.load %arg1[%c0, %c0_0] : memref<8x6272xbf16, #tpu.memory_space<vmem>>, vector<8x6272xbf16>
    %c0_1 = arith.constant 0 : index
    %c0_2 = arith.constant 0 : index
    %1 = vector.load %arg2[%c0_1, %c0_2] : memref<6272x128xbf16, #tpu.memory_space<vmem>>, vector<6272x128xbf16>
    %cst = arith.constant dense<0.000000e+00> : vector<8x128xf32>
    %2 = tpu.matmul %0, %1, %cst {dimension_numbers = #tpu.dot_dimension_numbers<[1], [0], [0], [1], [0, 0, 1, 1], [], []>} : vector<8x6272xbf16>, vector<6272x128xbf16>, vector<8x128xf32> -> vector<8x128xf32>
    %c0_3 = arith.constant 0 : index
    %c0_4 = arith.constant 0 : index
    %3 = vector.load %arg3[%c0_3, %c0_4] : memref<1x128xf32, #tpu.memory_space<vmem>>, vector<1x128xf32>
    %4 = vector.broadcast %3 : vector<1x128xf32> to vector<8x128xf32>
    %5 = arith.addf %2, %4 : vector<8x128xf32>
    %cst_5 = arith.constant 0.000000e+00 : f32
    %6 = vector.broadcast %cst_5 : f32 to vector<8x128xf32>
    %7 = arith.maximumf %5, %6 : vector<8x128xf32>
    %8 = arith.truncf %7 : vector<8x128xf32> to vector<8x128xbf16>
    %c0_6 = arith.constant 0 : index
    %c0_7 = arith.constant 0 : index
    %9 = vector.load %arg4[%c0_6, %c0_7] : memref<128x128xbf16, #tpu.memory_space<vmem>>, vector<128x128xbf16>
    %cst_8 = arith.constant dense<0.000000e+00> : vector<8x128xf32>
    %10 = tpu.matmul %8, %9, %cst_8 {dimension_numbers = #tpu.dot_dimension_numbers<[1], [0], [0], [1], [0, 0, 1, 1], [], []>} : vector<8x128xbf16>, vector<128x128xbf16>, vector<8x128xf32> -> vector<8x128xf32>
    %c0_9 = arith.constant 0 : index
    %c0_10 = arith.constant 0 : index
    %11 = vector.load %arg5[%c0_9, %c0_10] : memref<1x128xf32, #tpu.memory_space<vmem>>, vector<1x128xf32>
    %12 = vector.broadcast %11 : vector<1x128xf32> to vector<8x128xf32>
    %13 = arith.addf %10, %12 : vector<8x128xf32>
    %c0_11 = arith.constant 0 : index
    %c0_12 = arith.constant 0 : index
    %14 = vector.load %arg6[%c0_11, %c0_12] : memref<8x128xf32, #tpu.memory_space<vmem>>, vector<8x128xf32>
    tpu.vector_store %arg6[%c0_11, %c0_12], %13 {strides = array<i32>} : memref<8x128xf32, #tpu.memory_space<vmem>>, vector<8x128xf32>,
    return
  }
  func.func @transform_0(%arg0: i32) -> (i32, i32) {
    %c0_i32 = arith.constant 0 : i32
    %c0_i32_0 = arith.constant 0 : i32
    return %arg0, %c0_i32 : i32, i32
  }
  func.func @transform_1(%arg0: i32) -> (i32, i32) {
    %c0_i32 = arith.constant 0 : i32
    %c0_i32_0 = arith.constant 0 : i32
    %c0_i32_1 = arith.constant 0 : i32
    return %c0_i32, %c0_i32_0 : i32, i32
  }
  func.func @transform_2(%arg0: i32) -> (i32, i32) {
    %c0_i32 = arith.constant 0 : i32
    %c0_i32_0 = arith.constant 0 : i32
    %c0_i32_1 = arith.constant 0 : i32
    return %c0_i32, %c0_i32_0 : i32, i32
  }
  func.func @transform_3(%arg0: i32) -> (i32, i32) {
    %c0_i32 = arith.constant 0 : i32
    %c0_i32_0 = arith.constant 0 : i32
    %c0_i32_1 = arith.constant 0 : i32
    return %c0_i32, %c0_i32_0 : i32, i32
  }
  func.func @transform_4(%arg0: i32) -> (i32, i32) {
    %c0_i32 = arith.constant 0 : i32
    %c0_i32_0 = arith.constant 0 : i32
    %c0_i32_1 = arith.constant 0 : i32
    return %c0_i32, %c0_i32_0 : i32, i32
  }
  func.func @transform_5(%arg0: i32) -> (i32, i32) {
    %c0_i32 = arith.constant 0 : i32
    %c0_i32_0 = arith.constant 0 : i32
    return %arg0, %c0_i32 : i32, i32
  }
}

</mosaic_0001>

<llo_original>
// kernel: gcn_forward.3
$region0: #{gcn_forward.3}
  #allocation0 [shape = 'u32[]', space=smem, size = 0x4, offset = 0x4, fixed_abs, tag = 'smem constant byte address 0x4 - core index']
  #allocation1 [shape = 'u32[144,128]{1,0:T(1,128)}', space=vmem, size = 0x12000, scoped, tag = 'internal scratch']
  %s0 = inlined_call_operand.vmem [shape: bf16[392,128], index: 0, kind: input, shape index: {}]
  %s1 = inlined_call_operand.vmem [shape: bf16[392,128], index: 1, kind: input, shape index: {}]
  %s2 = inlined_call_operand.vmem [shape: bf16[392,128], index: 2, kind: input, shape index: {}]
  %s3 = inlined_call_operand.vmem [shape: bf16[392,128], index: 3, kind: input, shape index: {}]
  %s4 = inlined_call_operand.vmem [shape: bf16[128,128], index: 4, kind: input, shape index: {}]
  %s5 = inlined_call_operand.vmem [shape: f32[1,128], index: 5, kind: input, shape index: {}]
  %s6 = inlined_call_operand.vmem [shape: bf16[392,128], index: 6, kind: output, shape index: {}]
  %s7 = sld [smem:[#allocation0]]
  $region34: #{gcn_forward.3} parent=0
    _
  %s9 = ssub.s32 1, %s7
  %s10 = scalar_select 0, %s9, %s7
  // Predicated region
  $region2: #{gcn_forward.3} parent=0 // pred_check
    _
  $region3: #{gcn_forward.3} parent=0 // pred_check_branch
    %12 = sbr.rel (0) target = $region5
  $region4: #{gcn_forward.3} parent=0 // pred_region
    _
  $region5: #{gcn_forward.3} parent=0 // pred_fallthru
    _
  // Predicated region
  $region6: #{gcn_forward.3} parent=0 // pred_check
    _
  $region7: #{gcn_forward.3} parent=0 // pred_check_branch
    %14 = sbr.rel (0) target = $region9
  $region8: #{gcn_forward.3} parent=0 // pred_region
    _
  $region9: #{gcn_forward.3} parent=0 // pred_fallthru
    _
  // Predicated region
  $region10: #{gcn_forward.3} parent=0 // pred_check
    _
  $region11: #{gcn_forward.3} parent=0 // pred_check_branch
    %16 = sbr.rel (0) target = $region13
  $region12: #{gcn_forward.3} parent=0 // pred_region
    _
  $region13: #{gcn_forward.3} parent=0 // pred_fallthru
    _
  // Predicated region
  $region14: #{gcn_forward.3} parent=0 // pred_check
    _
  $region15: #{gcn_forward.3} parent=0 // pred_check_branch
    %18 = sbr.rel (0) target = $region17
  $region16: #{gcn_forward.3} parent=0 // pred_region
    _
  $region17: #{gcn_forward.3} parent=0 // pred_fallthru
    _
  // Predicated region
  $region18: #{gcn_forward.3} parent=0 // pred_check
    _
  $region19: #{gcn_forward.3} parent=0 // pred_check_branch
    %20 = sbr.rel (0) target = $region21
  $region20: #{gcn_forward.3} parent=0 // pred_region
    _
  $region21: #{gcn_forward.3} parent=0 // pred_fallthru
    _
  // Predicated region
  $region22: #{gcn_forward.3} parent=0 // pred_check
    _
  $region23: #{gcn_forward.3} parent=0 // pred_check_branch
    %22 = sbr.rel (0) target = $region25
  $region24: #{gcn_forward.3} parent=0 // pred_region
    _
  $region25: #{gcn_forward.3} parent=0 // pred_fallthru
    _
  %v24 = vld [vmem:[%s4] sm:$0xf]
  %v25 = vld [vmem:[%s4 + $0x4] sm:$0xf]
  %v26 = vld [vmem:[%s4 + $0x8] sm:$0xf]
  %v27 = vld [vmem:[%s4 + $0xc] sm:$0xf]
  %v28 = vld [vmem:[%s4 + $0x10] sm:$0xf]
  %v29 = vld [vmem:[%s4 + $0x14] sm:$0xf]
  %v30 = vld [vmem:[%s4 + $0x18] sm:$0xf]
  %v31 = vld [vmem:[%s4 + $0x1c] sm:$0xf]
  %v32 = vld [vmem:[%s4 + $0x20] sm:$0xf]
  %v33 = vld [vmem:[%s4 + $0x24] sm:$0xf]
  %v34 = vld [vmem:[%s4 + $0x28] sm:$0xf]
  %v35 = vld [vmem:[%s4 + $0x2c] sm:$0xf]
  %v36 = vld [vmem:[%s4 + $0x30] sm:$0xf]
  %v37 = vld [vmem:[%s4 + $0x34] sm:$0xf]
  %v38 = vld [vmem:[%s4 + $0x38] sm:$0xf]
  %v39 = vld [vmem:[%s4 + $0x3c] sm:$0xf]
  %v40 = vld [vmem:[%s0] sm:$0xf]
  %v41 = vld [vmem:[%s0 + $0x4] sm:$0xf]
  %v42 = vld [vmem:[%s0 + $0x8] sm:$0xf]
  %v43 = vld [vmem:[%s0 + $0xc] sm:$0xf]
  %v44 = vld [vmem:[%s0 + $0x10] sm:$0xf]
  %v45 = vld [vmem:[%s0 + $0x14] sm:$0xf]
  %v46 = vld [vmem:[%s0 + $0x18] sm:$0xf]
  %v47 = vld [vmem:[%s0 + $0x1c] sm:$0xf]
  %v48 = vld [vmem:[%s0 + $0x20] sm:$0xf]
  %v49 = vld [vmem:[%s0 + $0x24] sm:$0xf]
  %v50 = vld [vmem:[%s0 + $0x28] sm:$0xf]
  %v51 = vld [vmem:[%s0 + $0x2c] sm:$0xf]
  %v52 = vld [vmem:[%s0 + $0x30] sm:$0xf]
  %v53 = vld [vmem:[%s0 + $0x34] sm:$0xf]
  %v54 = vld [vmem:[%s0 + $0x38] sm:$0xf]
  %v55 = vld [vmem:[%s0 + $0x3c] sm:$0xf]
  %v56 = vld [vmem:[%s0 + $0x40] sm:$0xf]
  %v57 = vld [vmem:[%s0 + $0x44] sm:$0xf]
  %v58 = vld [vmem:[%s0 + $0x48] sm:$0xf]
  %v59 = vld [vmem:[%s0 + $0x4c] sm:$0xf]
  %v60 = vld [vmem:[%s0 + $0x50] sm:$0xf]
  %v61 = vld [vmem:[%s0 + $0x54] sm:$0xf]
  %v62 = vld [vmem:[%s0 + $0x58] sm:$0xf]
  %v63 = vld [vmem:[%s0 + $0x5c] sm:$0xf]
  %v64 = vld [vmem:[%s0 + $0x60] sm:$0xf]
  %v65 = vld [vmem:[%s0 + $0x64] sm:$0xf]
  %v66 = vld [vmem:[%s0 + $0x68] sm:$0xf]
  %v67 = vld [vmem:[%s0 + $0x6c] sm:$0xf]
  %v68 = vld [vmem:[%s0 + $0x70] sm:$0xf]
  %v69 = vld [vmem:[%s0 + $0x74] sm:$0xf]
  %v70 = vld [vmem:[%s0 + $0x78] sm:$0xf]
  %v71 = vld [vmem:[%s0 + $0x7c] sm:$0xf]
  %v72 = vld [vmem:[%s0 + $0x80] sm:$0xf]
  %v73 = vld [vmem:[%s0 + $0x84] sm:$0xf]
  %v74 = vld [vmem:[%s0 + $0x88] sm:$0xf]
  %v75 = vld [vmem:[%s0 + $0x8c] sm:$0xf]
  %v76 = vld [vmem:[%s0 + $0x90] sm:$0xf]
  %v77 = vld [vmem:[%s0 + $0x94] sm:$0xf]
  %v78 = vld [vmem:[%s0 + $0x98] sm:$0xf]
  %v79 = vld [vmem:[%s0 + $0x9c] sm:$0xf]
  %v80 = vld [vmem:[%s0 + $0xa0] sm:$0xf]
  %v81 = vld [vmem:[%s0 + $0xa4] sm:$0xf]
  %v82 = vld [vmem:[%s0 + $0xa8] sm:$0xf]
  %v83 = vld [vmem:[%s0 + $0xac] sm:$0xf]
  %v84 = vld [vmem:[%s0 + $0xb0] sm:$0xf]
  %v85 = vld [vmem:[%s0 + $0xb4] sm:$0xf]
  %v86 = vld [vmem:[%s0 + $0xb8] sm:$0xf]
  %v87 = vld [vmem:[%s0 + $0xbc] sm:$0xf]
  %v88 = vld [vmem:[%s0 + $0xc0] sm:$0xf]
  %v138 = vunpack.c.l.b16 %v40
  %v139 = vunpack.c.l.b16 %v41
  %v140 = vunpack.c.l.b16 %v42
  %v141 = vunpack.c.l.b16 %v43
  %v142 = vunpack.c.l.b16 %v44
  %v143 = vunpack.c.l.b16 %v45
  %v144 = vunpack.c.l.b16 %v46
  %v145 = vunpack.c.l.b16 %v47
  %v146 = vunpack.c.l.b16 %v48
  %v147 = vunpack.c.l.b16 %v49
  %v148 = vunpack.c.l.b16 %v50
  %v149 = vunpack.c.l.b16 %v51
  %v150 = vunpack.c.l.b16 %v52
  %v151 = vunpack.c.l.b16 %v53
  %v152 = vunpack.c.l.b16 %v54
  %v153 = vunpack.c.l.b16 %v55
  %v154 = vunpack.c.l.b16 %v56
  %v155 = vunpack.c.l.b16 %v57
  %v156 = vunpack.c.l.b16 %v58
  %v157 = vunpack.c.l.b16 %v59
  %v158 = vunpack.c.l.b16 %v60
  %v159 = vunpack.c.l.b16 %v61
  %v160 = vunpack.c.l.b16 %v62
  %v161 = vunpack.c.l.b16 %v63
  %v162 = vunpack.c.l.b16 %v64
  %v163 = vunpack.c.l.b16 %v65
  %v164 = vunpack.c.l.b16 %v66
  %v165 = vunpack.c.l.b16 %v67
  %v166 = vunpack.c.l.b16 %v68
  %v167 = vunpack.c.l.b16 %v69
  %v168 = vunpack.c.l.b16 %v70
  %v169 = vunpack.c.l.b16 %v71
  %v170 = vunpack.c.l.b16 %v72
  %v171 = vunpack.c.l.b16 %v73
  %v172 = vunpack.c.l.b16 %v74
  %v173 = vunpack.c.l.b16 %v75
  %v174 = vunpack.c.l.b16 %v76
  %v175 = vunpack.c.l.b16 %v77
  %v176 = vunpack.c.l.b16 %v78
  %v177 = vunpack.c.l.b16 %v79
  %v178 = vunpack.c.l.b16 %v80
  %v179 = vunpack.c.l.b16 %v81
  %v180 = vunpack.c.l.b16 %v82
  %v181 = vunpack.c.l.b16 %v83
  %v182 = vunpack.c.l.b16 %v84
  %v183 = vunpack.c.l.b16 %v85
  %v184 = vunpack.c.l.b16 %v86
  %v185 = vunpack.c.l.b16 %v87
  %v186 = vunpack.c.l.b16 %v88
  %v187 = vpack.c.b16 %v139, %v138
  %v188 = vpack.c.b16 %v141, %v140
  %v189 = vpack.c.b16 %v143, %v142
  %v190 = vpack.c.b16 %v145, %v144
  %v191 = vpack.c.b16 %v147, %v146
  %v192 = vpack.c.b16 %v149, %v148
  %v193 = vpack.c.b16 %v151, %v150
  %v194 = vpack.c.b16 %v153, %v152
  %v195 = vpack.c.b16 %v155, %v154
  %v196 = vpack.c.b16 %v157, %v156
  %v197 = vpack.c.b16 %v159, %v158
  %v198 = vpack.c.b16 %v161, %v160
  %v199 = vpack.c.b16 %v163, %v162
  %v200 = vpack.c.b16 %v165, %v164
  %v201 = vpack.c.b16 %v167, %v166
  %v202 = vpack.c.b16 %v169, %v168
  %v203 = vpack.c.b16 %v171, %v170
  %v204 = vpack.c.b16 %v173, %v172
  %v205 = vpack.c.b16 %v175, %v174
  %v206 = vpack.c.b16 %v177, %v176
  %v207 = vpack.c.b16 %v179, %v178
  %v208 = vpack.c.b16 %v181, %v180
  %v209 = vpack.c.b16 %v183, %v182
  %v210 = vpack.c.b16 %v185, %v184
  %v211 = vpack.c.b16 %v186, %v186
  %v253 = vunpack.c.l.b16 %v24
  %v254 = vunpack.c.l.b16 %v25
  %v255 = vunpack.c.l.b16 %v26
  %v256 = vunpack.c.l.b16 %v27
  %v257 = vunpack.c.l.b16 %v28
  %v258 = vunpack.c.l.b16 %v29
  %v259 = vunpack.c.l.b16 %v30
  %v260 = vunpack.c.l.b16 %v31
  %v261 = vunpack.c.l.b16 %v32
  %v262 = vunpack.c.l.b16 %v33
  %v263 = vunpack.c.l.b16 %v34
  %v264 = vunpack.c.l.b16 %v35
  %v265 = vunpack.c.l.b16 %v36
  %v266 = vunpack.c.l.b16 %v37
  %v267 = vunpack.c.l.b16 %v38
  %v268 = vunpack.c.l.b16 %v39
  %v269 = vpack.c.b16 %v254, %v253
  %v270 = vpack.c.b16 %v256, %v255
  %v271 = vpack.c.b16 %v258, %v257
  %v272 = vpack.c.b16 %v260, %v259
  %v273 = vpack.c.b16 %v262, %v261
  %v274 = vpack.c.b16 %v264, %v263
  %v275 = vpack.c.b16 %v266, %v265
  %v276 = vpack.c.b16 %v268, %v267
  %285 = vmatprep.subr.bf16.mxu0 0
  %286 = vmatpush1.bf16.msra.mxu0 %v276
  %287 = vmatprep.subr.bf16.mxu0 0
  %288 = vmatpush1.bf16.msra.mxu0 %v275
  %289 = vmatprep.subr.bf16.mxu0 0
  %290 = vmatpush1.bf16.msra.mxu0 %v274
  %291 = vmatprep.subr.bf16.mxu0 0
  %292 = vmatpush1.bf16.msra.mxu0 %v273
  %293 = vmatprep.subr.bf16.mxu0 0
  %294 = vmatpush1.bf16.msra.mxu0 %v272
  %295 = vmatprep.subr.bf16.mxu0 0
  %296 = vmatpush1.bf16.msra.mxu0 %v271
  %297 = vmatprep.subr.bf16.mxu0 0
  %298 = vmatpush1.bf16.msra.mxu0 %v270
  %299 = vmatprep.subr.bf16.mxu0 0
  %300 = vmatpush1.bf16.msra.mxu0 %v269
  %301 = vmatprep.subr.bf16.mxu0 0
  %302 = vmatpush2.bf16.msra.mxu0 0
  %303 = vmatprep.subr.bf16.mxu0 0
  %304 = vmatpush2.bf16.msra.mxu0 0
  %305 = vmatprep.subr.bf16.mxu0 0
  %306 = vmatpush2.bf16.msra.mxu0 0
  %307 = vmatprep.subr.bf16.mxu0 0
  %308 = vmatpush2.bf16.msra.mxu0 0
  %309 = vmatprep.subr.bf16.mxu0 0
  %310 = vmatpush2.bf16.msra.mxu0 0
  %311 = vmatprep.subr.bf16.mxu0 0
  %312 = vmatpush2.bf16.msra.mxu0 0
  %313 = vmatprep.subr.bf16.mxu0 0
  %314 = vmatpush2.bf16.msra.mxu0 0
  %315 = vmatprep.subr.bf16.mxu0 0
  %316 = vmatpush2.bf16.msra.mxu0 0
  %317 = vmatprep.mubr.bf16.mxu0 0
  %318 = vmatmul.mubr.bf16.gmra.mxu0 %v187
  %v319 = vpop.f32.mrf.mxu0
  %v320 = vadd.f32 0.0, %v319
  %v321 = vpop.f32.mrf.mxu0
  %v322 = vpop.f32.mrf.mxu0
  %v323 = vadd.f32 0.0, %v322
  %v324 = vpop.f32.mrf.mxu0
  %325 = vmatprep.mubr.bf16.mxu0 0
  %326 = vmatmul.mubr.bf16.gmra.mxu0 %v188
  %v327 = vpop.f32.mrf.mxu0
  %v328 = vadd.f32 0.0, %v327
  %v329 = vpop.f32.mrf.mxu0
  %v330 = vpop.f32.mrf.mxu0
  %v331 = vadd.f32 0.0, %v330
  %v332 = vpop.f32.mrf.mxu0
  %333 = vmatprep.mubr.bf16.mxu0 0
  %334 = vmatmul.mubr.bf16.gmra.mxu0 %v189
  %v335 = vpop.f32.mrf.mxu0
  %v336 = vadd.f32 0.0, %v335
  %v337 = vpop.f32.mrf.mxu0
  %v338 = vpop.f32.mrf.mxu0
  %v339 = vadd.f32 0.0, %v338
  %v340 = vpop.f32.mrf.mxu0
  %341 = vmatprep.mubr.bf16.mxu0 0
  %342 = vmatmul.mubr.bf16.gmra.mxu0 %v190
  %v343 = vpop.f32.mrf.mxu0
  %v344 = vadd.f32 0.0, %v343
  %v345 = vpop.f32.mrf.mxu0
  %v346 = vpop.f32.mrf.mxu0
  %v347 = vadd.f32 0.0, %v346
  %v348 = vpop.f32.mrf.mxu0
  %349 = vmatprep.mubr.bf16.mxu0 0
  %350 = vmatmul.mubr.bf16.gmra.mxu0 %v191
  %v351 = vpop.f32.mrf.mxu0
  %v352 = vadd.f32 0.0, %v351
  %v353 = vpop.f32.mrf.mxu0
  %v354 = vpop.f32.mrf.mxu0
  %v355 = vadd.f32 0.0, %v354
  %v356 = vpop.f32.mrf.mxu0
  %357 = vmatprep.mubr.bf16.mxu0 0
  %358 = vmatmul.mubr.bf16.gmra.mxu0 %v192
  %v359 = vpop.f32.mrf.mxu0
  %v360 = vadd.f32 0.0, %v359
  %v361 = vpop.f32.mrf.mxu0
  %v362 = vpop.f32.mrf.mxu0
  %v363 = vadd.f32 0.0, %v362
  %v364 = vpop.f32.mrf.mxu0
  %365 = vmatprep.mubr.bf16.mxu0 0
  %366 = vmatmul.mubr.bf16.gmra.mxu0 %v193
  %v367 = vpop.f32.mrf.mxu0
  %v368 = vadd.f32 0.0, %v367
  %v369 = vpop.f32.mrf.mxu0
  %v370 = vpop.f32.mrf.mxu0
  %v371 = vadd.f32 0.0, %v370
  %v372 = vpop.f32.mrf.mxu0
  %373 = vmatprep.mubr.bf16.mxu0 0
  %374 = vmatmul.mubr.bf16.gmra.mxu0 %v194
  %v375 = vpop.f32.mrf.mxu0
  %v376 = vadd.f32 0.0, %v375
  %v377 = vpop.f32.mrf.mxu0
  %v378 = vpop.f32.mrf.mxu0
  %v379 = vadd.f32 0.0, %v378
  %v380 = vpop.f32.mrf.mxu0
  %381 = vmatprep.mubr.bf16.mxu0 0
  %382 = vmatmul.mubr.bf16.gmra.mxu0 %v195
  %v383 = vpop.f32.mrf.mxu0
  %v384 = vadd.f32 0.0, %v383
  %v385 = vpop.f32.mrf.mxu0
  %v386 = vpop.f32.mrf.mxu0
  %v387 = vadd.f32 0.0, %v386
  %v388 = vpop.f32.mrf.mxu0
  %389 = vmatprep.mubr.bf16.mxu0 0
  %390 = vmatmul.mubr.bf16.gmra.mxu0 %v196
  %v391 = vpop.f32.mrf.mxu0
  %v392 = vadd.f32 0.0, %v391
  %v393 = vpop.f32.mrf.mxu0
  %v394 = vpop.f32.mrf.mxu0
  %v395 = vadd.f32 0.0, %v394
  %v396 = vpop.f32.mrf.mxu0
  %397 = vmatprep.mubr.bf16.mxu0 0
  %398 = vmatmul.mubr.bf16.gmra.mxu0 %v197
  %v399 = vpop.f32.mrf.mxu0
  %v400 = vadd.f32 0.0, %v399
  %v401 = vpop.f32.mrf.mxu0
  %v402 = vpop.f32.mrf.mxu0
  %v403 = vadd.f32 0.0, %v402
  %v404 = vpop.f32.mrf.mxu0
  %405 = vmatprep.mubr.bf16.mxu0 0
  %406 = vmatmul.mubr.bf16.gmra.mxu0 %v198
  %v407 = vpop.f32.mrf.mxu0
  %v408 = vadd.f32 0.0, %v407
  %v409 = vpop.f32.mrf.mxu0
  %v410 = vpop.f32.mrf.mxu0
  %v411 = vadd.f32 0.0, %v410
  %v412 = vpop.f32.mrf.mxu0
  %413 = vmatprep.mubr.bf16.mxu0 0
  %414 = vmatmul.mubr.bf16.gmra.mxu0 %v199
  %v415 = vpop.f32.mrf.mxu0
  %v416 = vadd.f32 0.0, %v415
  %v417 = vpop.f32.mrf.mxu0
  %v418 = vpop.f32.mrf.mxu0
  %v419 = vadd.f32 0.0, %v418
  %v420 = vpop.f32.mrf.mxu0
  %421 = vmatprep.mubr.bf16.mxu0 0
  %422 = vmatmul.mubr.bf16.gmra.mxu0 %v200
  %v423 = vpop.f32.mrf.mxu0
  %v424 = vadd.f32 0.0, %v423
  %v425 = vpop.f32.mrf.mxu0
  %v426 = vpop.f32.mrf.mxu0
  %v427 = vadd.f32 0.0, %v426
  %v428 = vpop.f32.mrf.mxu0
  %429 = vmatprep.mubr.bf16.mxu0 0
  %430 = vmatmul.mubr.bf16.gmra.mxu0 %v201
  %v431 = vpop.f32.mrf.mxu0
  %v432 = vadd.f32 0.0, %v431
  %v433 = vpop.f32.mrf.mxu0
  %v434 = vpop.f32.mrf.mxu0
  %v435 = vadd.f32 0.0, %v434
  %v436 = vpop.f32.mrf.mxu0
  %437 = vmatprep.mubr.bf16.mxu0 0
  %438 = vmatmul.mubr.bf16.gmra.mxu0 %v202
  %v439 = vpop.f32.mrf.mxu0
  %v440 = vadd.f32 0.0, %v439
  %v441 = vpop.f32.mrf.mxu0
  %v442 = vpop.f32.mrf.mxu0
  %v443 = vadd.f32 0.0, %v442
  %v444 = vpop.f32.mrf.mxu0
  %445 = vmatprep.mubr.bf16.mxu0 0
  %446 = vmatmul.mubr.bf16.gmra.mxu0 %v203
  %v447 = vpop.f32.mrf.mxu0
  %v448 = vadd.f32 0.0, %v447
  %v449 = vpop.f32.mrf.mxu0
  %v450 = vpop.f32.mrf.mxu0
  %v451 = vadd.f32 0.0, %v450
  %v452 = vpop.f32.mrf.mxu0
  %453 = vmatprep.mubr.bf16.mxu0 0
  %454 = vmatmul.mubr.bf16.gmra.mxu0 %v204
  %v455 = vpop.f32.mrf.mxu0
  %v456 = vadd.f32 0.0, %v455
  %v457 = vpop.f32.mrf.mxu0
  %v458 = vpop.f32.mrf.mxu0
  %v459 = vadd.f32 0.0, %v458
  %v460 = vpop.f32.mrf.mxu0
  %461 = vmatprep.mubr.bf16.mxu0 0
  %462 = vmatmul.mubr.bf16.gmra.mxu0 %v205
  %v463 = vpop.f32.mrf.mxu0
  %v464 = vadd.f32 0.0, %v463
  %v465 = vpop.f32.mrf.mxu0
  %v466 = vpop.f32.mrf.mxu0
  %v467 = vadd.f32 0.0, %v466
  %v468 = vpop.f32.mrf.mxu0
  %469 = vmatprep.mubr.bf16.mxu0 0
  %470 = vmatmul.mubr.bf16.gmra.mxu0 %v206
  %v471 = vpop.f32.mrf.mxu0
  %v472 = vadd.f32 0.0, %v471
  %v473 = vpop.f32.mrf.mxu0
  %v474 = vpop.f32.mrf.mxu0
  %v475 = vadd.f32 0.0, %v474
  %v476 = vpop.f32.mrf.mxu0
  %477 = vmatprep.mubr.bf16.mxu0 0
  %478 = vmatmul.mubr.bf16.gmra.mxu0 %v207
  %v479 = vpop.f32.mrf.mxu0
  %v480 = vadd.f32 0.0, %v479
  %v481 = vpop.f32.mrf.mxu0
  %v482 = vpop.f32.mrf.mxu0
  %v483 = vadd.f32 0.0, %v482
  %v484 = vpop.f32.mrf.mxu0
  %485 = vmatprep.mubr.bf16.mxu0 0
  %486 = vmatmul.mubr.bf16.gmra.mxu0 %v208
  %v487 = vpop.f32.mrf.mxu0
  %v488 = vadd.f32 0.0, %v487
  %v489 = vpop.f32.mrf.mxu0
  %v490 = vpop.f32.mrf.mxu0
  %v491 = vadd.f32 0.0, %v490
  %v492 = vpop.f32.mrf.mxu0
  %493 = vmatprep.mubr.bf16.mxu0 0
  %494 = vmatmul.mubr.bf16.gmra.mxu0 %v209
  %v495 = vpop.f32.mrf.mxu0
  %v496 = vadd.f32 0.0, %v495
  %v497 = vpop.f32.mrf.mxu0
  %v498 = vpop.f32.mrf.mxu0
  %v499 = vadd.f32 0.0, %v498
  %v500 = vpop.f32.mrf.mxu0
  %501 = vmatprep.mubr.bf16.mxu0 0
  %502 = vmatmul.mubr.bf16.gmra.mxu0 %v210
  %v503 = vpop.f32.mrf.mxu0
  %v504 = vadd.f32 0.0, %v503
  %v505 = vpop.f32.mrf.mxu0
  %v506 = vpop.f32.mrf.mxu0
  %v507 = vadd.f32 0.0, %v506
  %v508 = vpop.f32.mrf.mxu0
  %509 = vmatprep.mubr.bf16.mxu0 0
  %510 = vmatmul.mubr.bf16.gmra.mxu0 %v211
  %v511 = vpop.f32.mrf.mxu0
  %v512 = vadd.f32 0.0, %v511
  %v513 = vpop.f32.mrf.mxu0
  %v514 = vpop.f32.mrf.mxu0
  %v515 = vpop.f32.mrf.mxu0
  %516 = vdwg.mxu0
  %v517 = vld [vmem:[%s1] sm:$0xf]
  %v518 = vld [vmem:[%s1 + $0x4] sm:$0xf]
  %v519 = vld [vmem:[%s1 + $0x8] sm:$0xf]
  %v520 = vld [vmem:[%s1 + $0xc] sm:$0xf]
  %v521 = vld [vmem:[%s1 + $0x10] sm:$0xf]
  %v522 = vld [vmem:[%s1 + $0x14] sm:$0xf]
  %v523 = vld [vmem:[%s1 + $0x18] sm:$0xf]
  %v524 = vld [vmem:[%s1 + $0x1c] sm:$0xf]
  %v525 = vld [vmem:[%s1 + $0x20] sm:$0xf]
  %v526 = vld [vmem:[%s1 + $0x24] sm:$0xf]
  %v527 = vld [vmem:[%s1 + $0x28] sm:$0xf]
  %v528 = vld [vmem:[%s1 + $0x2c] sm:$0xf]
  %v529 = vld [vmem:[%s1 + $0x30] sm:$0xf]
  %v530 = vld [vmem:[%s1 + $0x34] sm:$0xf]
  %v531 = vld [vmem:[%s1 + $0x38] sm:$0xf]
  %v532 = vld [vmem:[%s1 + $0x3c] sm:$0xf]
  %v533 = vld [vmem:[%s1 + $0x40] sm:$0xf]
  %v534 = vld [vmem:[%s1 + $0x44] sm:$0xf]
  %v535 = vld [vmem:[%s1 + $0x48] sm:$0xf]
  %v536 = vld [vmem:[%s1 + $0x4c] sm:$0xf]
  %v537 = vld [vmem:[%s1 + $0x50] sm:$0xf]
  %v538 = vld [vmem:[%s1 + $0x54] sm:$0xf]
  %v539 = vld [vmem:[%s1 + $0x58] sm:$0xf]
  %v540 = vld [vmem:[%s1 + $0x5c] sm:$0xf]
  %v541 = vld [vmem:[%s1 + $0x60] sm:$0xf]
  %v542 = vld [vmem:[%s1 + $0x64] sm:$0xf]
  %v543 = vld [vmem:[%s1 + $0x68] sm:$0xf]
  %v544 = vld [vmem:[%s1 + $0x6c] sm:$0xf]
  %v545 = vld [vmem:[%s1 + $0x70] sm:$0xf]
  %v546 = vld [vmem:[%s1 + $0x74] sm:$0xf]
  %v547 = vld [vmem:[%s1 + $0x78] sm:$0xf]
  %v548 = vld [vmem:[%s1 + $0x7c] sm:$0xf]
  %v549 = vld [vmem:[%s1 + $0x80] sm:$0xf]
  %v550 = vld [vmem:[%s1 + $0x84] sm:$0xf]
  %v551 = vld [vmem:[%s1 + $0x88] sm:$0xf]
  %v552 = vld [vmem:[%s1 + $0x8c] sm:$0xf]
  %v553 = vld [vmem:[%s1 + $0x90] sm:$0xf]
  %v554 = vld [vmem:[%s1 + $0x94] sm:$0xf]
  %v555 = vld [vmem:[%s1 + $0x98] sm:$0xf]
  %v556 = vld [vmem:[%s1 + $0x9c] sm:$0xf]
  %v557 = vld [vmem:[%s1 + $0xa0] sm:$0xf]
  %v558 = vld [vmem:[%s1 + $0xa4] sm:$0xf]
  %v559 = vld [vmem:[%s1 + $0xa8] sm:$0xf]
  %v560 = vld [vmem:[%s1 + $0xac] sm:$0xf]
  %v561 = vld [vmem:[%s1 + $0xb0] sm:$0xf]
  %v562 = vld [vmem:[%s1 + $0xb4] sm:$0xf]
  %v563 = vld [vmem:[%s1 + $0xb8] sm:$0xf]
  %v564 = vld [vmem:[%s1 + $0xbc] sm:$0xf]
  %v565 = vld [vmem:[%s1 + $0xc0] sm:$0xf]
  %v615 = vunpack.c.l.b16 %v517
  %v616 = vunpack.c.l.b16 %v518
  %v617 = vunpack.c.l.b16 %v519
  %v618 = vunpack.c.l.b16 %v520
  %v619 = vunpack.c.l.b16 %v521
  %v620 = vunpack.c.l.b16 %v522
  %v621 = vunpack.c.l.b16 %v523
  %v622 = vunpack.c.l.b16 %v524
  %v623 = vunpack.c.l.b16 %v525
  %v624 = vunpack.c.l.b16 %v526
  %v625 = vunpack.c.l.b16 %v527
  %v626 = vunpack.c.l.b16 %v528
  %v627 = vunpack.c.l.b16 %v529
  %v628 = vunpack.c.l.b16 %v530
  %v629 = vunpack.c.l.b16 %v531
  %v630 = vunpack.c.l.b16 %v532
  %v631 = vunpack.c.l.b16 %v533
  %v632 = vunpack.c.l.b16 %v534
  %v633 = vunpack.c.l.b16 %v535
  %v634 = vunpack.c.l.b16 %v536
  %v635 = vunpack.c.l.b16 %v537
  %v636 = vunpack.c.l.b16 %v538
  %v637 = vunpack.c.l.b16 %v539
  %v638 = vunpack.c.l.b16 %v540
  %v639 = vunpack.c.l.b16 %v541
  %v640 = vunpack.c.l.b16 %v542
  %v641 = vunpack.c.l.b16 %v543
  %v642 = vunpack.c.l.b16 %v544
  %v643 = vunpack.c.l.b16 %v545
  %v644 = vunpack.c.l.b16 %v546
  %v645 = vunpack.c.l.b16 %v547
  %v646 = vunpack.c.l.b16 %v548
  %v647 = vunpack.c.l.b16 %v549
  %v648 = vunpack.c.l.b16 %v550
  %v649 = vunpack.c.l.b16 %v551
  %v650 = vunpack.c.l.b16 %v552
  %v651 = vunpack.c.l.b16 %v553
  %v652 = vunpack.c.l.b16 %v554
  %v653 = vunpack.c.l.b16 %v555
  %v654 = vunpack.c.l.b16 %v556
  %v655 = vunpack.c.l.b16 %v557
  %v656 = vunpack.c.l.b16 %v558
  %v657 = vunpack.c.l.b16 %v559
  %v658 = vunpack.c.l.b16 %v560
  %v659 = vunpack.c.l.b16 %v561
  %v660 = vunpack.c.l.b16 %v562
  %v661 = vunpack.c.l.b16 %v563
  %v662 = vunpack.c.l.b16 %v564
  %v663 = vunpack.c.l.b16 %v565
  %v664 = vpack.c.b16 %v616, %v615
  %v665 = vpack.c.b16 %v618, %v617
  %v666 = vpack.c.b16 %v620, %v619
  %v667 = vpack.c.b16 %v622, %v621
  %v668 = vpack.c.b16 %v624, %v623
  %v669 = vpack.c.b16 %v626, %v625
  %v670 = vpack.c.b16 %v628, %v627
  %v671 = vpack.c.b16 %v630, %v629
  %v672 = vpack.c.b16 %v632, %v631
  %v673 = vpack.c.b16 %v634, %v633
  %v674 = vpack.c.b16 %v636, %v635
  %v675 = vpack.c.b16 %v638, %v637
  %v676 = vpack.c.b16 %v640, %v639
  %v677 = vpack.c.b16 %v642, %v641
  %v678 = vpack.c.b16 %v644, %v643
  %v679 = vpack.c.b16 %v646, %v645
  %v680 = vpack.c.b16 %v648, %v647
  %v681 = vpack.c.b16 %v650, %v649
  %v682 = vpack.c.b16 %v652, %v651
  %v683 = vpack.c.b16 %v654, %v653
  %v684 = vpack.c.b16 %v656, %v655
  %v685 = vpack.c.b16 %v658, %v657
  %v686 = vpack.c.b16 %v660, %v659
  %v687 = vpack.c.b16 %v662, %v661
  %v688 = vpack.c.b16 %v663, %v663
  %714 = vmatprep.subr.bf16.mxu0 0
  %715 = vmatpush1.bf16.msra.mxu0 %v276
  %716 = vmatprep.subr.bf16.mxu0 0
  %717 = vmatpush1.bf16.msra.mxu0 %v275
  %718 = vmatprep.subr.bf16.mxu0 0
  %719 = vmatpush1.bf16.msra.mxu0 %v274
  %720 = vmatprep.subr.bf16.mxu0 0
  %721 = vmatpush1.bf16.msra.mxu0 %v273
  %722 = vmatprep.subr.bf16.mxu0 0
  %723 = vmatpush1.bf16.msra.mxu0 %v272
  %724 = vmatprep.subr.bf16.mxu0 0
  %725 = vmatpush1.bf16.msra.mxu0 %v271
  %726 = vmatprep.subr.bf16.mxu0 0
  %727 = vmatpush1.bf16.msra.mxu0 %v270
  %728 = vmatprep.subr.bf16.mxu0 0
  %729 = vmatpush1.bf16.msra.mxu0 %v269
  %730 = vmatprep.subr.bf16.mxu0 0
  %731 = vmatpush2.bf16.msra.mxu0 0
  %732 = vmatprep.subr.bf16.mxu0 0
  %733 = vmatpush2.bf16.msra.mxu0 0
  %734 = vmatprep.subr.bf16.mxu0 0
  %735 = vmatpush2.bf16.msra.mxu0 0
  %736 = vmatprep.subr.bf16.mxu0 0
  %737 = vmatpush2.bf16.msra.mxu0 0
  %738 = vmatprep.subr.bf16.mxu0 0
  %739 = vmatpush2.bf16.msra.mxu0 0
  %740 = vmatprep.subr.bf16.mxu0 0
  %741 = vmatpush2.bf16.msra.mxu0 0
  %742 = vmatprep.subr.bf16.mxu0 0
  %743 = vmatpush2.bf16.msra.mxu0 0
  %744 = vmatprep.subr.bf16.mxu0 0
  %745 = vmatpush2.bf16.msra.mxu0 0
  %746 = vmatprep.mubr.bf16.mxu0 0
  %747 = vmatmul.mubr.bf16.gmra.mxu0 %v664
  %v748 = vpop.f32.mrf.mxu0
  %v749 = vadd.f32 0.0, %v748
  %v750 = vpop.f32.mrf.mxu0
  %v751 = vpop.f32.mrf.mxu0
  %v752 = vadd.f32 0.0, %v751
  %v753 = vpop.f32.mrf.mxu0
  %754 = vmatprep.mubr.bf16.mxu0 0
  %755 = vmatmul.mubr.bf16.gmra.mxu0 %v665
  %v756 = vpop.f32.mrf.mxu0
  %v757 = vadd.f32 0.0, %v756
  %v758 = vpop.f32.mrf.mxu0
  %v759 = vpop.f32.mrf.mxu0
  %v760 = vadd.f32 0.0, %v759
  %v761 = vpop.f32.mrf.mxu0
  %762 = vmatprep.mubr.bf16.mxu0 0
  %763 = vmatmul.mubr.bf16.gmra.mxu0 %v666
  %v764 = vpop.f32.mrf.mxu0
  %v765 = vadd.f32 0.0, %v764
  %v766 = vpop.f32.mrf.mxu0
  %v767 = vpop.f32.mrf.mxu0
  %v768 = vadd.f32 0.0, %v767
  %v769 = vpop.f32.mrf.mxu0
  %770 = vmatprep.mubr.bf16.mxu0 0
  %771 = vmatmul.mubr.bf16.gmra.mxu0 %v667
  %v772 = vpop.f32.mrf.mxu0
  %v773 = vadd.f32 0.0, %v772
  %v774 = vpop.f32.mrf.mxu0
  %v775 = vpop.f32.mrf.mxu0
  %v776 = vadd.f32 0.0, %v775
  %v777 = vpop.f32.mrf.mxu0
  %778 = vmatprep.mubr.bf16.mxu0 0
  %779 = vmatmul.mubr.bf16.gmra.mxu0 %v668
  %v780 = vpop.f32.mrf.mxu0
  %v781 = vadd.f32 0.0, %v780
  %v782 = vpop.f32.mrf.mxu0
  %v783 = vpop.f32.mrf.mxu0
  %v784 = vadd.f32 0.0, %v783
  %v785 = vpop.f32.mrf.mxu0
  %786 = vmatprep.mubr.bf16.mxu0 0
  %787 = vmatmul.mubr.bf16.gmra.mxu0 %v669
  %v788 = vpop.f32.mrf.mxu0
  %v789 = vadd.f32 0.0, %v788
  %v790 = vpop.f32.mrf.mxu0
  %v791 = vpop.f32.mrf.mxu0
  %v792 = vadd.f32 0.0, %v791
  %v793 = vpop.f32.mrf.mxu0
  %794 = vmatprep.mubr.bf16.mxu0 0
  %795 = vmatmul.mubr.bf16.gmra.mxu0 %v670
  %v796 = vpop.f32.mrf.mxu0
  %v797 = vadd.f32 0.0, %v796
  %v798 = vpop.f32.mrf.mxu0
  %v799 = vpop.f32.mrf.mxu0
  %v800 = vadd.f32 0.0, %v799
  %v801 = vpop.f32.mrf.mxu0
  %802 = vmatprep.mubr.bf16.mxu0 0
  %803 = vmatmul.mubr.bf16.gmra.mxu0 %v671
  %v804 = vpop.f32.mrf.mxu0
  %v805 = vadd.f32 0.0, %v804
  %v806 = vpop.f32.mrf.mxu0
  %v807 = vpop.f32.mrf.mxu0
  %v808 = vadd.f32 0.0, %v807
  %v809 = vpop.f32.mrf.mxu0
  %810 = vmatprep.mubr.bf16.mxu0 0
  %811 = vmatmul.mubr.bf16.gmra.mxu0 %v672
  %v812 = vpop.f32.mrf.mxu0
  %v813 = vadd.f32 0.0, %v812
  %v814 = vpop.f32.mrf.mxu0
  %v815 = vpop.f32.mrf.mxu0
  %v816 = vadd.f32 0.0, %v815
  %v817 = vpop.f32.mrf.mxu0
  %818 = vmatprep.mubr.bf16.mxu0 0
  %819 = vmatmul.mubr.bf16.gmra.mxu0 %v673
  %v820 = vpop.f32.mrf.mxu0
  %v821 = vadd.f32 0.0, %v820
  %v822 = vpop.f32.mrf.mxu0
  %v823 = vpop.f32.mrf.mxu0
  %v824 = vadd.f32 0.0, %v823
  %v825 = vpop.f32.mrf.mxu0
  %826 = vmatprep.mubr.bf16.mxu0 0
  %827 = vmatmul.mubr.bf16.gmra.mxu0 %v674
  %v828 = vpop.f32.mrf.mxu0
  %v829 = vadd.f32 0.0, %v828
  %v830 = vpop.f32.mrf.mxu0
  %v831 = vpop.f32.mrf.mxu0
  %v832 = vadd.f32 0.0, %v831
  %v833 = vpop.f32.mrf.mxu0
  %834 = vmatprep.mubr.bf16.mxu0 0
  %835 = vmatmul.mubr.bf16.gmra.mxu0 %v675
  %v836 = vpop.f32.mrf.mxu0
  %v837 = vadd.f32 0.0, %v836
  %v838 = vpop.f32.mrf.mxu0
  %v839 = vpop.f32.mrf.mxu0
  %v840 = vadd.f32 0.0, %v839
  %v841 = vpop.f32.mrf.mxu0
  %842 = vmatprep.mubr.bf16.mxu0 0
  %843 = vmatmul.mubr.bf16.gmra.mxu0 %v676
  %v844 = vpop.f32.mrf.mxu0
  %v845 = vadd.f32 0.0, %v844
  %v846 = vpop.f32.mrf.mxu0
  %v847 = vpop.f32.mrf.mxu0
  %v848 = vadd.f32 0.0, %v847
  %v849 = vpop.f32.mrf.mxu0
  %850 = vmatprep.mubr.bf16.mxu0 0
  %851 = vmatmul.mubr.bf16.gmra.mxu0 %v677
  %v852 = vpop.f32.mrf.mxu0
  %v853 = vadd.f32 0.0, %v852
  %v854 = vpop.f32.mrf.mxu0
  %v855 = vpop.f32.mrf.mxu0
  %v856 = vadd.f32 0.0, %v855
  %v857 = vpop.f32.mrf.mxu0
  %858 = vmatprep.mubr.bf16.mxu0 0
  %859 = vmatmul.mubr.bf16.gmra.mxu0 %v678
  %v860 = vpop.f32.mrf.mxu0
  %v861 = vadd.f32 0.0, %v860
  %v862 = vpop.f32.mrf.mxu0
  %v863 = vpop.f32.mrf.mxu0
  %v864 = vadd.f32 0.0, %v863
  %v865 = vpop.f32.mrf.mxu0
  %866 = vmatprep.mubr.bf16.mxu0 0
  %867 = vmatmul.mubr.bf16.gmra.mxu0 %v679
  %v868 = vpop.f32.mrf.mxu0
  %v869 = vadd.f32 0.0, %v868
  %v870 = vpop.f32.mrf.mxu0
  %v871 = vpop.f32.mrf.mxu0
  %v872 = vadd.f32 0.0, %v871
  %v873 = vpop.f32.mrf.mxu0
  %874 = vmatprep.mubr.bf16.mxu0 0
  %875 = vmatmul.mubr.bf16.gmra.mxu0 %v680
  %v876 = vpop.f32.mrf.mxu0
  %v877 = vadd.f32 0.0, %v876
  %v878 = vpop.f32.mrf.mxu0
  %v879 = vpop.f32.mrf.mxu0
  %v880 = vadd.f32 0.0, %v879
  %v881 = vpop.f32.mrf.mxu0
  %882 = vmatprep.mubr.bf16.mxu0 0
  %883 = vmatmul.mubr.bf16.gmra.mxu0 %v681
  %v884 = vpop.f32.mrf.mxu0
  %v885 = vadd.f32 0.0, %v884
  %v886 = vpop.f32.mrf.mxu0
  %v887 = vpop.f32.mrf.mxu0
  %v888 = vadd.f32 0.0, %v887
  %v889 = vpop.f32.mrf.mxu0
  %890 = vmatprep.mubr.bf16.mxu0 0
  %891 = vmatmul.mubr.bf16.gmra.mxu0 %v682
  %v892 = vpop.f32.mrf.mxu0
  %v893 = vadd.f32 0.0, %v892
  %v894 = vpop.f32.mrf.mxu0
  %v895 = vpop.f32.mrf.mxu0
  %v896 = vadd.f32 0.0, %v895
  %v897 = vpop.f32.mrf.mxu0
  %898 = vmatprep.mubr.bf16.mxu0 0
  %899 = vmatmul.mubr.bf16.gmra.mxu0 %v683
  %v900 = vpop.f32.mrf.mxu0
  %v901 = vadd.f32 0.0, %v900
  %v902 = vpop.f32.mrf.mxu0
  %v903 = vpop.f32.mrf.mxu0
  %v904 = vadd.f32 0.0, %v903
  %v905 = vpop.f32.mrf.mxu0
  %906 = vmatprep.mubr.bf16.mxu0 0
  %907 = vmatmul.mubr.bf16.gmra.mxu0 %v684
  %v908 = vpop.f32.mrf.mxu0
  %v909 = vadd.f32 0.0, %v908
  %v910 = vpop.f32.mrf.mxu0
  %v911 = vpop.f32.mrf.mxu0
  %v912 = vadd.f32 0.0, %v911
  %v913 = vpop.f32.mrf.mxu0
  %914 = vmatprep.mubr.bf16.mxu0 0
  %915 = vmatmul.mubr.bf16.gmra.mxu0 %v685
  %v916 = vpop.f32.mrf.mxu0
  %v917 = vadd.f32 0.0, %v916
  %v918 = vpop.f32.mrf.mxu0
  %v919 = vpop.f32.mrf.mxu0
  %v920 = vadd.f32 0.0, %v919
  %v921 = vpop.f32.mrf.mxu0
  %922 = vmatprep.mubr.bf16.mxu0 0
  %923 = vmatmul.mubr.bf16.gmra.mxu0 %v686
  %v924 = vpop.f32.mrf.mxu0
  %v925 = vadd.f32 0.0, %v924
  %v926 = vpop.f32.mrf.mxu0
  %v927 = vpop.f32.mrf.mxu0
  %v928 = vadd.f32 0.0, %v927
  %v929 = vpop.f32.mrf.mxu0
  %930 = vmatprep.mubr.bf16.mxu0 0
  %931 = vmatmul.mubr.bf16.gmra.mxu0 %v687
  %v932 = vpop.f32.mrf.mxu0
  %v933 = vadd.f32 0.0, %v932
  %v934 = vpop.f32.mrf.mxu0
  %v935 = vpop.f32.mrf.mxu0
  %v936 = vadd.f32 0.0, %v935
  %v937 = vpop.f32.mrf.mxu0
  %938 = vmatprep.mubr.bf16.mxu0 0
  %939 = vmatmul.mubr.bf16.gmra.mxu0 %v688
  %v940 = vpop.f32.mrf.mxu0
  %v941 = vadd.f32 0.0, %v940
  %v942 = vpop.f32.mrf.mxu0
  %v943 = vpop.f32.mrf.mxu0
  %v944 = vpop.f32.mrf.mxu0
  %945 = vdwg.mxu0
  %v946 = vmax.f32 %v320, %v749
  %v947 = vmax.f32 %v323, %v752
  %v948 = vmax.f32 %v328, %v757
  %v949 = vmax.f32 %v331, %v760
  %v950 = vmax.f32 %v336, %v765
  %v951 = vmax.f32 %v339, %v768
  %v952 = vmax.f32 %v344, %v773
  %v953 = vmax.f32 %v347, %v776
  %v954 = vmax.f32 %v352, %v781
  %v955 = vmax.f32 %v355, %v784
  %v956 = vmax.f32 %v360, %v789
  %v957 = vmax.f32 %v363, %v792
  %v958 = vmax.f32 %v368, %v797
  %v959 = vmax.f32 %v371, %v800
  %v960 = vmax.f32 %v376, %v805
  %v961 = vmax.f32 %v379, %v808
  %v962 = vmax.f32 %v384, %v813
  %v963 = vmax.f32 %v387, %v816
  %v964 = vmax.f32 %v392, %v821
  %v965 = vmax.f32 %v395, %v824
  %v966 = vmax.f32 %v400, %v829
  %v967 = vmax.f32 %v403, %v832
  %v968 = vmax.f32 %v408, %v837
  %v969 = vmax.f32 %v411, %v840
  %v970 = vmax.f32 %v416, %v845
  %v971 = vmax.f32 %v419, %v848
  %v972 = vmax.f32 %v424, %v853
  %v973 = vmax.f32 %v427, %v856
  %v974 = vmax.f32 %v432, %v861
  %v975 = vmax.f32 %v435, %v864
  %v976 = vmax.f32 %v440, %v869
  %v977 = vmax.f32 %v443, %v872
  %v978 = vmax.f32 %v448, %v877
  %v979 = vmax.f32 %v451, %v880
  %v980 = vmax.f32 %v456, %v885
  %v981 = vmax.f32 %v459, %v888
  %v982 = vmax.f32 %v464, %v893
  %v983 = vmax.f32 %v467, %v896
  %v984 = vmax.f32 %v472, %v901
  %v985 = vmax.f32 %v475, %v904
  %v986 = vmax.f32 %v480, %v909
  %v987 = vmax.f32 %v483, %v912
  %v988 = vmax.f32 %v488, %v917
  %v989 = vmax.f32 %v491, %v920
  %v990 = vmax.f32 %v496, %v925
  %v991 = vmax.f32 %v499, %v928
  %v992 = vmax.f32 %v504, %v933
  %v993 = vmax.f32 %v507, %v936
  %v994 = vmax.f32 %v512, %v941
  %v995 = vld [vmem:[%s2] sm:$0xf]
  %v996 = vld [vmem:[%s2 + $0x4] sm:$0xf]
  %v997 = vld [vmem:[%s2 + $0x8] sm:$0xf]
  %v998 = vld [vmem:[%s2 + $0xc] sm:$0xf]
  %v999 = vld [vmem:[%s2 + $0x10] sm:$0xf]
  %v1000 = vld [vmem:[%s2 + $0x14] sm:$0xf]
  %v1001 = vld [vmem:[%s2 + $0x18] sm:$0xf]
  %v1002 = vld [vmem:[%s2 + $0x1c] sm:$0xf]
  %v1003 = vld [vmem:[%s2 + $0x20] sm:$0xf]
  %v1004 = vld [vmem:[%s2 + $0x24] sm:$0xf]
  %v1005 = vld [vmem:[%s2 + $0x28] sm:$0xf]
  %v1006 = vld [vmem:[%s2 + $0x2c] sm:$0xf]
  %v1007 = vld [vmem:[%s2 + $0x30] sm:$0xf]
  %v1008 = vld [vmem:[%s2 + $0x34] sm:$0xf]
  %v1009 = vld [vmem:[%s2 + $0x38] sm:$0xf]
  %v1010 = vld [vmem:[%s2 + $0x3c] sm:$0xf]
  %v1011 = vld [vmem:[%s2 + $0x40] sm:$0xf]
  %v1012 = vld [vmem:[%s2 + $0x44] sm:$0xf]
  %v1013 = vld [vmem:[%s2 + $0x48] sm:$0xf]
  %v1014 = vld [vmem:[%s2 + $0x4c] sm:$0xf]
  %v1015 = vld [vmem:[%s2 + $0x50] sm:$0xf]
  %v1016 = vld [vmem:[%s2 + $0x54] sm:$0xf]
  %v1017 = vld [vmem:[%s2 + $0x58] sm:$0xf]
  %v1018 = vld [vmem:[%s2 + $0x5c] sm:$0xf]
  %v1019 = vld [vmem:[%s2 + $0x60] sm:$0xf]
  %v1020 = vld [vmem:[%s2 + $0x64] sm:$0xf]
  %v1021 = vld [vmem:[%s2 + $0x68] sm:$0xf]
  %v1022 = vld [vmem:[%s2 + $0x6c] sm:$0xf]
  %v1023 = vld [vmem:[%s2 + $0x70] sm:$0xf]
  %v1024 = vld [vmem:[%s2 + $0x74] sm:$0xf]
  %v1025 = vld [vmem:[%s2 + $0x78] sm:$0xf]
  %v1026 = vld [vmem:[%s2 + $0x7c] sm:$0xf]
  %v1027 = vld [vmem:[%s2 + $0x80] sm:$0xf]
  %v1028 = vld [vmem:[%s2 + $0x84] sm:$0xf]
  %v1029 = vld [vmem:[%s2 + $0x88] sm:$0xf]
  %v1030 = vld [vmem:[%s2 + $0x8c] sm:$0xf]
  %v1031 = vld [vmem:[%s2 + $0x90] sm:$0xf]
  %v1032 = vld [vmem:[%s2 + $0x94] sm:$0xf]
  %v1033 = vld [vmem:[%s2 + $0x98] sm:$0xf]
  %v1034 = vld [vmem:[%s2 + $0x9c] sm:$0xf]
  %v1035 = vld [vmem:[%s2 + $0xa0] sm:$0xf]
  %v1036 = vld [vmem:[%s2 + $0xa4] sm:$0xf]
  %v1037 = vld [vmem:[%s2 + $0xa8] sm:$0xf]
  %v1038 = vld [vmem:[%s2 + $0xac] sm:$0xf]
  %v1039 = vld [vmem:[%s2 + $0xb0] sm:$0xf]
  %v1040 = vld [vmem:[%s2 + $0xb4] sm:$0xf]
  %v1041 = vld [vmem:[%s2 + $0xb8] sm:$0xf]
  %v1042 = vld [vmem:[%s2 + $0xbc] sm:$0xf]
  %v1043 = vld [vmem:[%s2 + $0xc0] sm:$0xf]
  %v1093 = vunpack.c.l.b16 %v995
  %v1094 = vunpack.c.l.b16 %v996
  %v1095 = vunpack.c.l.b16 %v997
  %v1096 = vunpack.c.l.b16 %v998
  %v1097 = vunpack.c.l.b16 %v999
  %v1098 = vunpack.c.l.b16 %v1000
  %v1099 = vunpack.c.l.b16 %v1001
  %v1100 = vunpack.c.l.b16 %v1002
  %v1101 = vunpack.c.l.b16 %v1003
  %v1102 = vunpack.c.l.b16 %v1004
  %v1103 = vunpack.c.l.b16 %v1005
  %v1104 = vunpack.c.l.b16 %v1006
  %v1105 = vunpack.c.l.b16 %v1007
  %v1106 = vunpack.c.l.b16 %v1008
  %v1107 = vunpack.c.l.b16 %v1009
  %v1108 = vunpack.c.l.b16 %v1010
  %v1109 = vunpack.c.l.b16 %v1011
  %v1110 = vunpack.c.l.b16 %v1012
  %v1111 = vunpack.c.l.b16 %v1013
  %v1112 = vunpack.c.l.b16 %v1014
  %v1113 = vunpack.c.l.b16 %v1015
  %v1114 = vunpack.c.l.b16 %v1016
  %v1115 = vunpack.c.l.b16 %v1017
  %v1116 = vunpack.c.l.b16 %v1018
  %v1117 = vunpack.c.l.b16 %v1019
  %v1118 = vunpack.c.l.b16 %v1020
  %v1119 = vunpack.c.l.b16 %v1021
  %v1120 = vunpack.c.l.b16 %v1022
  %v1121 = vunpack.c.l.b16 %v1023
  %v1122 = vunpack.c.l.b16 %v1024
  %v1123 = vunpack.c.l.b16 %v1025
  %v1124 = vunpack.c.l.b16 %v1026
  %v1125 = vunpack.c.l.b16 %v1027
  %v1126 = vunpack.c.l.b16 %v1028
  %v1127 = vunpack.c.l.b16 %v1029
  %v1128 = vunpack.c.l.b16 %v1030
  %v1129 = vunpack.c.l.b16 %v1031
  %v1130 = vunpack.c.l.b16 %v1032
  %v1131 = vunpack.c.l.b16 %v1033
  %v1132 = vunpack.c.l.b16 %v1034
  %v1133 = vunpack.c.l.b16 %v1035
  %v1134 = vunpack.c.l.b16 %v1036
  %v1135 = vunpack.c.l.b16 %v1037
  %v1136 = vunpack.c.l.b16 %v1038
  %v1137 = vunpack.c.l.b16 %v1039
  %v1138 = vunpack.c.l.b16 %v1040
  %v1139 = vunpack.c.l.b16 %v1041
  %v1140 = vunpack.c.l.b16 %v1042
  %v1141 = vunpack.c.l.b16 %v1043
  %v1142 = vpack.c.b16 %v1094, %v1093
  %v1143 = vpack.c.b16 %v1096, %v1095
  %v1144 = vpack.c.b16 %v1098, %v1097
  %v1145 = vpack.c.b16 %v1100, %v1099
  %v1146 = vpack.c.b16 %v1102, %v1101
  %v1147 = vpack.c.b16 %v1104, %v1103
  %v1148 = vpack.c.b16 %v1106, %v1105
  %v1149 = vpack.c.b16 %v1108, %v1107
  %v1150 = vpack.c.b16 %v1110, %v1109
  %v1151 = vpack.c.b16 %v1112, %v1111
  %v1152 = vpack.c.b16 %v1114, %v1113
  %v1153 = vpack.c.b16 %v1116, %v1115
  %v1154 = vpack.c.b16 %v1118, %v1117
  %v1155 = vpack.c.b16 %v1120, %v1119
  %v1156 = vpack.c.b16 %v1122, %v1121
  %v1157 = vpack.c.b16 %v1124, %v1123
  %v1158 = vpack.c.b16 %v1126, %v1125
  %v1159 = vpack.c.b16 %v1128, %v1127
  %v1160 = vpack.c.b16 %v1130, %v1129
  %v1161 = vpack.c.b16 %v1132, %v1131
  %v1162 = vpack.c.b16 %v1134, %v1133
  %v1163 = vpack.c.b16 %v1136, %v1135
  %v1164 = vpack.c.b16 %v1138, %v1137
  %v1165 = vpack.c.b16 %v1140, %v1139
  %v1166 = vpack.c.b16 %v1141, %v1141
  %1192 = vmatprep.subr.bf16.mxu0 0
  %1193 = vmatpush1.bf16.msra.mxu0 %v276
  %1194 = vmatprep.subr.bf16.mxu0 0
  %1195 = vmatpush1.bf16.msra.mxu0 %v275
  %1196 = vmatprep.subr.bf16.mxu0 0
  %1197 = vmatpush1.bf16.msra.mxu0 %v274
  %1198 = vmatprep.subr.bf16.mxu0 0
  %1199 = vmatpush1.bf16.msra.mxu0 %v273
  %1200 = vmatprep.subr.bf16.mxu0 0
  %1201 = vmatpush1.bf16.msra.mxu0 %v272
  %1202 = vmatprep.subr.bf16.mxu0 0
  %1203 = vmatpush1.bf16.msra.mxu0 %v271
  %1204 = vmatprep.subr.bf16.mxu0 0
  %1205 = vmatpush1.bf16.msra.mxu0 %v270
  %1206 = vmatprep.subr.bf16.mxu0 0
  %1207 = vmatpush1.bf16.msra.mxu0 %v269
  %1208 = vmatprep.subr.bf16.mxu0 0
  %1209 = vmatpush2.bf16.msra.mxu0 0
  %1210 = vmatprep.subr.bf16.mxu0 0
  %1211 = vmatpush2.bf16.msra.mxu0 0
  %1212 = vmatprep.subr.bf16.mxu0 0
  %1213 = vmatpush2.bf16.msra.mxu0 0
  %1214 = vmatprep.subr.bf16.mxu0 0
  %1215 = vmatpush2.bf16.msra.mxu0 0
  %1216 = vmatprep.subr.bf16.mxu0 0
  %1217 = vmatpush2.bf16.msra.mxu0 0
  %1218 = vmatprep.subr.bf16.mxu0 0
  %1219 = vmatpush2.bf16.msra.mxu0 0
  %1220 = vmatprep.subr.bf16.mxu0 0
  %1221 = vmatpush2.bf16.msra.mxu0 0
  %1222 = vmatprep.subr.bf16.mxu0 0
  %1223 = vmatpush2.bf16.msra.mxu0 0
  %1224 = vmatprep.mubr.bf16.mxu0 0
  %1225 = vmatmul.mubr.bf16.gmra.mxu0 %v1142
  %v1226 = vpop.f32.mrf.mxu0
  %v1227 = vadd.f32 0.0, %v1226
  %v1228 = vpop.f32.mrf.mxu0
  %v1229 = vpop.f32.mrf.mxu0
  %v1230 = vadd.f32 0.0, %v1229
  %v1231 = vpop.f32.mrf.mxu0
  %1232 = vmatprep.mubr.bf16.mxu0 0
  %1233 = vmatmul.mubr.bf16.gmra.mxu0 %v1143
  %v1234 = vpop.f32.mrf.mxu0
  %v1235 = vadd.f32 0.0, %v1234
  %v1236 = vpop.f32.mrf.mxu0
  %v1237 = vpop.f32.mrf.mxu0
  %v1238 = vadd.f32 0.0, %v1237
  %v1239 = vpop.f32.mrf.mxu0
  %1240 = vmatprep.mubr.bf16.mxu0 0
  %1241 = vmatmul.mubr.bf16.gmra.mxu0 %v1144
  %v1242 = vpop.f32.mrf.mxu0
  %v1243 = vadd.f32 0.0, %v1242
  %v1244 = vpop.f32.mrf.mxu0
  %v1245 = vpop.f32.mrf.mxu0
  %v1246 = vadd.f32 0.0, %v1245
  %v1247 = vpop.f32.mrf.mxu0
  %1248 = vmatprep.mubr.bf16.mxu0 0
  %1249 = vmatmul.mubr.bf16.gmra.mxu0 %v1145
  %v1250 = vpop.f32.mrf.mxu0
  %v1251 = vadd.f32 0.0, %v1250
  %v1252 = vpop.f32.mrf.mxu0
  %v1253 = vpop.f32.mrf.mxu0
  %v1254 = vadd.f32 0.0, %v1253
  %v1255 = vpop.f32.mrf.mxu0
  %1256 = vmatprep.mubr.bf16.mxu0 0
  %1257 = vmatmul.mubr.bf16.gmra.mxu0 %v1146
  %v1258 = vpop.f32.mrf.mxu0
  %v1259 = vadd.f32 0.0, %v1258
  %v1260 = vpop.f32.mrf.mxu0
  %v1261 = vpop.f32.mrf.mxu0
  %v1262 = vadd.f32 0.0, %v1261
  %v1263 = vpop.f32.mrf.mxu0
  %1264 = vmatprep.mubr.bf16.mxu0 0
  %1265 = vmatmul.mubr.bf16.gmra.mxu0 %v1147
  %v1266 = vpop.f32.mrf.mxu0
  %v1267 = vadd.f32 0.0, %v1266
  %v1268 = vpop.f32.mrf.mxu0
  %v1269 = vpop.f32.mrf.mxu0
  %v1270 = vadd.f32 0.0, %v1269
  %v1271 = vpop.f32.mrf.mxu0
  %1272 = vmatprep.mubr.bf16.mxu0 0
  %1273 = vmatmul.mubr.bf16.gmra.mxu0 %v1148
  %v1274 = vpop.f32.mrf.mxu0
  %v1275 = vadd.f32 0.0, %v1274
  %v1276 = vpop.f32.mrf.mxu0
  %v1277 = vpop.f32.mrf.mxu0
  %v1278 = vadd.f32 0.0, %v1277
  %v1279 = vpop.f32.mrf.mxu0
  %1280 = vmatprep.mubr.bf16.mxu0 0
  %1281 = vmatmul.mubr.bf16.gmra.mxu0 %v1149
  %v1282 = vpop.f32.mrf.mxu0
  %v1283 = vadd.f32 0.0, %v1282
  %v1284 = vpop.f32.mrf.mxu0
  %v1285 = vpop.f32.mrf.mxu0
  %v1286 = vadd.f32 0.0, %v1285
  %v1287 = vpop.f32.mrf.mxu0
  %1288 = vmatprep.mubr.bf16.mxu0 0
  %1289 = vmatmul.mubr.bf16.gmra.mxu0 %v1150
  %v1290 = vpop.f32.mrf.mxu0
  %v1291 = vadd.f32 0.0, %v1290
  %v1292 = vpop.f32.mrf.mxu0
  %v1293 = vpop.f32.mrf.mxu0
  %v1294 = vadd.f32 0.0, %v1293
  %v1295 = vpop.f32.mrf.mxu0
  %1296 = vmatprep.mubr.bf16.mxu0 0
  %1297 = vmatmul.mubr.bf16.gmra.mxu0 %v1151
  %v1298 = vpop.f32.mrf.mxu0
  %v1299 = vadd.f32 0.0, %v1298
  %v1300 = vpop.f32.mrf.mxu0
  %v1301 = vpop.f32.mrf.mxu0
  %v1302 = vadd.f32 0.0, %v1301
  %v1303 = vpop.f32.mrf.mxu0
  %1304 = vmatprep.mubr.bf16.mxu0 0
  %1305 = vmatmul.mubr.bf16.gmra.mxu0 %v1152
  %v1306 = vpop.f32.mrf.mxu0
  %v1307 = vadd.f32 0.0, %v1306
  %v1308 = vpop.f32.mrf.mxu0
  %v1309 = vpop.f32.mrf.mxu0
  %v1310 = vadd.f32 0.0, %v1309
  %v1311 = vpop.f32.mrf.mxu0
  %1312 = vmatprep.mubr.bf16.mxu0 0
  %1313 = vmatmul.mubr.bf16.gmra.mxu0 %v1153
  %v1314 = vpop.f32.mrf.mxu0
  %v1315 = vadd.f32 0.0, %v1314
  %v1316 = vpop.f32.mrf.mxu0
  %v1317 = vpop.f32.mrf.mxu0
  %v1318 = vadd.f32 0.0, %v1317
  %v1319 = vpop.f32.mrf.mxu0
  %1320 = vmatprep.mubr.bf16.mxu0 0
  %1321 = vmatmul.mubr.bf16.gmra.mxu0 %v1154
  %v1322 = vpop.f32.mrf.mxu0
  %v1323 = vadd.f32 0.0, %v1322
  %v1324 = vpop.f32.mrf.mxu0
  %v1325 = vpop.f32.mrf.mxu0
  %v1326 = vadd.f32 0.0, %v1325
  %v1327 = vpop.f32.mrf.mxu0
  %1328 = vmatprep.mubr.bf16.mxu0 0
  %1329 = vmatmul.mubr.bf16.gmra.mxu0 %v1155
  %v1330 = vpop.f32.mrf.mxu0
  %v1331 = vadd.f32 0.0, %v1330
  %v1332 = vpop.f32.mrf.mxu0
  %v1333 = vpop.f32.mrf.mxu0
  %v1334 = vadd.f32 0.0, %v1333
  %v1335 = vpop.f32.mrf.mxu0
  %1336 = vmatprep.mubr.bf16.mxu0 0
  %1337 = vmatmul.mubr.bf16.gmra.mxu0 %v1156
  %v1338 = vpop.f32.mrf.mxu0
  %v1339 = vadd.f32 0.0, %v1338
  %v1340 = vpop.f32.mrf.mxu0
  %v1341 = vpop.f32.mrf.mxu0
  %v1342 = vadd.f32 0.0, %v1341
  %v1343 = vpop.f32.mrf.mxu0
  %1344 = vmatprep.mubr.bf16.mxu0 0
  %1345 = vmatmul.mubr.bf16.gmra.mxu0 %v1157
  %v1346 = vpop.f32.mrf.mxu0
  %v1347 = vadd.f32 0.0, %v1346
  %v1348 = vpop.f32.mrf.mxu0
  %v1349 = vpop.f32.mrf.mxu0
  %v1350 = vadd.f32 0.0, %v1349
  %v1351 = vpop.f32.mrf.mxu0
  %1352 = vmatprep.mubr.bf16.mxu0 0
  %1353 = vmatmul.mubr.bf16.gmra.mxu0 %v1158
  %v1354 = vpop.f32.mrf.mxu0
  %v1355 = vadd.f32 0.0, %v1354
  %v1356 = vpop.f32.mrf.mxu0
  %v1357 = vpop.f32.mrf.mxu0
  %v1358 = vadd.f32 0.0, %v1357
  %v1359 = vpop.f32.mrf.mxu0
  %1360 = vmatprep.mubr.bf16.mxu0 0
  %1361 = vmatmul.mubr.bf16.gmra.mxu0 %v1159
  %v1362 = vpop.f32.mrf.mxu0
  %v1363 = vadd.f32 0.0, %v1362
  %v1364 = vpop.f32.mrf.mxu0
  %v1365 = vpop.f32.mrf.mxu0
  %v1366 = vadd.f32 0.0, %v1365
  %v1367 = vpop.f32.mrf.mxu0
  %1368 = vmatprep.mubr.bf16.mxu0 0
  %1369 = vmatmul.mubr.bf16.gmra.mxu0 %v1160
  %v1370 = vpop.f32.mrf.mxu0
  %v1371 = vadd.f32 0.0, %v1370
  %v1372 = vpop.f32.mrf.mxu0
  %v1373 = vpop.f32.mrf.mxu0
  %v1374 = vadd.f32 0.0, %v1373
  %v1375 = vpop.f32.mrf.mxu0
  %1376 = vmatprep.mubr.bf16.mxu0 0
  %1377 = vmatmul.mubr.bf16.gmra.mxu0 %v1161
  %v1378 = vpop.f32.mrf.mxu0
  %v1379 = vadd.f32 0.0, %v1378
  %v1380 = vpop.f32.mrf.mxu0
  %v1381 = vpop.f32.mrf.mxu0
  %v1382 = vadd.f32 0.0, %v1381
  %v1383 = vpop.f32.mrf.mxu0
  %1384 = vmatprep.mubr.bf16.mxu0 0
  %1385 = vmatmul.mubr.bf16.gmra.mxu0 %v1162
  %v1386 = vpop.f32.mrf.mxu0
  %v1387 = vadd.f32 0.0, %v1386
  %v1388 = vpop.f32.mrf.mxu0
  %v1389 = vpop.f32.mrf.mxu0
  %v1390 = vadd.f32 0.0, %v1389
  %v1391 = vpop.f32.mrf.mxu0
  %1392 = vmatprep.mubr.bf16.mxu0 0
  %1393 = vmatmul.mubr.bf16.gmra.mxu0 %v1163
  %v1394 = vpop.f32.mrf.mxu0
  %v1395 = vadd.f32 0.0, %v1394
  %v1396 = vpop.f32.mrf.mxu0
  %v1397 = vpop.f32.mrf.mxu0
  %v1398 = vadd.f32 0.0, %v1397
  %v1399 = vpop.f32.mrf.mxu0
  %1400 = vmatprep.mubr.bf16.mxu0 0
  %1401 = vmatmul.mubr.bf16.gmra.mxu0 %v1164
  %v1402 = vpop.f32.mrf.mxu0
  %v1403 = vadd.f32 0.0, %v1402
  %v1404 = vpop.f32.mrf.mxu0
  %v1405 = vpop.f32.mrf.mxu0
  %v1406 = vadd.f32 0.0, %v1405
  %v1407 = vpop.f32.mrf.mxu0
  %1408 = vmatprep.mubr.bf16.mxu0 0
  %1409 = vmatmul.mubr.bf16.gmra.mxu0 %v1165
  %v1410 = vpop.f32.mrf.mxu0
  %v1411 = vadd.f32 0.0, %v1410
  %v1412 = vpop.f32.mrf.mxu0
  %v1413 = vpop.f32.mrf.mxu0
  %v1414 = vadd.f32 0.0, %v1413
  %v1415 = vpop.f32.mrf.mxu0
  %1416 = vmatprep.mubr.bf16.mxu0 0
  %1417 = vmatmul.mubr.bf16.gmra.mxu0 %v1166
  %v1418 = vpop.f32.mrf.mxu0
  %v1419 = vadd.f32 0.0, %v1418
  %v1420 = vpop.f32.mrf.mxu0
  %v1421 = vpop.f32.mrf.mxu0
  %v1422 = vpop.f32.mrf.mxu0
  %1423 = vdwg.mxu0
  %v1424 = vmax.f32 %v946, %v1227
  %v1425 = vmax.f32 %v947, %v1230
  %v1426 = vmax.f32 %v948, %v1235
  %v1427 = vmax.f32 %v949, %v1238
  %v1428 = vmax.f32 %v950, %v1243
  %v1429 = vmax.f32 %v951, %v1246
  %v1430 = vmax.f32 %v952, %v1251
  %v1431 = vmax.f32 %v953, %v1254
  %v1432 = vmax.f32 %v954, %v1259
  %v1433 = vmax.f32 %v955, %v1262
  %v1434 = vmax.f32 %v956, %v1267
  %v1435 = vmax.f32 %v957, %v1270
  %v1436 = vmax.f32 %v958, %v1275
  %v1437 = vmax.f32 %v959, %v1278
  %v1438 = vmax.f32 %v960, %v1283
  %v1439 = vmax.f32 %v961, %v1286
  %v1440 = vmax.f32 %v962, %v1291
  %v1441 = vmax.f32 %v963, %v1294
  %v1442 = vmax.f32 %v964, %v1299
  %v1443 = vmax.f32 %v965, %v1302
  %v1444 = vmax.f32 %v966, %v1307
  %v1445 = vmax.f32 %v967, %v1310
  %v1446 = vmax.f32 %v968, %v1315
  %v1447 = vmax.f32 %v969, %v1318
  %v1448 = vmax.f32 %v970, %v1323
  %v1449 = vmax.f32 %v971, %v1326
  %v1450 = vmax.f32 %v972, %v1331
  %v1451 = vmax.f32 %v973, %v1334
  %v1452 = vmax.f32 %v974, %v1339
  %v1453 = vmax.f32 %v975, %v1342
  %v1454 = vmax.f32 %v976, %v1347
  %v1455 = vmax.f32 %v977, %v1350
  %v1456 = vmax.f32 %v978, %v1355
  %v1457 = vmax.f32 %v979, %v1358
  %v1458 = vmax.f32 %v980, %v1363
  %v1459 = vmax.f32 %v981, %v1366
  %v1460 = vmax.f32 %v982, %v1371
  %v1461 = vmax.f32 %v983, %v1374
  %v1462 = vmax.f32 %v984, %v1379
  %v1463 = vmax.f32 %v985, %v1382
  %v1464 = vmax.f32 %v986, %v1387
  %v1465 = vmax.f32 %v987, %v1390
  %v1466 = vmax.f32 %v988, %v1395
  %v1467 = vmax.f32 %v989, %v1398
  %v1468 = vmax.f32 %v990, %v1403
  %v1469 = vmax.f32 %v991, %v1406
  %v1470 = vmax.f32 %v992, %v1411
  %v1471 = vmax.f32 %v993, %v1414
  %v1472 = vmax.f32 %v994, %v1419
  %v1473 = vld [vmem:[%s3] sm:$0xf]
  %v1474 = vld [vmem:[%s3 + $0x4] sm:$0xf]
  %v1475 = vld [vmem:[%s3 + $0x8] sm:$0xf]
  %v1476 = vld [vmem:[%s3 + $0xc] sm:$0xf]
  %v1477 = vld [vmem:[%s3 + $0x10] sm:$0xf]
  %v1478 = vld [vmem:[%s3 + $0x14] sm:$0xf]
  %v1479 = vld [vmem:[%s3 + $0x18] sm:$0xf]
  %v1480 = vld [vmem:[%s3 + $0x1c] sm:$0xf]
  %v1481 = vld [vmem:[%s3 + $0x20] sm:$0xf]
  %v1482 = vld [vmem:[%s3 + $0x24] sm:$0xf]
  %v1483 = vld [vmem:[%s3 + $0x28] sm:$0xf]
  %v1484 = vld [vmem:[%s3 + $0x2c] sm:$0xf]
  %v1485 = vld [vmem:[%s3 + $0x30] sm:$0xf]
  %v1486 = vld [vmem:[%s3 + $0x34] sm:$0xf]
  %v1487 = vld [vmem:[%s3 + $0x38] sm:$0xf]
  %v1488 = vld [vmem:[%s3 + $0x3c] sm:$0xf]
  %v1489 = vld [vmem:[%s3 + $0x40] sm:$0xf]
  %v1490 = vld [vmem:[%s3 + $0x44] sm:$0xf]
  %v1491 = vld [vmem:[%s3 + $0x48] sm:$0xf]
  %v1492 = vld [vmem:[%s3 + $0x4c] sm:$0xf]
  %v1493 = vld [vmem:[%s3 + $0x50] sm:$0xf]
  %v1494 = vld [vmem:[%s3 + $0x54] sm:$0xf]
  %v1495 = vld [vmem:[%s3 + $0x58] sm:$0xf]
  %v1496 = vld [vmem:[%s3 + $0x5c] sm:$0xf]
  %v1497 = vld [vmem:[%s3 + $0x60] sm:$0xf]
  %v1498 = vld [vmem:[%s3 + $0x64] sm:$0xf]
  %v1499 = vld [vmem:[%s3 + $0x68] sm:$0xf]
  %v1500 = vld [vmem:[%s3 + $0x6c] sm:$0xf]
  %v1501 = vld [vmem:[%s3 + $0x70] sm:$0xf]
  %v1502 = vld [vmem:[%s3 + $0x74] sm:$0xf]
  %v1503 = vld [vmem:[%s3 + $0x78] sm:$0xf]
  %v1504 = vld [vmem:[%s3 + $0x7c] sm:$0xf]
  %v1505 = vld [vmem:[%s3 + $0x80] sm:$0xf]
  %v1506 = vld [vmem:[%s3 + $0x84] sm:$0xf]
  %v1507 = vld [vmem:[%s3 + $0x88] sm:$0xf]
  %v1508 = vld [vmem:[%s3 + $0x8c] sm:$0xf]
  %v1509 = vld [vmem:[%s3 + $0x90] sm:$0xf]
  %v1510 = vld [vmem:[%s3 + $0x94] sm:$0xf]
  %v1511 = vld [vmem:[%s3 + $0x98] sm:$0xf]
  %v1512 = vld [vmem:[%s3 + $0x9c] sm:$0xf]
  %v1513 = vld [vmem:[%s3 + $0xa0] sm:$0xf]
  %v1514 = vld [vmem:[%s3 + $0xa4] sm:$0xf]
  %v1515 = vld [vmem:[%s3 + $0xa8] sm:$0xf]
  %v1516 = vld [vmem:[%s3 + $0xac] sm:$0xf]
  %v1517 = vld [vmem:[%s3 + $0xb0] sm:$0xf]
  %v1518 = vld [vmem:[%s3 + $0xb4] sm:$0xf]
  %v1519 = vld [vmem:[%s3 + $0xb8] sm:$0xf]
  %v1520 = vld [vmem:[%s3 + $0xbc] sm:$0xf]
  %v1521 = vld [vmem:[%s3 + $0xc0] sm:$0xf]
  %v1571 = vunpack.c.l.b16 %v1473
  %v1572 = vunpack.c.l.b16 %v1474
  %v1573 = vunpack.c.l.b16 %v1475
  %v1574 = vunpack.c.l.b16 %v1476
  %v1575 = vunpack.c.l.b16 %v1477
  %v1576 = vunpack.c.l.b16 %v1478
  %v1577 = vunpack.c.l.b16 %v1479
  %v1578 = vunpack.c.l.b16 %v1480
  %v1579 = vunpack.c.l.b16 %v1481
  %v1580 = vunpack.c.l.b16 %v1482
  %v1581 = vunpack.c.l.b16 %v1483
  %v1582 = vunpack.c.l.b16 %v1484
  %v1583 = vunpack.c.l.b16 %v1485
  %v1584 = vunpack.c.l.b16 %v1486
  %v1585 = vunpack.c.l.b16 %v1487
  %v1586 = vunpack.c.l.b16 %v1488
  %v1587 = vunpack.c.l.b16 %v1489
  %v1588 = vunpack.c.l.b16 %v1490
  %v1589 = vunpack.c.l.b16 %v1491
  %v1590 = vunpack.c.l.b16 %v1492
  %v1591 = vunpack.c.l.b16 %v1493
  %v1592 = vunpack.c.l.b16 %v1494
  %v1593 = vunpack.c.l.b16 %v1495
  %v1594 = vunpack.c.l.b16 %v1496
  %v1595 = vunpack.c.l.b16 %v1497
  %v1596 = vunpack.c.l.b16 %v1498
  %v1597 = vunpack.c.l.b16 %v1499
  %v1598 = vunpack.c.l.b16 %v1500
  %v1599 = vunpack.c.l.b16 %v1501
  %v1600 = vunpack.c.l.b16 %v1502
  %v1601 = vunpack.c.l.b16 %v1503
  %v1602 = vunpack.c.l.b16 %v1504
  %v1603 = vunpack.c.l.b16 %v1505
  %v1604 = vunpack.c.l.b16 %v1506
  %v1605 = vunpack.c.l.b16 %v1507
  %v1606 = vunpack.c.l.b16 %v1508
  %v1607 = vunpack.c.l.b16 %v1509
  %v1608 = vunpack.c.l.b16 %v1510
  %v1609 = vunpack.c.l.b16 %v1511
  %v1610 = vunpack.c.l.b16 %v1512
  %v1611 = vunpack.c.l.b16 %v1513
  %v1612 = vunpack.c.l.b16 %v1514
  %v1613 = vunpack.c.l.b16 %v1515
  %v1614 = vunpack.c.l.b16 %v1516
  %v1615 = vunpack.c.l.b16 %v1517
  %v1616 = vunpack.c.l.b16 %v1518
  %v1617 = vunpack.c.l.b16 %v1519
  %v1618 = vunpack.c.l.b16 %v1520
  %v1619 = vunpack.c.l.b16 %v1521
  %v1620 = vpack.c.b16 %v1572, %v1571
  %v1621 = vpack.c.b16 %v1574, %v1573
  %v1622 = vpack.c.b16 %v1576, %v1575
  %v1623 = vpack.c.b16 %v1578, %v1577
  %v1624 = vpack.c.b16 %v1580, %v1579
  %v1625 = vpack.c.b16 %v1582, %v1581
  %v1626 = vpack.c.b16 %v1584, %v1583
  %v1627 = vpack.c.b16 %v1586, %v1585
  %v1628 = vpack.c.b16 %v1588, %v1587
  %v1629 = vpack.c.b16 %v1590, %v1589
  %v1630 = vpack.c.b16 %v1592, %v1591
  %v1631 = vpack.c.b16 %v1594, %v1593
  %v1632 = vpack.c.b16 %v1596, %v1595
  %v1633 = vpack.c.b16 %v1598, %v1597
  %v1634 = vpack.c.b16 %v1600, %v1599
  %v1635 = vpack.c.b16 %v1602, %v1601
  %v1636 = vpack.c.b16 %v1604, %v1603
  %v1637 = vpack.c.b16 %v1606, %v1605
  %v1638 = vpack.c.b16 %v1608, %v1607
  %v1639 = vpack.c.b16 %v1610, %v1609
  %v1640 = vpack.c.b16 %v1612, %v1611
  %v1641 = vpack.c.b16 %v1614, %v1613
  %v1642 = vpack.c.b16 %v1616, %v1615
  %v1643 = vpack.c.b16 %v1618, %v1617
  %v1644 = vpack.c.b16 %v1619, %v1619
  %1670 = vmatprep.subr.bf16.mxu0 0
  %1671 = vmatpush1.bf16.msra.mxu0 %v276
  %1672 = vmatprep.subr.bf16.mxu0 0
  %1673 = vmatpush1.bf16.msra.mxu0 %v275
  %1674 = vmatprep.subr.bf16.mxu0 0
  %1675 = vmatpush1.bf16.msra.mxu0 %v274
  %1676 = vmatprep.subr.bf16.mxu0 0
  %1677 = vmatpush1.bf16.msra.mxu0 %v273
  %1678 = vmatprep.subr.bf16.mxu0 0
  %1679 = vmatpush1.bf16.msra.mxu0 %v272
  %1680 = vmatprep.subr.bf16.mxu0 0
  %1681 = vmatpush1.bf16.msra.mxu0 %v271
  %1682 = vmatprep.subr.bf16.mxu0 0
  %1683 = vmatpush1.bf16.msra.mxu0 %v270
  %1684 = vmatprep.subr.bf16.mxu0 0
  %1685 = vmatpush1.bf16.msra.mxu0 %v269
  %1686 = vmatprep.subr.bf16.mxu0 0
  %1687 = vmatpush2.bf16.msra.mxu0 0
  %1688 = vmatprep.subr.bf16.mxu0 0
  %1689 = vmatpush2.bf16.msra.mxu0 0
  %1690 = vmatprep.subr.bf16.mxu0 0
  %1691 = vmatpush2.bf16.msra.mxu0 0
  %1692 = vmatprep.subr.bf16.mxu0 0
  %1693 = vmatpush2.bf16.msra.mxu0 0
  %1694 = vmatprep.subr.bf16.mxu0 0
  %1695 = vmatpush2.bf16.msra.mxu0 0
  %1696 = vmatprep.subr.bf16.mxu0 0
  %1697 = vmatpush2.bf16.msra.mxu0 0
  %1698 = vmatprep.subr.bf16.mxu0 0
  %1699 = vmatpush2.bf16.msra.mxu0 0
  %1700 = vmatprep.subr.bf16.mxu0 0
  %1701 = vmatpush2.bf16.msra.mxu0 0
  %1702 = vmatprep.mubr.bf16.mxu0 0
  %1703 = vmatmul.mubr.bf16.gmra.mxu0 %v1620
  %v1704 = vpop.f32.mrf.mxu0
  %v1705 = vadd.f32 0.0, %v1704
  %v1706 = vpop.f32.mrf.mxu0
  %v1707 = vpop.f32.mrf.mxu0
  %v1708 = vadd.f32 0.0, %v1707
  %v1709 = vpop.f32.mrf.mxu0
  %1710 = vmatprep.mubr.bf16.mxu0 0
  %1711 = vmatmul.mubr.bf16.gmra.mxu0 %v1621
  %v1712 = vpop.f32.mrf.mxu0
  %v1713 = vadd.f32 0.0, %v1712
  %v1714 = vpop.f32.mrf.mxu0
  %v1715 = vpop.f32.mrf.mxu0
  %v1716 = vadd.f32 0.0, %v1715
  %v1717 = vpop.f32.mrf.mxu0
  %1718 = vmatprep.mubr.bf16.mxu0 0
  %1719 = vmatmul.mubr.bf16.gmra.mxu0 %v1622
  %v1720 = vpop.f32.mrf.mxu0
  %v1721 = vadd.f32 0.0, %v1720
  %v1722 = vpop.f32.mrf.mxu0
  %v1723 = vpop.f32.mrf.mxu0
  %v1724 = vadd.f32 0.0, %v1723
  %v1725 = vpop.f32.mrf.mxu0
  %1726 = vmatprep.mubr.bf16.mxu0 0
  %1727 = vmatmul.mubr.bf16.gmra.mxu0 %v1623
  %v1728 = vpop.f32.mrf.mxu0
  %v1729 = vadd.f32 0.0, %v1728
  %v1730 = vpop.f32.mrf.mxu0
  %v1731 = vpop.f32.mrf.mxu0
  %v1732 = vadd.f32 0.0, %v1731
  %v1733 = vpop.f32.mrf.mxu0
  %1734 = vmatprep.mubr.bf16.mxu0 0
  %1735 = vmatmul.mubr.bf16.gmra.mxu0 %v1624
  %v1736 = vpop.f32.mrf.mxu0
  %v1737 = vadd.f32 0.0, %v1736
  %v1738 = vpop.f32.mrf.mxu0
  %v1739 = vpop.f32.mrf.mxu0
  %v1740 = vadd.f32 0.0, %v1739
  %v1741 = vpop.f32.mrf.mxu0
  %1742 = vmatprep.mubr.bf16.mxu0 0
  %1743 = vmatmul.mubr.bf16.gmra.mxu0 %v1625
  %v1744 = vpop.f32.mrf.mxu0
  %v1745 = vadd.f32 0.0, %v1744
  %v1746 = vpop.f32.mrf.mxu0
  %v1747 = vpop.f32.mrf.mxu0
  %v1748 = vadd.f32 0.0, %v1747
  %v1749 = vpop.f32.mrf.mxu0
  %1750 = vmatprep.mubr.bf16.mxu0 0
  %1751 = vmatmul.mubr.bf16.gmra.mxu0 %v1626
  %v1752 = vpop.f32.mrf.mxu0
  %v1753 = vadd.f32 0.0, %v1752
  %v1754 = vpop.f32.mrf.mxu0
  %v1755 = vpop.f32.mrf.mxu0
  %v1756 = vadd.f32 0.0, %v1755
  %v1757 = vpop.f32.mrf.mxu0
  %1758 = vmatprep.mubr.bf16.mxu0 0
  %1759 = vmatmul.mubr.bf16.gmra.mxu0 %v1627
  %v1760 = vpop.f32.mrf.mxu0
  %v1761 = vadd.f32 0.0, %v1760
  %v1762 = vpop.f32.mrf.mxu0
  %v1763 = vpop.f32.mrf.mxu0
  %v1764 = vadd.f32 0.0, %v1763
  %v1765 = vpop.f32.mrf.mxu0
  %1766 = vmatprep.mubr.bf16.mxu0 0
  %1767 = vmatmul.mubr.bf16.gmra.mxu0 %v1628
  %v1768 = vpop.f32.mrf.mxu0
  %v1769 = vadd.f32 0.0, %v1768
  %v1770 = vpop.f32.mrf.mxu0
  %v1771 = vpop.f32.mrf.mxu0
  %v1772 = vadd.f32 0.0, %v1771
  %v1773 = vpop.f32.mrf.mxu0
  %1774 = vmatprep.mubr.bf16.mxu0 0
  %1775 = vmatmul.mubr.bf16.gmra.mxu0 %v1629
  %v1776 = vpop.f32.mrf.mxu0
  %v1777 = vadd.f32 0.0, %v1776
  %v1778 = vpop.f32.mrf.mxu0
  %v1779 = vpop.f32.mrf.mxu0
  %v1780 = vadd.f32 0.0, %v1779
  %v1781 = vpop.f32.mrf.mxu0
  %1782 = vmatprep.mubr.bf16.mxu0 0
  %1783 = vmatmul.mubr.bf16.gmra.mxu0 %v1630
  %v1784 = vpop.f32.mrf.mxu0
  %v1785 = vadd.f32 0.0, %v1784
  %v1786 = vpop.f32.mrf.mxu0
  %v1787 = vpop.f32.mrf.mxu0
  %v1788 = vadd.f32 0.0, %v1787
  %v1789 = vpop.f32.mrf.mxu0
  %1790 = vmatprep.mubr.bf16.mxu0 0
  %1791 = vmatmul.mubr.bf16.gmra.mxu0 %v1631
  %v1792 = vpop.f32.mrf.mxu0
  %v1793 = vadd.f32 0.0, %v1792
  %v1794 = vpop.f32.mrf.mxu0
  %v1795 = vpop.f32.mrf.mxu0
  %v1796 = vadd.f32 0.0, %v1795
  %v1797 = vpop.f32.mrf.mxu0
  %1798 = vmatprep.mubr.bf16.mxu0 0
  %1799 = vmatmul.mubr.bf16.gmra.mxu0 %v1632
  %v1800 = vpop.f32.mrf.mxu0
  %v1801 = vadd.f32 0.0, %v1800
  %v1802 = vpop.f32.mrf.mxu0
  %v1803 = vpop.f32.mrf.mxu0
  %v1804 = vadd.f32 0.0, %v1803
  %v1805 = vpop.f32.mrf.mxu0
  %1806 = vmatprep.mubr.bf16.mxu0 0
  %1807 = vmatmul.mubr.bf16.gmra.mxu0 %v1633
  %v1808 = vpop.f32.mrf.mxu0
  %v1809 = vadd.f32 0.0, %v1808
  %v1810 = vpop.f32.mrf.mxu0
  %v1811 = vpop.f32.mrf.mxu0
  %v1812 = vadd.f32 0.0, %v1811
  %v1813 = vpop.f32.mrf.mxu0
  %1814 = vmatprep.mubr.bf16.mxu0 0
  %1815 = vmatmul.mubr.bf16.gmra.mxu0 %v1634
  %v1816 = vpop.f32.mrf.mxu0
  %v1817 = vadd.f32 0.0, %v1816
  %v1818 = vpop.f32.mrf.mxu0
  %v1819 = vpop.f32.mrf.mxu0
  %v1820 = vadd.f32 0.0, %v1819
  %v1821 = vpop.f32.mrf.mxu0
  %1822 = vmatprep.mubr.bf16.mxu0 0
  %1823 = vmatmul.mubr.bf16.gmra.mxu0 %v1635
  %v1824 = vpop.f32.mrf.mxu0
  %v1825 = vadd.f32 0.0, %v1824
  %v1826 = vpop.f32.mrf.mxu0
  %v1827 = vpop.f32.mrf.mxu0
  %v1828 = vadd.f32 0.0, %v1827
  %v1829 = vpop.f32.mrf.mxu0
  %1830 = vmatprep.mubr.bf16.mxu0 0
  %1831 = vmatmul.mubr.bf16.gmra.mxu0 %v1636
  %v1832 = vpop.f32.mrf.mxu0
  %v1833 = vadd.f32 0.0, %v1832
  %v1834 = vpop.f32.mrf.mxu0
  %v1835 = vpop.f32.mrf.mxu0
  %v1836 = vadd.f32 0.0, %v1835
  %v1837 = vpop.f32.mrf.mxu0
  %1838 = vmatprep.mubr.bf16.mxu0 0
  %1839 = vmatmul.mubr.bf16.gmra.mxu0 %v1637
  %v1840 = vpop.f32.mrf.mxu0
  %v1841 = vadd.f32 0.0, %v1840
  %v1842 = vpop.f32.mrf.mxu0
  %v1843 = vpop.f32.mrf.mxu0
  %v1844 = vadd.f32 0.0, %v1843
  %v1845 = vpop.f32.mrf.mxu0
  %1846 = vmatprep.mubr.bf16.mxu0 0
  %1847 = vmatmul.mubr.bf16.gmra.mxu0 %v1638
  %v1848 = vpop.f32.mrf.mxu0
  %v1849 = vadd.f32 0.0, %v1848
  %v1850 = vpop.f32.mrf.mxu0
  %v1851 = vpop.f32.mrf.mxu0
  %v1852 = vadd.f32 0.0, %v1851
  %v1853 = vpop.f32.mrf.mxu0
  %1854 = vmatprep.mubr.bf16.mxu0 0
  %1855 = vmatmul.mubr.bf16.gmra.mxu0 %v1639
  %v1856 = vpop.f32.mrf.mxu0
  %v1857 = vadd.f32 0.0, %v1856
  %v1858 = vpop.f32.mrf.mxu0
  %v1859 = vpop.f32.mrf.mxu0
  %v1860 = vadd.f32 0.0, %v1859
  %v1861 = vpop.f32.mrf.mxu0
  %1862 = vmatprep.mubr.bf16.mxu0 0
  %1863 = vmatmul.mubr.bf16.gmra.mxu0 %v1640
  %v1864 = vpop.f32.mrf.mxu0
  %v1865 = vadd.f32 0.0, %v1864
  %v1866 = vpop.f32.mrf.mxu0
  %v1867 = vpop.f32.mrf.mxu0
  %v1868 = vadd.f32 0.0, %v1867
  %v1869 = vpop.f32.mrf.mxu0
  %1870 = vmatprep.mubr.bf16.mxu0 0
  %1871 = vmatmul.mubr.bf16.gmra.mxu0 %v1641
  %v1872 = vpop.f32.mrf.mxu0
  %v1873 = vadd.f32 0.0, %v1872
  %v1874 = vpop.f32.mrf.mxu0
  %v1875 = vpop.f32.mrf.mxu0
  %v1876 = vadd.f32 0.0, %v1875
  %v1877 = vpop.f32.mrf.mxu0
  %1878 = vmatprep.mubr.bf16.mxu0 0
  %1879 = vmatmul.mubr.bf16.gmra.mxu0 %v1642
  %v1880 = vpop.f32.mrf.mxu0
  %v1881 = vadd.f32 0.0, %v1880
  %v1882 = vpop.f32.mrf.mxu0
  %v1883 = vpop.f32.mrf.mxu0
  %v1884 = vadd.f32 0.0, %v1883
  %v1885 = vpop.f32.mrf.mxu0
  %1886 = vmatprep.mubr.bf16.mxu0 0
  %1887 = vmatmul.mubr.bf16.gmra.mxu0 %v1643
  %v1888 = vpop.f32.mrf.mxu0
  %v1889 = vadd.f32 0.0, %v1888
  %v1890 = vpop.f32.mrf.mxu0
  %v1891 = vpop.f32.mrf.mxu0
  %v1892 = vadd.f32 0.0, %v1891
  %v1893 = vpop.f32.mrf.mxu0
  %1894 = vmatprep.mubr.bf16.mxu0 0
  %1895 = vmatmul.mubr.bf16.gmra.mxu0 %v1644
  %v1896 = vpop.f32.mrf.mxu0
  %v1897 = vadd.f32 0.0, %v1896
  %v1898 = vpop.f32.mrf.mxu0
  %v1899 = vpop.f32.mrf.mxu0
  %v1900 = vpop.f32.mrf.mxu0
  %1901 = vdwg.mxu0
  %v1902 = vmax.f32 %v1424, %v1705
  %v1903 = vmax.f32 %v1425, %v1708
  %v1904 = vmax.f32 %v1426, %v1713
  %v1905 = vmax.f32 %v1427, %v1716
  %v1906 = vmax.f32 %v1428, %v1721
  %v1907 = vmax.f32 %v1429, %v1724
  %v1908 = vmax.f32 %v1430, %v1729
  %v1909 = vmax.f32 %v1431, %v1732
  %v1910 = vmax.f32 %v1432, %v1737
  %v1911 = vmax.f32 %v1433, %v1740
  %v1912 = vmax.f32 %v1434, %v1745
  %v1913 = vmax.f32 %v1435, %v1748
  %v1914 = vmax.f32 %v1436, %v1753
  %v1915 = vmax.f32 %v1437, %v1756
  %v1916 = vmax.f32 %v1438, %v1761
  %v1917 = vmax.f32 %v1439, %v1764
  %v1918 = vmax.f32 %v1440, %v1769
  %v1919 = vmax.f32 %v1441, %v1772
  %v1920 = vmax.f32 %v1442, %v1777
  %v1921 = vmax.f32 %v1443, %v1780
  %v1922 = vmax.f32 %v1444, %v1785
  %v1923 = vmax.f32 %v1445, %v1788
  %v1924 = vmax.f32 %v1446, %v1793
  %v1925 = vmax.f32 %v1447, %v1796
  %v1926 = vmax.f32 %v1448, %v1801
  %v1927 = vmax.f32 %v1449, %v1804
  %v1928 = vmax.f32 %v1450, %v1809
  %v1929 = vmax.f32 %v1451, %v1812
  %v1930 = vmax.f32 %v1452, %v1817
  %v1931 = vmax.f32 %v1453, %v1820
  %v1932 = vmax.f32 %v1454, %v1825
  %v1933 = vmax.f32 %v1455, %v1828
  %v1934 = vmax.f32 %v1456, %v1833
  %v1935 = vmax.f32 %v1457, %v1836
  %v1936 = vmax.f32 %v1458, %v1841
  %v1937 = vmax.f32 %v1459, %v1844
  %v1938 = vmax.f32 %v1460, %v1849
  %v1939 = vmax.f32 %v1461, %v1852
  %v1940 = vmax.f32 %v1462, %v1857
  %v1941 = vmax.f32 %v1463, %v1860
  %v1942 = vmax.f32 %v1464, %v1865
  %v1943 = vmax.f32 %v1465, %v1868
  %v1944 = vmax.f32 %v1466, %v1873
  %v1945 = vmax.f32 %v1467, %v1876
  %v1946 = vmax.f32 %v1468, %v1881
  %v1947 = vmax.f32 %v1469, %v1884
  %v1948 = vmax.f32 %v1470, %v1889
  %v1949 = vmax.f32 %v1471, %v1892
  %v1950 = vmax.f32 %v1472, %v1897
  %v1951 = vld [vmem:[%s5] sm:$0x1]
  %v1953 = vlaneseq
  %v1954 = vshrl.u32 %v1953, 7
  %v1955 = vsub.s32 0, %v1954
  %v1956 = vrot.slane %v1951, %v1955
  %v1958 = vadd.f32 %v1902, %v1956
  %v1959 = vadd.f32 %v1903, %v1956
  %v1960 = vadd.f32 %v1904, %v1956
  %v1961 = vadd.f32 %v1905, %v1956
  %v1962 = vadd.f32 %v1906, %v1956
  %v1963 = vadd.f32 %v1907, %v1956
  %v1964 = vadd.f32 %v1908, %v1956
  %v1965 = vadd.f32 %v1909, %v1956
  %v1966 = vadd.f32 %v1910, %v1956
  %v1967 = vadd.f32 %v1911, %v1956
  %v1968 = vadd.f32 %v1912, %v1956
  %v1969 = vadd.f32 %v1913, %v1956
  %v1970 = vadd.f32 %v1914, %v1956
  %v1971 = vadd.f32 %v1915, %v1956
  %v1972 = vadd.f32 %v1916, %v1956
  %v1973 = vadd.f32 %v1917, %v1956
  %v1974 = vadd.f32 %v1918, %v1956
  %v1975 = vadd.f32 %v1919, %v1956
  %v1976 = vadd.f32 %v1920, %v1956
  %v1977 = vadd.f32 %v1921, %v1956
  %v1978 = vadd.f32 %v1922, %v1956
  %v1979 = vadd.f32 %v1923, %v1956
  %v1980 = vadd.f32 %v1924, %v1956
  %v1981 = vadd.f32 %v1925, %v1956
  %v1982 = vadd.f32 %v1926, %v1956
  %v1983 = vadd.f32 %v1927, %v1956
  %v1984 = vadd.f32 %v1928, %v1956
  %v1985 = vadd.f32 %v1929, %v1956
  %v1986 = vadd.f32 %v1930, %v1956
  %v1987 = vadd.f32 %v1931, %v1956
  %v1988 = vadd.f32 %v1932, %v1956
  %v1989 = vadd.f32 %v1933, %v1956
  %v1990 = vadd.f32 %v1934, %v1956
  %v1991 = vadd.f32 %v1935, %v1956
  %v1992 = vadd.f32 %v1936, %v1956
  %v1993 = vadd.f32 %v1937, %v1956
  %v1994 = vadd.f32 %v1938, %v1956
  %v1995 = vadd.f32 %v1939, %v1956
  %v1996 = vadd.f32 %v1940, %v1956
  %v1997 = vadd.f32 %v1941, %v1956
  %v1998 = vadd.f32 %v1942, %v1956
  %v1999 = vadd.f32 %v1943, %v1956
  %v2000 = vadd.f32 %v1944, %v1956
  %v2001 = vadd.f32 %v1945, %v1956
  %v2002 = vadd.f32 %v1946, %v1956
  %v2003 = vadd.f32 %v1947, %v1956
  %v2004 = vadd.f32 %v1948, %v1956
  %v2005 = vadd.f32 %v1949, %v1956
  %v2006 = vadd.f32 %v1950, %v1956
  %v2007 = vmax.f32 %v1958, 0.0
  %v2008 = vmax.f32 %v1959, 0.0
  %v2009 = vmax.f32 %v1960, 0.0
  %v2010 = vmax.f32 %v1961, 0.0
  %v2011 = vmax.f32 %v1962, 0.0
  %v2012 = vmax.f32 %v1963, 0.0
  %v2013 = vmax.f32 %v1964, 0.0
  %v2014 = vmax.f32 %v1965, 0.0
  %v2015 = vmax.f32 %v1966, 0.0
  %v2016 = vmax.f32 %v1967, 0.0
  %v2017 = vmax.f32 %v1968, 0.0
  %v2018 = vmax.f32 %v1969, 0.0
  %v2019 = vmax.f32 %v1970, 0.0
  %v2020 = vmax.f32 %v1971, 0.0
  %v2021 = vmax.f32 %v1972, 0.0
  %v2022 = vmax.f32 %v1973, 0.0
  %v2023 = vmax.f32 %v1974, 0.0
  %v2024 = vmax.f32 %v1975, 0.0
  %v2025 = vmax.f32 %v1976, 0.0
  %v2026 = vmax.f32 %v1977, 0.0
  %v2027 = vmax.f32 %v1978, 0.0
  %v2028 = vmax.f32 %v1979, 0.0
  %v2029 = vmax.f32 %v1980, 0.0
  %v2030 = vmax.f32 %v1981, 0.0
  %v2031 = vmax.f32 %v1982, 0.0
  %v2032 = vmax.f32 %v1983, 0.0
  %v2033 = vmax.f32 %v1984, 0.0
  %v2034 = vmax.f32 %v1985, 0.0
  %v2035 = vmax.f32 %v1986, 0.0
  %v2036 = vmax.f32 %v1987, 0.0
  %v2037 = vmax.f32 %v1988, 0.0
  %v2038 = vmax.f32 %v1989, 0.0
  %v2039 = vmax.f32 %v1990, 0.0
  %v2040 = vmax.f32 %v1991, 0.0
  %v2041 = vmax.f32 %v1992, 0.0
  %v2042 = vmax.f32 %v1993, 0.0
  %v2043 = vmax.f32 %v1994, 0.0
  %v2044 = vmax.f32 %v1995, 0.0
  %v2045 = vmax.f32 %v1996, 0.0
  %v2046 = vmax.f32 %v1997, 0.0
  %v2047 = vmax.f32 %v1998, 0.0
  %v2048 = vmax.f32 %v1999, 0.0
  %v2049 = vmax.f32 %v2000, 0.0
  %v2050 = vmax.f32 %v2001, 0.0
  %v2051 = vmax.f32 %v2002, 0.0
  %v2052 = vmax.f32 %v2003, 0.0
  %v2053 = vmax.f32 %v2004, 0.0
  %v2054 = vmax.f32 %v2005, 0.0
  %v2055 = vmax.f32 %v2006, 0.0
  %v2056 = vpack.c.bf16 %v2008, %v2007
  %v2057 = vpack.c.bf16 %v2010, %v2009
  %v2058 = vpack.c.bf16 %v2012, %v2011
  %v2059 = vpack.c.bf16 %v2014, %v2013
  %v2060 = vpack.c.bf16 %v2016, %v2015
  %v2061 = vpack.c.bf16 %v2018, %v2017
  %v2062 = vpack.c.bf16 %v2020, %v2019
  %v2063 = vpack.c.bf16 %v2022, %v2021
  %v2064 = vpack.c.bf16 %v2024, %v2023
  %v2065 = vpack.c.bf16 %v2026, %v2025
  %v2066 = vpack.c.bf16 %v2028, %v2027
  %v2067 = vpack.c.bf16 %v2030, %v2029
  %v2068 = vpack.c.bf16 %v2032, %v2031
  %v2069 = vpack.c.bf16 %v2034, %v2033
  %v2070 = vpack.c.bf16 %v2036, %v2035
  %v2071 = vpack.c.bf16 %v2038, %v2037
  %v2072 = vpack.c.bf16 %v2040, %v2039
  %v2073 = vpack.c.bf16 %v2042, %v2041
  %v2074 = vpack.c.bf16 %v2044, %v2043
  %v2075 = vpack.c.bf16 %v2046, %v2045
  %v2076 = vpack.c.bf16 %v2048, %v2047
  %v2077 = vpack.c.bf16 %v2050, %v2049
  %v2078 = vpack.c.bf16 %v2052, %v2051
  %v2079 = vpack.c.bf16 %v2054, %v2053
  %v2080 = vpack.c.bf16 %v2055, %v2055
  %v2106 = vunpack.c.l.b16 %v2056
  %v2107 = vunpack.c.h.b16 %v2056
  %v2108 = vunpack.c.l.b16 %v2057
  %v2109 = vunpack.c.h.b16 %v2057
  %v2110 = vunpack.c.l.b16 %v2058
  %v2111 = vunpack.c.h.b16 %v2058
  %v2112 = vunpack.c.l.b16 %v2059
  %v2113 = vunpack.c.h.b16 %v2059
  %v2114 = vunpack.c.l.b16 %v2060
  %v2115 = vunpack.c.h.b16 %v2060
  %v2116 = vunpack.c.l.b16 %v2061
  %v2117 = vunpack.c.h.b16 %v2061
  %v2118 = vunpack.c.l.b16 %v2062
  %v2119 = vunpack.c.h.b16 %v2062
  %v2120 = vunpack.c.l.b16 %v2063
  %v2121 = vunpack.c.h.b16 %v2063
  %v2122 = vunpack.c.l.b16 %v2064
  %v2123 = vunpack.c.h.b16 %v2064
  %v2124 = vunpack.c.l.b16 %v2065
  %v2125 = vunpack.c.h.b16 %v2065
  %v2126 = vunpack.c.l.b16 %v2066
  %v2127 = vunpack.c.h.b16 %v2066
  %v2128 = vunpack.c.l.b16 %v2067
  %v2129 = vunpack.c.h.b16 %v2067
  %v2130 = vunpack.c.l.b16 %v2068
  %v2131 = vunpack.c.h.b16 %v2068
  %v2132 = vunpack.c.l.b16 %v2069
  %v2133 = vunpack.c.h.b16 %v2069
  %v2134 = vunpack.c.l.b16 %v2070
  %v2135 = vunpack.c.h.b16 %v2070
  %v2136 = vunpack.c.l.b16 %v2071
  %v2137 = vunpack.c.h.b16 %v2071
  %v2138 = vunpack.c.l.b16 %v2072
  %v2139 = vunpack.c.h.b16 %v2072
  %v2140 = vunpack.c.l.b16 %v2073
  %v2141 = vunpack.c.h.b16 %v2073
  %v2142 = vunpack.c.l.b16 %v2074
  %v2143 = vunpack.c.h.b16 %v2074
  %v2144 = vunpack.c.l.b16 %v2075
  %v2145 = vunpack.c.h.b16 %v2075
  %v2146 = vunpack.c.l.b16 %v2076
  %v2147 = vunpack.c.h.b16 %v2076
  %v2148 = vunpack.c.l.b16 %v2077
  %v2149 = vunpack.c.h.b16 %v2077
  %v2150 = vunpack.c.l.b16 %v2078
  %v2151 = vunpack.c.h.b16 %v2078
  %v2152 = vunpack.c.l.b16 %v2079
  %v2153 = vunpack.c.h.b16 %v2079
  %v2154 = vunpack.c.l.b16 %v2080
  %v2155 = vpack.c.b16 %v2106, %v2106
  %v2156 = vpack.c.b16 %v2107, %v2107
  %v2157 = vpack.c.b16 %v2108, %v2108
  %v2158 = vpack.c.b16 %v2109, %v2109
  %v2159 = vpack.c.b16 %v2110, %v2110
  %v2160 = vpack.c.b16 %v2111, %v2111
  %v2161 = vpack.c.b16 %v2112, %v2112
  %v2162 = vpack.c.b16 %v2113, %v2113
  %v2163 = vpack.c.b16 %v2114, %v2114
  %v2164 = vpack.c.b16 %v2115, %v2115
  %v2165 = vpack.c.b16 %v2116, %v2116
  %v2166 = vpack.c.b16 %v2117, %v2117
  %v2167 = vpack.c.b16 %v2118, %v2118
  %v2168 = vpack.c.b16 %v2119, %v2119
  %v2169 = vpack.c.b16 %v2120, %v2120
  %v2170 = vpack.c.b16 %v2121, %v2121
  %v2171 = vpack.c.b16 %v2122, %v2122
  %v2172 = vpack.c.b16 %v2123, %v2123
  %v2173 = vpack.c.b16 %v2124, %v2124
  %v2174 = vpack.c.b16 %v2125, %v2125
  %v2175 = vpack.c.b16 %v2126, %v2126
  %v2176 = vpack.c.b16 %v2127, %v2127
  %v2177 = vpack.c.b16 %v2128, %v2128
  %v2178 = vpack.c.b16 %v2129, %v2129
  %v2179 = vpack.c.b16 %v2130, %v2130
  %v2180 = vpack.c.b16 %v2131, %v2131
  %v2181 = vpack.c.b16 %v2132, %v2132
  %v2182 = vpack.c.b16 %v2133, %v2133
  %v2183 = vpack.c.b16 %v2134, %v2134
  %v2184 = vpack.c.b16 %v2135, %v2135
  %v2185 = vpack.c.b16 %v2136, %v2136
  %v2186 = vpack.c.b16 %v2137, %v2137
  %v2187 = vpack.c.b16 %v2138, %v2138
  %v2188 = vpack.c.b16 %v2139, %v2139
  %v2189 = vpack.c.b16 %v2140, %v2140
  %v2190 = vpack.c.b16 %v2141, %v2141
  %v2191 = vpack.c.b16 %v2142, %v2142
  %v2192 = vpack.c.b16 %v2143, %v2143
  %v2193 = vpack.c.b16 %v2144, %v2144
  %v2194 = vpack.c.b16 %v2145, %v2145
  %v2195 = vpack.c.b16 %v2146, %v2146
  %v2196 = vpack.c.b16 %v2147, %v2147
  %v2197 = vpack.c.b16 %v2148, %v2148
  %v2198 = vpack.c.b16 %v2149, %v2149
  %v2199 = vpack.c.b16 %v2150, %v2150
  %v2200 = vpack.c.b16 %v2151, %v2151
  %v2201 = vpack.c.b16 %v2152, %v2152
  %v2202 = vpack.c.b16 %v2153, %v2153
  %v2203 = vpack.c.b16 %v2154, %v2154
  %2253 = vst [vmem:[%s6] sm:$0xf] %v2155
  %2254 = vst [vmem:[%s6 + $0x4] sm:$0xf] %v2156
  %2255 = vst [vmem:[%s6 + $0x8] sm:$0xf] %v2157
  %2256 = vst [vmem:[%s6 + $0xc] sm:$0xf] %v2158
  %2257 = vst [vmem:[%s6 + $0x10] sm:$0xf] %v2159
  %2258 = vst [vmem:[%s6 + $0x14] sm:$0xf] %v2160
  %2259 = vst [vmem:[%s6 + $0x18] sm:$0xf] %v2161
  %2260 = vst [vmem:[%s6 + $0x1c] sm:$0xf] %v2162
  %2261 = vst [vmem:[%s6 + $0x20] sm:$0xf] %v2163
  %2262 = vst [vmem:[%s6 + $0x24] sm:$0xf] %v2164
  %2263 = vst [vmem:[%s6 + $0x28] sm:$0xf] %v2165
  %2264 = vst [vmem:[%s6 + $0x2c] sm:$0xf] %v2166
  %2265 = vst [vmem:[%s6 + $0x30] sm:$0xf] %v2167
  %2266 = vst [vmem:[%s6 + $0x34] sm:$0xf] %v2168
  %2267 = vst [vmem:[%s6 + $0x38] sm:$0xf] %v2169
  %2268 = vst [vmem:[%s6 + $0x3c] sm:$0xf] %v2170
  %2269 = vst [vmem:[%s6 + $0x40] sm:$0xf] %v2171
  %2270 = vst [vmem:[%s6 + $0x44] sm:$0xf] %v2172
  %2271 = vst [vmem:[%s6 + $0x48] sm:$0xf] %v2173
  %2272 = vst [vmem:[%s6 + $0x4c] sm:$0xf] %v2174
  %2273 = vst [vmem:[%s6 + $0x50] sm:$0xf] %v2175
  %2274 = vst [vmem:[%s6 + $0x54] sm:$0xf] %v2176
  %2275 = vst [vmem:[%s6 + $0x58] sm:$0xf] %v2177
  %2276 = vst [vmem:[%s6 + $0x5c] sm:$0xf] %v2178
  %2277 = vst [vmem:[%s6 + $0x60] sm:$0xf] %v2179
  %2278 = vst [vmem:[%s6 + $0x64] sm:$0xf] %v2180
  %2279 = vst [vmem:[%s6 + $0x68] sm:$0xf] %v2181
  %2280 = vst [vmem:[%s6 + $0x6c] sm:$0xf] %v2182
  %2281 = vst [vmem:[%s6 + $0x70] sm:$0xf] %v2183
  %2282 = vst [vmem:[%s6 + $0x74] sm:$0xf] %v2184
  %2283 = vst [vmem:[%s6 + $0x78] sm:$0xf] %v2185
  %2284 = vst [vmem:[%s6 + $0x7c] sm:$0xf] %v2186
  %2285 = vst [vmem:[%s6 + $0x80] sm:$0xf] %v2187
  %2286 = vst [vmem:[%s6 + $0x84] sm:$0xf] %v2188
  %2287 = vst [vmem:[%s6 + $0x88] sm:$0xf] %v2189
  %2288 = vst [vmem:[%s6 + $0x8c] sm:$0xf] %v2190
  %2289 = vst [vmem:[%s6 + $0x90] sm:$0xf] %v2191
  %2290 = vst [vmem:[%s6 + $0x94] sm:$0xf] %v2192
  %2291 = vst [vmem:[%s6 + $0x98] sm:$0xf] %v2193
  %2292 = vst [vmem:[%s6 + $0x9c] sm:$0xf] %v2194
  %2293 = vst [vmem:[%s6 + $0xa0] sm:$0xf] %v2195
  %2294 = vst [vmem:[%s6 + $0xa4] sm:$0xf] %v2196
  %2295 = vst [vmem:[%s6 + $0xa8] sm:$0xf] %v2197
  %2296 = vst [vmem:[%s6 + $0xac] sm:$0xf] %v2198
  %2297 = vst [vmem:[%s6 + $0xb0] sm:$0xf] %v2199
  %2298 = vst [vmem:[%s6 + $0xb4] sm:$0xf] %v2200
  %2299 = vst [vmem:[%s6 + $0xb8] sm:$0xf] %v2201
  %2300 = vst [vmem:[%s6 + $0xbc] sm:$0xf] %v2202
  %2301 = vst [vmem:[%s6 + $0xc0] sm:$0xf] %v2203
  // Predicated region
  $region26: #{gcn_forward.3} parent=0 // pred_check
    _
  $region27: #{gcn_forward.3} parent=0 // pred_check_branch
    %2303 = sbr.rel (0) target = $region29
  $region28: #{gcn_forward.3} parent=0 // pred_region
    _
  $region29: #{gcn_forward.3} parent=0 // pred_fallthru
    _
  // Predicated region
  $region30: #{gcn_forward.3} parent=0 // pred_check
    _
  $region31: #{gcn_forward.3} parent=0 // pred_check_branch
    %2305 = sbr.rel (0) target = $region33
  $region32: #{gcn_forward.3} parent=0 // pred_region
    _
  $region33: #{gcn_forward.3} parent=0 // pred_fallthru
    _

// kernel: gcn_forward.4
$region0: #{gcn_forward.4}
  #allocation0 [shape = 'u32[]', space=smem, size = 0x4, offset = 0x4, fixed_abs, tag = 'smem constant byte address 0x4 - core index']
  #allocation1 [shape = 'u32[144,128]{1,0:T(1,128)}', space=vmem, size = 0x12000, scoped, tag = 'internal scratch']
  %s0 = inlined_call_operand.vmem [shape: bf16[104,896], index: 0, kind: input, shape index: {}]
  %s1 = inlined_call_operand.vmem [shape: bf16[104,896], index: 1, kind: input, shape index: {}]
  %s2 = inlined_call_operand.vmem [shape: bf16[104,896], index: 2, kind: input, shape index: {}]
  %s3 = inlined_call_operand.vmem [shape: bf16[104,896], index: 3, kind: input, shape index: {}]
  %s4 = inlined_call_operand.vmem [shape: bf16[896,128], index: 4, kind: input, shape index: {}]
  %s5 = inlined_call_operand.vmem [shape: f32[1,128], index: 5, kind: input, shape index: {}]
  %s6 = inlined_call_operand.vmem [shape: bf16[104,128], index: 6, kind: output, shape index: {}]
  %s7 = sld [smem:[#allocation0]]
  $region34: #{gcn_forward.4} parent=0
    _
  %s9 = ssub.s32 1, %s7
  %s10 = scalar_select 0, %s9, %s7
  // Predicated region
  $region2: #{gcn_forward.4} parent=0 // pred_check
    _
  $region3: #{gcn_forward.4} parent=0 // pred_check_branch
    %12 = sbr.rel (0) target = $region5
  $region4: #{gcn_forward.4} parent=0 // pred_region
    _
  $region5: #{gcn_forward.4} parent=0 // pred_fallthru
    _
  // Predicated region
  $region6: #{gcn_forward.4} parent=0 // pred_check
    _
  $region7: #{gcn_forward.4} parent=0 // pred_check_branch
    %14 = sbr.rel (0) target = $region9
  $region8: #{gcn_forward.4} parent=0 // pred_region
    _
  $region9: #{gcn_forward.4} parent=0 // pred_fallthru
    _
  // Predicated region
  $region10: #{gcn_forward.4} parent=0 // pred_check
    _
  $region11: #{gcn_forward.4} parent=0 // pred_check_branch
    %16 = sbr.rel (0) target = $region13
  $region12: #{gcn_forward.4} parent=0 // pred_region
    _
  $region13: #{gcn_forward.4} parent=0 // pred_fallthru
    _
  // Predicated region
  $region14: #{gcn_forward.4} parent=0 // pred_check
    _
  $region15: #{gcn_forward.4} parent=0 // pred_check_branch
    %18 = sbr.rel (0) target = $region17
  $region16: #{gcn_forward.4} parent=0 // pred_region
    _
  $region17: #{gcn_forward.4} parent=0 // pred_fallthru
    _
  // Predicated region
  $region18: #{gcn_forward.4} parent=0 // pred_check
    _
  $region19: #{gcn_forward.4} parent=0 // pred_check_branch
    %20 = sbr.rel (0) target = $region21
  $region20: #{gcn_forward.4} parent=0 // pred_region
    _
  $region21: #{gcn_forward.4} parent=0 // pred_fallthru
    _
  // Predicated region
  $region22: #{gcn_forward.4} parent=0 // pred_check
    _
  $region23: #{gcn_forward.4} parent=0 // pred_check_branch
    %22 = sbr.rel (0) target = $region25
  $region24: #{gcn_forward.4} parent=0 // pred_region
    _
  $region25: #{gcn_forward.4} parent=0 // pred_fallthru
    _
  %v24 = vld [vmem:[%s4] sm:$0xf]
  %v25 = vld [vmem:[%s4 + $0x4] sm:$0xf]
  %v26 = vld [vmem:[%s4 + $0x8] sm:$0xf]
  %v27 = vld [vmem:[%s4 + $0xc] sm:$0xf]
  %v28 = vld [vmem:[%s4 + $0x10] sm:$0xf]
  %v29 = vld [vmem:[%s4 + $0x14] sm:$0xf]
  %v30 = vld [vmem:[%s4 + $0x18] sm:$0xf]
  %v31 = vld [vmem:[%s4 + $0x1c] sm:$0xf]
  %v32 = vld [vmem:[%s4 + $0x20] sm:$0xf]
  %v33 = vld [vmem:[%s4 + $0x24] sm:$0xf]
  %v34 = vld [vmem:[%s4 + $0x28] sm:$0xf]
  %v35 = vld [vmem:[%s4 + $0x2c] sm:$0xf]
  %v36 = vld [vmem:[%s4 + $0x30] sm:$0xf]
  %v37 = vld [vmem:[%s4 + $0x34] sm:$0xf]
  %v38 = vld [vmem:[%s4 + $0x38] sm:$0xf]
  %v39 = vld [vmem:[%s4 + $0x3c] sm:$0xf]
  %v40 = vld [vmem:[%s4 + $0x40] sm:$0xf]
  %v41 = vld [vmem:[%s4 + $0x44] sm:$0xf]
  %v42 = vld [vmem:[%s4 + $0x48] sm:$0xf]
  %v43 = vld [vmem:[%s4 + $0x4c] sm:$0xf]
  %v44 = vld [vmem:[%s4 + $0x50] sm:$0xf]
  %v45 = vld [vmem:[%s4 + $0x54] sm:$0xf]
  %v46 = vld [vmem:[%s4 + $0x58] sm:$0xf]
  %v47 = vld [vmem:[%s4 + $0x5c] sm:$0xf]
  %v48 = vld [vmem:[%s4 + $0x60] sm:$0xf]
  %v49 = vld [vmem:[%s4 + $0x64] sm:$0xf]
  %v50 = vld [vmem:[%s4 + $0x68] sm:$0xf]
  %v51 = vld [vmem:[%s4 + $0x6c] sm:$0xf]
  %v52 = vld [vmem:[%s4 + $0x70] sm:$0xf]
  %v53 = vld [vmem:[%s4 + $0x74] sm:$0xf]
  %v54 = vld [vmem:[%s4 + $0x78] sm:$0xf]
  %v55 = vld [vmem:[%s4 + $0x7c] sm:$0xf]
  %v56 = vld [vmem:[%s4 + $0x80] sm:$0xf]
  %v57 = vld [vmem:[%s4 + $0x84] sm:$0xf]
  %v58 = vld [vmem:[%s4 + $0x88] sm:$0xf]
  %v59 = vld [vmem:[%s4 + $0x8c] sm:$0xf]
  %v60 = vld [vmem:[%s4 + $0x90] sm:$0xf]
  %v61 = vld [vmem:[%s4 + $0x94] sm:$0xf]
  %v62 = vld [vmem:[%s4 + $0x98] sm:$0xf]
  %v63 = vld [vmem:[%s4 + $0x9c] sm:$0xf]
  %v64 = vld [vmem:[%s4 + $0xa0] sm:$0xf]
  %v65 = vld [vmem:[%s4 + $0xa4] sm:$0xf]
  %v66 = vld [vmem:[%s4 + $0xa8] sm:$0xf]
  %v67 = vld [vmem:[%s4 + $0xac] sm:$0xf]
  %v68 = vld [vmem:[%s4 + $0xb0] sm:$0xf]
  %v69 = vld [vmem:[%s4 + $0xb4] sm:$0xf]
  %v70 = vld [vmem:[%s4 + $0xb8] sm:$0xf]
  %v71 = vld [vmem:[%s4 + $0xbc] sm:$0xf]
  %v72 = vld [vmem:[%s4 + $0xc0] sm:$0xf]
  %v73 = vld [vmem:[%s4 + $0xc4] sm:$0xf]
  %v74 = vld [vmem:[%s4 + $0xc8] sm:$0xf]
  %v75 = vld [vmem:[%s4 + $0xcc] sm:$0xf]
  %v76 = vld [vmem:[%s4 + $0xd0] sm:$0xf]
  %v77 = vld [vmem:[%s4 + $0xd4] sm:$0xf]
  %v78 = vld [vmem:[%s4 + $0xd8] sm:$0xf]
  %v79 = vld [vmem:[%s4 + $0xdc] sm:$0xf]
  %v80 = vld [vmem:[%s4 + $0xe0] sm:$0xf]
  %v81 = vld [vmem:[%s4 + $0xe4] sm:$0xf]
  %v82 = vld [vmem:[%s4 + $0xe8] sm:$0xf]
  %v83 = vld [vmem:[%s4 + $0xec] sm:$0xf]
  %v84 = vld [vmem:[%s4 + $0xf0] sm:$0xf]
  %v85 = vld [vmem:[%s4 + $0xf4] sm:$0xf]
  %v86 = vld [vmem:[%s4 + $0xf8] sm:$0xf]
  %v87 = vld [vmem:[%s4 + $0xfc] sm:$0xf]
  %v88 = vld [vmem:[%s4 + $0x100] sm:$0xf]
  %v89 = vld [vmem:[%s4 + $0x104] sm:$0xf]
  %v90 = vld [vmem:[%s4 + $0x108] sm:$0xf]
  %v91 = vld [vmem:[%s4 + $0x10c] sm:$0xf]
  %v92 = vld [vmem:[%s4 + $0x110] sm:$0xf]
  %v93 = vld [vmem:[%s4 + $0x114] sm:$0xf]
  %v94 = vld [vmem:[%s4 + $0x118] sm:$0xf]
  %v95 = vld [vmem:[%s4 + $0x11c] sm:$0xf]
  %v96 = vld [vmem:[%s4 + $0x120] sm:$0xf]
  %v97 = vld [vmem:[%s4 + $0x124] sm:$0xf]
  %v98 = vld [vmem:[%s4 + $0x128] sm:$0xf]
  %v99 = vld [vmem:[%s4 + $0x12c] sm:$0xf]
  %v100 = vld [vmem:[%s4 + $0x130] sm:$0xf]
  %v101 = vld [vmem:[%s4 + $0x134] sm:$0xf]
  %v102 = vld [vmem:[%s4 + $0x138] sm:$0xf]
  %v103 = vld [vmem:[%s4 + $0x13c] sm:$0xf]
  %v104 = vld [vmem:[%s4 + $0x140] sm:$0xf]
  %v105 = vld [vmem:[%s4 + $0x144] sm:$0xf]
  %v106 = vld [vmem:[%s4 + $0x148] sm:$0xf]
  %v107 = vld [vmem:[%s4 + $0x14c] sm:$0xf]
  %v108 = vld [vmem:[%s4 + $0x150] sm:$0xf]
  %v109 = vld [vmem:[%s4 + $0x154] sm:$0xf]
  %v110 = vld [vmem:[%s4 + $0x158] sm:$0xf]
  %v111 = vld [vmem:[%s4 + $0x15c] sm:$0xf]
  %v112 = vld [vmem:[%s4 + $0x160] sm:$0xf]
  %v113 = vld [vmem:[%s4 + $0x164] sm:$0xf]
  %v114 = vld [vmem:[%s4 + $0x168] sm:$0xf]
  %v115 = vld [vmem:[%s4 + $0x16c] sm:$0xf]
  %v116 = vld [vmem:[%s4 + $0x170] sm:$0xf]
  %v117 = vld [vmem:[%s4 + $0x174] sm:$0xf]
  %v118 = vld [vmem:[%s4 + $0x178] sm:$0xf]
  %v119 = vld [vmem:[%s4 + $0x17c] sm:$0xf]
  %v120 = vld [vmem:[%s4 + $0x180] sm:$0xf]
  %v121 = vld [vmem:[%s4 + $0x184] sm:$0xf]
  %v122 = vld [vmem:[%s4 + $0x188] sm:$0xf]
  %v123 = vld [vmem:[%s4 + $0x18c] sm:$0xf]
  %v124 = vld [vmem:[%s4 + $0x190] sm:$0xf]
  %v125 = vld [vmem:[%s4 + $0x194] sm:$0xf]
  %v126 = vld [vmem:[%s4 + $0x198] sm:$0xf]
  %v127 = vld [vmem:[%s4 + $0x19c] sm:$0xf]
  %v128 = vld [vmem:[%s4 + $0x1a0] sm:$0xf]
  %v129 = vld [vmem:[%s4 + $0x1a4] sm:$0xf]
  %v130 = vld [vmem:[%s4 + $0x1a8] sm:$0xf]
  %v131 = vld [vmem:[%s4 + $0x1ac] sm:$0xf]
  %v132 = vld [vmem:[%s4 + $0x1b0] sm:$0xf]
  %v133 = vld [vmem:[%s4 + $0x1b4] sm:$0xf]
  %v134 = vld [vmem:[%s4 + $0x1b8] sm:$0xf]
  %v135 = vld [vmem:[%s4 + $0x1bc] sm:$0xf]
  %v136 = vld [vmem:[%s0] sm:$0xff]
  %v137 = vld [vmem:[%s0 + $0x8] sm:$0xff]
  %v138 = vld [vmem:[%s0 + $0x10] sm:$0xff]
  %v139 = vld [vmem:[%s0 + $0x18] sm:$0xf]
  %v140 = vld [vmem:[%s0 + $0x1c] sm:$0xff]
  %v141 = vld [vmem:[%s0 + $0x24] sm:$0xff]
  %v142 = vld [vmem:[%s0 + $0x2c] sm:$0xff]
  %v143 = vld [vmem:[%s0 + $0x34] sm:$0xf]
  %v144 = vld [vmem:[%s0 + $0x38] sm:$0xff]
  %v145 = vld [vmem:[%s0 + $0x40] sm:$0xff]
  %v146 = vld [vmem:[%s0 + $0x48] sm:$0xff]
  %v147 = vld [vmem:[%s0 + $0x50] sm:$0xf]
  %v148 = vld [vmem:[%s0 + $0x54] sm:$0xff]
  %v149 = vld [vmem:[%s0 + $0x5c] sm:$0xff]
  %v150 = vld [vmem:[%s0 + $0x64] sm:$0xff]
  %v151 = vld [vmem:[%s0 + $0x6c] sm:$0xf]
  %v152 = vld [vmem:[%s0 + $0x70] sm:$0xff]
  %v153 = vld [vmem:[%s0 + $0x78] sm:$0xff]
  %v154 = vld [vmem:[%s0 + $0x80] sm:$0xff]
  %v155 = vld [vmem:[%s0 + $0x88] sm:$0xf]
  %v156 = vld [vmem:[%s0 + $0x8c] sm:$0xff]
  %v157 = vld [vmem:[%s0 + $0x94] sm:$0xff]
  %v158 = vld [vmem:[%s0 + $0x9c] sm:$0xff]
  %v159 = vld [vmem:[%s0 + $0xa4] sm:$0xf]
  %v160 = vld [vmem:[%s0 + $0xa8] sm:$0xff]
  %v161 = vld [vmem:[%s0 + $0xb0] sm:$0xff]
  %v162 = vld [vmem:[%s0 + $0xb8] sm:$0xff]
  %v163 = vld [vmem:[%s0 + $0xc0] sm:$0xf]
  %v164 = vld [vmem:[%s0 + $0xc4] sm:$0xff]
  %v165 = vld [vmem:[%s0 + $0xcc] sm:$0xff]
  %v166 = vld [vmem:[%s0 + $0xd4] sm:$0xff]
  %v167 = vld [vmem:[%s0 + $0xdc] sm:$0xf]
  %v168 = vld [vmem:[%s0 + $0xe0] sm:$0xff]
  %v169 = vld [vmem:[%s0 + $0xe8] sm:$0xff]
  %v170 = vld [vmem:[%s0 + $0xf0] sm:$0xff]
  %v171 = vld [vmem:[%s0 + $0xf8] sm:$0xf]
  %v172 = vld [vmem:[%s0 + $0xfc] sm:$0xff]
  %v173 = vld [vmem:[%s0 + $0x104] sm:$0xff]
  %v174 = vld [vmem:[%s0 + $0x10c] sm:$0xff]
  %v175 = vld [vmem:[%s0 + $0x114] sm:$0xf]
  %v176 = vld [vmem:[%s0 + $0x118] sm:$0xff]
  %v177 = vld [vmem:[%s0 + $0x120] sm:$0xff]
  %v178 = vld [vmem:[%s0 + $0x128] sm:$0xff]
  %v179 = vld [vmem:[%s0 + $0x130] sm:$0xf]
  %v180 = vld [vmem:[%s0 + $0x134] sm:$0xff]
  %v181 = vld [vmem:[%s0 + $0x13c] sm:$0xff]
  %v182 = vld [vmem:[%s0 + $0x144] sm:$0xff]
  %v183 = vld [vmem:[%s0 + $0x14c] sm:$0xf]
  %v184 = vld [vmem:[%s0 + $0x150] sm:$0xff]
  %v185 = vld [vmem:[%s0 + $0x158] sm:$0xff]
  %v186 = vld [vmem:[%s0 + $0x160] sm:$0xff]
  %v187 = vld [vmem:[%s0 + $0x168] sm:$0xf]
  %v240 = vunpack.c.l.b16 %v136
  %v241 = vunpack.c.h.b16 %v136
  %v242 = vunpack.c.l.b16 %v137
  %v243 = vunpack.c.h.b16 %v137
  %v244 = vunpack.c.l.b16 %v138
  %v245 = vunpack.c.h.b16 %v138
  %v246 = vunpack.c.l.b16 %v139
  %v247 = vunpack.c.l.b16 %v140
  %v248 = vunpack.c.h.b16 %v140
  %v249 = vunpack.c.l.b16 %v141
  %v250 = vunpack.c.h.b16 %v141
  %v251 = vunpack.c.l.b16 %v142
  %v252 = vunpack.c.h.b16 %v142
  %v253 = vunpack.c.l.b16 %v143
  %v254 = vunpack.c.l.b16 %v144
  %v255 = vunpack.c.h.b16 %v144
  %v256 = vunpack.c.l.b16 %v145
  %v257 = vunpack.c.h.b16 %v145
  %v258 = vunpack.c.l.b16 %v146
  %v259 = vunpack.c.h.b16 %v146
  %v260 = vunpack.c.l.b16 %v147
  %v261 = vunpack.c.l.b16 %v148
  %v262 = vunpack.c.h.b16 %v148
  %v263 = vunpack.c.l.b16 %v149
  %v264 = vunpack.c.h.b16 %v149
  %v265 = vunpack.c.l.b16 %v150
  %v266 = vunpack.c.h.b16 %v150
  %v267 = vunpack.c.l.b16 %v151
  %v268 = vunpack.c.l.b16 %v152
  %v269 = vunpack.c.h.b16 %v152
  %v270 = vunpack.c.l.b16 %v153
  %v271 = vunpack.c.h.b16 %v153
  %v272 = vunpack.c.l.b16 %v154
  %v273 = vunpack.c.h.b16 %v154
  %v274 = vunpack.c.l.b16 %v155
  %v275 = vunpack.c.l.b16 %v156
  %v276 = vunpack.c.h.b16 %v156
  %v277 = vunpack.c.l.b16 %v157
  %v278 = vunpack.c.h.b16 %v157
  %v279 = vunpack.c.l.b16 %v158
  %v280 = vunpack.c.h.b16 %v158
  %v281 = vunpack.c.l.b16 %v159
  %v282 = vunpack.c.l.b16 %v160
  %v283 = vunpack.c.h.b16 %v160
  %v284 = vunpack.c.l.b16 %v161
  %v285 = vunpack.c.h.b16 %v161
  %v286 = vunpack.c.l.b16 %v162
  %v287 = vunpack.c.h.b16 %v162
  %v288 = vunpack.c.l.b16 %v163
  %v289 = vunpack.c.l.b16 %v164
  %v290 = vunpack.c.h.b16 %v164
  %v291 = vunpack.c.l.b16 %v165
  %v292 = vunpack.c.h.b16 %v165
  %v293 = vunpack.c.l.b16 %v166
  %v294 = vunpack.c.h.b16 %v166
  %v295 = vunpack.c.l.b16 %v167
  %v296 = vunpack.c.l.b16 %v168
  %v297 = vunpack.c.h.b16 %v168
  %v298 = vunpack.c.l.b16 %v169
  %v299 = vunpack.c.h.b16 %v169
  %v300 = vunpack.c.l.b16 %v170
  %v301 = vunpack.c.h.b16 %v170
  %v302 = vunpack.c.l.b16 %v171
  %v303 = vunpack.c.l.b16 %v172
  %v304 = vunpack.c.h.b16 %v172
  %v305 = vunpack.c.l.b16 %v173
  %v306 = vunpack.c.h.b16 %v173
  %v307 = vunpack.c.l.b16 %v174
  %v308 = vunpack.c.h.b16 %v174
  %v309 = vunpack.c.l.b16 %v175
  %v310 = vunpack.c.l.b16 %v176
  %v311 = vunpack.c.h.b16 %v176
  %v312 = vunpack.c.l.b16 %v177
  %v313 = vunpack.c.h.b16 %v177
  %v314 = vunpack.c.l.b16 %v178
  %v315 = vunpack.c.h.b16 %v178
  %v316 = vunpack.c.l.b16 %v179
  %v317 = vunpack.c.l.b16 %v180
  %v318 = vunpack.c.h.b16 %v180
  %v319 = vunpack.c.l.b16 %v181
  %v320 = vunpack.c.h.b16 %v181
  %v321 = vunpack.c.l.b16 %v182
  %v322 = vunpack.c.h.b16 %v182
  %v323 = vunpack.c.l.b16 %v183
  %v324 = vunpack.c.l.b16 %v184
  %v325 = vunpack.c.h.b16 %v184
  %v326 = vunpack.c.l.b16 %v185
  %v327 = vunpack.c.h.b16 %v185
  %v328 = vunpack.c.l.b16 %v186
  %v329 = vunpack.c.h.b16 %v186
  %v330 = vunpack.c.l.b16 %v187
  %v331 = vpack.c.b16 %v247, %v240
  %v332 = vpack.c.b16 %v248, %v241
  %v333 = vpack.c.b16 %v249, %v242
  %v334 = vpack.c.b16 %v250, %v243
  %v335 = vpack.c.b16 %v251, %v244
  %v336 = vpack.c.b16 %v252, %v245
  %v337 = vpack.c.b16 %v253, %v246
  %v338 = vpack.c.b16 %v261, %v254
  %v339 = vpack.c.b16 %v262, %v255
  %v340 = vpack.c.b16 %v263, %v256
  %v341 = vpack.c.b16 %v264, %v257
  %v342 = vpack.c.b16 %v265, %v258
  %v343 = vpack.c.b16 %v266, %v259
  %v344 = vpack.c.b16 %v267, %v260
  %v345 = vpack.c.b16 %v275, %v268
  %v346 = vpack.c.b16 %v276, %v269
  %v347 = vpack.c.b16 %v277, %v270
  %v348 = vpack.c.b16 %v278, %v271
  %v349 = vpack.c.b16 %v279, %v272
  %v350 = vpack.c.b16 %v280, %v273
  %v351 = vpack.c.b16 %v281, %v274
  %v352 = vpack.c.b16 %v289, %v282
  %v353 = vpack.c.b16 %v290, %v283
  %v354 = vpack.c.b16 %v291, %v284
  %v355 = vpack.c.b16 %v292, %v285
  %v356 = vpack.c.b16 %v293, %v286
  %v357 = vpack.c.b16 %v294, %v287
  %v358 = vpack.c.b16 %v295, %v288
  %v359 = vpack.c.b16 %v303, %v296
  %v360 = vpack.c.b16 %v304, %v297
  %v361 = vpack.c.b16 %v305, %v298
  %v362 = vpack.c.b16 %v306, %v299
  %v363 = vpack.c.b16 %v307, %v300
  %v364 = vpack.c.b16 %v308, %v301
  %v365 = vpack.c.b16 %v309, %v302
  %v366 = vpack.c.b16 %v317, %v310
  %v367 = vpack.c.b16 %v318, %v311
  %v368 = vpack.c.b16 %v319, %v312
  %v369 = vpack.c.b16 %v320, %v313
  %v370 = vpack.c.b16 %v321, %v314
  %v371 = vpack.c.b16 %v322, %v315
  %v372 = vpack.c.b16 %v323, %v316
  %v373 = vpack.c.b16 %v324, %v324
  %v374 = vpack.c.b16 %v325, %v325
  %v375 = vpack.c.b16 %v326, %v326
  %v376 = vpack.c.b16 %v327, %v327
  %v377 = vpack.c.b16 %v328, %v328
  %v378 = vpack.c.b16 %v329, %v329
  %v379 = vpack.c.b16 %v330, %v330
  %v541 = vunpack.c.l.b16 %v24
  %v542 = vunpack.c.l.b16 %v25
  %v543 = vunpack.c.l.b16 %v26
  %v544 = vunpack.c.l.b16 %v27
  %v545 = vunpack.c.l.b16 %v28
  %v546 = vunpack.c.l.b16 %v29
  %v547 = vunpack.c.l.b16 %v30
  %v548 = vunpack.c.l.b16 %v31
  %v549 = vunpack.c.l.b16 %v32
  %v550 = vunpack.c.l.b16 %v33
  %v551 = vunpack.c.l.b16 %v34
  %v552 = vunpack.c.l.b16 %v35
  %v553 = vunpack.c.l.b16 %v36
  %v554 = vunpack.c.l.b16 %v37
  %v555 = vunpack.c.l.b16 %v38
  %v556 = vunpack.c.l.b16 %v39
  %v557 = vunpack.c.l.b16 %v40
  %v558 = vunpack.c.l.b16 %v41
  %v559 = vunpack.c.l.b16 %v42
  %v560 = vunpack.c.l.b16 %v43
  %v561 = vunpack.c.l.b16 %v44
  %v562 = vunpack.c.l.b16 %v45
  %v563 = vunpack.c.l.b16 %v46
  %v564 = vunpack.c.l.b16 %v47
  %v565 = vunpack.c.l.b16 %v48
  %v566 = vunpack.c.l.b16 %v49
  %v567 = vunpack.c.l.b16 %v50
  %v568 = vunpack.c.l.b16 %v51
  %v569 = vunpack.c.l.b16 %v52
  %v570 = vunpack.c.l.b16 %v53
  %v571 = vunpack.c.l.b16 %v54
  %v572 = vunpack.c.l.b16 %v55
  %v573 = vunpack.c.l.b16 %v56
  %v574 = vunpack.c.l.b16 %v57
  %v575 = vunpack.c.l.b16 %v58
  %v576 = vunpack.c.l.b16 %v59
  %v577 = vunpack.c.l.b16 %v60
  %v578 = vunpack.c.l.b16 %v61
  %v579 = vunpack.c.l.b16 %v62
  %v580 = vunpack.c.l.b16 %v63
  %v581 = vunpack.c.l.b16 %v64
  %v582 = vunpack.c.l.b16 %v65
  %v583 = vunpack.c.l.b16 %v66
  %v584 = vunpack.c.l.b16 %v67
  %v585 = vunpack.c.l.b16 %v68
  %v586 = vunpack.c.l.b16 %v69
  %v587 = vunpack.c.l.b16 %v70
  %v588 = vunpack.c.l.b16 %v71
  %v589 = vunpack.c.l.b16 %v72
  %v590 = vunpack.c.l.b16 %v73
  %v591 = vunpack.c.l.b16 %v74
  %v592 = vunpack.c.l.b16 %v75
  %v593 = vunpack.c.l.b16 %v76
  %v594 = vunpack.c.l.b16 %v77
  %v595 = vunpack.c.l.b16 %v78
  %v596 = vunpack.c.l.b16 %v79
  %v597 = vunpack.c.l.b16 %v80
  %v598 = vunpack.c.l.b16 %v81
  %v599 = vunpack.c.l.b16 %v82
  %v600 = vunpack.c.l.b16 %v83
  %v601 = vunpack.c.l.b16 %v84
  %v602 = vunpack.c.l.b16 %v85
  %v603 = vunpack.c.l.b16 %v86
  %v604 = vunpack.c.l.b16 %v87
  %v605 = vunpack.c.l.b16 %v88
  %v606 = vunpack.c.l.b16 %v89
  %v607 = vunpack.c.l.b16 %v90
  %v608 = vunpack.c.l.b16 %v91
  %v609 = vunpack.c.l.b16 %v92
  %v610 = vunpack.c.l.b16 %v93
  %v611 = vunpack.c.l.b16 %v94
  %v612 = vunpack.c.l.b16 %v95
  %v613 = vunpack.c.l.b16 %v96
  %v614 = vunpack.c.l.b16 %v97
  %v615 = vunpack.c.l.b16 %v98
  %v616 = vunpack.c.l.b16 %v99
  %v617 = vunpack.c.l.b16 %v100
  %v618 = vunpack.c.l.b16 %v101
  %v619 = vunpack.c.l.b16 %v102
  %v620 = vunpack.c.l.b16 %v103
  %v621 = vunpack.c.l.b16 %v104
  %v622 = vunpack.c.l.b16 %v105
  %v623 = vunpack.c.l.b16 %v106
  %v624 = vunpack.c.l.b16 %v107
  %v625 = vunpack.c.l.b16 %v108
  %v626 = vunpack.c.l.b16 %v109
  %v627 = vunpack.c.l.b16 %v110
  %v628 = vunpack.c.l.b16 %v111
  %v629 = vunpack.c.l.b16 %v112
  %v630 = vunpack.c.l.b16 %v113
  %v631 = vunpack.c.l.b16 %v114
  %v632 = vunpack.c.l.b16 %v115
  %v633 = vunpack.c.l.b16 %v116
  %v634 = vunpack.c.l.b16 %v117
  %v635 = vunpack.c.l.b16 %v118
  %v636 = vunpack.c.l.b16 %v119
  %v637 = vunpack.c.l.b16 %v120
  %v638 = vunpack.c.l.b16 %v121
  %v639 = vunpack.c.l.b16 %v122
  %v640 = vunpack.c.l.b16 %v123
  %v641 = vunpack.c.l.b16 %v124
  %v642 = vunpack.c.l.b16 %v125
  %v643 = vunpack.c.l.b16 %v126
  %v644 = vunpack.c.l.b16 %v127
  %v645 = vunpack.c.l.b16 %v128
  %v646 = vunpack.c.l.b16 %v129
  %v647 = vunpack.c.l.b16 %v130
  %v648 = vunpack.c.l.b16 %v131
  %v649 = vunpack.c.l.b16 %v132
  %v650 = vunpack.c.l.b16 %v133
  %v651 = vunpack.c.l.b16 %v134
  %v652 = vunpack.c.l.b16 %v135
  %v653 = vpack.c.b16 %v542, %v541
  %v654 = vpack.c.b16 %v544, %v543
  %v655 = vpack.c.b16 %v546, %v545
  %v656 = vpack.c.b16 %v548, %v547
  %v657 = vpack.c.b16 %v550, %v549
  %v658 = vpack.c.b16 %v552, %v551
  %v659 = vpack.c.b16 %v554, %v553
  %v660 = vpack.c.b16 %v556, %v555
  %v661 = vpack.c.b16 %v558, %v557
  %v662 = vpack.c.b16 %v560, %v559
  %v663 = vpack.c.b16 %v562, %v561
  %v664 = vpack.c.b16 %v564, %v563
  %v665 = vpack.c.b16 %v566, %v565
  %v666 = vpack.c.b16 %v568, %v567
  %v667 = vpack.c.b16 %v570, %v569
  %v668 = vpack.c.b16 %v572, %v571
  %v669 = vpack.c.b16 %v574, %v573
  %v670 = vpack.c.b16 %v576, %v575
  %v671 = vpack.c.b16 %v578, %v577
  %v672 = vpack.c.b16 %v580, %v579
  %v673 = vpack.c.b16 %v582, %v581
  %v674 = vpack.c.b16 %v584, %v583
  %v675 = vpack.c.b16 %v586, %v585
  %v676 = vpack.c.b16 %v588, %v587
  %v677 = vpack.c.b16 %v590, %v589
  %v678 = vpack.c.b16 %v592, %v591
  %v679 = vpack.c.b16 %v594, %v593
  %v680 = vpack.c.b16 %v596, %v595
  %v681 = vpack.c.b16 %v598, %v597
  %v682 = vpack.c.b16 %v600, %v599
  %v683 = vpack.c.b16 %v602, %v601
  %v684 = vpack.c.b16 %v604, %v603
  %v685 = vpack.c.b16 %v606, %v605
  %v686 = vpack.c.b16 %v608, %v607
  %v687 = vpack.c.b16 %v610, %v609
  %v688 = vpack.c.b16 %v612, %v611
  %v689 = vpack.c.b16 %v614, %v613
  %v690 = vpack.c.b16 %v616, %v615
  %v691 = vpack.c.b16 %v618, %v617
  %v692 = vpack.c.b16 %v620, %v619
  %v693 = vpack.c.b16 %v622, %v621
  %v694 = vpack.c.b16 %v624, %v623
  %v695 = vpack.c.b16 %v626, %v625
  %v696 = vpack.c.b16 %v628, %v627
  %v697 = vpack.c.b16 %v630, %v629
  %v698 = vpack.c.b16 %v632, %v631
  %v699 = vpack.c.b16 %v634, %v633
  %v700 = vpack.c.b16 %v636, %v635
  %v701 = vpack.c.b16 %v638, %v637
  %v702 = vpack.c.b16 %v640, %v639
  %v703 = vpack.c.b16 %v642, %v641
  %v704 = vpack.c.b16 %v644, %v643
  %v705 = vpack.c.b16 %v646, %v645
  %v706 = vpack.c.b16 %v648, %v647
  %v707 = vpack.c.b16 %v650, %v649
  %v708 = vpack.c.b16 %v652, %v651
  %765 = vmatprep.subr.bf16.mxu0 0
  %766 = vmatpush1.bf16.msra.mxu0 %v660
  %767 = vmatprep.subr.bf16.mxu0 0
  %768 = vmatpush1.bf16.msra.mxu0 %v659
  %769 = vmatprep.subr.bf16.mxu0 0
  %770 = vmatpush1.bf16.msra.mxu0 %v658
  %771 = vmatprep.subr.bf16.mxu0 0
  %772 = vmatpush1.bf16.msra.mxu0 %v657
  %773 = vmatprep.subr.bf16.mxu0 0
  %774 = vmatpush1.bf16.msra.mxu0 %v656
  %775 = vmatprep.subr.bf16.mxu0 0
  %776 = vmatpush1.bf16.msra.mxu0 %v655
  %777 = vmatprep.subr.bf16.mxu0 0
  %778 = vmatpush1.bf16.msra.mxu0 %v654
  %779 = vmatprep.subr.bf16.mxu0 0
  %780 = vmatpush1.bf16.msra.mxu0 %v653
  %781 = vmatprep.subr.bf16.mxu0 0
  %782 = vmatpush2.bf16.msra.mxu0 %v668
  %783 = vmatprep.subr.bf16.mxu0 0
  %784 = vmatpush2.bf16.msra.mxu0 %v667
  %785 = vmatprep.subr.bf16.mxu0 0
  %786 = vmatpush2.bf16.msra.mxu0 %v666
  %787 = vmatprep.subr.bf16.mxu0 0
  %788 = vmatpush2.bf16.msra.mxu0 %v665
  %789 = vmatprep.subr.bf16.mxu0 0
  %790 = vmatpush2.bf16.msra.mxu0 %v664
  %791 = vmatprep.subr.bf16.mxu0 0
  %792 = vmatpush2.bf16.msra.mxu0 %v663
  %793 = vmatprep.subr.bf16.mxu0 0
  %794 = vmatpush2.bf16.msra.mxu0 %v662
  %795 = vmatprep.subr.bf16.mxu0 0
  %796 = vmatpush2.bf16.msra.mxu0 %v661
  %797 = vmatprep.mubr.bf16.mxu0 %v332
  %798 = vmatmul.mubr.bf16.gmra.mxu0 %v331
  %v799 = vpop.f32.mrf.mxu0
  %v800 = vadd.f32 0.0, %v799
  %v801 = vpop.f32.mrf.mxu0
  %v802 = vpop.f32.mrf.mxu0
  %v803 = vadd.f32 0.0, %v802
  %v804 = vpop.f32.mrf.mxu0
  %805 = vmatprep.mubr.bf16.mxu0 %v339
  %806 = vmatmul.mubr.bf16.gmra.mxu0 %v338
  %v807 = vpop.f32.mrf.mxu0
  %v808 = vadd.f32 0.0, %v807
  %v809 = vpop.f32.mrf.mxu0
  %v810 = vpop.f32.mrf.mxu0
  %v811 = vadd.f32 0.0, %v810
  %v812 = vpop.f32.mrf.mxu0
  %813 = vmatprep.mubr.bf16.mxu0 %v346
  %814 = vmatmul.mubr.bf16.gmra.mxu0 %v345
  %v815 = vpop.f32.mrf.mxu0
  %v816 = vadd.f32 0.0, %v815
  %v817 = vpop.f32.mrf.mxu0
  %v818 = vpop.f32.mrf.mxu0
  %v819 = vadd.f32 0.0, %v818
  %v820 = vpop.f32.mrf.mxu0
  %821 = vmatprep.mubr.bf16.mxu0 %v353
  %822 = vmatmul.mubr.bf16.gmra.mxu0 %v352
  %v823 = vpop.f32.mrf.mxu0
  %v824 = vadd.f32 0.0, %v823
  %v825 = vpop.f32.mrf.mxu0
  %v826 = vpop.f32.mrf.mxu0
  %v827 = vadd.f32 0.0, %v826
  %v828 = vpop.f32.mrf.mxu0
  %829 = vmatprep.mubr.bf16.mxu0 %v360
  %830 = vmatmul.mubr.bf16.gmra.mxu0 %v359
  %v831 = vpop.f32.mrf.mxu0
  %v832 = vadd.f32 0.0, %v831
  %v833 = vpop.f32.mrf.mxu0
  %v834 = vpop.f32.mrf.mxu0
  %v835 = vadd.f32 0.0, %v834
  %v836 = vpop.f32.mrf.mxu0
  %837 = vmatprep.mubr.bf16.mxu0 %v367
  %838 = vmatmul.mubr.bf16.gmra.mxu0 %v366
  %v839 = vpop.f32.mrf.mxu0
  %v840 = vadd.f32 0.0, %v839
  %v841 = vpop.f32.mrf.mxu0
  %v842 = vpop.f32.mrf.mxu0
  %v843 = vadd.f32 0.0, %v842
  %v844 = vpop.f32.mrf.mxu0
  %845 = vmatprep.mubr.bf16.mxu0 %v374
  %846 = vmatmul.mubr.bf16.gmra.mxu0 %v373
  %v847 = vpop.f32.mrf.mxu0
  %v848 = vadd.f32 0.0, %v847
  %v849 = vpop.f32.mrf.mxu0
  %v850 = vpop.f32.mrf.mxu0
  %v851 = vpop.f32.mrf.mxu0
  %852 = vdwg.mxu0
  %853 = vmatprep.subr.bf16.mxu0 0
  %854 = vmatpush1.bf16.msra.mxu0 %v676
  %855 = vmatprep.subr.bf16.mxu0 0
  %856 = vmatpush1.bf16.msra.mxu0 %v675
  %857 = vmatprep.subr.bf16.mxu0 0
  %858 = vmatpush1.bf16.msra.mxu0 %v674
  %859 = vmatprep.subr.bf16.mxu0 0
  %860 = vmatpush1.bf16.msra.mxu0 %v673
  %861 = vmatprep.subr.bf16.mxu0 0
  %862 = vmatpush1.bf16.msra.mxu0 %v672
  %863 = vmatprep.subr.bf16.mxu0 0
  %864 = vmatpush1.bf16.msra.mxu0 %v671
  %865 = vmatprep.subr.bf16.mxu0 0
  %866 = vmatpush1.bf16.msra.mxu0 %v670
  %867 = vmatprep.subr.bf16.mxu0 0
  %868 = vmatpush1.bf16.msra.mxu0 %v669
  %869 = vmatprep.subr.bf16.mxu0 0
  %870 = vmatpush2.bf16.msra.mxu0 %v684
  %871 = vmatprep.subr.bf16.mxu0 0
  %872 = vmatpush2.bf16.msra.mxu0 %v683
  %873 = vmatprep.subr.bf16.mxu0 0
  %874 = vmatpush2.bf16.msra.mxu0 %v682
  %875 = vmatprep.subr.bf16.mxu0 0
  %876 = vmatpush2.bf16.msra.mxu0 %v681
  %877 = vmatprep.subr.bf16.mxu0 0
  %878 = vmatpush2.bf16.msra.mxu0 %v680
  %879 = vmatprep.subr.bf16.mxu0 0
  %880 = vmatpush2.bf16.msra.mxu0 %v679
  %881 = vmatprep.subr.bf16.mxu0 0
  %882 = vmatpush2.bf16.msra.mxu0 %v678
  %883 = vmatprep.subr.bf16.mxu0 0
  %884 = vmatpush2.bf16.msra.mxu0 %v677
  %885 = vmatprep.mubr.bf16.mxu0 %v334
  %886 = vmatmul.mubr.bf16.gmra.mxu0 %v333
  %v887 = vpop.f32.mrf.mxu0
  %v888 = vadd.f32 %v800, %v887
  %v889 = vpop.f32.mrf.mxu0
  %v890 = vpop.f32.mrf.mxu0
  %v891 = vadd.f32 %v803, %v890
  %v892 = vpop.f32.mrf.mxu0
  %893 = vmatprep.mubr.bf16.mxu0 %v341
  %894 = vmatmul.mubr.bf16.gmra.mxu0 %v340
  %v895 = vpop.f32.mrf.mxu0
  %v896 = vadd.f32 %v808, %v895
  %v897 = vpop.f32.mrf.mxu0
  %v898 = vpop.f32.mrf.mxu0
  %v899 = vadd.f32 %v811, %v898
  %v900 = vpop.f32.mrf.mxu0
  %901 = vmatprep.mubr.bf16.mxu0 %v348
  %902 = vmatmul.mubr.bf16.gmra.mxu0 %v347
  %v903 = vpop.f32.mrf.mxu0
  %v904 = vadd.f32 %v816, %v903
  %v905 = vpop.f32.mrf.mxu0
  %v906 = vpop.f32.mrf.mxu0
  %v907 = vadd.f32 %v819, %v906
  %v908 = vpop.f32.mrf.mxu0
  %909 = vmatprep.mubr.bf16.mxu0 %v355
  %910 = vmatmul.mubr.bf16.gmra.mxu0 %v354
  %v911 = vpop.f32.mrf.mxu0
  %v912 = vadd.f32 %v824, %v911
  %v913 = vpop.f32.mrf.mxu0
  %v914 = vpop.f32.mrf.mxu0
  %v915 = vadd.f32 %v827, %v914
  %v916 = vpop.f32.mrf.mxu0
  %917 = vmatprep.mubr.bf16.mxu0 %v362
  %918 = vmatmul.mubr.bf16.gmra.mxu0 %v361
  %v919 = vpop.f32.mrf.mxu0
  %v920 = vadd.f32 %v832, %v919
  %v921 = vpop.f32.mrf.mxu0
  %v922 = vpop.f32.mrf.mxu0
  %v923 = vadd.f32 %v835, %v922
  %v924 = vpop.f32.mrf.mxu0
  %925 = vmatprep.mubr.bf16.mxu0 %v369
  %926 = vmatmul.mubr.bf16.gmra.mxu0 %v368
  %v927 = vpop.f32.mrf.mxu0
  %v928 = vadd.f32 %v840, %v927
  %v929 = vpop.f32.mrf.mxu0
  %v930 = vpop.f32.mrf.mxu0
  %v931 = vadd.f32 %v843, %v930
  %v932 = vpop.f32.mrf.mxu0
  %933 = vmatprep.mubr.bf16.mxu0 %v376
  %934 = vmatmul.mubr.bf16.gmra.mxu0 %v375
  %v935 = vpop.f32.mrf.mxu0
  %v936 = vadd.f32 %v848, %v935
  %v937 = vpop.f32.mrf.mxu0
  %v938 = vpop.f32.mrf.mxu0
  %v939 = vpop.f32.mrf.mxu0
  %940 = vdwg.mxu0
  %941 = vmatprep.subr.bf16.mxu0 0
  %942 = vmatpush1.bf16.msra.mxu0 %v692
  %943 = vmatprep.subr.bf16.mxu0 0
  %944 = vmatpush1.bf16.msra.mxu0 %v691
  %945 = vmatprep.subr.bf16.mxu0 0
  %946 = vmatpush1.bf16.msra.mxu0 %v690
  %947 = vmatprep.subr.bf16.mxu0 0
  %948 = vmatpush1.bf16.msra.mxu0 %v689
  %949 = vmatprep.subr.bf16.mxu0 0
  %950 = vmatpush1.bf16.msra.mxu0 %v688
  %951 = vmatprep.subr.bf16.mxu0 0
  %952 = vmatpush1.bf16.msra.mxu0 %v687
  %953 = vmatprep.subr.bf16.mxu0 0
  %954 = vmatpush1.bf16.msra.mxu0 %v686
  %955 = vmatprep.subr.bf16.mxu0 0
  %956 = vmatpush1.bf16.msra.mxu0 %v685
  %957 = vmatprep.subr.bf16.mxu0 0
  %958 = vmatpush2.bf16.msra.mxu0 %v700
  %959 = vmatprep.subr.bf16.mxu0 0
  %960 = vmatpush2.bf16.msra.mxu0 %v699
  %961 = vmatprep.subr.bf16.mxu0 0
  %962 = vmatpush2.bf16.msra.mxu0 %v698
  %963 = vmatprep.subr.bf16.mxu0 0
  %964 = vmatpush2.bf16.msra.mxu0 %v697
  %965 = vmatprep.subr.bf16.mxu0 0
  %966 = vmatpush2.bf16.msra.mxu0 %v696
  %967 = vmatprep.subr.bf16.mxu0 0
  %968 = vmatpush2.bf16.msra.mxu0 %v695
  %969 = vmatprep.subr.bf16.mxu0 0
  %970 = vmatpush2.bf16.msra.mxu0 %v694
  %971 = vmatprep.subr.bf16.mxu0 0
  %972 = vmatpush2.bf16.msra.mxu0 %v693
  %973 = vmatprep.mubr.bf16.mxu0 %v336
  %974 = vmatmul.mubr.bf16.gmra.mxu0 %v335
  %v975 = vpop.f32.mrf.mxu0
  %v976 = vadd.f32 %v888, %v975
  %v977 = vpop.f32.mrf.mxu0
  %v978 = vpop.f32.mrf.mxu0
  %v979 = vadd.f32 %v891, %v978
  %v980 = vpop.f32.mrf.mxu0
  %981 = vmatprep.mubr.bf16.mxu0 %v343
  %982 = vmatmul.mubr.bf16.gmra.mxu0 %v342
  %v983 = vpop.f32.mrf.mxu0
  %v984 = vadd.f32 %v896, %v983
  %v985 = vpop.f32.mrf.mxu0
  %v986 = vpop.f32.mrf.mxu0
  %v987 = vadd.f32 %v899, %v986
  %v988 = vpop.f32.mrf.mxu0
  %989 = vmatprep.mubr.bf16.mxu0 %v350
  %990 = vmatmul.mubr.bf16.gmra.mxu0 %v349
  %v991 = vpop.f32.mrf.mxu0
  %v992 = vadd.f32 %v904, %v991
  %v993 = vpop.f32.mrf.mxu0
  %v994 = vpop.f32.mrf.mxu0
  %v995 = vadd.f32 %v907, %v994
  %v996 = vpop.f32.mrf.mxu0
  %997 = vmatprep.mubr.bf16.mxu0 %v357
  %998 = vmatmul.mubr.bf16.gmra.mxu0 %v356
  %v999 = vpop.f32.mrf.mxu0
  %v1000 = vadd.f32 %v912, %v999
  %v1001 = vpop.f32.mrf.mxu0
  %v1002 = vpop.f32.mrf.mxu0
  %v1003 = vadd.f32 %v915, %v1002
  %v1004 = vpop.f32.mrf.mxu0
  %1005 = vmatprep.mubr.bf16.mxu0 %v364
  %1006 = vmatmul.mubr.bf16.gmra.mxu0 %v363
  %v1007 = vpop.f32.mrf.mxu0
  %v1008 = vadd.f32 %v920, %v1007
  %v1009 = vpop.f32.mrf.mxu0
  %v1010 = vpop.f32.mrf.mxu0
  %v1011 = vadd.f32 %v923, %v1010
  %v1012 = vpop.f32.mrf.mxu0
  %1013 = vmatprep.mubr.bf16.mxu0 %v371
  %1014 = vmatmul.mubr.bf16.gmra.mxu0 %v370
  %v1015 = vpop.f32.mrf.mxu0
  %v1016 = vadd.f32 %v928, %v1015
  %v1017 = vpop.f32.mrf.mxu0
  %v1018 = vpop.f32.mrf.mxu0
  %v1019 = vadd.f32 %v931, %v1018
  %v1020 = vpop.f32.mrf.mxu0
  %1021 = vmatprep.mubr.bf16.mxu0 %v378
  %1022 = vmatmul.mubr.bf16.gmra.mxu0 %v377
  %v1023 = vpop.f32.mrf.mxu0
  %v1024 = vadd.f32 %v936, %v1023
  %v1025 = vpop.f32.mrf.mxu0
  %v1026 = vpop.f32.mrf.mxu0
  %v1027 = vpop.f32.mrf.mxu0
  %1028 = vdwg.mxu0
  %1029 = vmatprep.subr.bf16.mxu0 0
  %1030 = vmatpush1.bf16.msra.mxu0 %v708
  %1031 = vmatprep.subr.bf16.mxu0 0
  %1032 = vmatpush1.bf16.msra.mxu0 %v707
  %1033 = vmatprep.subr.bf16.mxu0 0
  %1034 = vmatpush1.bf16.msra.mxu0 %v706
  %1035 = vmatprep.subr.bf16.mxu0 0
  %1036 = vmatpush1.bf16.msra.mxu0 %v705
  %1037 = vmatprep.subr.bf16.mxu0 0
  %1038 = vmatpush1.bf16.msra.mxu0 %v704
  %1039 = vmatprep.subr.bf16.mxu0 0
  %1040 = vmatpush1.bf16.msra.mxu0 %v703
  %1041 = vmatprep.subr.bf16.mxu0 0
  %1042 = vmatpush1.bf16.msra.mxu0 %v702
  %1043 = vmatprep.subr.bf16.mxu0 0
  %1044 = vmatpush1.bf16.msra.mxu0 %v701
  %1045 = vmatprep.subr.bf16.mxu0 0
  %1046 = vmatpush2.bf16.msra.mxu0 0
  %1047 = vmatprep.subr.bf16.mxu0 0
  %1048 = vmatpush2.bf16.msra.mxu0 0
  %1049 = vmatprep.subr.bf16.mxu0 0
  %1050 = vmatpush2.bf16.msra.mxu0 0
  %1051 = vmatprep.subr.bf16.mxu0 0
  %1052 = vmatpush2.bf16.msra.mxu0 0
  %1053 = vmatprep.subr.bf16.mxu0 0
  %1054 = vmatpush2.bf16.msra.mxu0 0
  %1055 = vmatprep.subr.bf16.mxu0 0
  %1056 = vmatpush2.bf16.msra.mxu0 0
  %1057 = vmatprep.subr.bf16.mxu0 0
  %1058 = vmatpush2.bf16.msra.mxu0 0
  %1059 = vmatprep.subr.bf16.mxu0 0
  %1060 = vmatpush2.bf16.msra.mxu0 0
  %1061 = vmatprep.mubr.bf16.mxu0 0
  %1062 = vmatmul.mubr.bf16.gmra.mxu0 %v337
  %v1063 = vpop.f32.mrf.mxu0
  %v1064 = vadd.f32 %v976, %v1063
  %v1065 = vpop.f32.mrf.mxu0
  %v1066 = vpop.f32.mrf.mxu0
  %v1067 = vadd.f32 %v979, %v1066
  %v1068 = vpop.f32.mrf.mxu0
  %1069 = vmatprep.mubr.bf16.mxu0 0
  %1070 = vmatmul.mubr.bf16.gmra.mxu0 %v344
  %v1071 = vpop.f32.mrf.mxu0
  %v1072 = vadd.f32 %v984, %v1071
  %v1073 = vpop.f32.mrf.mxu0
  %v1074 = vpop.f32.mrf.mxu0
  %v1075 = vadd.f32 %v987, %v1074
  %v1076 = vpop.f32.mrf.mxu0
  %1077 = vmatprep.mubr.bf16.mxu0 0
  %1078 = vmatmul.mubr.bf16.gmra.mxu0 %v351
  %v1079 = vpop.f32.mrf.mxu0
  %v1080 = vadd.f32 %v992, %v1079
  %v1081 = vpop.f32.mrf.mxu0
  %v1082 = vpop.f32.mrf.mxu0
  %v1083 = vadd.f32 %v995, %v1082
  %v1084 = vpop.f32.mrf.mxu0
  %1085 = vmatprep.mubr.bf16.mxu0 0
  %1086 = vmatmul.mubr.bf16.gmra.mxu0 %v358
  %v1087 = vpop.f32.mrf.mxu0
  %v1088 = vadd.f32 %v1000, %v1087
  %v1089 = vpop.f32.mrf.mxu0
  %v1090 = vpop.f32.mrf.mxu0
  %v1091 = vadd.f32 %v1003, %v1090
  %v1092 = vpop.f32.mrf.mxu0
  %1093 = vmatprep.mubr.bf16.mxu0 0
  %1094 = vmatmul.mubr.bf16.gmra.mxu0 %v365
  %v1095 = vpop.f32.mrf.mxu0
  %v1096 = vadd.f32 %v1008, %v1095
  %v1097 = vpop.f32.mrf.mxu0
  %v1098 = vpop.f32.mrf.mxu0
  %v1099 = vadd.f32 %v1011, %v1098
  %v1100 = vpop.f32.mrf.mxu0
  %1101 = vmatprep.mubr.bf16.mxu0 0
  %1102 = vmatmul.mubr.bf16.gmra.mxu0 %v372
  %v1103 = vpop.f32.mrf.mxu0
  %v1104 = vadd.f32 %v1016, %v1103
  %v1105 = vpop.f32.mrf.mxu0
  %v1106 = vpop.f32.mrf.mxu0
  %v1107 = vadd.f32 %v1019, %v1106
  %v1108 = vpop.f32.mrf.mxu0
  %1109 = vmatprep.mubr.bf16.mxu0 0
  %1110 = vmatmul.mubr.bf16.gmra.mxu0 %v379
  %v1111 = vpop.f32.mrf.mxu0
  %v1112 = vadd.f32 %v1024, %v1111
  %v1113 = vpop.f32.mrf.mxu0
  %v1114 = vpop.f32.mrf.mxu0
  %v1115 = vpop.f32.mrf.mxu0
  %1116 = vdwg.mxu0
  %v1117 = vld [vmem:[%s1] sm:$0xff]
  %v1118 = vld [vmem:[%s1 + $0x8] sm:$0xff]
  %v1119 = vld [vmem:[%s1 + $0x10] sm:$0xff]
  %v1120 = vld [vmem:[%s1 + $0x18] sm:$0xf]
  %v1121 = vld [vmem:[%s1 + $0x1c] sm:$0xff]
  %v1122 = vld [vmem:[%s1 + $0x24] sm:$0xff]
  %v1123 = vld [vmem:[%s1 + $0x2c] sm:$0xff]
  %v1124 = vld [vmem:[%s1 + $0x34] sm:$0xf]
  %v1125 = vld [vmem:[%s1 + $0x38] sm:$0xff]
  %v1126 = vld [vmem:[%s1 + $0x40] sm:$0xff]
  %v1127 = vld [vmem:[%s1 + $0x48] sm:$0xff]
  %v1128 = vld [vmem:[%s1 + $0x50] sm:$0xf]
  %v1129 = vld [vmem:[%s1 + $0x54] sm:$0xff]
  %v1130 = vld [vmem:[%s1 + $0x5c] sm:$0xff]
  %v1131 = vld [vmem:[%s1 + $0x64] sm:$0xff]
  %v1132 = vld [vmem:[%s1 + $0x6c] sm:$0xf]
  %v1133 = vld [vmem:[%s1 + $0x70] sm:$0xff]
  %v1134 = vld [vmem:[%s1 + $0x78] sm:$0xff]
  %v1135 = vld [vmem:[%s1 + $0x80] sm:$0xff]
  %v1136 = vld [vmem:[%s1 + $0x88] sm:$0xf]
  %v1137 = vld [vmem:[%s1 + $0x8c] sm:$0xff]
  %v1138 = vld [vmem:[%s1 + $0x94] sm:$0xff]
  %v1139 = vld [vmem:[%s1 + $0x9c] sm:$0xff]
  %v1140 = vld [vmem:[%s1 + $0xa4] sm:$0xf]
  %v1141 = vld [vmem:[%s1 + $0xa8] sm:$0xff]
  %v1142 = vld [vmem:[%s1 + $0xb0] sm:$0xff]
  %v1143 = vld [vmem:[%s1 + $0xb8] sm:$0xff]
  %v1144 = vld [vmem:[%s1 + $0xc0] sm:$0xf]
  %v1145 = vld [vmem:[%s1 + $0xc4] sm:$0xff]
  %v1146 = vld [vmem:[%s1 + $0xcc] sm:$0xff]
  %v1147 = vld [vmem:[%s1 + $0xd4] sm:$0xff]
  %v1148 = vld [vmem:[%s1 + $0xdc] sm:$0xf]
  %v1149 = vld [vmem:[%s1 + $0xe0] sm:$0xff]
  %v1150 = vld [vmem:[%s1 + $0xe8] sm:$0xff]
  %v1151 = vld [vmem:[%s1 + $0xf0] sm:$0xff]
  %v1152 = vld [vmem:[%s1 + $0xf8] sm:$0xf]
  %v1153 = vld [vmem:[%s1 + $0xfc] sm:$0xff]
  %v1154 = vld [vmem:[%s1 + $0x104] sm:$0xff]
  %v1155 = vld [vmem:[%s1 + $0x10c] sm:$0xff]
  %v1156 = vld [vmem:[%s1 + $0x114] sm:$0xf]
  %v1157 = vld [vmem:[%s1 + $0x118] sm:$0xff]
  %v1158 = vld [vmem:[%s1 + $0x120] sm:$0xff]
  %v1159 = vld [vmem:[%s1 + $0x128] sm:$0xff]
  %v1160 = vld [vmem:[%s1 + $0x130] sm:$0xf]
  %v1161 = vld [vmem:[%s1 + $0x134] sm:$0xff]
  %v1162 = vld [vmem:[%s1 + $0x13c] sm:$0xff]
  %v1163 = vld [vmem:[%s1 + $0x144] sm:$0xff]
  %v1164 = vld [vmem:[%s1 + $0x14c] sm:$0xf]
  %v1165 = vld [vmem:[%s1 + $0x150] sm:$0xff]
  %v1166 = vld [vmem:[%s1 + $0x158] sm:$0xff]
  %v1167 = vld [vmem:[%s1 + $0x160] sm:$0xff]
  %v1168 = vld [vmem:[%s1 + $0x168] sm:$0xf]
  %v1221 = vunpack.c.l.b16 %v1117
  %v1222 = vunpack.c.h.b16 %v1117
  %v1223 = vunpack.c.l.b16 %v1118
  %v1224 = vunpack.c.h.b16 %v1118
  %v1225 = vunpack.c.l.b16 %v1119
  %v1226 = vunpack.c.h.b16 %v1119
  %v1227 = vunpack.c.l.b16 %v1120
  %v1228 = vunpack.c.l.b16 %v1121
  %v1229 = vunpack.c.h.b16 %v1121
  %v1230 = vunpack.c.l.b16 %v1122
  %v1231 = vunpack.c.h.b16 %v1122
  %v1232 = vunpack.c.l.b16 %v1123
  %v1233 = vunpack.c.h.b16 %v1123
  %v1234 = vunpack.c.l.b16 %v1124
  %v1235 = vunpack.c.l.b16 %v1125
  %v1236 = vunpack.c.h.b16 %v1125
  %v1237 = vunpack.c.l.b16 %v1126
  %v1238 = vunpack.c.h.b16 %v1126
  %v1239 = vunpack.c.l.b16 %v1127
  %v1240 = vunpack.c.h.b16 %v1127
  %v1241 = vunpack.c.l.b16 %v1128
  %v1242 = vunpack.c.l.b16 %v1129
  %v1243 = vunpack.c.h.b16 %v1129
  %v1244 = vunpack.c.l.b16 %v1130
  %v1245 = vunpack.c.h.b16 %v1130
  %v1246 = vunpack.c.l.b16 %v1131
  %v1247 = vunpack.c.h.b16 %v1131
  %v1248 = vunpack.c.l.b16 %v1132
  %v1249 = vunpack.c.l.b16 %v1133
  %v1250 = vunpack.c.h.b16 %v1133
  %v1251 = vunpack.c.l.b16 %v1134
  %v1252 = vunpack.c.h.b16 %v1134
  %v1253 = vunpack.c.l.b16 %v1135
  %v1254 = vunpack.c.h.b16 %v1135
  %v1255 = vunpack.c.l.b16 %v1136
  %v1256 = vunpack.c.l.b16 %v1137
  %v1257 = vunpack.c.h.b16 %v1137
  %v1258 = vunpack.c.l.b16 %v1138
  %v1259 = vunpack.c.h.b16 %v1138
  %v1260 = vunpack.c.l.b16 %v1139
  %v1261 = vunpack.c.h.b16 %v1139
  %v1262 = vunpack.c.l.b16 %v1140
  %v1263 = vunpack.c.l.b16 %v1141
  %v1264 = vunpack.c.h.b16 %v1141
  %v1265 = vunpack.c.l.b16 %v1142
  %v1266 = vunpack.c.h.b16 %v1142
  %v1267 = vunpack.c.l.b16 %v1143
  %v1268 = vunpack.c.h.b16 %v1143
  %v1269 = vunpack.c.l.b16 %v1144
  %v1270 = vunpack.c.l.b16 %v1145
  %v1271 = vunpack.c.h.b16 %v1145
  %v1272 = vunpack.c.l.b16 %v1146
  %v1273 = vunpack.c.h.b16 %v1146
  %v1274 = vunpack.c.l.b16 %v1147
  %v1275 = vunpack.c.h.b16 %v1147
  %v1276 = vunpack.c.l.b16 %v1148
  %v1277 = vunpack.c.l.b16 %v1149
  %v1278 = vunpack.c.h.b16 %v1149
  %v1279 = vunpack.c.l.b16 %v1150
  %v1280 = vunpack.c.h.b16 %v1150
  %v1281 = vunpack.c.l.b16 %v1151
  %v1282 = vunpack.c.h.b16 %v1151
  %v1283 = vunpack.c.l.b16 %v1152
  %v1284 = vunpack.c.l.b16 %v1153
  %v1285 = vunpack.c.h.b16 %v1153
  %v1286 = vunpack.c.l.b16 %v1154
  %v1287 = vunpack.c.h.b16 %v1154
  %v1288 = vunpack.c.l.b16 %v1155
  %v1289 = vunpack.c.h.b16 %v1155
  %v1290 = vunpack.c.l.b16 %v1156
  %v1291 = vunpack.c.l.b16 %v1157
  %v1292 = vunpack.c.h.b16 %v1157
  %v1293 = vunpack.c.l.b16 %v1158
  %v1294 = vunpack.c.h.b16 %v1158
  %v1295 = vunpack.c.l.b16 %v1159
  %v1296 = vunpack.c.h.b16 %v1159
  %v1297 = vunpack.c.l.b16 %v1160
  %v1298 = vunpack.c.l.b16 %v1161
  %v1299 = vunpack.c.h.b16 %v1161
  %v1300 = vunpack.c.l.b16 %v1162
  %v1301 = vunpack.c.h.b16 %v1162
  %v1302 = vunpack.c.l.b16 %v1163
  %v1303 = vunpack.c.h.b16 %v1163
  %v1304 = vunpack.c.l.b16 %v1164
  %v1305 = vunpack.c.l.b16 %v1165
  %v1306 = vunpack.c.h.b16 %v1165
  %v1307 = vunpack.c.l.b16 %v1166
  %v1308 = vunpack.c.h.b16 %v1166
  %v1309 = vunpack.c.l.b16 %v1167
  %v1310 = vunpack.c.h.b16 %v1167
  %v1311 = vunpack.c.l.b16 %v1168
  %v1312 = vpack.c.b16 %v1228, %v1221
  %v1313 = vpack.c.b16 %v1229, %v1222
  %v1314 = vpack.c.b16 %v1230, %v1223
  %v1315 = vpack.c.b16 %v1231, %v1224
  %v1316 = vpack.c.b16 %v1232, %v1225
  %v1317 = vpack.c.b16 %v1233, %v1226
  %v1318 = vpack.c.b16 %v1234, %v1227
  %v1319 = vpack.c.b16 %v1242, %v1235
  %v1320 = vpack.c.b16 %v1243, %v1236
  %v1321 = vpack.c.b16 %v1244, %v1237
  %v1322 = vpack.c.b16 %v1245, %v1238
  %v1323 = vpack.c.b16 %v1246, %v1239
  %v1324 = vpack.c.b16 %v1247, %v1240
  %v1325 = vpack.c.b16 %v1248, %v1241
  %v1326 = vpack.c.b16 %v1256, %v1249
  %v1327 = vpack.c.b16 %v1257, %v1250
  %v1328 = vpack.c.b16 %v1258, %v1251
  %v1329 = vpack.c.b16 %v1259, %v1252
  %v1330 = vpack.c.b16 %v1260, %v1253
  %v1331 = vpack.c.b16 %v1261, %v1254
  %v1332 = vpack.c.b16 %v1262, %v1255
  %v1333 = vpack.c.b16 %v1270, %v1263
  %v1334 = vpack.c.b16 %v1271, %v1264
  %v1335 = vpack.c.b16 %v1272, %v1265
  %v1336 = vpack.c.b16 %v1273, %v1266
  %v1337 = vpack.c.b16 %v1274, %v1267
  %v1338 = vpack.c.b16 %v1275, %v1268
  %v1339 = vpack.c.b16 %v1276, %v1269
  %v1340 = vpack.c.b16 %v1284, %v1277
  %v1341 = vpack.c.b16 %v1285, %v1278
  %v1342 = vpack.c.b16 %v1286, %v1279
  %v1343 = vpack.c.b16 %v1287, %v1280
  %v1344 = vpack.c.b16 %v1288, %v1281
  %v1345 = vpack.c.b16 %v1289, %v1282
  %v1346 = vpack.c.b16 %v1290, %v1283
  %v1347 = vpack.c.b16 %v1298, %v1291
  %v1348 = vpack.c.b16 %v1299, %v1292
  %v1349 = vpack.c.b16 %v1300, %v1293
  %v1350 = vpack.c.b16 %v1301, %v1294
  %v1351 = vpack.c.b16 %v1302, %v1295
  %v1352 = vpack.c.b16 %v1303, %v1296
  %v1353 = vpack.c.b16 %v1304, %v1297
  %v1354 = vpack.c.b16 %v1305, %v1305
  %v1355 = vpack.c.b16 %v1306, %v1306
  %v1356 = vpack.c.b16 %v1307, %v1307
  %v1357 = vpack.c.b16 %v1308, %v1308
  %v1358 = vpack.c.b16 %v1309, %v1309
  %v1359 = vpack.c.b16 %v1310, %v1310
  %v1360 = vpack.c.b16 %v1311, %v1311
  %1410 = vmatprep.subr.bf16.mxu0 0
  %1411 = vmatpush1.bf16.msra.mxu0 %v660
  %1412 = vmatprep.subr.bf16.mxu0 0
  %1413 = vmatpush1.bf16.msra.mxu0 %v659
  %1414 = vmatprep.subr.bf16.mxu0 0
  %1415 = vmatpush1.bf16.msra.mxu0 %v658
  %1416 = vmatprep.subr.bf16.mxu0 0
  %1417 = vmatpush1.bf16.msra.mxu0 %v657
  %1418 = vmatprep.subr.bf16.mxu0 0
  %1419 = vmatpush1.bf16.msra.mxu0 %v656
  %1420 = vmatprep.subr.bf16.mxu0 0
  %1421 = vmatpush1.bf16.msra.mxu0 %v655
  %1422 = vmatprep.subr.bf16.mxu0 0
  %1423 = vmatpush1.bf16.msra.mxu0 %v654
  %1424 = vmatprep.subr.bf16.mxu0 0
  %1425 = vmatpush1.bf16.msra.mxu0 %v653
  %1426 = vmatprep.subr.bf16.mxu0 0
  %1427 = vmatpush2.bf16.msra.mxu0 %v668
  %1428 = vmatprep.subr.bf16.mxu0 0
  %1429 = vmatpush2.bf16.msra.mxu0 %v667
  %1430 = vmatprep.subr.bf16.mxu0 0
  %1431 = vmatpush2.bf16.msra.mxu0 %v666
  %1432 = vmatprep.subr.bf16.mxu0 0
  %1433 = vmatpush2.bf16.msra.mxu0 %v665
  %1434 = vmatprep.subr.bf16.mxu0 0
  %1435 = vmatpush2.bf16.msra.mxu0 %v664
  %1436 = vmatprep.subr.bf16.mxu0 0
  %1437 = vmatpush2.bf16.msra.mxu0 %v663
  %1438 = vmatprep.subr.bf16.mxu0 0
  %1439 = vmatpush2.bf16.msra.mxu0 %v662
  %1440 = vmatprep.subr.bf16.mxu0 0
  %1441 = vmatpush2.bf16.msra.mxu0 %v661
  %1442 = vmatprep.mubr.bf16.mxu0 %v1313
  %1443 = vmatmul.mubr.bf16.gmra.mxu0 %v1312
  %v1444 = vpop.f32.mrf.mxu0
  %v1445 = vadd.f32 0.0, %v1444
  %v1446 = vpop.f32.mrf.mxu0
  %v1447 = vpop.f32.mrf.mxu0
  %v1448 = vadd.f32 0.0, %v1447
  %v1449 = vpop.f32.mrf.mxu0
  %1450 = vmatprep.mubr.bf16.mxu0 %v1320
  %1451 = vmatmul.mubr.bf16.gmra.mxu0 %v1319
  %v1452 = vpop.f32.mrf.mxu0
  %v1453 = vadd.f32 0.0, %v1452
  %v1454 = vpop.f32.mrf.mxu0
  %v1455 = vpop.f32.mrf.mxu0
  %v1456 = vadd.f32 0.0, %v1455
  %v1457 = vpop.f32.mrf.mxu0
  %1458 = vmatprep.mubr.bf16.mxu0 %v1327
  %1459 = vmatmul.mubr.bf16.gmra.mxu0 %v1326
  %v1460 = vpop.f32.mrf.mxu0
  %v1461 = vadd.f32 0.0, %v1460
  %v1462 = vpop.f32.mrf.mxu0
  %v1463 = vpop.f32.mrf.mxu0
  %v1464 = vadd.f32 0.0, %v1463
  %v1465 = vpop.f32.mrf.mxu0
  %1466 = vmatprep.mubr.bf16.mxu0 %v1334
  %1467 = vmatmul.mubr.bf16.gmra.mxu0 %v1333
  %v1468 = vpop.f32.mrf.mxu0
  %v1469 = vadd.f32 0.0, %v1468
  %v1470 = vpop.f32.mrf.mxu0
  %v1471 = vpop.f32.mrf.mxu0
  %v1472 = vadd.f32 0.0, %v1471
  %v1473 = vpop.f32.mrf.mxu0
  %1474 = vmatprep.mubr.bf16.mxu0 %v1341
  %1475 = vmatmul.mubr.bf16.gmra.mxu0 %v1340
  %v1476 = vpop.f32.mrf.mxu0
  %v1477 = vadd.f32 0.0, %v1476
  %v1478 = vpop.f32.mrf.mxu0
  %v1479 = vpop.f32.mrf.mxu0
  %v1480 = vadd.f32 0.0, %v1479
  %v1481 = vpop.f32.mrf.mxu0
  %1482 = vmatprep.mubr.bf16.mxu0 %v1348
  %1483 = vmatmul.mubr.bf16.gmra.mxu0 %v1347
  %v1484 = vpop.f32.mrf.mxu0
  %v1485 = vadd.f32 0.0, %v1484
  %v1486 = vpop.f32.mrf.mxu0
  %v1487 = vpop.f32.mrf.mxu0
  %v1488 = vadd.f32 0.0, %v1487
  %v1489 = vpop.f32.mrf.mxu0
  %1490 = vmatprep.mubr.bf16.mxu0 %v1355
  %1491 = vmatmul.mubr.bf16.gmra.mxu0 %v1354
  %v1492 = vpop.f32.mrf.mxu0
  %v1493 = vadd.f32 0.0, %v1492
  %v1494 = vpop.f32.mrf.mxu0
  %v1495 = vpop.f32.mrf.mxu0
  %v1496 = vpop.f32.mrf.mxu0
  %1497 = vdwg.mxu0
  %1498 = vmatprep.subr.bf16.mxu0 0
  %1499 = vmatpush1.bf16.msra.mxu0 %v676
  %1500 = vmatprep.subr.bf16.mxu0 0
  %1501 = vmatpush1.bf16.msra.mxu0 %v675
  %1502 = vmatprep.subr.bf16.mxu0 0
  %1503 = vmatpush1.bf16.msra.mxu0 %v674
  %1504 = vmatprep.subr.bf16.mxu0 0
  %1505 = vmatpush1.bf16.msra.mxu0 %v673
  %1506 = vmatprep.subr.bf16.mxu0 0
  %1507 = vmatpush1.bf16.msra.mxu0 %v672
  %1508 = vmatprep.subr.bf16.mxu0 0
  %1509 = vmatpush1.bf16.msra.mxu0 %v671
  %1510 = vmatprep.subr.bf16.mxu0 0
  %1511 = vmatpush1.bf16.msra.mxu0 %v670
  %1512 = vmatprep.subr.bf16.mxu0 0
  %1513 = vmatpush1.bf16.msra.mxu0 %v669
  %1514 = vmatprep.subr.bf16.mxu0 0
  %1515 = vmatpush2.bf16.msra.mxu0 %v684
  %1516 = vmatprep.subr.bf16.mxu0 0
  %1517 = vmatpush2.bf16.msra.mxu0 %v683
  %1518 = vmatprep.subr.bf16.mxu0 0
  %1519 = vmatpush2.bf16.msra.mxu0 %v682
  %1520 = vmatprep.subr.bf16.mxu0 0
  %1521 = vmatpush2.bf16.msra.mxu0 %v681
  %1522 = vmatprep.subr.bf16.mxu0 0
  %1523 = vmatpush2.bf16.msra.mxu0 %v680
  %1524 = vmatprep.subr.bf16.mxu0 0
  %1525 = vmatpush2.bf16.msra.mxu0 %v679
  %1526 = vmatprep.subr.bf16.mxu0 0
  %1527 = vmatpush2.bf16.msra.mxu0 %v678
  %1528 = vmatprep.subr.bf16.mxu0 0
  %1529 = vmatpush2.bf16.msra.mxu0 %v677
  %1530 = vmatprep.mubr.bf16.mxu0 %v1315
  %1531 = vmatmul.mubr.bf16.gmra.mxu0 %v1314
  %v1532 = vpop.f32.mrf.mxu0
  %v1533 = vadd.f32 %v1445, %v1532
  %v1534 = vpop.f32.mrf.mxu0
  %v1535 = vpop.f32.mrf.mxu0
  %v1536 = vadd.f32 %v1448, %v1535
  %v1537 = vpop.f32.mrf.mxu0
  %1538 = vmatprep.mubr.bf16.mxu0 %v1322
  %1539 = vmatmul.mubr.bf16.gmra.mxu0 %v1321
  %v1540 = vpop.f32.mrf.mxu0
  %v1541 = vadd.f32 %v1453, %v1540
  %v1542 = vpop.f32.mrf.mxu0
  %v1543 = vpop.f32.mrf.mxu0
  %v1544 = vadd.f32 %v1456, %v1543
  %v1545 = vpop.f32.mrf.mxu0
  %1546 = vmatprep.mubr.bf16.mxu0 %v1329
  %1547 = vmatmul.mubr.bf16.gmra.mxu0 %v1328
  %v1548 = vpop.f32.mrf.mxu0
  %v1549 = vadd.f32 %v1461, %v1548
  %v1550 = vpop.f32.mrf.mxu0
  %v1551 = vpop.f32.mrf.mxu0
  %v1552 = vadd.f32 %v1464, %v1551
  %v1553 = vpop.f32.mrf.mxu0
  %1554 = vmatprep.mubr.bf16.mxu0 %v1336
  %1555 = vmatmul.mubr.bf16.gmra.mxu0 %v1335
  %v1556 = vpop.f32.mrf.mxu0
  %v1557 = vadd.f32 %v1469, %v1556
  %v1558 = vpop.f32.mrf.mxu0
  %v1559 = vpop.f32.mrf.mxu0
  %v1560 = vadd.f32 %v1472, %v1559
  %v1561 = vpop.f32.mrf.mxu0
  %1562 = vmatprep.mubr.bf16.mxu0 %v1343
  %1563 = vmatmul.mubr.bf16.gmra.mxu0 %v1342
  %v1564 = vpop.f32.mrf.mxu0
  %v1565 = vadd.f32 %v1477, %v1564
  %v1566 = vpop.f32.mrf.mxu0
  %v1567 = vpop.f32.mrf.mxu0
  %v1568 = vadd.f32 %v1480, %v1567
  %v1569 = vpop.f32.mrf.mxu0
  %1570 = vmatprep.mubr.bf16.mxu0 %v1350
  %1571 = vmatmul.mubr.bf16.gmra.mxu0 %v1349
  %v1572 = vpop.f32.mrf.mxu0
  %v1573 = vadd.f32 %v1485, %v1572
  %v1574 = vpop.f32.mrf.mxu0
  %v1575 = vpop.f32.mrf.mxu0
  %v1576 = vadd.f32 %v1488, %v1575
  %v1577 = vpop.f32.mrf.mxu0
  %1578 = vmatprep.mubr.bf16.mxu0 %v1357
  %1579 = vmatmul.mubr.bf16.gmra.mxu0 %v1356
  %v1580 = vpop.f32.mrf.mxu0
  %v1581 = vadd.f32 %v1493, %v1580
  %v1582 = vpop.f32.mrf.mxu0
  %v1583 = vpop.f32.mrf.mxu0
  %v1584 = vpop.f32.mrf.mxu0
  %1585 = vdwg.mxu0
  %1586 = vmatprep.subr.bf16.mxu0 0
  %1587 = vmatpush1.bf16.msra.mxu0 %v692
  %1588 = vmatprep.subr.bf16.mxu0 0
  %1589 = vmatpush1.bf16.msra.mxu0 %v691
  %1590 = vmatprep.subr.bf16.mxu0 0
  %1591 = vmatpush1.bf16.msra.mxu0 %v690
  %1592 = vmatprep.subr.bf16.mxu0 0
  %1593 = vmatpush1.bf16.msra.mxu0 %v689
  %1594 = vmatprep.subr.bf16.mxu0 0
  %1595 = vmatpush1.bf16.msra.mxu0 %v688
  %1596 = vmatprep.subr.bf16.mxu0 0
  %1597 = vmatpush1.bf16.msra.mxu0 %v687
  %1598 = vmatprep.subr.bf16.mxu0 0
  %1599 = vmatpush1.bf16.msra.mxu0 %v686
  %1600 = vmatprep.subr.bf16.mxu0 0
  %1601 = vmatpush1.bf16.msra.mxu0 %v685
  %1602 = vmatprep.subr.bf16.mxu0 0
  %1603 = vmatpush2.bf16.msra.mxu0 %v700
  %1604 = vmatprep.subr.bf16.mxu0 0
  %1605 = vmatpush2.bf16.msra.mxu0 %v699
  %1606 = vmatprep.subr.bf16.mxu0 0
  %1607 = vmatpush2.bf16.msra.mxu0 %v698
  %1608 = vmatprep.subr.bf16.mxu0 0
  %1609 = vmatpush2.bf16.msra.mxu0 %v697
  %1610 = vmatprep.subr.bf16.mxu0 0
  %1611 = vmatpush2.bf16.msra.mxu0 %v696
  %1612 = vmatprep.subr.bf16.mxu0 0
  %1613 = vmatpush2.bf16.msra.mxu0 %v695
  %1614 = vmatprep.subr.bf16.mxu0 0
  %1615 = vmatpush2.bf16.msra.mxu0 %v694
  %1616 = vmatprep.subr.bf16.mxu0 0
  %1617 = vmatpush2.bf16.msra.mxu0 %v693
  %1618 = vmatprep.mubr.bf16.mxu0 %v1317
  %1619 = vmatmul.mubr.bf16.gmra.mxu0 %v1316
  %v1620 = vpop.f32.mrf.mxu0
  %v1621 = vadd.f32 %v1533, %v1620
  %v1622 = vpop.f32.mrf.mxu0
  %v1623 = vpop.f32.mrf.mxu0
  %v1624 = vadd.f32 %v1536, %v1623
  %v1625 = vpop.f32.mrf.mxu0
  %1626 = vmatprep.mubr.bf16.mxu0 %v1324
  %1627 = vmatmul.mubr.bf16.gmra.mxu0 %v1323
  %v1628 = vpop.f32.mrf.mxu0
  %v1629 = vadd.f32 %v1541, %v1628
  %v1630 = vpop.f32.mrf.mxu0
  %v1631 = vpop.f32.mrf.mxu0
  %v1632 = vadd.f32 %v1544, %v1631
  %v1633 = vpop.f32.mrf.mxu0
  %1634 = vmatprep.mubr.bf16.mxu0 %v1331
  %1635 = vmatmul.mubr.bf16.gmra.mxu0 %v1330
  %v1636 = vpop.f32.mrf.mxu0
  %v1637 = vadd.f32 %v1549, %v1636
  %v1638 = vpop.f32.mrf.mxu0
  %v1639 = vpop.f32.mrf.mxu0
  %v1640 = vadd.f32 %v1552, %v1639
  %v1641 = vpop.f32.mrf.mxu0
  %1642 = vmatprep.mubr.bf16.mxu0 %v1338
  %1643 = vmatmul.mubr.bf16.gmra.mxu0 %v1337
  %v1644 = vpop.f32.mrf.mxu0
  %v1645 = vadd.f32 %v1557, %v1644
  %v1646 = vpop.f32.mrf.mxu0
  %v1647 = vpop.f32.mrf.mxu0
  %v1648 = vadd.f32 %v1560, %v1647
  %v1649 = vpop.f32.mrf.mxu0
  %1650 = vmatprep.mubr.bf16.mxu0 %v1345
  %1651 = vmatmul.mubr.bf16.gmra.mxu0 %v1344
  %v1652 = vpop.f32.mrf.mxu0
  %v1653 = vadd.f32 %v1565, %v1652
  %v1654 = vpop.f32.mrf.mxu0
  %v1655 = vpop.f32.mrf.mxu0
  %v1656 = vadd.f32 %v1568, %v1655
  %v1657 = vpop.f32.mrf.mxu0
  %1658 = vmatprep.mubr.bf16.mxu0 %v1352
  %1659 = vmatmul.mubr.bf16.gmra.mxu0 %v1351
  %v1660 = vpop.f32.mrf.mxu0
  %v1661 = vadd.f32 %v1573, %v1660
  %v1662 = vpop.f32.mrf.mxu0
  %v1663 = vpop.f32.mrf.mxu0
  %v1664 = vadd.f32 %v1576, %v1663
  %v1665 = vpop.f32.mrf.mxu0
  %1666 = vmatprep.mubr.bf16.mxu0 %v1359
  %1667 = vmatmul.mubr.bf16.gmra.mxu0 %v1358
  %v1668 = vpop.f32.mrf.mxu0
  %v1669 = vadd.f32 %v1581, %v1668
  %v1670 = vpop.f32.mrf.mxu0
  %v1671 = vpop.f32.mrf.mxu0
  %v1672 = vpop.f32.mrf.mxu0
  %1673 = vdwg.mxu0
  %1674 = vmatprep.subr.bf16.mxu0 0
  %1675 = vmatpush1.bf16.msra.mxu0 %v708
  %1676 = vmatprep.subr.bf16.mxu0 0
  %1677 = vmatpush1.bf16.msra.mxu0 %v707
  %1678 = vmatprep.subr.bf16.mxu0 0
  %1679 = vmatpush1.bf16.msra.mxu0 %v706
  %1680 = vmatprep.subr.bf16.mxu0 0
  %1681 = vmatpush1.bf16.msra.mxu0 %v705
  %1682 = vmatprep.subr.bf16.mxu0 0
  %1683 = vmatpush1.bf16.msra.mxu0 %v704
  %1684 = vmatprep.subr.bf16.mxu0 0
  %1685 = vmatpush1.bf16.msra.mxu0 %v703
  %1686 = vmatprep.subr.bf16.mxu0 0
  %1687 = vmatpush1.bf16.msra.mxu0 %v702
  %1688 = vmatprep.subr.bf16.mxu0 0
  %1689 = vmatpush1.bf16.msra.mxu0 %v701
  %1690 = vmatprep.subr.bf16.mxu0 0
  %1691 = vmatpush2.bf16.msra.mxu0 0
  %1692 = vmatprep.subr.bf16.mxu0 0
  %1693 = vmatpush2.bf16.msra.mxu0 0
  %1694 = vmatprep.subr.bf16.mxu0 0
  %1695 = vmatpush2.bf16.msra.mxu0 0
  %1696 = vmatprep.subr.bf16.mxu0 0
  %1697 = vmatpush2.bf16.msra.mxu0 0
  %1698 = vmatprep.subr.bf16.mxu0 0
  %1699 = vmatpush2.bf16.msra.mxu0 0
  %1700 = vmatprep.subr.bf16.mxu0 0
  %1701 = vmatpush2.bf16.msra.mxu0 0
  %1702 = vmatprep.subr.bf16.mxu0 0
  %1703 = vmatpush2.bf16.msra.mxu0 0
  %1704 = vmatprep.subr.bf16.mxu0 0
  %1705 = vmatpush2.bf16.msra.mxu0 0
  %1706 = vmatprep.mubr.bf16.mxu0 0
  %1707 = vmatmul.mubr.bf16.gmra.mxu0 %v1318
  %v1708 = vpop.f32.mrf.mxu0
  %v1709 = vadd.f32 %v1621, %v1708
  %v1710 = vpop.f32.mrf.mxu0
  %v1711 = vpop.f32.mrf.mxu0
  %v1712 = vadd.f32 %v1624, %v1711
  %v1713 = vpop.f32.mrf.mxu0
  %1714 = vmatprep.mubr.bf16.mxu0 0
  %1715 = vmatmul.mubr.bf16.gmra.mxu0 %v1325
  %v1716 = vpop.f32.mrf.mxu0
  %v1717 = vadd.f32 %v1629, %v1716
  %v1718 = vpop.f32.mrf.mxu0
  %v1719 = vpop.f32.mrf.mxu0
  %v1720 = vadd.f32 %v1632, %v1719
  %v1721 = vpop.f32.mrf.mxu0
  %1722 = vmatprep.mubr.bf16.mxu0 0
  %1723 = vmatmul.mubr.bf16.gmra.mxu0 %v1332
  %v1724 = vpop.f32.mrf.mxu0
  %v1725 = vadd.f32 %v1637, %v1724
  %v1726 = vpop.f32.mrf.mxu0
  %v1727 = vpop.f32.mrf.mxu0
  %v1728 = vadd.f32 %v1640, %v1727
  %v1729 = vpop.f32.mrf.mxu0
  %1730 = vmatprep.mubr.bf16.mxu0 0
  %1731 = vmatmul.mubr.bf16.gmra.mxu0 %v1339
  %v1732 = vpop.f32.mrf.mxu0
  %v1733 = vadd.f32 %v1645, %v1732
  %v1734 = vpop.f32.mrf.mxu0
  %v1735 = vpop.f32.mrf.mxu0
  %v1736 = vadd.f32 %v1648, %v1735
  %v1737 = vpop.f32.mrf.mxu0
  %1738 = vmatprep.mubr.bf16.mxu0 0
  %1739 = vmatmul.mubr.bf16.gmra.mxu0 %v1346
  %v1740 = vpop.f32.mrf.mxu0
  %v1741 = vadd.f32 %v1653, %v1740
  %v1742 = vpop.f32.mrf.mxu0
  %v1743 = vpop.f32.mrf.mxu0
  %v1744 = vadd.f32 %v1656, %v1743
  %v1745 = vpop.f32.mrf.mxu0
  %1746 = vmatprep.mubr.bf16.mxu0 0
  %1747 = vmatmul.mubr.bf16.gmra.mxu0 %v1353
  %v1748 = vpop.f32.mrf.mxu0
  %v1749 = vadd.f32 %v1661, %v1748
  %v1750 = vpop.f32.mrf.mxu0
  %v1751 = vpop.f32.mrf.mxu0
  %v1752 = vadd.f32 %v1664, %v1751
  %v1753 = vpop.f32.mrf.mxu0
  %1754 = vmatprep.mubr.bf16.mxu0 0
  %1755 = vmatmul.mubr.bf16.gmra.mxu0 %v1360
  %v1756 = vpop.f32.mrf.mxu0
  %v1757 = vadd.f32 %v1669, %v1756
  %v1758 = vpop.f32.mrf.mxu0
  %v1759 = vpop.f32.mrf.mxu0
  %v1760 = vpop.f32.mrf.mxu0
  %1761 = vdwg.mxu0
  %v1762 = vmax.f32 %v1064, %v1709
  %v1763 = vmax.f32 %v1067, %v1712
  %v1764 = vmax.f32 %v1072, %v1717
  %v1765 = vmax.f32 %v1075, %v1720
  %v1766 = vmax.f32 %v1080, %v1725
  %v1767 = vmax.f32 %v1083, %v1728
  %v1768 = vmax.f32 %v1088, %v1733
  %v1769 = vmax.f32 %v1091, %v1736
  %v1770 = vmax.f32 %v1096, %v1741
  %v1771 = vmax.f32 %v1099, %v1744
  %v1772 = vmax.f32 %v1104, %v1749
  %v1773 = vmax.f32 %v1107, %v1752
  %v1774 = vmax.f32 %v1112, %v1757
  %v1775 = vld [vmem:[%s2] sm:$0xff]
  %v1776 = vld [vmem:[%s2 + $0x8] sm:$0xff]
  %v1777 = vld [vmem:[%s2 + $0x10] sm:$0xff]
  %v1778 = vld [vmem:[%s2 + $0x18] sm:$0xf]
  %v1779 = vld [vmem:[%s2 + $0x1c] sm:$0xff]
  %v1780 = vld [vmem:[%s2 + $0x24] sm:$0xff]
  %v1781 = vld [vmem:[%s2 + $0x2c] sm:$0xff]
  %v1782 = vld [vmem:[%s2 + $0x34] sm:$0xf]
  %v1783 = vld [vmem:[%s2 + $0x38] sm:$0xff]
  %v1784 = vld [vmem:[%s2 + $0x40] sm:$0xff]
  %v1785 = vld [vmem:[%s2 + $0x48] sm:$0xff]
  %v1786 = vld [vmem:[%s2 + $0x50] sm:$0xf]
  %v1787 = vld [vmem:[%s2 + $0x54] sm:$0xff]
  %v1788 = vld [vmem:[%s2 + $0x5c] sm:$0xff]
  %v1789 = vld [vmem:[%s2 + $0x64] sm:$0xff]
  %v1790 = vld [vmem:[%s2 + $0x6c] sm:$0xf]
  %v1791 = vld [vmem:[%s2 + $0x70] sm:$0xff]
  %v1792 = vld [vmem:[%s2 + $0x78] sm:$0xff]
  %v1793 = vld [vmem:[%s2 + $0x80] sm:$0xff]
  %v1794 = vld [vmem:[%s2 + $0x88] sm:$0xf]
  %v1795 = vld [vmem:[%s2 + $0x8c] sm:$0xff]
  %v1796 = vld [vmem:[%s2 + $0x94] sm:$0xff]
  %v1797 = vld [vmem:[%s2 + $0x9c] sm:$0xff]
  %v1798 = vld [vmem:[%s2 + $0xa4] sm:$0xf]
  %v1799 = vld [vmem:[%s2 + $0xa8] sm:$0xff]
  %v1800 = vld [vmem:[%s2 + $0xb0] sm:$0xff]
  %v1801 = vld [vmem:[%s2 + $0xb8] sm:$0xff]
  %v1802 = vld [vmem:[%s2 + $0xc0] sm:$0xf]
  %v1803 = vld [vmem:[%s2 + $0xc4] sm:$0xff]
  %v1804 = vld [vmem:[%s2 + $0xcc] sm:$0xff]
  %v1805 = vld [vmem:[%s2 + $0xd4] sm:$0xff]
  %v1806 = vld [vmem:[%s2 + $0xdc] sm:$0xf]
  %v1807 = vld [vmem:[%s2 + $0xe0] sm:$0xff]
  %v1808 = vld [vmem:[%s2 + $0xe8] sm:$0xff]
  %v1809 = vld [vmem:[%s2 + $0xf0] sm:$0xff]
  %v1810 = vld [vmem:[%s2 + $0xf8] sm:$0xf]
  %v1811 = vld [vmem:[%s2 + $0xfc] sm:$0xff]
  %v1812 = vld [vmem:[%s2 + $0x104] sm:$0xff]
  %v1813 = vld [vmem:[%s2 + $0x10c] sm:$0xff]
  %v1814 = vld [vmem:[%s2 + $0x114] sm:$0xf]
  %v1815 = vld [vmem:[%s2 + $0x118] sm:$0xff]
  %v1816 = vld [vmem:[%s2 + $0x120] sm:$0xff]
  %v1817 = vld [vmem:[%s2 + $0x128] sm:$0xff]
  %v1818 = vld [vmem:[%s2 + $0x130] sm:$0xf]
  %v1819 = vld [vmem:[%s2 + $0x134] sm:$0xff]
  %v1820 = vld [vmem:[%s2 + $0x13c] sm:$0xff]
  %v1821 = vld [vmem:[%s2 + $0x144] sm:$0xff]
  %v1822 = vld [vmem:[%s2 + $0x14c] sm:$0xf]
  %v1823 = vld [vmem:[%s2 + $0x150] sm:$0xff]
  %v1824 = vld [vmem:[%s2 + $0x158] sm:$0xff]
  %v1825 = vld [vmem:[%s2 + $0x160] sm:$0xff]
  %v1826 = vld [vmem:[%s2 + $0x168] sm:$0xf]
  %v1879 = vunpack.c.l.b16 %v1775
  %v1880 = vunpack.c.h.b16 %v1775
  %v1881 = vunpack.c.l.b16 %v1776
  %v1882 = vunpack.c.h.b16 %v1776
  %v1883 = vunpack.c.l.b16 %v1777
  %v1884 = vunpack.c.h.b16 %v1777
  %v1885 = vunpack.c.l.b16 %v1778
  %v1886 = vunpack.c.l.b16 %v1779
  %v1887 = vunpack.c.h.b16 %v1779
  %v1888 = vunpack.c.l.b16 %v1780
  %v1889 = vunpack.c.h.b16 %v1780
  %v1890 = vunpack.c.l.b16 %v1781
  %v1891 = vunpack.c.h.b16 %v1781
  %v1892 = vunpack.c.l.b16 %v1782
  %v1893 = vunpack.c.l.b16 %v1783
  %v1894 = vunpack.c.h.b16 %v1783
  %v1895 = vunpack.c.l.b16 %v1784
  %v1896 = vunpack.c.h.b16 %v1784
  %v1897 = vunpack.c.l.b16 %v1785
  %v1898 = vunpack.c.h.b16 %v1785
  %v1899 = vunpack.c.l.b16 %v1786
  %v1900 = vunpack.c.l.b16 %v1787
  %v1901 = vunpack.c.h.b16 %v1787
  %v1902 = vunpack.c.l.b16 %v1788
  %v1903 = vunpack.c.h.b16 %v1788
  %v1904 = vunpack.c.l.b16 %v1789
  %v1905 = vunpack.c.h.b16 %v1789
  %v1906 = vunpack.c.l.b16 %v1790
  %v1907 = vunpack.c.l.b16 %v1791
  %v1908 = vunpack.c.h.b16 %v1791
  %v1909 = vunpack.c.l.b16 %v1792
  %v1910 = vunpack.c.h.b16 %v1792
  %v1911 = vunpack.c.l.b16 %v1793
  %v1912 = vunpack.c.h.b16 %v1793
  %v1913 = vunpack.c.l.b16 %v1794
  %v1914 = vunpack.c.l.b16 %v1795
  %v1915 = vunpack.c.h.b16 %v1795
  %v1916 = vunpack.c.l.b16 %v1796
  %v1917 = vunpack.c.h.b16 %v1796
  %v1918 = vunpack.c.l.b16 %v1797
  %v1919 = vunpack.c.h.b16 %v1797
  %v1920 = vunpack.c.l.b16 %v1798
  %v1921 = vunpack.c.l.b16 %v1799
  %v1922 = vunpack.c.h.b16 %v1799
  %v1923 = vunpack.c.l.b16 %v1800
  %v1924 = vunpack.c.h.b16 %v1800
  %v1925 = vunpack.c.l.b16 %v1801
  %v1926 = vunpack.c.h.b16 %v1801
  %v1927 = vunpack.c.l.b16 %v1802
  %v1928 = vunpack.c.l.b16 %v1803
  %v1929 = vunpack.c.h.b16 %v1803
  %v1930 = vunpack.c.l.b16 %v1804
  %v1931 = vunpack.c.h.b16 %v1804
  %v1932 = vunpack.c.l.b16 %v1805
  %v1933 = vunpack.c.h.b16 %v1805
  %v1934 = vunpack.c.l.b16 %v1806
  %v1935 = vunpack.c.l.b16 %v1807
  %v1936 = vunpack.c.h.b16 %v1807
  %v1937 = vunpack.c.l.b16 %v1808
  %v1938 = vunpack.c.h.b16 %v1808
  %v1939 = vunpack.c.l.b16 %v1809
  %v1940 = vunpack.c.h.b16 %v1809
  %v1941 = vunpack.c.l.b16 %v1810
  %v1942 = vunpack.c.l.b16 %v1811
  %v1943 = vunpack.c.h.b16 %v1811
  %v1944 = vunpack.c.l.b16 %v1812
  %v1945 = vunpack.c.h.b16 %v1812
  %v1946 = vunpack.c.l.b16 %v1813
  %v1947 = vunpack.c.h.b16 %v1813
  %v1948 = vunpack.c.l.b16 %v1814
  %v1949 = vunpack.c.l.b16 %v1815
  %v1950 = vunpack.c.h.b16 %v1815
  %v1951 = vunpack.c.l.b16 %v1816
  %v1952 = vunpack.c.h.b16 %v1816
  %v1953 = vunpack.c.l.b16 %v1817
  %v1954 = vunpack.c.h.b16 %v1817
  %v1955 = vunpack.c.l.b16 %v1818
  %v1956 = vunpack.c.l.b16 %v1819
  %v1957 = vunpack.c.h.b16 %v1819
  %v1958 = vunpack.c.l.b16 %v1820
  %v1959 = vunpack.c.h.b16 %v1820
  %v1960 = vunpack.c.l.b16 %v1821
  %v1961 = vunpack.c.h.b16 %v1821
  %v1962 = vunpack.c.l.b16 %v1822
  %v1963 = vunpack.c.l.b16 %v1823
  %v1964 = vunpack.c.h.b16 %v1823
  %v1965 = vunpack.c.l.b16 %v1824
  %v1966 = vunpack.c.h.b16 %v1824
  %v1967 = vunpack.c.l.b16 %v1825
  %v1968 = vunpack.c.h.b16 %v1825
  %v1969 = vunpack.c.l.b16 %v1826
  %v1970 = vpack.c.b16 %v1886, %v1879
  %v1971 = vpack.c.b16 %v1887, %v1880
  %v1972 = vpack.c.b16 %v1888, %v1881
  %v1973 = vpack.c.b16 %v1889, %v1882
  %v1974 = vpack.c.b16 %v1890, %v1883
  %v1975 = vpack.c.b16 %v1891, %v1884
  %v1976 = vpack.c.b16 %v1892, %v1885
  %v1977 = vpack.c.b16 %v1900, %v1893
  %v1978 = vpack.c.b16 %v1901, %v1894
  %v1979 = vpack.c.b16 %v1902, %v1895
  %v1980 = vpack.c.b16 %v1903, %v1896
  %v1981 = vpack.c.b16 %v1904, %v1897
  %v1982 = vpack.c.b16 %v1905, %v1898
  %v1983 = vpack.c.b16 %v1906, %v1899
  %v1984 = vpack.c.b16 %v1914, %v1907
  %v1985 = vpack.c.b16 %v1915, %v1908
  %v1986 = vpack.c.b16 %v1916, %v1909
  %v1987 = vpack.c.b16 %v1917, %v1910
  %v1988 = vpack.c.b16 %v1918, %v1911
  %v1989 = vpack.c.b16 %v1919, %v1912
  %v1990 = vpack.c.b16 %v1920, %v1913
  %v1991 = vpack.c.b16 %v1928, %v1921
  %v1992 = vpack.c.b16 %v1929, %v1922
  %v1993 = vpack.c.b16 %v1930, %v1923
  %v1994 = vpack.c.b16 %v1931, %v1924
  %v1995 = vpack.c.b16 %v1932, %v1925
  %v1996 = vpack.c.b16 %v1933, %v1926
  %v1997 = vpack.c.b16 %v1934, %v1927
  %v1998 = vpack.c.b16 %v1942, %v1935
  %v1999 = vpack.c.b16 %v1943, %v1936
  %v2000 = vpack.c.b16 %v1944, %v1937
  %v2001 = vpack.c.b16 %v1945, %v1938
  %v2002 = vpack.c.b16 %v1946, %v1939
  %v2003 = vpack.c.b16 %v1947, %v1940
  %v2004 = vpack.c.b16 %v1948, %v1941
  %v2005 = vpack.c.b16 %v1956, %v1949
  %v2006 = vpack.c.b16 %v1957, %v1950
  %v2007 = vpack.c.b16 %v1958, %v1951
  %v2008 = vpack.c.b16 %v1959, %v1952
  %v2009 = vpack.c.b16 %v1960, %v1953
  %v2010 = vpack.c.b16 %v1961, %v1954
  %v2011 = vpack.c.b16 %v1962, %v1955
  %v2012 = vpack.c.b16 %v1963, %v1963
  %v2013 = vpack.c.b16 %v1964, %v1964
  %v2014 = vpack.c.b16 %v1965, %v1965
  %v2015 = vpack.c.b16 %v1966, %v1966
  %v2016 = vpack.c.b16 %v1967, %v1967
  %v2017 = vpack.c.b16 %v1968, %v1968
  %v2018 = vpack.c.b16 %v1969, %v1969
  %2068 = vmatprep.subr.bf16.mxu0 0
  %2069 = vmatpush1.bf16.msra.mxu0 %v660
  %2070 = vmatprep.subr.bf16.mxu0 0
  %2071 = vmatpush1.bf16.msra.mxu0 %v659
  %2072 = vmatprep.subr.bf16.mxu0 0
  %2073 = vmatpush1.bf16.msra.mxu0 %v658
  %2074 = vmatprep.subr.bf16.mxu0 0
  %2075 = vmatpush1.bf16.msra.mxu0 %v657
  %2076 = vmatprep.subr.bf16.mxu0 0
  %2077 = vmatpush1.bf16.msra.mxu0 %v656
  %2078 = vmatprep.subr.bf16.mxu0 0
  %2079 = vmatpush1.bf16.msra.mxu0 %v655
  %2080 = vmatprep.subr.bf16.mxu0 0
  %2081 = vmatpush1.bf16.msra.mxu0 %v654
  %2082 = vmatprep.subr.bf16.mxu0 0
  %2083 = vmatpush1.bf16.msra.mxu0 %v653
  %2084 = vmatprep.subr.bf16.mxu0 0
  %2085 = vmatpush2.bf16.msra.mxu0 %v668
  %2086 = vmatprep.subr.bf16.mxu0 0
  %2087 = vmatpush2.bf16.msra.mxu0 %v667
  %2088 = vmatprep.subr.bf16.mxu0 0
  %2089 = vmatpush2.bf16.msra.mxu0 %v666
  %2090 = vmatprep.subr.bf16.mxu0 0
  %2091 = vmatpush2.bf16.msra.mxu0 %v665
  %2092 = vmatprep.subr.bf16.mxu0 0
  %2093 = vmatpush2.bf16.msra.mxu0 %v664
  %2094 = vmatprep.subr.bf16.mxu0 0
  %2095 = vmatpush2.bf16.msra.mxu0 %v663
  %2096 = vmatprep.subr.bf16.mxu0 0
  %2097 = vmatpush2.bf16.msra.mxu0 %v662
  %2098 = vmatprep.subr.bf16.mxu0 0
  %2099 = vmatpush2.bf16.msra.mxu0 %v661
  %2100 = vmatprep.mubr.bf16.mxu0 %v1971
  %2101 = vmatmul.mubr.bf16.gmra.mxu0 %v1970
  %v2102 = vpop.f32.mrf.mxu0
  %v2103 = vadd.f32 0.0, %v2102
  %v2104 = vpop.f32.mrf.mxu0
  %v2105 = vpop.f32.mrf.mxu0
  %v2106 = vadd.f32 0.0, %v2105
  %v2107 = vpop.f32.mrf.mxu0
  %2108 = vmatprep.mubr.bf16.mxu0 %v1978
  %2109 = vmatmul.mubr.bf16.gmra.mxu0 %v1977
  %v2110 = vpop.f32.mrf.mxu0
  %v2111 = vadd.f32 0.0, %v2110
  %v2112 = vpop.f32.mrf.mxu0
  %v2113 = vpop.f32.mrf.mxu0
  %v2114 = vadd.f32 0.0, %v2113
  %v2115 = vpop.f32.mrf.mxu0
  %2116 = vmatprep.mubr.bf16.mxu0 %v1985
  %2117 = vmatmul.mubr.bf16.gmra.mxu0 %v1984
  %v2118 = vpop.f32.mrf.mxu0
  %v2119 = vadd.f32 0.0, %v2118
  %v2120 = vpop.f32.mrf.mxu0
  %v2121 = vpop.f32.mrf.mxu0
  %v2122 = vadd.f32 0.0, %v2121
  %v2123 = vpop.f32.mrf.mxu0
  %2124 = vmatprep.mubr.bf16.mxu0 %v1992
  %2125 = vmatmul.mubr.bf16.gmra.mxu0 %v1991
  %v2126 = vpop.f32.mrf.mxu0
  %v2127 = vadd.f32 0.0, %v2126
  %v2128 = vpop.f32.mrf.mxu0
  %v2129 = vpop.f32.mrf.mxu0
  %v2130 = vadd.f32 0.0, %v2129
  %v2131 = vpop.f32.mrf.mxu0
  %2132 = vmatprep.mubr.bf16.mxu0 %v1999
  %2133 = vmatmul.mubr.bf16.gmra.mxu0 %v1998
  %v2134 = vpop.f32.mrf.mxu0
  %v2135 = vadd.f32 0.0, %v2134
  %v2136 = vpop.f32.mrf.mxu0
  %v2137 = vpop.f32.mrf.mxu0
  %v2138 = vadd.f32 0.0, %v2137
  %v2139 = vpop.f32.mrf.mxu0
  %2140 = vmatprep.mubr.bf16.mxu0 %v2006
  %2141 = vmatmul.mubr.bf16.gmra.mxu0 %v2005
  %v2142 = vpop.f32.mrf.mxu0
  %v2143 = vadd.f32 0.0, %v2142
  %v2144 = vpop.f32.mrf.mxu0
  %v2145 = vpop.f32.mrf.mxu0
  %v2146 = vadd.f32 0.0, %v2145
  %v2147 = vpop.f32.mrf.mxu0
  %2148 = vmatprep.mubr.bf16.mxu0 %v2013
  %2149 = vmatmul.mubr.bf16.gmra.mxu0 %v2012
  %v2150 = vpop.f32.mrf.mxu0
  %v2151 = vadd.f32 0.0, %v2150
  %v2152 = vpop.f32.mrf.mxu0
  %v2153 = vpop.f32.mrf.mxu0
  %v2154 = vpop.f32.mrf.mxu0
  %2155 = vdwg.mxu0
  %2156 = vmatprep.subr.bf16.mxu0 0
  %2157 = vmatpush1.bf16.msra.mxu0 %v676
  %2158 = vmatprep.subr.bf16.mxu0 0
  %2159 = vmatpush1.bf16.msra.mxu0 %v675
  %2160 = vmatprep.subr.bf16.mxu0 0
  %2161 = vmatpush1.bf16.msra.mxu0 %v674
  %2162 = vmatprep.subr.bf16.mxu0 0
  %2163 = vmatpush1.bf16.msra.mxu0 %v673
  %2164 = vmatprep.subr.bf16.mxu0 0
  %2165 = vmatpush1.bf16.msra.mxu0 %v672
  %2166 = vmatprep.subr.bf16.mxu0 0
  %2167 = vmatpush1.bf16.msra.mxu0 %v671
  %2168 = vmatprep.subr.bf16.mxu0 0
  %2169 = vmatpush1.bf16.msra.mxu0 %v670
  %2170 = vmatprep.subr.bf16.mxu0 0
  %2171 = vmatpush1.bf16.msra.mxu0 %v669
  %2172 = vmatprep.subr.bf16.mxu0 0
  %2173 = vmatpush2.bf16.msra.mxu0 %v684
  %2174 = vmatprep.subr.bf16.mxu0 0
  %2175 = vmatpush2.bf16.msra.mxu0 %v683
  %2176 = vmatprep.subr.bf16.mxu0 0
  %2177 = vmatpush2.bf16.msra.mxu0 %v682
  %2178 = vmatprep.subr.bf16.mxu0 0
  %2179 = vmatpush2.bf16.msra.mxu0 %v681
  %2180 = vmatprep.subr.bf16.mxu0 0
  %2181 = vmatpush2.bf16.msra.mxu0 %v680
  %2182 = vmatprep.subr.bf16.mxu0 0
  %2183 = vmatpush2.bf16.msra.mxu0 %v679
  %2184 = vmatprep.subr.bf16.mxu0 0
  %2185 = vmatpush2.bf16.msra.mxu0 %v678
  %2186 = vmatprep.subr.bf16.mxu0 0
  %2187 = vmatpush2.bf16.msra.mxu0 %v677
  %2188 = vmatprep.mubr.bf16.mxu0 %v1973
  %2189 = vmatmul.mubr.bf16.gmra.mxu0 %v1972
  %v2190 = vpop.f32.mrf.mxu0
  %v2191 = vadd.f32 %v2103, %v2190
  %v2192 = vpop.f32.mrf.mxu0
  %v2193 = vpop.f32.mrf.mxu0
  %v2194 = vadd.f32 %v2106, %v2193
  %v2195 = vpop.f32.mrf.mxu0
  %2196 = vmatprep.mubr.bf16.mxu0 %v1980
  %2197 = vmatmul.mubr.bf16.gmra.mxu0 %v1979
  %v2198 = vpop.f32.mrf.mxu0
  %v2199 = vadd.f32 %v2111, %v2198
  %v2200 = vpop.f32.mrf.mxu0
  %v2201 = vpop.f32.mrf.mxu0
  %v2202 = vadd.f32 %v2114, %v2201
  %v2203 = vpop.f32.mrf.mxu0
  %2204 = vmatprep.mubr.bf16.mxu0 %v1987
  %2205 = vmatmul.mubr.bf16.gmra.mxu0 %v1986
  %v2206 = vpop.f32.mrf.mxu0
  %v2207 = vadd.f32 %v2119, %v2206
  %v2208 = vpop.f32.mrf.mxu0
  %v2209 = vpop.f32.mrf.mxu0
  %v2210 = vadd.f32 %v2122, %v2209
  %v2211 = vpop.f32.mrf.mxu0
  %2212 = vmatprep.mubr.bf16.mxu0 %v1994
  %2213 = vmatmul.mubr.bf16.gmra.mxu0 %v1993
  %v2214 = vpop.f32.mrf.mxu0
  %v2215 = vadd.f32 %v2127, %v2214
  %v2216 = vpop.f32.mrf.mxu0
  %v2217 = vpop.f32.mrf.mxu0
  %v2218 = vadd.f32 %v2130, %v2217
  %v2219 = vpop.f32.mrf.mxu0
  %2220 = vmatprep.mubr.bf16.mxu0 %v2001
  %2221 = vmatmul.mubr.bf16.gmra.mxu0 %v2000
  %v2222 = vpop.f32.mrf.mxu0
  %v2223 = vadd.f32 %v2135, %v2222
  %v2224 = vpop.f32.mrf.mxu0
  %v2225 = vpop.f32.mrf.mxu0
  %v2226 = vadd.f32 %v2138, %v2225
  %v2227 = vpop.f32.mrf.mxu0
  %2228 = vmatprep.mubr.bf16.mxu0 %v2008
  %2229 = vmatmul.mubr.bf16.gmra.mxu0 %v2007
  %v2230 = vpop.f32.mrf.mxu0
  %v2231 = vadd.f32 %v2143, %v2230
  %v2232 = vpop.f32.mrf.mxu0
  %v2233 = vpop.f32.mrf.mxu0
  %v2234 = vadd.f32 %v2146, %v2233
  %v2235 = vpop.f32.mrf.mxu0
  %2236 = vmatprep.mubr.bf16.mxu0 %v2015
  %2237 = vmatmul.mubr.bf16.gmra.mxu0 %v2014
  %v2238 = vpop.f32.mrf.mxu0
  %v2239 = vadd.f32 %v2151, %v2238
  %v2240 = vpop.f32.mrf.mxu0
  %v2241 = vpop.f32.mrf.mxu0
  %v2242 = vpop.f32.mrf.mxu0
  %2243 = vdwg.mxu0
  %2244 = vmatprep.subr.bf16.mxu0 0
  %2245 = vmatpush1.bf16.msra.mxu0 %v692
  %2246 = vmatprep.subr.bf16.mxu0 0
  %2247 = vmatpush1.bf16.msra.mxu0 %v691
  %2248 = vmatprep.subr.bf16.mxu0 0
  %2249 = vmatpush1.bf16.msra.mxu0 %v690
  %2250 = vmatprep.subr.bf16.mxu0 0
  %2251 = vmatpush1.bf16.msra.mxu0 %v689
  %2252 = vmatprep.subr.bf16.mxu0 0
  %2253 = vmatpush1.bf16.msra.mxu0 %v688
  %2254 = vmatprep.subr.bf16.mxu0 0
  %2255 = vmatpush1.bf16.msra.mxu0 %v687
  %2256 = vmatprep.subr.bf16.mxu0 0
  %2257 = vmatpush1.bf16.msra.mxu0 %v686
  %2258 = vmatprep.subr.bf16.mxu0 0
  %2259 = vmatpush1.bf16.msra.mxu0 %v685
  %2260 = vmatprep.subr.bf16.mxu0 0
  %2261 = vmatpush2.bf16.msra.mxu0 %v700
  %2262 = vmatprep.subr.bf16.mxu0 0
  %2263 = vmatpush2.bf16.msra.mxu0 %v699
  %2264 = vmatprep.subr.bf16.mxu0 0
  %2265 = vmatpush2.bf16.msra.mxu0 %v698
  %2266 = vmatprep.subr.bf16.mxu0 0
  %2267 = vmatpush2.bf16.msra.mxu0 %v697
  %2268 = vmatprep.subr.bf16.mxu0 0
  %2269 = vmatpush2.bf16.msra.mxu0 %v696
  %2270 = vmatprep.subr.bf16.mxu0 0
  %2271 = vmatpush2.bf16.msra.mxu0 %v695
  %2272 = vmatprep.subr.bf16.mxu0 0
  %2273 = vmatpush2.bf16.msra.mxu0 %v694
  %2274 = vmatprep.subr.bf16.mxu0 0
  %2275 = vmatpush2.bf16.msra.mxu0 %v693
  %2276 = vmatprep.mubr.bf16.mxu0 %v1975
  %2277 = vmatmul.mubr.bf16.gmra.mxu0 %v1974
  %v2278 = vpop.f32.mrf.mxu0
  %v2279 = vadd.f32 %v2191, %v2278
  %v2280 = vpop.f32.mrf.mxu0
  %v2281 = vpop.f32.mrf.mxu0
  %v2282 = vadd.f32 %v2194, %v2281
  %v2283 = vpop.f32.mrf.mxu0
  %2284 = vmatprep.mubr.bf16.mxu0 %v1982
  %2285 = vmatmul.mubr.bf16.gmra.mxu0 %v1981
  %v2286 = vpop.f32.mrf.mxu0
  %v2287 = vadd.f32 %v2199, %v2286
  %v2288 = vpop.f32.mrf.mxu0
  %v2289 = vpop.f32.mrf.mxu0
  %v2290 = vadd.f32 %v2202, %v2289
  %v2291 = vpop.f32.mrf.mxu0
  %2292 = vmatprep.mubr.bf16.mxu0 %v1989
  %2293 = vmatmul.mubr.bf16.gmra.mxu0 %v1988
  %v2294 = vpop.f32.mrf.mxu0
  %v2295 = vadd.f32 %v2207, %v2294
  %v2296 = vpop.f32.mrf.mxu0
  %v2297 = vpop.f32.mrf.mxu0
  %v2298 = vadd.f32 %v2210, %v2297
  %v2299 = vpop.f32.mrf.mxu0
  %2300 = vmatprep.mubr.bf16.mxu0 %v1996
  %2301 = vmatmul.mubr.bf16.gmra.mxu0 %v1995
  %v2302 = vpop.f32.mrf.mxu0
  %v2303 = vadd.f32 %v2215, %v2302
  %v2304 = vpop.f32.mrf.mxu0
  %v2305 = vpop.f32.mrf.mxu0
  %v2306 = vadd.f32 %v2218, %v2305
  %v2307 = vpop.f32.mrf.mxu0
  %2308 = vmatprep.mubr.bf16.mxu0 %v2003
  %2309 = vmatmul.mubr.bf16.gmra.mxu0 %v2002
  %v2310 = vpop.f32.mrf.mxu0
  %v2311 = vadd.f32 %v2223, %v2310
  %v2312 = vpop.f32.mrf.mxu0
  %v2313 = vpop.f32.mrf.mxu0
  %v2314 = vadd.f32 %v2226, %v2313
  %v2315 = vpop.f32.mrf.mxu0
  %2316 = vmatprep.mubr.bf16.mxu0 %v2010
  %2317 = vmatmul.mubr.bf16.gmra.mxu0 %v2009
  %v2318 = vpop.f32.mrf.mxu0
  %v2319 = vadd.f32 %v2231, %v2318
  %v2320 = vpop.f32.mrf.mxu0
  %v2321 = vpop.f32.mrf.mxu0
  %v2322 = vadd.f32 %v2234, %v2321
  %v2323 = vpop.f32.mrf.mxu0
  %2324 = vmatprep.mubr.bf16.mxu0 %v2017
  %2325 = vmatmul.mubr.bf16.gmra.mxu0 %v2016
  %v2326 = vpop.f32.mrf.mxu0
  %v2327 = vadd.f32 %v2239, %v2326
  %v2328 = vpop.f32.mrf.mxu0
  %v2329 = vpop.f32.mrf.mxu0
  %v2330 = vpop.f32.mrf.mxu0
  %2331 = vdwg.mxu0
  %2332 = vmatprep.subr.bf16.mxu0 0
  %2333 = vmatpush1.bf16.msra.mxu0 %v708
  %2334 = vmatprep.subr.bf16.mxu0 0
  %2335 = vmatpush1.bf16.msra.mxu0 %v707
  %2336 = vmatprep.subr.bf16.mxu0 0
  %2337 = vmatpush1.bf16.msra.mxu0 %v706
  %2338 = vmatprep.subr.bf16.mxu0 0
  %2339 = vmatpush1.bf16.msra.mxu0 %v705
  %2340 = vmatprep.subr.bf16.mxu0 0
  %2341 = vmatpush1.bf16.msra.mxu0 %v704
  %2342 = vmatprep.subr.bf16.mxu0 0
  %2343 = vmatpush1.bf16.msra.mxu0 %v703
  %2344 = vmatprep.subr.bf16.mxu0 0
  %2345 = vmatpush1.bf16.msra.mxu0 %v702
  %2346 = vmatprep.subr.bf16.mxu0 0
  %2347 = vmatpush1.bf16.msra.mxu0 %v701
  %2348 = vmatprep.subr.bf16.mxu0 0
  %2349 = vmatpush2.bf16.msra.mxu0 0
  %2350 = vmatprep.subr.bf16.mxu0 0
  %2351 = vmatpush2.bf16.msra.mxu0 0
  %2352 = vmatprep.subr.bf16.mxu0 0
  %2353 = vmatpush2.bf16.msra.mxu0 0
  %2354 = vmatprep.subr.bf16.mxu0 0
  %2355 = vmatpush2.bf16.msra.mxu0 0
  %2356 = vmatprep.subr.bf16.mxu0 0
  %2357 = vmatpush2.bf16.msra.mxu0 0
  %2358 = vmatprep.subr.bf16.mxu0 0
  %2359 = vmatpush2.bf16.msra.mxu0 0
  %2360 = vmatprep.subr.bf16.mxu0 0
  %2361 = vmatpush2.bf16.msra.mxu0 0
  %2362 = vmatprep.subr.bf16.mxu0 0
  %2363 = vmatpush2.bf16.msra.mxu0 0
  %2364 = vmatprep.mubr.bf16.mxu0 0
  %2365 = vmatmul.mubr.bf16.gmra.mxu0 %v1976
  %v2366 = vpop.f32.mrf.mxu0
  %v2367 = vadd.f32 %v2279, %v2366
  %v2368 = vpop.f32.mrf.mxu0
  %v2369 = vpop.f32.mrf.mxu0
  %v2370 = vadd.f32 %v2282, %v2369
  %v2371 = vpop.f32.mrf.mxu0
  %2372 = vmatprep.mubr.bf16.mxu0 0
  %2373 = vmatmul.mubr.bf16.gmra.mxu0 %v1983
  %v2374 = vpop.f32.mrf.mxu0
  %v2375 = vadd.f32 %v2287, %v2374
  %v2376 = vpop.f32.mrf.mxu0
  %v2377 = vpop.f32.mrf.mxu0
  %v2378 = vadd.f32 %v2290, %v2377
  %v2379 = vpop.f32.mrf.mxu0
  %2380 = vmatprep.mubr.bf16.mxu0 0
  %2381 = vmatmul.mubr.bf16.gmra.mxu0 %v1990
  %v2382 = vpop.f32.mrf.mxu0
  %v2383 = vadd.f32 %v2295, %v2382
  %v2384 = vpop.f32.mrf.mxu0
  %v2385 = vpop.f32.mrf.mxu0
  %v2386 = vadd.f32 %v2298, %v2385
  %v2387 = vpop.f32.mrf.mxu0
  %2388 = vmatprep.mubr.bf16.mxu0 0
  %2389 = vmatmul.mubr.bf16.gmra.mxu0 %v1997
  %v2390 = vpop.f32.mrf.mxu0
  %v2391 = vadd.f32 %v2303, %v2390
  %v2392 = vpop.f32.mrf.mxu0
  %v2393 = vpop.f32.mrf.mxu0
  %v2394 = vadd.f32 %v2306, %v2393
  %v2395 = vpop.f32.mrf.mxu0
  %2396 = vmatprep.mubr.bf16.mxu0 0
  %2397 = vmatmul.mubr.bf16.gmra.mxu0 %v2004
  %v2398 = vpop.f32.mrf.mxu0
  %v2399 = vadd.f32 %v2311, %v2398
  %v2400 = vpop.f32.mrf.mxu0
  %v2401 = vpop.f32.mrf.mxu0
  %v2402 = vadd.f32 %v2314, %v2401
  %v2403 = vpop.f32.mrf.mxu0
  %2404 = vmatprep.mubr.bf16.mxu0 0
  %2405 = vmatmul.mubr.bf16.gmra.mxu0 %v2011
  %v2406 = vpop.f32.mrf.mxu0
  %v2407 = vadd.f32 %v2319, %v2406
  %v2408 = vpop.f32.mrf.mxu0
  %v2409 = vpop.f32.mrf.mxu0
  %v2410 = vadd.f32 %v2322, %v2409
  %v2411 = vpop.f32.mrf.mxu0
  %2412 = vmatprep.mubr.bf16.mxu0 0
  %2413 = vmatmul.mubr.bf16.gmra.mxu0 %v2018
  %v2414 = vpop.f32.mrf.mxu0
  %v2415 = vadd.f32 %v2327, %v2414
  %v2416 = vpop.f32.mrf.mxu0
  %v2417 = vpop.f32.mrf.mxu0
  %v2418 = vpop.f32.mrf.mxu0
  %2419 = vdwg.mxu0
  %v2420 = vmax.f32 %v1762, %v2367
  %v2421 = vmax.f32 %v1763, %v2370
  %v2422 = vmax.f32 %v1764, %v2375
  %v2423 = vmax.f32 %v1765, %v2378
  %v2424 = vmax.f32 %v1766, %v2383
  %v2425 = vmax.f32 %v1767, %v2386
  %v2426 = vmax.f32 %v1768, %v2391
  %v2427 = vmax.f32 %v1769, %v2394
  %v2428 = vmax.f32 %v1770, %v2399
  %v2429 = vmax.f32 %v1771, %v2402
  %v2430 = vmax.f32 %v1772, %v2407
  %v2431 = vmax.f32 %v1773, %v2410
  %v2432 = vmax.f32 %v1774, %v2415
  %v2433 = vld [vmem:[%s3] sm:$0xff]
  %v2434 = vld [vmem:[%s3 + $0x8] sm:$0xff]
  %v2435 = vld [vmem:[%s3 + $0x10] sm:$0xff]
  %v2436 = vld [vmem:[%s3 + $0x18] sm:$0xf]
  %v2437 = vld [vmem:[%s3 + $0x1c] sm:$0xff]
  %v2438 = vld [vmem:[%s3 + $0x24] sm:$0xff]
  %v2439 = vld [vmem:[%s3 + $0x2c] sm:$0xff]
  %v2440 = vld [vmem:[%s3 + $0x34] sm:$0xf]
  %v2441 = vld [vmem:[%s3 + $0x38] sm:$0xff]
  %v2442 = vld [vmem:[%s3 + $0x40] sm:$0xff]
  %v2443 = vld [vmem:[%s3 + $0x48] sm:$0xff]
  %v2444 = vld [vmem:[%s3 + $0x50] sm:$0xf]
  %v2445 = vld [vmem:[%s3 + $0x54] sm:$0xff]
  %v2446 = vld [vmem:[%s3 + $0x5c] sm:$0xff]
  %v2447 = vld [vmem:[%s3 + $0x64] sm:$0xff]
  %v2448 = vld [vmem:[%s3 + $0x6c] sm:$0xf]
  %v2449 = vld [vmem:[%s3 + $0x70] sm:$0xff]
  %v2450 = vld [vmem:[%s3 + $0x78] sm:$0xff]
  %v2451 = vld [vmem:[%s3 + $0x80] sm:$0xff]
  %v2452 = vld [vmem:[%s3 + $0x88] sm:$0xf]
  %v2453 = vld [vmem:[%s3 + $0x8c] sm:$0xff]
  %v2454 = vld [vmem:[%s3 + $0x94] sm:$0xff]
  %v2455 = vld [vmem:[%s3 + $0x9c] sm:$0xff]
  %v2456 = vld [vmem:[%s3 + $0xa4] sm:$0xf]
  %v2457 = vld [vmem:[%s3 + $0xa8] sm:$0xff]
  %v2458 = vld [vmem:[%s3 + $0xb0] sm:$0xff]
  %v2459 = vld [vmem:[%s3 + $0xb8] sm:$0xff]
  %v2460 = vld [vmem:[%s3 + $0xc0] sm:$0xf]
  %v2461 = vld [vmem:[%s3 + $0xc4] sm:$0xff]
  %v2462 = vld [vmem:[%s3 + $0xcc] sm:$0xff]
  %v2463 = vld [vmem:[%s3 + $0xd4] sm:$0xff]
  %v2464 = vld [vmem:[%s3 + $0xdc] sm:$0xf]
  %v2465 = vld [vmem:[%s3 + $0xe0] sm:$0xff]
  %v2466 = vld [vmem:[%s3 + $0xe8] sm:$0xff]
  %v2467 = vld [vmem:[%s3 + $0xf0] sm:$0xff]
  %v2468 = vld [vmem:[%s3 + $0xf8] sm:$0xf]
  %v2469 = vld [vmem:[%s3 + $0xfc] sm:$0xff]
  %v2470 = vld [vmem:[%s3 + $0x104] sm:$0xff]
  %v2471 = vld [vmem:[%s3 + $0x10c] sm:$0xff]
  %v2472 = vld [vmem:[%s3 + $0x114] sm:$0xf]
  %v2473 = vld [vmem:[%s3 + $0x118] sm:$0xff]
  %v2474 = vld [vmem:[%s3 + $0x120] sm:$0xff]
  %v2475 = vld [vmem:[%s3 + $0x128] sm:$0xff]
  %v2476 = vld [vmem:[%s3 + $0x130] sm:$0xf]
  %v2477 = vld [vmem:[%s3 + $0x134] sm:$0xff]
  %v2478 = vld [vmem:[%s3 + $0x13c] sm:$0xff]
  %v2479 = vld [vmem:[%s3 + $0x144] sm:$0xff]
  %v2480 = vld [vmem:[%s3 + $0x14c] sm:$0xf]
  %v2481 = vld [vmem:[%s3 + $0x150] sm:$0xff]
  %v2482 = vld [vmem:[%s3 + $0x158] sm:$0xff]
  %v2483 = vld [vmem:[%s3 + $0x160] sm:$0xff]
  %v2484 = vld [vmem:[%s3 + $0x168] sm:$0xf]
  %v2537 = vunpack.c.l.b16 %v2433
  %v2538 = vunpack.c.h.b16 %v2433
  %v2539 = vunpack.c.l.b16 %v2434
  %v2540 = vunpack.c.h.b16 %v2434
  %v2541 = vunpack.c.l.b16 %v2435
  %v2542 = vunpack.c.h.b16 %v2435
  %v2543 = vunpack.c.l.b16 %v2436
  %v2544 = vunpack.c.l.b16 %v2437
  %v2545 = vunpack.c.h.b16 %v2437
  %v2546 = vunpack.c.l.b16 %v2438
  %v2547 = vunpack.c.h.b16 %v2438
  %v2548 = vunpack.c.l.b16 %v2439
  %v2549 = vunpack.c.h.b16 %v2439
  %v2550 = vunpack.c.l.b16 %v2440
  %v2551 = vunpack.c.l.b16 %v2441
  %v2552 = vunpack.c.h.b16 %v2441
  %v2553 = vunpack.c.l.b16 %v2442
  %v2554 = vunpack.c.h.b16 %v2442
  %v2555 = vunpack.c.l.b16 %v2443
  %v2556 = vunpack.c.h.b16 %v2443
  %v2557 = vunpack.c.l.b16 %v2444
  %v2558 = vunpack.c.l.b16 %v2445
  %v2559 = vunpack.c.h.b16 %v2445
  %v2560 = vunpack.c.l.b16 %v2446
  %v2561 = vunpack.c.h.b16 %v2446
  %v2562 = vunpack.c.l.b16 %v2447
  %v2563 = vunpack.c.h.b16 %v2447
  %v2564 = vunpack.c.l.b16 %v2448
  %v2565 = vunpack.c.l.b16 %v2449
  %v2566 = vunpack.c.h.b16 %v2449
  %v2567 = vunpack.c.l.b16 %v2450
  %v2568 = vunpack.c.h.b16 %v2450
  %v2569 = vunpack.c.l.b16 %v2451
  %v2570 = vunpack.c.h.b16 %v2451
  %v2571 = vunpack.c.l.b16 %v2452
  %v2572 = vunpack.c.l.b16 %v2453
  %v2573 = vunpack.c.h.b16 %v2453
  %v2574 = vunpack.c.l.b16 %v2454
  %v2575 = vunpack.c.h.b16 %v2454
  %v2576 = vunpack.c.l.b16 %v2455
  %v2577 = vunpack.c.h.b16 %v2455
  %v2578 = vunpack.c.l.b16 %v2456
  %v2579 = vunpack.c.l.b16 %v2457
  %v2580 = vunpack.c.h.b16 %v2457
  %v2581 = vunpack.c.l.b16 %v2458
  %v2582 = vunpack.c.h.b16 %v2458
  %v2583 = vunpack.c.l.b16 %v2459
  %v2584 = vunpack.c.h.b16 %v2459
  %v2585 = vunpack.c.l.b16 %v2460
  %v2586 = vunpack.c.l.b16 %v2461
  %v2587 = vunpack.c.h.b16 %v2461
  %v2588 = vunpack.c.l.b16 %v2462
  %v2589 = vunpack.c.h.b16 %v2462
  %v2590 = vunpack.c.l.b16 %v2463
  %v2591 = vunpack.c.h.b16 %v2463
  %v2592 = vunpack.c.l.b16 %v2464
  %v2593 = vunpack.c.l.b16 %v2465
  %v2594 = vunpack.c.h.b16 %v2465
  %v2595 = vunpack.c.l.b16 %v2466
  %v2596 = vunpack.c.h.b16 %v2466
  %v2597 = vunpack.c.l.b16 %v2467
  %v2598 = vunpack.c.h.b16 %v2467
  %v2599 = vunpack.c.l.b16 %v2468
  %v2600 = vunpack.c.l.b16 %v2469
  %v2601 = vunpack.c.h.b16 %v2469
  %v2602 = vunpack.c.l.b16 %v2470
  %v2603 = vunpack.c.h.b16 %v2470
  %v2604 = vunpack.c.l.b16 %v2471
  %v2605 = vunpack.c.h.b16 %v2471
  %v2606 = vunpack.c.l.b16 %v2472
  %v2607 = vunpack.c.l.b16 %v2473
  %v2608 = vunpack.c.h.b16 %v2473
  %v2609 = vunpack.c.l.b16 %v2474
  %v2610 = vunpack.c.h.b16 %v2474
  %v2611 = vunpack.c.l.b16 %v2475
  %v2612 = vunpack.c.h.b16 %v2475
  %v2613 = vunpack.c.l.b16 %v2476
  %v2614 = vunpack.c.l.b16 %v2477
  %v2615 = vunpack.c.h.b16 %v2477
  %v2616 = vunpack.c.l.b16 %v2478
  %v2617 = vunpack.c.h.b16 %v2478
  %v2618 = vunpack.c.l.b16 %v2479
  %v2619 = vunpack.c.h.b16 %v2479
  %v2620 = vunpack.c.l.b16 %v2480
  %v2621 = vunpack.c.l.b16 %v2481
  %v2622 = vunpack.c.h.b16 %v2481
  %v2623 = vunpack.c.l.b16 %v2482
  %v2624 = vunpack.c.h.b16 %v2482
  %v2625 = vunpack.c.l.b16 %v2483
  %v2626 = vunpack.c.h.b16 %v2483
  %v2627 = vunpack.c.l.b16 %v2484
  %v2628 = vpack.c.b16 %v2544, %v2537
  %v2629 = vpack.c.b16 %v2545, %v2538
  %v2630 = vpack.c.b16 %v2546, %v2539
  %v2631 = vpack.c.b16 %v2547, %v2540
  %v2632 = vpack.c.b16 %v2548, %v2541
  %v2633 = vpack.c.b16 %v2549, %v2542
  %v2634 = vpack.c.b16 %v2550, %v2543
  %v2635 = vpack.c.b16 %v2558, %v2551
  %v2636 = vpack.c.b16 %v2559, %v2552
  %v2637 = vpack.c.b16 %v2560, %v2553
  %v2638 = vpack.c.b16 %v2561, %v2554
  %v2639 = vpack.c.b16 %v2562, %v2555
  %v2640 = vpack.c.b16 %v2563, %v2556
  %v2641 = vpack.c.b16 %v2564, %v2557
  %v2642 = vpack.c.b16 %v2572, %v2565
  %v2643 = vpack.c.b16 %v2573, %v2566
  %v2644 = vpack.c.b16 %v2574, %v2567
  %v2645 = vpack.c.b16 %v2575, %v2568
  %v2646 = vpack.c.b16 %v2576, %v2569
  %v2647 = vpack.c.b16 %v2577, %v2570
  %v2648 = vpack.c.b16 %v2578, %v2571
  %v2649 = vpack.c.b16 %v2586, %v2579
  %v2650 = vpack.c.b16 %v2587, %v2580
  %v2651 = vpack.c.b16 %v2588, %v2581
  %v2652 = vpack.c.b16 %v2589, %v2582
  %v2653 = vpack.c.b16 %v2590, %v2583
  %v2654 = vpack.c.b16 %v2591, %v2584
  %v2655 = vpack.c.b16 %v2592, %v2585
  %v2656 = vpack.c.b16 %v2600, %v2593
  %v2657 = vpack.c.b16 %v2601, %v2594
  %v2658 = vpack.c.b16 %v2602, %v2595
  %v2659 = vpack.c.b16 %v2603, %v2596
  %v2660 = vpack.c.b16 %v2604, %v2597
  %v2661 = vpack.c.b16 %v2605, %v2598
  %v2662 = vpack.c.b16 %v2606, %v2599
  %v2663 = vpack.c.b16 %v2614, %v2607
  %v2664 = vpack.c.b16 %v2615, %v2608
  %v2665 = vpack.c.b16 %v2616, %v2609
  %v2666 = vpack.c.b16 %v2617, %v2610
  %v2667 = vpack.c.b16 %v2618, %v2611
  %v2668 = vpack.c.b16 %v2619, %v2612
  %v2669 = vpack.c.b16 %v2620, %v2613
  %v2670 = vpack.c.b16 %v2621, %v2621
  %v2671 = vpack.c.b16 %v2622, %v2622
  %v2672 = vpack.c.b16 %v2623, %v2623
  %v2673 = vpack.c.b16 %v2624, %v2624
  %v2674 = vpack.c.b16 %v2625, %v2625
  %v2675 = vpack.c.b16 %v2626, %v2626
  %v2676 = vpack.c.b16 %v2627, %v2627
  %2726 = vmatprep.subr.bf16.mxu0 0
  %2727 = vmatpush1.bf16.msra.mxu0 %v660
  %2728 = vmatprep.subr.bf16.mxu0 0
  %2729 = vmatpush1.bf16.msra.mxu0 %v659
  %2730 = vmatprep.subr.bf16.mxu0 0
  %2731 = vmatpush1.bf16.msra.mxu0 %v658
  %2732 = vmatprep.subr.bf16.mxu0 0
  %2733 = vmatpush1.bf16.msra.mxu0 %v657
  %2734 = vmatprep.subr.bf16.mxu0 0
  %2735 = vmatpush1.bf16.msra.mxu0 %v656
  %2736 = vmatprep.subr.bf16.mxu0 0
  %2737 = vmatpush1.bf16.msra.mxu0 %v655
  %2738 = vmatprep.subr.bf16.mxu0 0
  %2739 = vmatpush1.bf16.msra.mxu0 %v654
  %2740 = vmatprep.subr.bf16.mxu0 0
  %2741 = vmatpush1.bf16.msra.mxu0 %v653
  %2742 = vmatprep.subr.bf16.mxu0 0
  %2743 = vmatpush2.bf16.msra.mxu0 %v668
  %2744 = vmatprep.subr.bf16.mxu0 0
  %2745 = vmatpush2.bf16.msra.mxu0 %v667
  %2746 = vmatprep.subr.bf16.mxu0 0
  %2747 = vmatpush2.bf16.msra.mxu0 %v666
  %2748 = vmatprep.subr.bf16.mxu0 0
  %2749 = vmatpush2.bf16.msra.mxu0 %v665
  %2750 = vmatprep.subr.bf16.mxu0 0
  %2751 = vmatpush2.bf16.msra.mxu0 %v664
  %2752 = vmatprep.subr.bf16.mxu0 0
  %2753 = vmatpush2.bf16.msra.mxu0 %v663
  %2754 = vmatprep.subr.bf16.mxu0 0
  %2755 = vmatpush2.bf16.msra.mxu0 %v662
  %2756 = vmatprep.subr.bf16.mxu0 0
  %2757 = vmatpush2.bf16.msra.mxu0 %v661
  %2758 = vmatprep.mubr.bf16.mxu0 %v2629
  %2759 = vmatmul.mubr.bf16.gmra.mxu0 %v2628
  %v2760 = vpop.f32.mrf.mxu0
  %v2761 = vadd.f32 0.0, %v2760
  %v2762 = vpop.f32.mrf.mxu0
  %v2763 = vpop.f32.mrf.mxu0
  %v2764 = vadd.f32 0.0, %v2763
  %v2765 = vpop.f32.mrf.mxu0
  %2766 = vmatprep.mubr.bf16.mxu0 %v2636
  %2767 = vmatmul.mubr.bf16.gmra.mxu0 %v2635
  %v2768 = vpop.f32.mrf.mxu0
  %v2769 = vadd.f32 0.0, %v2768
  %v2770 = vpop.f32.mrf.mxu0
  %v2771 = vpop.f32.mrf.mxu0
  %v2772 = vadd.f32 0.0, %v2771
  %v2773 = vpop.f32.mrf.mxu0
  %2774 = vmatprep.mubr.bf16.mxu0 %v2643
  %2775 = vmatmul.mubr.bf16.gmra.mxu0 %v2642
  %v2776 = vpop.f32.mrf.mxu0
  %v2777 = vadd.f32 0.0, %v2776
  %v2778 = vpop.f32.mrf.mxu0
  %v2779 = vpop.f32.mrf.mxu0
  %v2780 = vadd.f32 0.0, %v2779
  %v2781 = vpop.f32.mrf.mxu0
  %2782 = vmatprep.mubr.bf16.mxu0 %v2650
  %2783 = vmatmul.mubr.bf16.gmra.mxu0 %v2649
  %v2784 = vpop.f32.mrf.mxu0
  %v2785 = vadd.f32 0.0, %v2784
  %v2786 = vpop.f32.mrf.mxu0
  %v2787 = vpop.f32.mrf.mxu0
  %v2788 = vadd.f32 0.0, %v2787
  %v2789 = vpop.f32.mrf.mxu0
  %2790 = vmatprep.mubr.bf16.mxu0 %v2657
  %2791 = vmatmul.mubr.bf16.gmra.mxu0 %v2656
  %v2792 = vpop.f32.mrf.mxu0
  %v2793 = vadd.f32 0.0, %v2792
  %v2794 = vpop.f32.mrf.mxu0
  %v2795 = vpop.f32.mrf.mxu0
  %v2796 = vadd.f32 0.0, %v2795
  %v2797 = vpop.f32.mrf.mxu0
  %2798 = vmatprep.mubr.bf16.mxu0 %v2664
  %2799 = vmatmul.mubr.bf16.gmra.mxu0 %v2663
  %v2800 = vpop.f32.mrf.mxu0
  %v2801 = vadd.f32 0.0, %v2800
  %v2802 = vpop.f32.mrf.mxu0
  %v2803 = vpop.f32.mrf.mxu0
  %v2804 = vadd.f32 0.0, %v2803
  %v2805 = vpop.f32.mrf.mxu0
  %2806 = vmatprep.mubr.bf16.mxu0 %v2671
  %2807 = vmatmul.mubr.bf16.gmra.mxu0 %v2670
  %v2808 = vpop.f32.mrf.mxu0
  %v2809 = vadd.f32 0.0, %v2808
  %v2810 = vpop.f32.mrf.mxu0
  %v2811 = vpop.f32.mrf.mxu0
  %v2812 = vpop.f32.mrf.mxu0
  %2813 = vdwg.mxu0
  %2814 = vmatprep.subr.bf16.mxu0 0
  %2815 = vmatpush1.bf16.msra.mxu0 %v676
  %2816 = vmatprep.subr.bf16.mxu0 0
  %2817 = vmatpush1.bf16.msra.mxu0 %v675
  %2818 = vmatprep.subr.bf16.mxu0 0
  %2819 = vmatpush1.bf16.msra.mxu0 %v674
  %2820 = vmatprep.subr.bf16.mxu0 0
  %2821 = vmatpush1.bf16.msra.mxu0 %v673
  %2822 = vmatprep.subr.bf16.mxu0 0
  %2823 = vmatpush1.bf16.msra.mxu0 %v672
  %2824 = vmatprep.subr.bf16.mxu0 0
  %2825 = vmatpush1.bf16.msra.mxu0 %v671
  %2826 = vmatprep.subr.bf16.mxu0 0
  %2827 = vmatpush1.bf16.msra.mxu0 %v670
  %2828 = vmatprep.subr.bf16.mxu0 0
  %2829 = vmatpush1.bf16.msra.mxu0 %v669
  %2830 = vmatprep.subr.bf16.mxu0 0
  %2831 = vmatpush2.bf16.msra.mxu0 %v684
  %2832 = vmatprep.subr.bf16.mxu0 0
  %2833 = vmatpush2.bf16.msra.mxu0 %v683
  %2834 = vmatprep.subr.bf16.mxu0 0
  %2835 = vmatpush2.bf16.msra.mxu0 %v682
  %2836 = vmatprep.subr.bf16.mxu0 0
  %2837 = vmatpush2.bf16.msra.mxu0 %v681
  %2838 = vmatprep.subr.bf16.mxu0 0
  %2839 = vmatpush2.bf16.msra.mxu0 %v680
  %2840 = vmatprep.subr.bf16.mxu0 0
  %2841 = vmatpush2.bf16.msra.mxu0 %v679
  %2842 = vmatprep.subr.bf16.mxu0 0
  %2843 = vmatpush2.bf16.msra.mxu0 %v678
  %2844 = vmatprep.subr.bf16.mxu0 0
  %2845 = vmatpush2.bf16.msra.mxu0 %v677
  %2846 = vmatprep.mubr.bf16.mxu0 %v2631
  %2847 = vmatmul.mubr.bf16.gmra.mxu0 %v2630
  %v2848 = vpop.f32.mrf.mxu0
  %v2849 = vadd.f32 %v2761, %v2848
  %v2850 = vpop.f32.mrf.mxu0
  %v2851 = vpop.f32.mrf.mxu0
  %v2852 = vadd.f32 %v2764, %v2851
  %v2853 = vpop.f32.mrf.mxu0
  %2854 = vmatprep.mubr.bf16.mxu0 %v2638
  %2855 = vmatmul.mubr.bf16.gmra.mxu0 %v2637
  %v2856 = vpop.f32.mrf.mxu0
  %v2857 = vadd.f32 %v2769, %v2856
  %v2858 = vpop.f32.mrf.mxu0
  %v2859 = vpop.f32.mrf.mxu0
  %v2860 = vadd.f32 %v2772, %v2859
  %v2861 = vpop.f32.mrf.mxu0
  %2862 = vmatprep.mubr.bf16.mxu0 %v2645
  %2863 = vmatmul.mubr.bf16.gmra.mxu0 %v2644
  %v2864 = vpop.f32.mrf.mxu0
  %v2865 = vadd.f32 %v2777, %v2864
  %v2866 = vpop.f32.mrf.mxu0
  %v2867 = vpop.f32.mrf.mxu0
  %v2868 = vadd.f32 %v2780, %v2867
  %v2869 = vpop.f32.mrf.mxu0
  %2870 = vmatprep.mubr.bf16.mxu0 %v2652
  %2871 = vmatmul.mubr.bf16.gmra.mxu0 %v2651
  %v2872 = vpop.f32.mrf.mxu0
  %v2873 = vadd.f32 %v2785, %v2872
  %v2874 = vpop.f32.mrf.mxu0
  %v2875 = vpop.f32.mrf.mxu0
  %v2876 = vadd.f32 %v2788, %v2875
  %v2877 = vpop.f32.mrf.mxu0
  %2878 = vmatprep.mubr.bf16.mxu0 %v2659
  %2879 = vmatmul.mubr.bf16.gmra.mxu0 %v2658
  %v2880 = vpop.f32.mrf.mxu0
  %v2881 = vadd.f32 %v2793, %v2880
  %v2882 = vpop.f32.mrf.mxu0
  %v2883 = vpop.f32.mrf.mxu0
  %v2884 = vadd.f32 %v2796, %v2883
  %v2885 = vpop.f32.mrf.mxu0
  %2886 = vmatprep.mubr.bf16.mxu0 %v2666
  %2887 = vmatmul.mubr.bf16.gmra.mxu0 %v2665
  %v2888 = vpop.f32.mrf.mxu0
  %v2889 = vadd.f32 %v2801, %v2888
  %v2890 = vpop.f32.mrf.mxu0
  %v2891 = vpop.f32.mrf.mxu0
  %v2892 = vadd.f32 %v2804, %v2891
  %v2893 = vpop.f32.mrf.mxu0
  %2894 = vmatprep.mubr.bf16.mxu0 %v2673
  %2895 = vmatmul.mubr.bf16.gmra.mxu0 %v2672
  %v2896 = vpop.f32.mrf.mxu0
  %v2897 = vadd.f32 %v2809, %v2896
  %v2898 = vpop.f32.mrf.mxu0
  %v2899 = vpop.f32.mrf.mxu0
  %v2900 = vpop.f32.mrf.mxu0
  %2901 = vdwg.mxu0
  %2902 = vmatprep.subr.bf16.mxu0 0
  %2903 = vmatpush1.bf16.msra.mxu0 %v692
  %2904 = vmatprep.subr.bf16.mxu0 0
  %2905 = vmatpush1.bf16.msra.mxu0 %v691
  %2906 = vmatprep.subr.bf16.mxu0 0
  %2907 = vmatpush1.bf16.msra.mxu0 %v690
  %2908 = vmatprep.subr.bf16.mxu0 0
  %2909 = vmatpush1.bf16.msra.mxu0 %v689
  %2910 = vmatprep.subr.bf16.mxu0 0
  %2911 = vmatpush1.bf16.msra.mxu0 %v688
  %2912 = vmatprep.subr.bf16.mxu0 0
  %2913 = vmatpush1.bf16.msra.mxu0 %v687
  %2914 = vmatprep.subr.bf16.mxu0 0
  %2915 = vmatpush1.bf16.msra.mxu0 %v686
  %2916 = vmatprep.subr.bf16.mxu0 0
  %2917 = vmatpush1.bf16.msra.mxu0 %v685
  %2918 = vmatprep.subr.bf16.mxu0 0
  %2919 = vmatpush2.bf16.msra.mxu0 %v700
  %2920 = vmatprep.subr.bf16.mxu0 0
  %2921 = vmatpush2.bf16.msra.mxu0 %v699
  %2922 = vmatprep.subr.bf16.mxu0 0
  %2923 = vmatpush2.bf16.msra.mxu0 %v698
  %2924 = vmatprep.subr.bf16.mxu0 0
  %2925 = vmatpush2.bf16.msra.mxu0 %v697
  %2926 = vmatprep.subr.bf16.mxu0 0
  %2927 = vmatpush2.bf16.msra.mxu0 %v696
  %2928 = vmatprep.subr.bf16.mxu0 0
  %2929 = vmatpush2.bf16.msra.mxu0 %v695
  %2930 = vmatprep.subr.bf16.mxu0 0
  %2931 = vmatpush2.bf16.msra.mxu0 %v694
  %2932 = vmatprep.subr.bf16.mxu0 0
  %2933 = vmatpush2.bf16.msra.mxu0 %v693
  %2934 = vmatprep.mubr.bf16.mxu0 %v2633
  %2935 = vmatmul.mubr.bf16.gmra.mxu0 %v2632
  %v2936 = vpop.f32.mrf.mxu0
  %v2937 = vadd.f32 %v2849, %v2936
  %v2938 = vpop.f32.mrf.mxu0
  %v2939 = vpop.f32.mrf.mxu0
  %v2940 = vadd.f32 %v2852, %v2939
  %v2941 = vpop.f32.mrf.mxu0
  %2942 = vmatprep.mubr.bf16.mxu0 %v2640
  %2943 = vmatmul.mubr.bf16.gmra.mxu0 %v2639
  %v2944 = vpop.f32.mrf.mxu0
  %v2945 = vadd.f32 %v2857, %v2944
  %v2946 = vpop.f32.mrf.mxu0
  %v2947 = vpop.f32.mrf.mxu0
  %v2948 = vadd.f32 %v2860, %v2947
  %v2949 = vpop.f32.mrf.mxu0
  %2950 = vmatprep.mubr.bf16.mxu0 %v2647
  %2951 = vmatmul.mubr.bf16.gmra.mxu0 %v2646
  %v2952 = vpop.f32.mrf.mxu0
  %v2953 = vadd.f32 %v2865, %v2952
  %v2954 = vpop.f32.mrf.mxu0
  %v2955 = vpop.f32.mrf.mxu0
  %v2956 = vadd.f32 %v2868, %v2955
  %v2957 = vpop.f32.mrf.mxu0
  %2958 = vmatprep.mubr.bf16.mxu0 %v2654
  %2959 = vmatmul.mubr.bf16.gmra.mxu0 %v2653
  %v2960 = vpop.f32.mrf.mxu0
  %v2961 = vadd.f32 %v2873, %v2960
  %v2962 = vpop.f32.mrf.mxu0
  %v2963 = vpop.f32.mrf.mxu0
  %v2964 = vadd.f32 %v2876, %v2963
  %v2965 = vpop.f32.mrf.mxu0
  %2966 = vmatprep.mubr.bf16.mxu0 %v2661
  %2967 = vmatmul.mubr.bf16.gmra.mxu0 %v2660
  %v2968 = vpop.f32.mrf.mxu0
  %v2969 = vadd.f32 %v2881, %v2968
  %v2970 = vpop.f32.mrf.mxu0
  %v2971 = vpop.f32.mrf.mxu0
  %v2972 = vadd.f32 %v2884, %v2971
  %v2973 = vpop.f32.mrf.mxu0
  %2974 = vmatprep.mubr.bf16.mxu0 %v2668
  %2975 = vmatmul.mubr.bf16.gmra.mxu0 %v2667
  %v2976 = vpop.f32.mrf.mxu0
  %v2977 = vadd.f32 %v2889, %v2976
  %v2978 = vpop.f32.mrf.mxu0
  %v2979 = vpop.f32.mrf.mxu0
  %v2980 = vadd.f32 %v2892, %v2979
  %v2981 = vpop.f32.mrf.mxu0
  %2982 = vmatprep.mubr.bf16.mxu0 %v2675
  %2983 = vmatmul.mubr.bf16.gmra.mxu0 %v2674
  %v2984 = vpop.f32.mrf.mxu0
  %v2985 = vadd.f32 %v2897, %v2984
  %v2986 = vpop.f32.mrf.mxu0
  %v2987 = vpop.f32.mrf.mxu0
  %v2988 = vpop.f32.mrf.mxu0
  %2989 = vdwg.mxu0
  %2990 = vmatprep.subr.bf16.mxu0 0
  %2991 = vmatpush1.bf16.msra.mxu0 %v708
  %2992 = vmatprep.subr.bf16.mxu0 0
  %2993 = vmatpush1.bf16.msra.mxu0 %v707
  %2994 = vmatprep.subr.bf16.mxu0 0
  %2995 = vmatpush1.bf16.msra.mxu0 %v706
  %2996 = vmatprep.subr.bf16.mxu0 0
  %2997 = vmatpush1.bf16.msra.mxu0 %v705
  %2998 = vmatprep.subr.bf16.mxu0 0
  %2999 = vmatpush1.bf16.msra.mxu0 %v704
  %3000 = vmatprep.subr.bf16.mxu0 0
  %3001 = vmatpush1.bf16.msra.mxu0 %v703
  %3002 = vmatprep.subr.bf16.mxu0 0
  %3003 = vmatpush1.bf16.msra.mxu0 %v702
  %3004 = vmatprep.subr.bf16.mxu0 0
  %3005 = vmatpush1.bf16.msra.mxu0 %v701
  %3006 = vmatprep.subr.bf16.mxu0 0
  %3007 = vmatpush2.bf16.msra.mxu0 0
  %3008 = vmatprep.subr.bf16.mxu0 0
  %3009 = vmatpush2.bf16.msra.mxu0 0
  %3010 = vmatprep.subr.bf16.mxu0 0
  %3011 = vmatpush2.bf16.msra.mxu0 0
  %3012 = vmatprep.subr.bf16.mxu0 0
  %3013 = vmatpush2.bf16.msra.mxu0 0
  %3014 = vmatprep.subr.bf16.mxu0 0
  %3015 = vmatpush2.bf16.msra.mxu0 0
  %3016 = vmatprep.subr.bf16.mxu0 0
  %3017 = vmatpush2.bf16.msra.mxu0 0
  %3018 = vmatprep.subr.bf16.mxu0 0
  %3019 = vmatpush2.bf16.msra.mxu0 0
  %3020 = vmatprep.subr.bf16.mxu0 0
  %3021 = vmatpush2.bf16.msra.mxu0 0
  %3022 = vmatprep.mubr.bf16.mxu0 0
  %3023 = vmatmul.mubr.bf16.gmra.mxu0 %v2634
  %v3024 = vpop.f32.mrf.mxu0
  %v3025 = vadd.f32 %v2937, %v3024
  %v3026 = vpop.f32.mrf.mxu0
  %v3027 = vpop.f32.mrf.mxu0
  %v3028 = vadd.f32 %v2940, %v3027
  %v3029 = vpop.f32.mrf.mxu0
  %3030 = vmatprep.mubr.bf16.mxu0 0
  %3031 = vmatmul.mubr.bf16.gmra.mxu0 %v2641
  %v3032 = vpop.f32.mrf.mxu0
  %v3033 = vadd.f32 %v2945, %v3032
  %v3034 = vpop.f32.mrf.mxu0
  %v3035 = vpop.f32.mrf.mxu0
  %v3036 = vadd.f32 %v2948, %v3035
  %v3037 = vpop.f32.mrf.mxu0
  %3038 = vmatprep.mubr.bf16.mxu0 0
  %3039 = vmatmul.mubr.bf16.gmra.mxu0 %v2648
  %v3040 = vpop.f32.mrf.mxu0
  %v3041 = vadd.f32 %v2953, %v3040
  %v3042 = vpop.f32.mrf.mxu0
  %v3043 = vpop.f32.mrf.mxu0
  %v3044 = vadd.f32 %v2956, %v3043
  %v3045 = vpop.f32.mrf.mxu0
  %3046 = vmatprep.mubr.bf16.mxu0 0
  %3047 = vmatmul.mubr.bf16.gmra.mxu0 %v2655
  %v3048 = vpop.f32.mrf.mxu0
  %v3049 = vadd.f32 %v2961, %v3048
  %v3050 = vpop.f32.mrf.mxu0
  %v3051 = vpop.f32.mrf.mxu0
  %v3052 = vadd.f32 %v2964, %v3051
  %v3053 = vpop.f32.mrf.mxu0
  %3054 = vmatprep.mubr.bf16.mxu0 0
  %3055 = vmatmul.mubr.bf16.gmra.mxu0 %v2662
  %v3056 = vpop.f32.mrf.mxu0
  %v3057 = vadd.f32 %v2969, %v3056
  %v3058 = vpop.f32.mrf.mxu0
  %v3059 = vpop.f32.mrf.mxu0
  %v3060 = vadd.f32 %v2972, %v3059
  %v3061 = vpop.f32.mrf.mxu0
  %3062 = vmatprep.mubr.bf16.mxu0 0
  %3063 = vmatmul.mubr.bf16.gmra.mxu0 %v2669
  %v3064 = vpop.f32.mrf.mxu0
  %v3065 = vadd.f32 %v2977, %v3064
  %v3066 = vpop.f32.mrf.mxu0
  %v3067 = vpop.f32.mrf.mxu0
  %v3068 = vadd.f32 %v2980, %v3067
  %v3069 = vpop.f32.mrf.mxu0
  %3070 = vmatprep.mubr.bf16.mxu0 0
  %3071 = vmatmul.mubr.bf16.gmra.mxu0 %v2676
  %v3072 = vpop.f32.mrf.mxu0
  %v3073 = vadd.f32 %v2985, %v3072
  %v3074 = vpop.f32.mrf.mxu0
  %v3075 = vpop.f32.mrf.mxu0
  %v3076 = vpop.f32.mrf.mxu0
  %3077 = vdwg.mxu0
  %v3078 = vmax.f32 %v2420, %v3025
  %v3079 = vmax.f32 %v2421, %v3028
  %v3080 = vmax.f32 %v2422, %v3033
  %v3081 = vmax.f32 %v2423, %v3036
  %v3082 = vmax.f32 %v2424, %v3041
  %v3083 = vmax.f32 %v2425, %v3044
  %v3084 = vmax.f32 %v2426, %v3049
  %v3085 = vmax.f32 %v2427, %v3052
  %v3086 = vmax.f32 %v2428, %v3057
  %v3087 = vmax.f32 %v2429, %v3060
  %v3088 = vmax.f32 %v2430, %v3065
  %v3089 = vmax.f32 %v2431, %v3068
  %v3090 = vmax.f32 %v2432, %v3073
  %v3091 = vld [vmem:[%s5] sm:$0x1]
  %v3093 = vlaneseq
  %v3094 = vshrl.u32 %v3093, 7
  %v3095 = vsub.s32 0, %v3094
  %v3096 = vrot.slane %v3091, %v3095
  %v3098 = vadd.f32 %v3078, %v3096
  %v3099 = vadd.f32 %v3079, %v3096
  %v3100 = vadd.f32 %v3080, %v3096
  %v3101 = vadd.f32 %v3081, %v3096
  %v3102 = vadd.f32 %v3082, %v3096
  %v3103 = vadd.f32 %v3083, %v3096
  %v3104 = vadd.f32 %v3084, %v3096
  %v3105 = vadd.f32 %v3085, %v3096
  %v3106 = vadd.f32 %v3086, %v3096
  %v3107 = vadd.f32 %v3087, %v3096
  %v3108 = vadd.f32 %v3088, %v3096
  %v3109 = vadd.f32 %v3089, %v3096
  %v3110 = vadd.f32 %v3090, %v3096
  %v3111 = vmax.f32 %v3098, 0.0
  %v3112 = vmax.f32 %v3099, 0.0
  %v3113 = vmax.f32 %v3100, 0.0
  %v3114 = vmax.f32 %v3101, 0.0
  %v3115 = vmax.f32 %v3102, 0.0
  %v3116 = vmax.f32 %v3103, 0.0
  %v3117 = vmax.f32 %v3104, 0.0
  %v3118 = vmax.f32 %v3105, 0.0
  %v3119 = vmax.f32 %v3106, 0.0
  %v3120 = vmax.f32 %v3107, 0.0
  %v3121 = vmax.f32 %v3108, 0.0
  %v3122 = vmax.f32 %v3109, 0.0
  %v3123 = vmax.f32 %v3110, 0.0
  %v3124 = vpack.c.bf16 %v3112, %v3111
  %v3125 = vpack.c.bf16 %v3114, %v3113
  %v3126 = vpack.c.bf16 %v3116, %v3115
  %v3127 = vpack.c.bf16 %v3118, %v3117
  %v3128 = vpack.c.bf16 %v3120, %v3119
  %v3129 = vpack.c.bf16 %v3122, %v3121
  %v3130 = vpack.c.bf16 %v3123, %v3123
  %v3138 = vunpack.c.l.b16 %v3124
  %v3139 = vunpack.c.h.b16 %v3124
  %v3140 = vunpack.c.l.b16 %v3125
  %v3141 = vunpack.c.h.b16 %v3125
  %v3142 = vunpack.c.l.b16 %v3126
  %v3143 = vunpack.c.h.b16 %v3126
  %v3144 = vunpack.c.l.b16 %v3127
  %v3145 = vunpack.c.h.b16 %v3127
  %v3146 = vunpack.c.l.b16 %v3128
  %v3147 = vunpack.c.h.b16 %v3128
  %v3148 = vunpack.c.l.b16 %v3129
  %v3149 = vunpack.c.h.b16 %v3129
  %v3150 = vunpack.c.l.b16 %v3130
  %v3151 = vpack.c.b16 %v3138, %v3138
  %v3152 = vpack.c.b16 %v3139, %v3139
  %v3153 = vpack.c.b16 %v3140, %v3140
  %v3154 = vpack.c.b16 %v3141, %v3141
  %v3155 = vpack.c.b16 %v3142, %v3142
  %v3156 = vpack.c.b16 %v3143, %v3143
  %v3157 = vpack.c.b16 %v3144, %v3144
  %v3158 = vpack.c.b16 %v3145, %v3145
  %v3159 = vpack.c.b16 %v3146, %v3146
  %v3160 = vpack.c.b16 %v3147, %v3147
  %v3161 = vpack.c.b16 %v3148, %v3148
  %v3162 = vpack.c.b16 %v3149, %v3149
  %v3163 = vpack.c.b16 %v3150, %v3150
  %3177 = vst [vmem:[%s6] sm:$0xf] %v3151
  %3178 = vst [vmem:[%s6 + $0x4] sm:$0xf] %v3152
  %3179 = vst [vmem:[%s6 + $0x8] sm:$0xf] %v3153
  %3180 = vst [vmem:[%s6 + $0xc] sm:$0xf] %v3154
  %3181 = vst [vmem:[%s6 + $0x10] sm:$0xf] %v3155
  %3182 = vst [vmem:[%s6 + $0x14] sm:$0xf] %v3156
  %3183 = vst [vmem:[%s6 + $0x18] sm:$0xf] %v3157
  %3184 = vst [vmem:[%s6 + $0x1c] sm:$0xf] %v3158
  %3185 = vst [vmem:[%s6 + $0x20] sm:$0xf] %v3159
  %3186 = vst [vmem:[%s6 + $0x24] sm:$0xf] %v3160
  %3187 = vst [vmem:[%s6 + $0x28] sm:$0xf] %v3161
  %3188 = vst [vmem:[%s6 + $0x2c] sm:$0xf] %v3162
  %3189 = vst [vmem:[%s6 + $0x30] sm:$0xf] %v3163
  // Predicated region
  $region26: #{gcn_forward.4} parent=0 // pred_check
    _
  $region27: #{gcn_forward.4} parent=0 // pred_check_branch
    %3191 = sbr.rel (0) target = $region29
  $region28: #{gcn_forward.4} parent=0 // pred_region
    _
  $region29: #{gcn_forward.4} parent=0 // pred_fallthru
    _
  // Predicated region
  $region30: #{gcn_forward.4} parent=0 // pred_check
    _
  $region31: #{gcn_forward.4} parent=0 // pred_check_branch
    %3193 = sbr.rel (0) target = $region33
  $region32: #{gcn_forward.4} parent=0 // pred_region
    _
  $region33: #{gcn_forward.4} parent=0 // pred_fallthru
    _

// kernel: gcn_forward.5
$region0: #{gcn_forward.5}
  #allocation0 [shape = 'u32[]', space=smem, size = 0x4, offset = 0x4, fixed_abs, tag = 'smem constant byte address 0x4 - core index']
  #allocation1 [shape = 'u32[144,128]{1,0:T(1,128)}', space=vmem, size = 0x12000, scoped, tag = 'internal scratch']
  %s0 = inlined_call_operand.vmem [shape: bf16[8,6272], index: 0, kind: input, shape index: {}]
  %s1 = inlined_call_operand.vmem [shape: bf16[6272,128], index: 1, kind: input, shape index: {}]
  %s2 = inlined_call_operand.vmem [shape: f32[1,128], index: 2, kind: input, shape index: {}]
  %s3 = inlined_call_operand.vmem [shape: bf16[128,128], index: 3, kind: input, shape index: {}]
  %s4 = inlined_call_operand.vmem [shape: f32[1,128], index: 4, kind: input, shape index: {}]
  %s5 = inlined_call_operand.vmem [shape: f32[8,128], index: 5, kind: output, shape index: {}]
  %s6 = sld [smem:[#allocation0]]
  $region30: #{gcn_forward.5} parent=0
    _
  %s8 = ssub.s32 1, %s6
  %s9 = scalar_select 0, %s8, %s6
  // Predicated region
  $region2: #{gcn_forward.5} parent=0 // pred_check
    _
  $region3: #{gcn_forward.5} parent=0 // pred_check_branch
    %11 = sbr.rel (0) target = $region5
  $region4: #{gcn_forward.5} parent=0 // pred_region
    _
  $region5: #{gcn_forward.5} parent=0 // pred_fallthru
    _
  // Predicated region
  $region6: #{gcn_forward.5} parent=0 // pred_check
    _
  $region7: #{gcn_forward.5} parent=0 // pred_check_branch
    %13 = sbr.rel (0) target = $region9
  $region8: #{gcn_forward.5} parent=0 // pred_region
    _
  $region9: #{gcn_forward.5} parent=0 // pred_fallthru
    _
  // Predicated region
  $region10: #{gcn_forward.5} parent=0 // pred_check
    _
  $region11: #{gcn_forward.5} parent=0 // pred_check_branch
    %15 = sbr.rel (0) target = $region13
  $region12: #{gcn_forward.5} parent=0 // pred_region
    _
  $region13: #{gcn_forward.5} parent=0 // pred_fallthru
    _
  // Predicated region
  $region14: #{gcn_forward.5} parent=0 // pred_check
    _
  $region15: #{gcn_forward.5} parent=0 // pred_check_branch
    %17 = sbr.rel (0) target = $region17
  $region16: #{gcn_forward.5} parent=0 // pred_region
    _
  $region17: #{gcn_forward.5} parent=0 // pred_fallthru
    _
  // Predicated region
  $region18: #{gcn_forward.5} parent=0 // pred_check
    _
  $region19: #{gcn_forward.5} parent=0 // pred_check_branch
    %19 = sbr.rel (0) target = $region21
  $region20: #{gcn_forward.5} parent=0 // pred_region
    _
  $region21: #{gcn_forward.5} parent=0 // pred_fallthru
    _
  %v21 = vld [vmem:[%s0] sm:$0xff]
  %v22 = vld [vmem:[%s0 + $0x8] sm:$0xff]
  %v23 = vld [vmem:[%s0 + $0x10] sm:$0xff]
  %v24 = vld [vmem:[%s0 + $0x18] sm:$0xff]
  %v25 = vld [vmem:[%s0 + $0x20] sm:$0xff]
  %v26 = vld [vmem:[%s0 + $0x28] sm:$0xff]
  %v27 = vld [vmem:[%s0 + $0x30] sm:$0xff]
  %v28 = vld [vmem:[%s0 + $0x38] sm:$0xff]
  %v29 = vld [vmem:[%s0 + $0x40] sm:$0xff]
  %v30 = vld [vmem:[%s0 + $0x48] sm:$0xff]
  %v31 = vld [vmem:[%s0 + $0x50] sm:$0xff]
  %v32 = vld [vmem:[%s0 + $0x58] sm:$0xff]
  %v33 = vld [vmem:[%s0 + $0x60] sm:$0xff]
  %v34 = vld [vmem:[%s0 + $0x68] sm:$0xff]
  %v35 = vld [vmem:[%s0 + $0x70] sm:$0xff]
  %v36 = vld [vmem:[%s0 + $0x78] sm:$0xff]
  %v37 = vld [vmem:[%s0 + $0x80] sm:$0xff]
  %v38 = vld [vmem:[%s0 + $0x88] sm:$0xff]
  %v39 = vld [vmem:[%s0 + $0x90] sm:$0xff]
  %v40 = vld [vmem:[%s0 + $0x98] sm:$0xff]
  %v41 = vld [vmem:[%s0 + $0xa0] sm:$0xff]
  %v42 = vld [vmem:[%s0 + $0xa8] sm:$0xff]
  %v43 = vld [vmem:[%s0 + $0xb0] sm:$0xff]
  %v44 = vld [vmem:[%s0 + $0xb8] sm:$0xff]
  %v45 = vld [vmem:[%s0 + $0xc0] sm:$0xf]
  %v46 = vld [vmem:[%s1] sm:$0xf]
  %v47 = vld [vmem:[%s1 + $0x4] sm:$0xf]
  %v48 = vld [vmem:[%s1 + $0x8] sm:$0xf]
  %v49 = vld [vmem:[%s1 + $0xc] sm:$0xf]
  %v50 = vld [vmem:[%s1 + $0x10] sm:$0xf]
  %v51 = vld [vmem:[%s1 + $0x14] sm:$0xf]
  %v52 = vld [vmem:[%s1 + $0x18] sm:$0xf]
  %v53 = vld [vmem:[%s1 + $0x1c] sm:$0xf]
  %v54 = vld [vmem:[%s1 + $0x20] sm:$0xf]
  %v55 = vld [vmem:[%s1 + $0x24] sm:$0xf]
  %v56 = vld [vmem:[%s1 + $0x28] sm:$0xf]
  %v57 = vld [vmem:[%s1 + $0x2c] sm:$0xf]
  %v58 = vld [vmem:[%s1 + $0x30] sm:$0xf]
  %v59 = vld [vmem:[%s1 + $0x34] sm:$0xf]
  %v60 = vld [vmem:[%s1 + $0x38] sm:$0xf]
  %v61 = vld [vmem:[%s1 + $0x3c] sm:$0xf]
  %v62 = vld [vmem:[%s1 + $0x40] sm:$0xf]
  %v63 = vld [vmem:[%s1 + $0x44] sm:$0xf]
  %v64 = vld [vmem:[%s1 + $0x48] sm:$0xf]
  %v65 = vld [vmem:[%s1 + $0x4c] sm:$0xf]
  %v66 = vld [vmem:[%s1 + $0x50] sm:$0xf]
  %v67 = vld [vmem:[%s1 + $0x54] sm:$0xf]
  %v68 = vld [vmem:[%s1 + $0x58] sm:$0xf]
  %v69 = vld [vmem:[%s1 + $0x5c] sm:$0xf]
  %v70 = vld [vmem:[%s1 + $0x60] sm:$0xf]
  %v71 = vld [vmem:[%s1 + $0x64] sm:$0xf]
  %v72 = vld [vmem:[%s1 + $0x68] sm:$0xf]
  %v73 = vld [vmem:[%s1 + $0x6c] sm:$0xf]
  %v74 = vld [vmem:[%s1 + $0x70] sm:$0xf]
  %v75 = vld [vmem:[%s1 + $0x74] sm:$0xf]
  %v76 = vld [vmem:[%s1 + $0x78] sm:$0xf]
  %v77 = vld [vmem:[%s1 + $0x7c] sm:$0xf]
  %v78 = vld [vmem:[%s1 + $0x80] sm:$0xf]
  %v79 = vld [vmem:[%s1 + $0x84] sm:$0xf]
  %v80 = vld [vmem:[%s1 + $0x88] sm:$0xf]
  %v81 = vld [vmem:[%s1 + $0x8c] sm:$0xf]
  %v82 = vld [vmem:[%s1 + $0x90] sm:$0xf]
  %v83 = vld [vmem:[%s1 + $0x94] sm:$0xf]
  %v84 = vld [vmem:[%s1 + $0x98] sm:$0xf]
  %v85 = vld [vmem:[%s1 + $0x9c] sm:$0xf]
  %v86 = vld [vmem:[%s1 + $0xa0] sm:$0xf]
  %v87 = vld [vmem:[%s1 + $0xa4] sm:$0xf]
  %v88 = vld [vmem:[%s1 + $0xa8] sm:$0xf]
  %v89 = vld [vmem:[%s1 + $0xac] sm:$0xf]
  %v90 = vld [vmem:[%s1 + $0xb0] sm:$0xf]
  %v91 = vld [vmem:[%s1 + $0xb4] sm:$0xf]
  %v92 = vld [vmem:[%s1 + $0xb8] sm:$0xf]
  %v93 = vld [vmem:[%s1 + $0xbc] sm:$0xf]
  %v94 = vld [vmem:[%s1 + $0xc0] sm:$0xf]
  %v95 = vld [vmem:[%s1 + $0xc4] sm:$0xf]
  %v96 = vld [vmem:[%s1 + $0xc8] sm:$0xf]
  %v97 = vld [vmem:[%s1 + $0xcc] sm:$0xf]
  %v98 = vld [vmem:[%s1 + $0xd0] sm:$0xf]
  %v99 = vld [vmem:[%s1 + $0xd4] sm:$0xf]
  %v100 = vld [vmem:[%s1 + $0xd8] sm:$0xf]
  %v101 = vld [vmem:[%s1 + $0xdc] sm:$0xf]
  %v102 = vld [vmem:[%s1 + $0xe0] sm:$0xf]
  %v103 = vld [vmem:[%s1 + $0xe4] sm:$0xf]
  %v104 = vld [vmem:[%s1 + $0xe8] sm:$0xf]
  %v105 = vld [vmem:[%s1 + $0xec] sm:$0xf]
  %v106 = vld [vmem:[%s1 + $0xf0] sm:$0xf]
  %v107 = vld [vmem:[%s1 + $0xf4] sm:$0xf]
  %v108 = vld [vmem:[%s1 + $0xf8] sm:$0xf]
  %v109 = vld [vmem:[%s1 + $0xfc] sm:$0xf]
  %v110 = vld [vmem:[%s1 + $0x100] sm:$0xf]
  %v111 = vld [vmem:[%s1 + $0x104] sm:$0xf]
  %v112 = vld [vmem:[%s1 + $0x108] sm:$0xf]
  %v113 = vld [vmem:[%s1 + $0x10c] sm:$0xf]
  %v114 = vld [vmem:[%s1 + $0x110] sm:$0xf]
  %v115 = vld [vmem:[%s1 + $0x114] sm:$0xf]
  %v116 = vld [vmem:[%s1 + $0x118] sm:$0xf]
  %v117 = vld [vmem:[%s1 + $0x11c] sm:$0xf]
  %v118 = vld [vmem:[%s1 + $0x120] sm:$0xf]
  %v119 = vld [vmem:[%s1 + $0x124] sm:$0xf]
  %v120 = vld [vmem:[%s1 + $0x128] sm:$0xf]
  %v121 = vld [vmem:[%s1 + $0x12c] sm:$0xf]
  %v122 = vld [vmem:[%s1 + $0x130] sm:$0xf]
  %v123 = vld [vmem:[%s1 + $0x134] sm:$0xf]
  %v124 = vld [vmem:[%s1 + $0x138] sm:$0xf]
  %v125 = vld [vmem:[%s1 + $0x13c] sm:$0xf]
  %v126 = vld [vmem:[%s1 + $0x140] sm:$0xf]
  %v127 = vld [vmem:[%s1 + $0x144] sm:$0xf]
  %v128 = vld [vmem:[%s1 + $0x148] sm:$0xf]
  %v129 = vld [vmem:[%s1 + $0x14c] sm:$0xf]
  %v130 = vld [vmem:[%s1 + $0x150] sm:$0xf]
  %v131 = vld [vmem:[%s1 + $0x154] sm:$0xf]
  %v132 = vld [vmem:[%s1 + $0x158] sm:$0xf]
  %v133 = vld [vmem:[%s1 + $0x15c] sm:$0xf]
  %v134 = vld [vmem:[%s1 + $0x160] sm:$0xf]
  %v135 = vld [vmem:[%s1 + $0x164] sm:$0xf]
  %v136 = vld [vmem:[%s1 + $0x168] sm:$0xf]
  %v137 = vld [vmem:[%s1 + $0x16c] sm:$0xf]
  %v138 = vld [vmem:[%s1 + $0x170] sm:$0xf]
  %v139 = vld [vmem:[%s1 + $0x174] sm:$0xf]
  %v140 = vld [vmem:[%s1 + $0x178] sm:$0xf]
  %v141 = vld [vmem:[%s1 + $0x17c] sm:$0xf]
  %v142 = vld [vmem:[%s1 + $0x180] sm:$0xf]
  %v143 = vld [vmem:[%s1 + $0x184] sm:$0xf]
  %v144 = vld [vmem:[%s1 + $0x188] sm:$0xf]
  %v145 = vld [vmem:[%s1 + $0x18c] sm:$0xf]
  %v146 = vld [vmem:[%s1 + $0x190] sm:$0xf]
  %v147 = vld [vmem:[%s1 + $0x194] sm:$0xf]
  %v148 = vld [vmem:[%s1 + $0x198] sm:$0xf]
  %v149 = vld [vmem:[%s1 + $0x19c] sm:$0xf]
  %v150 = vld [vmem:[%s1 + $0x1a0] sm:$0xf]
  %v151 = vld [vmem:[%s1 + $0x1a4] sm:$0xf]
  %v152 = vld [vmem:[%s1 + $0x1a8] sm:$0xf]
  %v153 = vld [vmem:[%s1 + $0x1ac] sm:$0xf]
  %v154 = vld [vmem:[%s1 + $0x1b0] sm:$0xf]
  %v155 = vld [vmem:[%s1 + $0x1b4] sm:$0xf]
  %v156 = vld [vmem:[%s1 + $0x1b8] sm:$0xf]
  %v157 = vld [vmem:[%s1 + $0x1bc] sm:$0xf]
  %v158 = vld [vmem:[%s1 + $0x1c0] sm:$0xf]
  %v159 = vld [vmem:[%s1 + $0x1c4] sm:$0xf]
  %v160 = vld [vmem:[%s1 + $0x1c8] sm:$0xf]
  %v161 = vld [vmem:[%s1 + $0x1cc] sm:$0xf]
  %v162 = vld [vmem:[%s1 + $0x1d0] sm:$0xf]
  %v163 = vld [vmem:[%s1 + $0x1d4] sm:$0xf]
  %v164 = vld [vmem:[%s1 + $0x1d8] sm:$0xf]
  %v165 = vld [vmem:[%s1 + $0x1dc] sm:$0xf]
  %v166 = vld [vmem:[%s1 + $0x1e0] sm:$0xf]
  %v167 = vld [vmem:[%s1 + $0x1e4] sm:$0xf]
  %v168 = vld [vmem:[%s1 + $0x1e8] sm:$0xf]
  %v169 = vld [vmem:[%s1 + $0x1ec] sm:$0xf]
  %v170 = vld [vmem:[%s1 + $0x1f0] sm:$0xf]
  %v171 = vld [vmem:[%s1 + $0x1f4] sm:$0xf]
  %v172 = vld [vmem:[%s1 + $0x1f8] sm:$0xf]
  %v173 = vld [vmem:[%s1 + $0x1fc] sm:$0xf]
  %v174 = vld [vmem:[%s1 + $0x200] sm:$0xf]
  %v175 = vld [vmem:[%s1 + $0x204] sm:$0xf]
  %v176 = vld [vmem:[%s1 + $0x208] sm:$0xf]
  %v177 = vld [vmem:[%s1 + $0x20c] sm:$0xf]
  %v178 = vld [vmem:[%s1 + $0x210] sm:$0xf]
  %v179 = vld [vmem:[%s1 + $0x214] sm:$0xf]
  %v180 = vld [vmem:[%s1 + $0x218] sm:$0xf]
  %v181 = vld [vmem:[%s1 + $0x21c] sm:$0xf]
  %v182 = vld [vmem:[%s1 + $0x220] sm:$0xf]
  %v183 = vld [vmem:[%s1 + $0x224] sm:$0xf]
  %v184 = vld [vmem:[%s1 + $0x228] sm:$0xf]
  %v185 = vld [vmem:[%s1 + $0x22c] sm:$0xf]
  %v186 = vld [vmem:[%s1 + $0x230] sm:$0xf]
  %v187 = vld [vmem:[%s1 + $0x234] sm:$0xf]
  %v188 = vld [vmem:[%s1 + $0x238] sm:$0xf]
  %v189 = vld [vmem:[%s1 + $0x23c] sm:$0xf]
  %v190 = vld [vmem:[%s1 + $0x240] sm:$0xf]
  %v191 = vld [vmem:[%s1 + $0x244] sm:$0xf]
  %v192 = vld [vmem:[%s1 + $0x248] sm:$0xf]
  %v193 = vld [vmem:[%s1 + $0x24c] sm:$0xf]
  %v194 = vld [vmem:[%s1 + $0x250] sm:$0xf]
  %v195 = vld [vmem:[%s1 + $0x254] sm:$0xf]
  %v196 = vld [vmem:[%s1 + $0x258] sm:$0xf]
  %v197 = vld [vmem:[%s1 + $0x25c] sm:$0xf]
  %v198 = vld [vmem:[%s1 + $0x260] sm:$0xf]
  %v199 = vld [vmem:[%s1 + $0x264] sm:$0xf]
  %v200 = vld [vmem:[%s1 + $0x268] sm:$0xf]
  %v201 = vld [vmem:[%s1 + $0x26c] sm:$0xf]
  %v202 = vld [vmem:[%s1 + $0x270] sm:$0xf]
  %v203 = vld [vmem:[%s1 + $0x274] sm:$0xf]
  %v204 = vld [vmem:[%s1 + $0x278] sm:$0xf]
  %v205 = vld [vmem:[%s1 + $0x27c] sm:$0xf]
  %v206 = vld [vmem:[%s1 + $0x280] sm:$0xf]
  %v207 = vld [vmem:[%s1 + $0x284] sm:$0xf]
  %v208 = vld [vmem:[%s1 + $0x288] sm:$0xf]
  %v209 = vld [vmem:[%s1 + $0x28c] sm:$0xf]
  %v210 = vld [vmem:[%s1 + $0x290] sm:$0xf]
  %v211 = vld [vmem:[%s1 + $0x294] sm:$0xf]
  %v212 = vld [vmem:[%s1 + $0x298] sm:$0xf]
  %v213 = vld [vmem:[%s1 + $0x29c] sm:$0xf]
  %v214 = vld [vmem:[%s1 + $0x2a0] sm:$0xf]
  %v215 = vld [vmem:[%s1 + $0x2a4] sm:$0xf]
  %v216 = vld [vmem:[%s1 + $0x2a8] sm:$0xf]
  %v217 = vld [vmem:[%s1 + $0x2ac] sm:$0xf]
  %v218 = vld [vmem:[%s1 + $0x2b0] sm:$0xf]
  %v219 = vld [vmem:[%s1 + $0x2b4] sm:$0xf]
  %v220 = vld [vmem:[%s1 + $0x2b8] sm:$0xf]
  %v221 = vld [vmem:[%s1 + $0x2bc] sm:$0xf]
  %v222 = vld [vmem:[%s1 + $0x2c0] sm:$0xf]
  %v223 = vld [vmem:[%s1 + $0x2c4] sm:$0xf]
  %v224 = vld [vmem:[%s1 + $0x2c8] sm:$0xf]
  %v225 = vld [vmem:[%s1 + $0x2cc] sm:$0xf]
  %v226 = vld [vmem:[%s1 + $0x2d0] sm:$0xf]
  %v227 = vld [vmem:[%s1 + $0x2d4] sm:$0xf]
  %v228 = vld [vmem:[%s1 + $0x2d8] sm:$0xf]
  %v229 = vld [vmem:[%s1 + $0x2dc] sm:$0xf]
  %v230 = vld [vmem:[%s1 + $0x2e0] sm:$0xf]
  %v231 = vld [vmem:[%s1 + $0x2e4] sm:$0xf]
  %v232 = vld [vmem:[%s1 + $0x2e8] sm:$0xf]
  %v233 = vld [vmem:[%s1 + $0x2ec] sm:$0xf]
  %v234 = vld [vmem:[%s1 + $0x2f0] sm:$0xf]
  %v235 = vld [vmem:[%s1 + $0x2f4] sm:$0xf]
  %v236 = vld [vmem:[%s1 + $0x2f8] sm:$0xf]
  %v237 = vld [vmem:[%s1 + $0x2fc] sm:$0xf]
  %v238 = vld [vmem:[%s1 + $0x300] sm:$0xf]
  %v239 = vld [vmem:[%s1 + $0x304] sm:$0xf]
  %v240 = vld [vmem:[%s1 + $0x308] sm:$0xf]
  %v241 = vld [vmem:[%s1 + $0x30c] sm:$0xf]
  %v242 = vld [vmem:[%s1 + $0x310] sm:$0xf]
  %v243 = vld [vmem:[%s1 + $0x314] sm:$0xf]
  %v244 = vld [vmem:[%s1 + $0x318] sm:$0xf]
  %v245 = vld [vmem:[%s1 + $0x31c] sm:$0xf]
  %v246 = vld [vmem:[%s1 + $0x320] sm:$0xf]
  %v247 = vld [vmem:[%s1 + $0x324] sm:$0xf]
  %v248 = vld [vmem:[%s1 + $0x328] sm:$0xf]
  %v249 = vld [vmem:[%s1 + $0x32c] sm:$0xf]
  %v250 = vld [vmem:[%s1 + $0x330] sm:$0xf]
  %v251 = vld [vmem:[%s1 + $0x334] sm:$0xf]
  %v252 = vld [vmem:[%s1 + $0x338] sm:$0xf]
  %v253 = vld [vmem:[%s1 + $0x33c] sm:$0xf]
  %v254 = vld [vmem:[%s1 + $0x340] sm:$0xf]
  %v255 = vld [vmem:[%s1 + $0x344] sm:$0xf]
  %v256 = vld [vmem:[%s1 + $0x348] sm:$0xf]
  %v257 = vld [vmem:[%s1 + $0x34c] sm:$0xf]
  %v258 = vld [vmem:[%s1 + $0x350] sm:$0xf]
  %v259 = vld [vmem:[%s1 + $0x354] sm:$0xf]
  %v260 = vld [vmem:[%s1 + $0x358] sm:$0xf]
  %v261 = vld [vmem:[%s1 + $0x35c] sm:$0xf]
  %v262 = vld [vmem:[%s1 + $0x360] sm:$0xf]
  %v263 = vld [vmem:[%s1 + $0x364] sm:$0xf]
  %v264 = vld [vmem:[%s1 + $0x368] sm:$0xf]
  %v265 = vld [vmem:[%s1 + $0x36c] sm:$0xf]
  %v266 = vld [vmem:[%s1 + $0x370] sm:$0xf]
  %v267 = vld [vmem:[%s1 + $0x374] sm:$0xf]
  %v268 = vld [vmem:[%s1 + $0x378] sm:$0xf]
  %v269 = vld [vmem:[%s1 + $0x37c] sm:$0xf]
  %v270 = vld [vmem:[%s1 + $0x380] sm:$0xf]
  %v271 = vld [vmem:[%s1 + $0x384] sm:$0xf]
  %v272 = vld [vmem:[%s1 + $0x388] sm:$0xf]
  %v273 = vld [vmem:[%s1 + $0x38c] sm:$0xf]
  %v274 = vld [vmem:[%s1 + $0x390] sm:$0xf]
  %v275 = vld [vmem:[%s1 + $0x394] sm:$0xf]
  %v276 = vld [vmem:[%s1 + $0x398] sm:$0xf]
  %v277 = vld [vmem:[%s1 + $0x39c] sm:$0xf]
  %v278 = vld [vmem:[%s1 + $0x3a0] sm:$0xf]
  %v279 = vld [vmem:[%s1 + $0x3a4] sm:$0xf]
  %v280 = vld [vmem:[%s1 + $0x3a8] sm:$0xf]
  %v281 = vld [vmem:[%s1 + $0x3ac] sm:$0xf]
  %v282 = vld [vmem:[%s1 + $0x3b0] sm:$0xf]
  %v283 = vld [vmem:[%s1 + $0x3b4] sm:$0xf]
  %v284 = vld [vmem:[%s1 + $0x3b8] sm:$0xf]
  %v285 = vld [vmem:[%s1 + $0x3bc] sm:$0xf]
  %v286 = vld [vmem:[%s1 + $0x3c0] sm:$0xf]
  %v287 = vld [vmem:[%s1 + $0x3c4] sm:$0xf]
  %v288 = vld [vmem:[%s1 + $0x3c8] sm:$0xf]
  %v289 = vld [vmem:[%s1 + $0x3cc] sm:$0xf]
  %v290 = vld [vmem:[%s1 + $0x3d0] sm:$0xf]
  %v291 = vld [vmem:[%s1 + $0x3d4] sm:$0xf]
  %v292 = vld [vmem:[%s1 + $0x3d8] sm:$0xf]
  %v293 = vld [vmem:[%s1 + $0x3dc] sm:$0xf]
  %v294 = vld [vmem:[%s1 + $0x3e0] sm:$0xf]
  %v295 = vld [vmem:[%s1 + $0x3e4] sm:$0xf]
  %v296 = vld [vmem:[%s1 + $0x3e8] sm:$0xf]
  %v297 = vld [vmem:[%s1 + $0x3ec] sm:$0xf]
  %v298 = vld [vmem:[%s1 + $0x3f0] sm:$0xf]
  %v299 = vld [vmem:[%s1 + $0x3f4] sm:$0xf]
  %v300 = vld [vmem:[%s1 + $0x3f8] sm:$0xf]
  %v301 = vld [vmem:[%s1 + $0x3fc] sm:$0xf]
  %v302 = vld [vmem:[%s1 + $0x400] sm:$0xf]
  %v303 = vld [vmem:[%s1 + $0x404] sm:$0xf]
  %v304 = vld [vmem:[%s1 + $0x408] sm:$0xf]
  %v305 = vld [vmem:[%s1 + $0x40c] sm:$0xf]
  %v306 = vld [vmem:[%s1 + $0x410] sm:$0xf]
  %v307 = vld [vmem:[%s1 + $0x414] sm:$0xf]
  %v308 = vld [vmem:[%s1 + $0x418] sm:$0xf]
  %v309 = vld [vmem:[%s1 + $0x41c] sm:$0xf]
  %v310 = vld [vmem:[%s1 + $0x420] sm:$0xf]
  %v311 = vld [vmem:[%s1 + $0x424] sm:$0xf]
  %v312 = vld [vmem:[%s1 + $0x428] sm:$0xf]
  %v313 = vld [vmem:[%s1 + $0x42c] sm:$0xf]
  %v314 = vld [vmem:[%s1 + $0x430] sm:$0xf]
  %v315 = vld [vmem:[%s1 + $0x434] sm:$0xf]
  %v316 = vld [vmem:[%s1 + $0x438] sm:$0xf]
  %v317 = vld [vmem:[%s1 + $0x43c] sm:$0xf]
  %v318 = vld [vmem:[%s1 + $0x440] sm:$0xf]
  %v319 = vld [vmem:[%s1 + $0x444] sm:$0xf]
  %v320 = vld [vmem:[%s1 + $0x448] sm:$0xf]
  %v321 = vld [vmem:[%s1 + $0x44c] sm:$0xf]
  %v322 = vld [vmem:[%s1 + $0x450] sm:$0xf]
  %v323 = vld [vmem:[%s1 + $0x454] sm:$0xf]
  %v324 = vld [vmem:[%s1 + $0x458] sm:$0xf]
  %v325 = vld [vmem:[%s1 + $0x45c] sm:$0xf]
  %v326 = vld [vmem:[%s1 + $0x460] sm:$0xf]
  %v327 = vld [vmem:[%s1 + $0x464] sm:$0xf]
  %v328 = vld [vmem:[%s1 + $0x468] sm:$0xf]
  %v329 = vld [vmem:[%s1 + $0x46c] sm:$0xf]
  %v330 = vld [vmem:[%s1 + $0x470] sm:$0xf]
  %v331 = vld [vmem:[%s1 + $0x474] sm:$0xf]
  %v332 = vld [vmem:[%s1 + $0x478] sm:$0xf]
  %v333 = vld [vmem:[%s1 + $0x47c] sm:$0xf]
  %v334 = vld [vmem:[%s1 + $0x480] sm:$0xf]
  %v335 = vld [vmem:[%s1 + $0x484] sm:$0xf]
  %v336 = vld [vmem:[%s1 + $0x488] sm:$0xf]
  %v337 = vld [vmem:[%s1 + $0x48c] sm:$0xf]
  %v338 = vld [vmem:[%s1 + $0x490] sm:$0xf]
  %v339 = vld [vmem:[%s1 + $0x494] sm:$0xf]
  %v340 = vld [vmem:[%s1 + $0x498] sm:$0xf]
  %v341 = vld [vmem:[%s1 + $0x49c] sm:$0xf]
  %v342 = vld [vmem:[%s1 + $0x4a0] sm:$0xf]
  %v343 = vld [vmem:[%s1 + $0x4a4] sm:$0xf]
  %v344 = vld [vmem:[%s1 + $0x4a8] sm:$0xf]
  %v345 = vld [vmem:[%s1 + $0x4ac] sm:$0xf]
  %v346 = vld [vmem:[%s1 + $0x4b0] sm:$0xf]
  %v347 = vld [vmem:[%s1 + $0x4b4] sm:$0xf]
  %v348 = vld [vmem:[%s1 + $0x4b8] sm:$0xf]
  %v349 = vld [vmem:[%s1 + $0x4bc] sm:$0xf]
  %v350 = vld [vmem:[%s1 + $0x4c0] sm:$0xf]
  %v351 = vld [vmem:[%s1 + $0x4c4] sm:$0xf]
  %v352 = vld [vmem:[%s1 + $0x4c8] sm:$0xf]
  %v353 = vld [vmem:[%s1 + $0x4cc] sm:$0xf]
  %v354 = vld [vmem:[%s1 + $0x4d0] sm:$0xf]
  %v355 = vld [vmem:[%s1 + $0x4d4] sm:$0xf]
  %v356 = vld [vmem:[%s1 + $0x4d8] sm:$0xf]
  %v357 = vld [vmem:[%s1 + $0x4dc] sm:$0xf]
  %v358 = vld [vmem:[%s1 + $0x4e0] sm:$0xf]
  %v359 = vld [vmem:[%s1 + $0x4e4] sm:$0xf]
  %v360 = vld [vmem:[%s1 + $0x4e8] sm:$0xf]
  %v361 = vld [vmem:[%s1 + $0x4ec] sm:$0xf]
  %v362 = vld [vmem:[%s1 + $0x4f0] sm:$0xf]
  %v363 = vld [vmem:[%s1 + $0x4f4] sm:$0xf]
  %v364 = vld [vmem:[%s1 + $0x4f8] sm:$0xf]
  %v365 = vld [vmem:[%s1 + $0x4fc] sm:$0xf]
  %v366 = vld [vmem:[%s1 + $0x500] sm:$0xf]
  %v367 = vld [vmem:[%s1 + $0x504] sm:$0xf]
  %v368 = vld [vmem:[%s1 + $0x508] sm:$0xf]
  %v369 = vld [vmem:[%s1 + $0x50c] sm:$0xf]
  %v370 = vld [vmem:[%s1 + $0x510] sm:$0xf]
  %v371 = vld [vmem:[%s1 + $0x514] sm:$0xf]
  %v372 = vld [vmem:[%s1 + $0x518] sm:$0xf]
  %v373 = vld [vmem:[%s1 + $0x51c] sm:$0xf]
  %v374 = vld [vmem:[%s1 + $0x520] sm:$0xf]
  %v375 = vld [vmem:[%s1 + $0x524] sm:$0xf]
  %v376 = vld [vmem:[%s1 + $0x528] sm:$0xf]
  %v377 = vld [vmem:[%s1 + $0x52c] sm:$0xf]
  %v378 = vld [vmem:[%s1 + $0x530] sm:$0xf]
  %v379 = vld [vmem:[%s1 + $0x534] sm:$0xf]
  %v380 = vld [vmem:[%s1 + $0x538] sm:$0xf]
  %v381 = vld [vmem:[%s1 + $0x53c] sm:$0xf]
  %v382 = vld [vmem:[%s1 + $0x540] sm:$0xf]
  %v383 = vld [vmem:[%s1 + $0x544] sm:$0xf]
  %v384 = vld [vmem:[%s1 + $0x548] sm:$0xf]
  %v385 = vld [vmem:[%s1 + $0x54c] sm:$0xf]
  %v386 = vld [vmem:[%s1 + $0x550] sm:$0xf]
  %v387 = vld [vmem:[%s1 + $0x554] sm:$0xf]
  %v388 = vld [vmem:[%s1 + $0x558] sm:$0xf]
  %v389 = vld [vmem:[%s1 + $0x55c] sm:$0xf]
  %v390 = vld [vmem:[%s1 + $0x560] sm:$0xf]
  %v391 = vld [vmem:[%s1 + $0x564] sm:$0xf]
  %v392 = vld [vmem:[%s1 + $0x568] sm:$0xf]
  %v393 = vld [vmem:[%s1 + $0x56c] sm:$0xf]
  %v394 = vld [vmem:[%s1 + $0x570] sm:$0xf]
  %v395 = vld [vmem:[%s1 + $0x574] sm:$0xf]
  %v396 = vld [vmem:[%s1 + $0x578] sm:$0xf]
  %v397 = vld [vmem:[%s1 + $0x57c] sm:$0xf]
  %v398 = vld [vmem:[%s1 + $0x580] sm:$0xf]
  %v399 = vld [vmem:[%s1 + $0x584] sm:$0xf]
  %v400 = vld [vmem:[%s1 + $0x588] sm:$0xf]
  %v401 = vld [vmem:[%s1 + $0x58c] sm:$0xf]
  %v402 = vld [vmem:[%s1 + $0x590] sm:$0xf]
  %v403 = vld [vmem:[%s1 + $0x594] sm:$0xf]
  %v404 = vld [vmem:[%s1 + $0x598] sm:$0xf]
  %v405 = vld [vmem:[%s1 + $0x59c] sm:$0xf]
  %v406 = vld [vmem:[%s1 + $0x5a0] sm:$0xf]
  %v407 = vld [vmem:[%s1 + $0x5a4] sm:$0xf]
  %v408 = vld [vmem:[%s1 + $0x5a8] sm:$0xf]
  %v409 = vld [vmem:[%s1 + $0x5ac] sm:$0xf]
  %v410 = vld [vmem:[%s1 + $0x5b0] sm:$0xf]
  %v411 = vld [vmem:[%s1 + $0x5b4] sm:$0xf]
  %v412 = vld [vmem:[%s1 + $0x5b8] sm:$0xf]
  %v413 = vld [vmem:[%s1 + $0x5bc] sm:$0xf]
  %v414 = vld [vmem:[%s1 + $0x5c0] sm:$0xf]
  %v415 = vld [vmem:[%s1 + $0x5c4] sm:$0xf]
  %v416 = vld [vmem:[%s1 + $0x5c8] sm:$0xf]
  %v417 = vld [vmem:[%s1 + $0x5cc] sm:$0xf]
  %v418 = vld [vmem:[%s1 + $0x5d0] sm:$0xf]
  %v419 = vld [vmem:[%s1 + $0x5d4] sm:$0xf]
  %v420 = vld [vmem:[%s1 + $0x5d8] sm:$0xf]
  %v421 = vld [vmem:[%s1 + $0x5dc] sm:$0xf]
  %v422 = vld [vmem:[%s1 + $0x5e0] sm:$0xf]
  %v423 = vld [vmem:[%s1 + $0x5e4] sm:$0xf]
  %v424 = vld [vmem:[%s1 + $0x5e8] sm:$0xf]
  %v425 = vld [vmem:[%s1 + $0x5ec] sm:$0xf]
  %v426 = vld [vmem:[%s1 + $0x5f0] sm:$0xf]
  %v427 = vld [vmem:[%s1 + $0x5f4] sm:$0xf]
  %v428 = vld [vmem:[%s1 + $0x5f8] sm:$0xf]
  %v429 = vld [vmem:[%s1 + $0x5fc] sm:$0xf]
  %v430 = vld [vmem:[%s1 + $0x600] sm:$0xf]
  %v431 = vld [vmem:[%s1 + $0x604] sm:$0xf]
  %v432 = vld [vmem:[%s1 + $0x608] sm:$0xf]
  %v433 = vld [vmem:[%s1 + $0x60c] sm:$0xf]
  %v434 = vld [vmem:[%s1 + $0x610] sm:$0xf]
  %v435 = vld [vmem:[%s1 + $0x614] sm:$0xf]
  %v436 = vld [vmem:[%s1 + $0x618] sm:$0xf]
  %v437 = vld [vmem:[%s1 + $0x61c] sm:$0xf]
  %v438 = vld [vmem:[%s1 + $0x620] sm:$0xf]
  %v439 = vld [vmem:[%s1 + $0x624] sm:$0xf]
  %v440 = vld [vmem:[%s1 + $0x628] sm:$0xf]
  %v441 = vld [vmem:[%s1 + $0x62c] sm:$0xf]
  %v442 = vld [vmem:[%s1 + $0x630] sm:$0xf]
  %v443 = vld [vmem:[%s1 + $0x634] sm:$0xf]
  %v444 = vld [vmem:[%s1 + $0x638] sm:$0xf]
  %v445 = vld [vmem:[%s1 + $0x63c] sm:$0xf]
  %v446 = vld [vmem:[%s1 + $0x640] sm:$0xf]
  %v447 = vld [vmem:[%s1 + $0x644] sm:$0xf]
  %v448 = vld [vmem:[%s1 + $0x648] sm:$0xf]
  %v449 = vld [vmem:[%s1 + $0x64c] sm:$0xf]
  %v450 = vld [vmem:[%s1 + $0x650] sm:$0xf]
  %v451 = vld [vmem:[%s1 + $0x654] sm:$0xf]
  %v452 = vld [vmem:[%s1 + $0x658] sm:$0xf]
  %v453 = vld [vmem:[%s1 + $0x65c] sm:$0xf]
  %v454 = vld [vmem:[%s1 + $0x660] sm:$0xf]
  %v455 = vld [vmem:[%s1 + $0x664] sm:$0xf]
  %v456 = vld [vmem:[%s1 + $0x668] sm:$0xf]
  %v457 = vld [vmem:[%s1 + $0x66c] sm:$0xf]
  %v458 = vld [vmem:[%s1 + $0x670] sm:$0xf]
  %v459 = vld [vmem:[%s1 + $0x674] sm:$0xf]
  %v460 = vld [vmem:[%s1 + $0x678] sm:$0xf]
  %v461 = vld [vmem:[%s1 + $0x67c] sm:$0xf]
  %v462 = vld [vmem:[%s1 + $0x680] sm:$0xf]
  %v463 = vld [vmem:[%s1 + $0x684] sm:$0xf]
  %v464 = vld [vmem:[%s1 + $0x688] sm:$0xf]
  %v465 = vld [vmem:[%s1 + $0x68c] sm:$0xf]
  %v466 = vld [vmem:[%s1 + $0x690] sm:$0xf]
  %v467 = vld [vmem:[%s1 + $0x694] sm:$0xf]
  %v468 = vld [vmem:[%s1 + $0x698] sm:$0xf]
  %v469 = vld [vmem:[%s1 + $0x69c] sm:$0xf]
  %v470 = vld [vmem:[%s1 + $0x6a0] sm:$0xf]
  %v471 = vld [vmem:[%s1 + $0x6a4] sm:$0xf]
  %v472 = vld [vmem:[%s1 + $0x6a8] sm:$0xf]
  %v473 = vld [vmem:[%s1 + $0x6ac] sm:$0xf]
  %v474 = vld [vmem:[%s1 + $0x6b0] sm:$0xf]
  %v475 = vld [vmem:[%s1 + $0x6b4] sm:$0xf]
  %v476 = vld [vmem:[%s1 + $0x6b8] sm:$0xf]
  %v477 = vld [vmem:[%s1 + $0x6bc] sm:$0xf]
  %v478 = vld [vmem:[%s1 + $0x6c0] sm:$0xf]
  %v479 = vld [vmem:[%s1 + $0x6c4] sm:$0xf]
  %v480 = vld [vmem:[%s1 + $0x6c8] sm:$0xf]
  %v481 = vld [vmem:[%s1 + $0x6cc] sm:$0xf]
  %v482 = vld [vmem:[%s1 + $0x6d0] sm:$0xf]
  %v483 = vld [vmem:[%s1 + $0x6d4] sm:$0xf]
  %v484 = vld [vmem:[%s1 + $0x6d8] sm:$0xf]
  %v485 = vld [vmem:[%s1 + $0x6dc] sm:$0xf]
  %v486 = vld [vmem:[%s1 + $0x6e0] sm:$0xf]
  %v487 = vld [vmem:[%s1 + $0x6e4] sm:$0xf]
  %v488 = vld [vmem:[%s1 + $0x6e8] sm:$0xf]
  %v489 = vld [vmem:[%s1 + $0x6ec] sm:$0xf]
  %v490 = vld [vmem:[%s1 + $0x6f0] sm:$0xf]
  %v491 = vld [vmem:[%s1 + $0x6f4] sm:$0xf]
  %v492 = vld [vmem:[%s1 + $0x6f8] sm:$0xf]
  %v493 = vld [vmem:[%s1 + $0x6fc] sm:$0xf]
  %v494 = vld [vmem:[%s1 + $0x700] sm:$0xf]
  %v495 = vld [vmem:[%s1 + $0x704] sm:$0xf]
  %v496 = vld [vmem:[%s1 + $0x708] sm:$0xf]
  %v497 = vld [vmem:[%s1 + $0x70c] sm:$0xf]
  %v498 = vld [vmem:[%s1 + $0x710] sm:$0xf]
  %v499 = vld [vmem:[%s1 + $0x714] sm:$0xf]
  %v500 = vld [vmem:[%s1 + $0x718] sm:$0xf]
  %v501 = vld [vmem:[%s1 + $0x71c] sm:$0xf]
  %v502 = vld [vmem:[%s1 + $0x720] sm:$0xf]
  %v503 = vld [vmem:[%s1 + $0x724] sm:$0xf]
  %v504 = vld [vmem:[%s1 + $0x728] sm:$0xf]
  %v505 = vld [vmem:[%s1 + $0x72c] sm:$0xf]
  %v506 = vld [vmem:[%s1 + $0x730] sm:$0xf]
  %v507 = vld [vmem:[%s1 + $0x734] sm:$0xf]
  %v508 = vld [vmem:[%s1 + $0x738] sm:$0xf]
  %v509 = vld [vmem:[%s1 + $0x73c] sm:$0xf]
  %v510 = vld [vmem:[%s1 + $0x740] sm:$0xf]
  %v511 = vld [vmem:[%s1 + $0x744] sm:$0xf]
  %v512 = vld [vmem:[%s1 + $0x748] sm:$0xf]
  %v513 = vld [vmem:[%s1 + $0x74c] sm:$0xf]
  %v514 = vld [vmem:[%s1 + $0x750] sm:$0xf]
  %v515 = vld [vmem:[%s1 + $0x754] sm:$0xf]
  %v516 = vld [vmem:[%s1 + $0x758] sm:$0xf]
  %v517 = vld [vmem:[%s1 + $0x75c] sm:$0xf]
  %v518 = vld [vmem:[%s1 + $0x760] sm:$0xf]
  %v519 = vld [vmem:[%s1 + $0x764] sm:$0xf]
  %v520 = vld [vmem:[%s1 + $0x768] sm:$0xf]
  %v521 = vld [vmem:[%s1 + $0x76c] sm:$0xf]
  %v522 = vld [vmem:[%s1 + $0x770] sm:$0xf]
  %v523 = vld [vmem:[%s1 + $0x774] sm:$0xf]
  %v524 = vld [vmem:[%s1 + $0x778] sm:$0xf]
  %v525 = vld [vmem:[%s1 + $0x77c] sm:$0xf]
  %v526 = vld [vmem:[%s1 + $0x780] sm:$0xf]
  %v527 = vld [vmem:[%s1 + $0x784] sm:$0xf]
  %v528 = vld [vmem:[%s1 + $0x788] sm:$0xf]
  %v529 = vld [vmem:[%s1 + $0x78c] sm:$0xf]
  %v530 = vld [vmem:[%s1 + $0x790] sm:$0xf]
  %v531 = vld [vmem:[%s1 + $0x794] sm:$0xf]
  %v532 = vld [vmem:[%s1 + $0x798] sm:$0xf]
  %v533 = vld [vmem:[%s1 + $0x79c] sm:$0xf]
  %v534 = vld [vmem:[%s1 + $0x7a0] sm:$0xf]
  %v535 = vld [vmem:[%s1 + $0x7a4] sm:$0xf]
  %v536 = vld [vmem:[%s1 + $0x7a8] sm:$0xf]
  %v537 = vld [vmem:[%s1 + $0x7ac] sm:$0xf]
  %v538 = vld [vmem:[%s1 + $0x7b0] sm:$0xf]
  %v539 = vld [vmem:[%s1 + $0x7b4] sm:$0xf]
  %v540 = vld [vmem:[%s1 + $0x7b8] sm:$0xf]
  %v541 = vld [vmem:[%s1 + $0x7bc] sm:$0xf]
  %v542 = vld [vmem:[%s1 + $0x7c0] sm:$0xf]
  %v543 = vld [vmem:[%s1 + $0x7c4] sm:$0xf]
  %v544 = vld [vmem:[%s1 + $0x7c8] sm:$0xf]
  %v545 = vld [vmem:[%s1 + $0x7cc] sm:$0xf]
  %v546 = vld [vmem:[%s1 + $0x7d0] sm:$0xf]
  %v547 = vld [vmem:[%s1 + $0x7d4] sm:$0xf]
  %v548 = vld [vmem:[%s1 + $0x7d8] sm:$0xf]
  %v549 = vld [vmem:[%s1 + $0x7dc] sm:$0xf]
  %v550 = vld [vmem:[%s1 + $0x7e0] sm:$0xf]
  %v551 = vld [vmem:[%s1 + $0x7e4] sm:$0xf]
  %v552 = vld [vmem:[%s1 + $0x7e8] sm:$0xf]
  %v553 = vld [vmem:[%s1 + $0x7ec] sm:$0xf]
  %v554 = vld [vmem:[%s1 + $0x7f0] sm:$0xf]
  %v555 = vld [vmem:[%s1 + $0x7f4] sm:$0xf]
  %v556 = vld [vmem:[%s1 + $0x7f8] sm:$0xf]
  %v557 = vld [vmem:[%s1 + $0x7fc] sm:$0xf]
  %v558 = vld [vmem:[%s1 + $0x800] sm:$0xf]
  %v559 = vld [vmem:[%s1 + $0x804] sm:$0xf]
  %v560 = vld [vmem:[%s1 + $0x808] sm:$0xf]
  %v561 = vld [vmem:[%s1 + $0x80c] sm:$0xf]
  %v562 = vld [vmem:[%s1 + $0x810] sm:$0xf]
  %v563 = vld [vmem:[%s1 + $0x814] sm:$0xf]
  %v564 = vld [vmem:[%s1 + $0x818] sm:$0xf]
  %v565 = vld [vmem:[%s1 + $0x81c] sm:$0xf]
  %v566 = vld [vmem:[%s1 + $0x820] sm:$0xf]
  %v567 = vld [vmem:[%s1 + $0x824] sm:$0xf]
  %v568 = vld [vmem:[%s1 + $0x828] sm:$0xf]
  %v569 = vld [vmem:[%s1 + $0x82c] sm:$0xf]
  %v570 = vld [vmem:[%s1 + $0x830] sm:$0xf]
  %v571 = vld [vmem:[%s1 + $0x834] sm:$0xf]
  %v572 = vld [vmem:[%s1 + $0x838] sm:$0xf]
  %v573 = vld [vmem:[%s1 + $0x83c] sm:$0xf]
  %v574 = vld [vmem:[%s1 + $0x840] sm:$0xf]
  %v575 = vld [vmem:[%s1 + $0x844] sm:$0xf]
  %v576 = vld [vmem:[%s1 + $0x848] sm:$0xf]
  %v577 = vld [vmem:[%s1 + $0x84c] sm:$0xf]
  %v578 = vld [vmem:[%s1 + $0x850] sm:$0xf]
  %v579 = vld [vmem:[%s1 + $0x854] sm:$0xf]
  %v580 = vld [vmem:[%s1 + $0x858] sm:$0xf]
  %v581 = vld [vmem:[%s1 + $0x85c] sm:$0xf]
  %v582 = vld [vmem:[%s1 + $0x860] sm:$0xf]
  %v583 = vld [vmem:[%s1 + $0x864] sm:$0xf]
  %v584 = vld [vmem:[%s1 + $0x868] sm:$0xf]
  %v585 = vld [vmem:[%s1 + $0x86c] sm:$0xf]
  %v586 = vld [vmem:[%s1 + $0x870] sm:$0xf]
  %v587 = vld [vmem:[%s1 + $0x874] sm:$0xf]
  %v588 = vld [vmem:[%s1 + $0x878] sm:$0xf]
  %v589 = vld [vmem:[%s1 + $0x87c] sm:$0xf]
  %v590 = vld [vmem:[%s1 + $0x880] sm:$0xf]
  %v591 = vld [vmem:[%s1 + $0x884] sm:$0xf]
  %v592 = vld [vmem:[%s1 + $0x888] sm:$0xf]
  %v593 = vld [vmem:[%s1 + $0x88c] sm:$0xf]
  %v594 = vld [vmem:[%s1 + $0x890] sm:$0xf]
  %v595 = vld [vmem:[%s1 + $0x894] sm:$0xf]
  %v596 = vld [vmem:[%s1 + $0x898] sm:$0xf]
  %v597 = vld [vmem:[%s1 + $0x89c] sm:$0xf]
  %v598 = vld [vmem:[%s1 + $0x8a0] sm:$0xf]
  %v599 = vld [vmem:[%s1 + $0x8a4] sm:$0xf]
  %v600 = vld [vmem:[%s1 + $0x8a8] sm:$0xf]
  %v601 = vld [vmem:[%s1 + $0x8ac] sm:$0xf]
  %v602 = vld [vmem:[%s1 + $0x8b0] sm:$0xf]
  %v603 = vld [vmem:[%s1 + $0x8b4] sm:$0xf]
  %v604 = vld [vmem:[%s1 + $0x8b8] sm:$0xf]
  %v605 = vld [vmem:[%s1 + $0x8bc] sm:$0xf]
  %v606 = vld [vmem:[%s1 + $0x8c0] sm:$0xf]
  %v607 = vld [vmem:[%s1 + $0x8c4] sm:$0xf]
  %v608 = vld [vmem:[%s1 + $0x8c8] sm:$0xf]
  %v609 = vld [vmem:[%s1 + $0x8cc] sm:$0xf]
  %v610 = vld [vmem:[%s1 + $0x8d0] sm:$0xf]
  %v611 = vld [vmem:[%s1 + $0x8d4] sm:$0xf]
  %v612 = vld [vmem:[%s1 + $0x8d8] sm:$0xf]
  %v613 = vld [vmem:[%s1 + $0x8dc] sm:$0xf]
  %v614 = vld [vmem:[%s1 + $0x8e0] sm:$0xf]
  %v615 = vld [vmem:[%s1 + $0x8e4] sm:$0xf]
  %v616 = vld [vmem:[%s1 + $0x8e8] sm:$0xf]
  %v617 = vld [vmem:[%s1 + $0x8ec] sm:$0xf]
  %v618 = vld [vmem:[%s1 + $0x8f0] sm:$0xf]
  %v619 = vld [vmem:[%s1 + $0x8f4] sm:$0xf]
  %v620 = vld [vmem:[%s1 + $0x8f8] sm:$0xf]
  %v621 = vld [vmem:[%s1 + $0x8fc] sm:$0xf]
  %v622 = vld [vmem:[%s1 + $0x900] sm:$0xf]
  %v623 = vld [vmem:[%s1 + $0x904] sm:$0xf]
  %v624 = vld [vmem:[%s1 + $0x908] sm:$0xf]
  %v625 = vld [vmem:[%s1 + $0x90c] sm:$0xf]
  %v626 = vld [vmem:[%s1 + $0x910] sm:$0xf]
  %v627 = vld [vmem:[%s1 + $0x914] sm:$0xf]
  %v628 = vld [vmem:[%s1 + $0x918] sm:$0xf]
  %v629 = vld [vmem:[%s1 + $0x91c] sm:$0xf]
  %v630 = vld [vmem:[%s1 + $0x920] sm:$0xf]
  %v631 = vld [vmem:[%s1 + $0x924] sm:$0xf]
  %v632 = vld [vmem:[%s1 + $0x928] sm:$0xf]
  %v633 = vld [vmem:[%s1 + $0x92c] sm:$0xf]
  %v634 = vld [vmem:[%s1 + $0x930] sm:$0xf]
  %v635 = vld [vmem:[%s1 + $0x934] sm:$0xf]
  %v636 = vld [vmem:[%s1 + $0x938] sm:$0xf]
  %v637 = vld [vmem:[%s1 + $0x93c] sm:$0xf]
  %v638 = vld [vmem:[%s1 + $0x940] sm:$0xf]
  %v639 = vld [vmem:[%s1 + $0x944] sm:$0xf]
  %v640 = vld [vmem:[%s1 + $0x948] sm:$0xf]
  %v641 = vld [vmem:[%s1 + $0x94c] sm:$0xf]
  %v642 = vld [vmem:[%s1 + $0x950] sm:$0xf]
  %v643 = vld [vmem:[%s1 + $0x954] sm:$0xf]
  %v644 = vld [vmem:[%s1 + $0x958] sm:$0xf]
  %v645 = vld [vmem:[%s1 + $0x95c] sm:$0xf]
  %v646 = vld [vmem:[%s1 + $0x960] sm:$0xf]
  %v647 = vld [vmem:[%s1 + $0x964] sm:$0xf]
  %v648 = vld [vmem:[%s1 + $0x968] sm:$0xf]
  %v649 = vld [vmem:[%s1 + $0x96c] sm:$0xf]
  %v650 = vld [vmem:[%s1 + $0x970] sm:$0xf]
  %v651 = vld [vmem:[%s1 + $0x974] sm:$0xf]
  %v652 = vld [vmem:[%s1 + $0x978] sm:$0xf]
  %v653 = vld [vmem:[%s1 + $0x97c] sm:$0xf]
  %v654 = vld [vmem:[%s1 + $0x980] sm:$0xf]
  %v655 = vld [vmem:[%s1 + $0x984] sm:$0xf]
  %v656 = vld [vmem:[%s1 + $0x988] sm:$0xf]
  %v657 = vld [vmem:[%s1 + $0x98c] sm:$0xf]
  %v658 = vld [vmem:[%s1 + $0x990] sm:$0xf]
  %v659 = vld [vmem:[%s1 + $0x994] sm:$0xf]
  %v660 = vld [vmem:[%s1 + $0x998] sm:$0xf]
  %v661 = vld [vmem:[%s1 + $0x99c] sm:$0xf]
  %v662 = vld [vmem:[%s1 + $0x9a0] sm:$0xf]
  %v663 = vld [vmem:[%s1 + $0x9a4] sm:$0xf]
  %v664 = vld [vmem:[%s1 + $0x9a8] sm:$0xf]
  %v665 = vld [vmem:[%s1 + $0x9ac] sm:$0xf]
  %v666 = vld [vmem:[%s1 + $0x9b0] sm:$0xf]
  %v667 = vld [vmem:[%s1 + $0x9b4] sm:$0xf]
  %v668 = vld [vmem:[%s1 + $0x9b8] sm:$0xf]
  %v669 = vld [vmem:[%s1 + $0x9bc] sm:$0xf]
  %v670 = vld [vmem:[%s1 + $0x9c0] sm:$0xf]
  %v671 = vld [vmem:[%s1 + $0x9c4] sm:$0xf]
  %v672 = vld [vmem:[%s1 + $0x9c8] sm:$0xf]
  %v673 = vld [vmem:[%s1 + $0x9cc] sm:$0xf]
  %v674 = vld [vmem:[%s1 + $0x9d0] sm:$0xf]
  %v675 = vld [vmem:[%s1 + $0x9d4] sm:$0xf]
  %v676 = vld [vmem:[%s1 + $0x9d8] sm:$0xf]
  %v677 = vld [vmem:[%s1 + $0x9dc] sm:$0xf]
  %v678 = vld [vmem:[%s1 + $0x9e0] sm:$0xf]
  %v679 = vld [vmem:[%s1 + $0x9e4] sm:$0xf]
  %v680 = vld [vmem:[%s1 + $0x9e8] sm:$0xf]
  %v681 = vld [vmem:[%s1 + $0x9ec] sm:$0xf]
  %v682 = vld [vmem:[%s1 + $0x9f0] sm:$0xf]
  %v683 = vld [vmem:[%s1 + $0x9f4] sm:$0xf]
  %v684 = vld [vmem:[%s1 + $0x9f8] sm:$0xf]
  %v685 = vld [vmem:[%s1 + $0x9fc] sm:$0xf]
  %v686 = vld [vmem:[%s1 + $0xa00] sm:$0xf]
  %v687 = vld [vmem:[%s1 + $0xa04] sm:$0xf]
  %v688 = vld [vmem:[%s1 + $0xa08] sm:$0xf]
  %v689 = vld [vmem:[%s1 + $0xa0c] sm:$0xf]
  %v690 = vld [vmem:[%s1 + $0xa10] sm:$0xf]
  %v691 = vld [vmem:[%s1 + $0xa14] sm:$0xf]
  %v692 = vld [vmem:[%s1 + $0xa18] sm:$0xf]
  %v693 = vld [vmem:[%s1 + $0xa1c] sm:$0xf]
  %v694 = vld [vmem:[%s1 + $0xa20] sm:$0xf]
  %v695 = vld [vmem:[%s1 + $0xa24] sm:$0xf]
  %v696 = vld [vmem:[%s1 + $0xa28] sm:$0xf]
  %v697 = vld [vmem:[%s1 + $0xa2c] sm:$0xf]
  %v698 = vld [vmem:[%s1 + $0xa30] sm:$0xf]
  %v699 = vld [vmem:[%s1 + $0xa34] sm:$0xf]
  %v700 = vld [vmem:[%s1 + $0xa38] sm:$0xf]
  %v701 = vld [vmem:[%s1 + $0xa3c] sm:$0xf]
  %v702 = vld [vmem:[%s1 + $0xa40] sm:$0xf]
  %v703 = vld [vmem:[%s1 + $0xa44] sm:$0xf]
  %v704 = vld [vmem:[%s1 + $0xa48] sm:$0xf]
  %v705 = vld [vmem:[%s1 + $0xa4c] sm:$0xf]
  %v706 = vld [vmem:[%s1 + $0xa50] sm:$0xf]
  %v707 = vld [vmem:[%s1 + $0xa54] sm:$0xf]
  %v708 = vld [vmem:[%s1 + $0xa58] sm:$0xf]
  %v709 = vld [vmem:[%s1 + $0xa5c] sm:$0xf]
  %v710 = vld [vmem:[%s1 + $0xa60] sm:$0xf]
  %v711 = vld [vmem:[%s1 + $0xa64] sm:$0xf]
  %v712 = vld [vmem:[%s1 + $0xa68] sm:$0xf]
  %v713 = vld [vmem:[%s1 + $0xa6c] sm:$0xf]
  %v714 = vld [vmem:[%s1 + $0xa70] sm:$0xf]
  %v715 = vld [vmem:[%s1 + $0xa74] sm:$0xf]
  %v716 = vld [vmem:[%s1 + $0xa78] sm:$0xf]
  %v717 = vld [vmem:[%s1 + $0xa7c] sm:$0xf]
  %v718 = vld [vmem:[%s1 + $0xa80] sm:$0xf]
  %v719 = vld [vmem:[%s1 + $0xa84] sm:$0xf]
  %v720 = vld [vmem:[%s1 + $0xa88] sm:$0xf]
  %v721 = vld [vmem:[%s1 + $0xa8c] sm:$0xf]
  %v722 = vld [vmem:[%s1 + $0xa90] sm:$0xf]
  %v723 = vld [vmem:[%s1 + $0xa94] sm:$0xf]
  %v724 = vld [vmem:[%s1 + $0xa98] sm:$0xf]
  %v725 = vld [vmem:[%s1 + $0xa9c] sm:$0xf]
  %v726 = vld [vmem:[%s1 + $0xaa0] sm:$0xf]
  %v727 = vld [vmem:[%s1 + $0xaa4] sm:$0xf]
  %v728 = vld [vmem:[%s1 + $0xaa8] sm:$0xf]
  %v729 = vld [vmem:[%s1 + $0xaac] sm:$0xf]
  %v730 = vld [vmem:[%s1 + $0xab0] sm:$0xf]
  %v731 = vld [vmem:[%s1 + $0xab4] sm:$0xf]
  %v732 = vld [vmem:[%s1 + $0xab8] sm:$0xf]
  %v733 = vld [vmem:[%s1 + $0xabc] sm:$0xf]
  %v734 = vld [vmem:[%s1 + $0xac0] sm:$0xf]
  %v735 = vld [vmem:[%s1 + $0xac4] sm:$0xf]
  %v736 = vld [vmem:[%s1 + $0xac8] sm:$0xf]
  %v737 = vld [vmem:[%s1 + $0xacc] sm:$0xf]
  %v738 = vld [vmem:[%s1 + $0xad0] sm:$0xf]
  %v739 = vld [vmem:[%s1 + $0xad4] sm:$0xf]
  %v740 = vld [vmem:[%s1 + $0xad8] sm:$0xf]
  %v741 = vld [vmem:[%s1 + $0xadc] sm:$0xf]
  %v742 = vld [vmem:[%s1 + $0xae0] sm:$0xf]
  %v743 = vld [vmem:[%s1 + $0xae4] sm:$0xf]
  %v744 = vld [vmem:[%s1 + $0xae8] sm:$0xf]
  %v745 = vld [vmem:[%s1 + $0xaec] sm:$0xf]
  %v746 = vld [vmem:[%s1 + $0xaf0] sm:$0xf]
  %v747 = vld [vmem:[%s1 + $0xaf4] sm:$0xf]
  %v748 = vld [vmem:[%s1 + $0xaf8] sm:$0xf]
  %v749 = vld [vmem:[%s1 + $0xafc] sm:$0xf]
  %v750 = vld [vmem:[%s1 + $0xb00] sm:$0xf]
  %v751 = vld [vmem:[%s1 + $0xb04] sm:$0xf]
  %v752 = vld [vmem:[%s1 + $0xb08] sm:$0xf]
  %v753 = vld [vmem:[%s1 + $0xb0c] sm:$0xf]
  %v754 = vld [vmem:[%s1 + $0xb10] sm:$0xf]
  %v755 = vld [vmem:[%s1 + $0xb14] sm:$0xf]
  %v756 = vld [vmem:[%s1 + $0xb18] sm:$0xf]
  %v757 = vld [vmem:[%s1 + $0xb1c] sm:$0xf]
  %v758 = vld [vmem:[%s1 + $0xb20] sm:$0xf]
  %v759 = vld [vmem:[%s1 + $0xb24] sm:$0xf]
  %v760 = vld [vmem:[%s1 + $0xb28] sm:$0xf]
  %v761 = vld [vmem:[%s1 + $0xb2c] sm:$0xf]
  %v762 = vld [vmem:[%s1 + $0xb30] sm:$0xf]
  %v763 = vld [vmem:[%s1 + $0xb34] sm:$0xf]
  %v764 = vld [vmem:[%s1 + $0xb38] sm:$0xf]
  %v765 = vld [vmem:[%s1 + $0xb3c] sm:$0xf]
  %v766 = vld [vmem:[%s1 + $0xb40] sm:$0xf]
  %v767 = vld [vmem:[%s1 + $0xb44] sm:$0xf]
  %v768 = vld [vmem:[%s1 + $0xb48] sm:$0xf]
  %v769 = vld [vmem:[%s1 + $0xb4c] sm:$0xf]
  %v770 = vld [vmem:[%s1 + $0xb50] sm:$0xf]
  %v771 = vld [vmem:[%s1 + $0xb54] sm:$0xf]
  %v772 = vld [vmem:[%s1 + $0xb58] sm:$0xf]
  %v773 = vld [vmem:[%s1 + $0xb5c] sm:$0xf]
  %v774 = vld [vmem:[%s1 + $0xb60] sm:$0xf]
  %v775 = vld [vmem:[%s1 + $0xb64] sm:$0xf]
  %v776 = vld [vmem:[%s1 + $0xb68] sm:$0xf]
  %v777 = vld [vmem:[%s1 + $0xb6c] sm:$0xf]
  %v778 = vld [vmem:[%s1 + $0xb70] sm:$0xf]
  %v779 = vld [vmem:[%s1 + $0xb74] sm:$0xf]
  %v780 = vld [vmem:[%s1 + $0xb78] sm:$0xf]
  %v781 = vld [vmem:[%s1 + $0xb7c] sm:$0xf]
  %v782 = vld [vmem:[%s1 + $0xb80] sm:$0xf]
  %v783 = vld [vmem:[%s1 + $0xb84] sm:$0xf]
  %v784 = vld [vmem:[%s1 + $0xb88] sm:$0xf]
  %v785 = vld [vmem:[%s1 + $0xb8c] sm:$0xf]
  %v786 = vld [vmem:[%s1 + $0xb90] sm:$0xf]
  %v787 = vld [vmem:[%s1 + $0xb94] sm:$0xf]
  %v788 = vld [vmem:[%s1 + $0xb98] sm:$0xf]
  %v789 = vld [vmem:[%s1 + $0xb9c] sm:$0xf]
  %v790 = vld [vmem:[%s1 + $0xba0] sm:$0xf]
  %v791 = vld [vmem:[%s1 + $0xba4] sm:$0xf]
  %v792 = vld [vmem:[%s1 + $0xba8] sm:$0xf]
  %v793 = vld [vmem:[%s1 + $0xbac] sm:$0xf]
  %v794 = vld [vmem:[%s1 + $0xbb0] sm:$0xf]
  %v795 = vld [vmem:[%s1 + $0xbb4] sm:$0xf]
  %v796 = vld [vmem:[%s1 + $0xbb8] sm:$0xf]
  %v797 = vld [vmem:[%s1 + $0xbbc] sm:$0xf]
  %v798 = vld [vmem:[%s1 + $0xbc0] sm:$0xf]
  %v799 = vld [vmem:[%s1 + $0xbc4] sm:$0xf]
  %v800 = vld [vmem:[%s1 + $0xbc8] sm:$0xf]
  %v801 = vld [vmem:[%s1 + $0xbcc] sm:$0xf]
  %v802 = vld [vmem:[%s1 + $0xbd0] sm:$0xf]
  %v803 = vld [vmem:[%s1 + $0xbd4] sm:$0xf]
  %v804 = vld [vmem:[%s1 + $0xbd8] sm:$0xf]
  %v805 = vld [vmem:[%s1 + $0xbdc] sm:$0xf]
  %v806 = vld [vmem:[%s1 + $0xbe0] sm:$0xf]
  %v807 = vld [vmem:[%s1 + $0xbe4] sm:$0xf]
  %v808 = vld [vmem:[%s1 + $0xbe8] sm:$0xf]
  %v809 = vld [vmem:[%s1 + $0xbec] sm:$0xf]
  %v810 = vld [vmem:[%s1 + $0xbf0] sm:$0xf]
  %v811 = vld [vmem:[%s1 + $0xbf4] sm:$0xf]
  %v812 = vld [vmem:[%s1 + $0xbf8] sm:$0xf]
  %v813 = vld [vmem:[%s1 + $0xbfc] sm:$0xf]
  %v814 = vld [vmem:[%s1 + $0xc00] sm:$0xf]
  %v815 = vld [vmem:[%s1 + $0xc04] sm:$0xf]
  %v816 = vld [vmem:[%s1 + $0xc08] sm:$0xf]
  %v817 = vld [vmem:[%s1 + $0xc0c] sm:$0xf]
  %v818 = vld [vmem:[%s1 + $0xc10] sm:$0xf]
  %v819 = vld [vmem:[%s1 + $0xc14] sm:$0xf]
  %v820 = vld [vmem:[%s1 + $0xc18] sm:$0xf]
  %v821 = vld [vmem:[%s1 + $0xc1c] sm:$0xf]
  %v822 = vld [vmem:[%s1 + $0xc20] sm:$0xf]
  %v823 = vld [vmem:[%s1 + $0xc24] sm:$0xf]
  %v824 = vld [vmem:[%s1 + $0xc28] sm:$0xf]
  %v825 = vld [vmem:[%s1 + $0xc2c] sm:$0xf]
  %v826 = vld [vmem:[%s1 + $0xc30] sm:$0xf]
  %v827 = vld [vmem:[%s1 + $0xc34] sm:$0xf]
  %v828 = vld [vmem:[%s1 + $0xc38] sm:$0xf]
  %v829 = vld [vmem:[%s1 + $0xc3c] sm:$0xf]
  %v830 = vld [vmem:[%s2] sm:$0x1]
  %v832 = vlaneseq
  %v833 = vshrl.u32 %v832, 7
  %v834 = vsub.s32 0, %v833
  %v835 = vrot.slane %v830, %v834
  %v862 = vunpack.c.l.b16 %v21
  %v863 = vunpack.c.h.b16 %v21
  %v864 = vunpack.c.l.b16 %v22
  %v865 = vunpack.c.h.b16 %v22
  %v866 = vunpack.c.l.b16 %v23
  %v867 = vunpack.c.h.b16 %v23
  %v868 = vunpack.c.l.b16 %v24
  %v869 = vunpack.c.h.b16 %v24
  %v870 = vunpack.c.l.b16 %v25
  %v871 = vunpack.c.h.b16 %v25
  %v872 = vunpack.c.l.b16 %v26
  %v873 = vunpack.c.h.b16 %v26
  %v874 = vunpack.c.l.b16 %v27
  %v875 = vunpack.c.h.b16 %v27
  %v876 = vunpack.c.l.b16 %v28
  %v877 = vunpack.c.h.b16 %v28
  %v878 = vunpack.c.l.b16 %v29
  %v879 = vunpack.c.h.b16 %v29
  %v880 = vunpack.c.l.b16 %v30
  %v881 = vunpack.c.h.b16 %v30
  %v882 = vunpack.c.l.b16 %v31
  %v883 = vunpack.c.h.b16 %v31
  %v884 = vunpack.c.l.b16 %v32
  %v885 = vunpack.c.h.b16 %v32
  %v886 = vunpack.c.l.b16 %v33
  %v887 = vunpack.c.h.b16 %v33
  %v888 = vunpack.c.l.b16 %v34
  %v889 = vunpack.c.h.b16 %v34
  %v890 = vunpack.c.l.b16 %v35
  %v891 = vunpack.c.h.b16 %v35
  %v892 = vunpack.c.l.b16 %v36
  %v893 = vunpack.c.h.b16 %v36
  %v894 = vunpack.c.l.b16 %v37
  %v895 = vunpack.c.h.b16 %v37
  %v896 = vunpack.c.l.b16 %v38
  %v897 = vunpack.c.h.b16 %v38
  %v898 = vunpack.c.l.b16 %v39
  %v899 = vunpack.c.h.b16 %v39
  %v900 = vunpack.c.l.b16 %v40
  %v901 = vunpack.c.h.b16 %v40
  %v902 = vunpack.c.l.b16 %v41
  %v903 = vunpack.c.h.b16 %v41
  %v904 = vunpack.c.l.b16 %v42
  %v905 = vunpack.c.h.b16 %v42
  %v906 = vunpack.c.l.b16 %v43
  %v907 = vunpack.c.h.b16 %v43
  %v908 = vunpack.c.l.b16 %v44
  %v909 = vunpack.c.h.b16 %v44
  %v910 = vunpack.c.l.b16 %v45
  %v911 = vpack.c.b16 %v862, %v862
  %v912 = vpack.c.b16 %v863, %v863
  %v913 = vpack.c.b16 %v864, %v864
  %v914 = vpack.c.b16 %v865, %v865
  %v915 = vpack.c.b16 %v866, %v866
  %v916 = vpack.c.b16 %v867, %v867
  %v917 = vpack.c.b16 %v868, %v868
  %v918 = vpack.c.b16 %v869, %v869
  %v919 = vpack.c.b16 %v870, %v870
  %v920 = vpack.c.b16 %v871, %v871
  %v921 = vpack.c.b16 %v872, %v872
  %v922 = vpack.c.b16 %v873, %v873
  %v923 = vpack.c.b16 %v874, %v874
  %v924 = vpack.c.b16 %v875, %v875
  %v925 = vpack.c.b16 %v876, %v876
  %v926 = vpack.c.b16 %v877, %v877
  %v927 = vpack.c.b16 %v878, %v878
  %v928 = vpack.c.b16 %v879, %v879
  %v929 = vpack.c.b16 %v880, %v880
  %v930 = vpack.c.b16 %v881, %v881
  %v931 = vpack.c.b16 %v882, %v882
  %v932 = vpack.c.b16 %v883, %v883
  %v933 = vpack.c.b16 %v884, %v884
  %v934 = vpack.c.b16 %v885, %v885
  %v935 = vpack.c.b16 %v886, %v886
  %v936 = vpack.c.b16 %v887, %v887
  %v937 = vpack.c.b16 %v888, %v888
  %v938 = vpack.c.b16 %v889, %v889
  %v939 = vpack.c.b16 %v890, %v890
  %v940 = vpack.c.b16 %v891, %v891
  %v941 = vpack.c.b16 %v892, %v892
  %v942 = vpack.c.b16 %v893, %v893
  %v943 = vpack.c.b16 %v894, %v894
  %v944 = vpack.c.b16 %v895, %v895
  %v945 = vpack.c.b16 %v896, %v896
  %v946 = vpack.c.b16 %v897, %v897
  %v947 = vpack.c.b16 %v898, %v898
  %v948 = vpack.c.b16 %v899, %v899
  %v949 = vpack.c.b16 %v900, %v900
  %v950 = vpack.c.b16 %v901, %v901
  %v951 = vpack.c.b16 %v902, %v902
  %v952 = vpack.c.b16 %v903, %v903
  %v953 = vpack.c.b16 %v904, %v904
  %v954 = vpack.c.b16 %v905, %v905
  %v955 = vpack.c.b16 %v906, %v906
  %v956 = vpack.c.b16 %v907, %v907
  %v957 = vpack.c.b16 %v908, %v908
  %v958 = vpack.c.b16 %v909, %v909
  %v959 = vpack.c.b16 %v910, %v910
  %v1793 = vunpack.c.l.b16 %v46
  %v1794 = vunpack.c.l.b16 %v47
  %v1795 = vunpack.c.l.b16 %v48
  %v1796 = vunpack.c.l.b16 %v49
  %v1797 = vunpack.c.l.b16 %v50
  %v1798 = vunpack.c.l.b16 %v51
  %v1799 = vunpack.c.l.b16 %v52
  %v1800 = vunpack.c.l.b16 %v53
  %v1801 = vunpack.c.l.b16 %v54
  %v1802 = vunpack.c.l.b16 %v55
  %v1803 = vunpack.c.l.b16 %v56
  %v1804 = vunpack.c.l.b16 %v57
  %v1805 = vunpack.c.l.b16 %v58
  %v1806 = vunpack.c.l.b16 %v59
  %v1807 = vunpack.c.l.b16 %v60
  %v1808 = vunpack.c.l.b16 %v61
  %v1809 = vunpack.c.l.b16 %v62
  %v1810 = vunpack.c.l.b16 %v63
  %v1811 = vunpack.c.l.b16 %v64
  %v1812 = vunpack.c.l.b16 %v65
  %v1813 = vunpack.c.l.b16 %v66
  %v1814 = vunpack.c.l.b16 %v67
  %v1815 = vunpack.c.l.b16 %v68
  %v1816 = vunpack.c.l.b16 %v69
  %v1817 = vunpack.c.l.b16 %v70
  %v1818 = vunpack.c.l.b16 %v71
  %v1819 = vunpack.c.l.b16 %v72
  %v1820 = vunpack.c.l.b16 %v73
  %v1821 = vunpack.c.l.b16 %v74
  %v1822 = vunpack.c.l.b16 %v75
  %v1823 = vunpack.c.l.b16 %v76
  %v1824 = vunpack.c.l.b16 %v77
  %v1825 = vunpack.c.l.b16 %v78
  %v1826 = vunpack.c.l.b16 %v79
  %v1827 = vunpack.c.l.b16 %v80
  %v1828 = vunpack.c.l.b16 %v81
  %v1829 = vunpack.c.l.b16 %v82
  %v1830 = vunpack.c.l.b16 %v83
  %v1831 = vunpack.c.l.b16 %v84
  %v1832 = vunpack.c.l.b16 %v85
  %v1833 = vunpack.c.l.b16 %v86
  %v1834 = vunpack.c.l.b16 %v87
  %v1835 = vunpack.c.l.b16 %v88
  %v1836 = vunpack.c.l.b16 %v89
  %v1837 = vunpack.c.l.b16 %v90
  %v1838 = vunpack.c.l.b16 %v91
  %v1839 = vunpack.c.l.b16 %v92
  %v1840 = vunpack.c.l.b16 %v93
  %v1841 = vunpack.c.l.b16 %v94
  %v1842 = vunpack.c.l.b16 %v95
  %v1843 = vunpack.c.l.b16 %v96
  %v1844 = vunpack.c.l.b16 %v97
  %v1845 = vunpack.c.l.b16 %v98
  %v1846 = vunpack.c.l.b16 %v99
  %v1847 = vunpack.c.l.b16 %v100
  %v1848 = vunpack.c.l.b16 %v101
  %v1849 = vunpack.c.l.b16 %v102
  %v1850 = vunpack.c.l.b16 %v103
  %v1851 = vunpack.c.l.b16 %v104
  %v1852 = vunpack.c.l.b16 %v105
  %v1853 = vunpack.c.l.b16 %v106
  %v1854 = vunpack.c.l.b16 %v107
  %v1855 = vunpack.c.l.b16 %v108
  %v1856 = vunpack.c.l.b16 %v109
  %v1857 = vunpack.c.l.b16 %v110
  %v1858 = vunpack.c.l.b16 %v111
  %v1859 = vunpack.c.l.b16 %v112
  %v1860 = vunpack.c.l.b16 %v113
  %v1861 = vunpack.c.l.b16 %v114
  %v1862 = vunpack.c.l.b16 %v115
  %v1863 = vunpack.c.l.b16 %v116
  %v1864 = vunpack.c.l.b16 %v117
  %v1865 = vunpack.c.l.b16 %v118
  %v1866 = vunpack.c.l.b16 %v119
  %v1867 = vunpack.c.l.b16 %v120
  %v1868 = vunpack.c.l.b16 %v121
  %v1869 = vunpack.c.l.b16 %v122
  %v1870 = vunpack.c.l.b16 %v123
  %v1871 = vunpack.c.l.b16 %v124
  %v1872 = vunpack.c.l.b16 %v125
  %v1873 = vunpack.c.l.b16 %v126
  %v1874 = vunpack.c.l.b16 %v127
  %v1875 = vunpack.c.l.b16 %v128
  %v1876 = vunpack.c.l.b16 %v129
  %v1877 = vunpack.c.l.b16 %v130
  %v1878 = vunpack.c.l.b16 %v131
  %v1879 = vunpack.c.l.b16 %v132
  %v1880 = vunpack.c.l.b16 %v133
  %v1881 = vunpack.c.l.b16 %v134
  %v1882 = vunpack.c.l.b16 %v135
  %v1883 = vunpack.c.l.b16 %v136
  %v1884 = vunpack.c.l.b16 %v137
  %v1885 = vunpack.c.l.b16 %v138
  %v1886 = vunpack.c.l.b16 %v139
  %v1887 = vunpack.c.l.b16 %v140
  %v1888 = vunpack.c.l.b16 %v141
  %v1889 = vunpack.c.l.b16 %v142
  %v1890 = vunpack.c.l.b16 %v143
  %v1891 = vunpack.c.l.b16 %v144
  %v1892 = vunpack.c.l.b16 %v145
  %v1893 = vunpack.c.l.b16 %v146
  %v1894 = vunpack.c.l.b16 %v147
  %v1895 = vunpack.c.l.b16 %v148
  %v1896 = vunpack.c.l.b16 %v149
  %v1897 = vunpack.c.l.b16 %v150
  %v1898 = vunpack.c.l.b16 %v151
  %v1899 = vunpack.c.l.b16 %v152
  %v1900 = vunpack.c.l.b16 %v153
  %v1901 = vunpack.c.l.b16 %v154
  %v1902 = vunpack.c.l.b16 %v155
  %v1903 = vunpack.c.l.b16 %v156
  %v1904 = vunpack.c.l.b16 %v157
  %v1905 = vunpack.c.l.b16 %v158
  %v1906 = vunpack.c.l.b16 %v159
  %v1907 = vunpack.c.l.b16 %v160
  %v1908 = vunpack.c.l.b16 %v161
  %v1909 = vunpack.c.l.b16 %v162
  %v1910 = vunpack.c.l.b16 %v163
  %v1911 = vunpack.c.l.b16 %v164
  %v1912 = vunpack.c.l.b16 %v165
  %v1913 = vunpack.c.l.b16 %v166
  %v1914 = vunpack.c.l.b16 %v167
  %v1915 = vunpack.c.l.b16 %v168
  %v1916 = vunpack.c.l.b16 %v169
  %v1917 = vunpack.c.l.b16 %v170
  %v1918 = vunpack.c.l.b16 %v171
  %v1919 = vunpack.c.l.b16 %v172
  %v1920 = vunpack.c.l.b16 %v173
  %v1921 = vunpack.c.l.b16 %v174
  %v1922 = vunpack.c.l.b16 %v175
  %v1923 = vunpack.c.l.b16 %v176
  %v1924 = vunpack.c.l.b16 %v177
  %v1925 = vunpack.c.l.b16 %v178
  %v1926 = vunpack.c.l.b16 %v179
  %v1927 = vunpack.c.l.b16 %v180
  %v1928 = vunpack.c.l.b16 %v181
  %v1929 = vunpack.c.l.b16 %v182
  %v1930 = vunpack.c.l.b16 %v183
  %v1931 = vunpack.c.l.b16 %v184
  %v1932 = vunpack.c.l.b16 %v185
  %v1933 = vunpack.c.l.b16 %v186
  %v1934 = vunpack.c.l.b16 %v187
  %v1935 = vunpack.c.l.b16 %v188
  %v1936 = vunpack.c.l.b16 %v189
  %v1937 = vunpack.c.l.b16 %v190
  %v1938 = vunpack.c.l.b16 %v191
  %v1939 = vunpack.c.l.b16 %v192
  %v1940 = vunpack.c.l.b16 %v193
  %v1941 = vunpack.c.l.b16 %v194
  %v1942 = vunpack.c.l.b16 %v195
  %v1943 = vunpack.c.l.b16 %v196
  %v1944 = vunpack.c.l.b16 %v197
  %v1945 = vunpack.c.l.b16 %v198
  %v1946 = vunpack.c.l.b16 %v199
  %v1947 = vunpack.c.l.b16 %v200
  %v1948 = vunpack.c.l.b16 %v201
  %v1949 = vunpack.c.l.b16 %v202
  %v1950 = vunpack.c.l.b16 %v203
  %v1951 = vunpack.c.l.b16 %v204
  %v1952 = vunpack.c.l.b16 %v205
  %v1953 = vunpack.c.l.b16 %v206
  %v1954 = vunpack.c.l.b16 %v207
  %v1955 = vunpack.c.l.b16 %v208
  %v1956 = vunpack.c.l.b16 %v209
  %v1957 = vunpack.c.l.b16 %v210
  %v1958 = vunpack.c.l.b16 %v211
  %v1959 = vunpack.c.l.b16 %v212
  %v1960 = vunpack.c.l.b16 %v213
  %v1961 = vunpack.c.l.b16 %v214
  %v1962 = vunpack.c.l.b16 %v215
  %v1963 = vunpack.c.l.b16 %v216
  %v1964 = vunpack.c.l.b16 %v217
  %v1965 = vunpack.c.l.b16 %v218
  %v1966 = vunpack.c.l.b16 %v219
  %v1967 = vunpack.c.l.b16 %v220
  %v1968 = vunpack.c.l.b16 %v221
  %v1969 = vunpack.c.l.b16 %v222
  %v1970 = vunpack.c.l.b16 %v223
  %v1971 = vunpack.c.l.b16 %v224
  %v1972 = vunpack.c.l.b16 %v225
  %v1973 = vunpack.c.l.b16 %v226
  %v1974 = vunpack.c.l.b16 %v227
  %v1975 = vunpack.c.l.b16 %v228
  %v1976 = vunpack.c.l.b16 %v229
  %v1977 = vunpack.c.l.b16 %v230
  %v1978 = vunpack.c.l.b16 %v231
  %v1979 = vunpack.c.l.b16 %v232
  %v1980 = vunpack.c.l.b16 %v233
  %v1981 = vunpack.c.l.b16 %v234
  %v1982 = vunpack.c.l.b16 %v235
  %v1983 = vunpack.c.l.b16 %v236
  %v1984 = vunpack.c.l.b16 %v237
  %v1985 = vunpack.c.l.b16 %v238
  %v1986 = vunpack.c.l.b16 %v239
  %v1987 = vunpack.c.l.b16 %v240
  %v1988 = vunpack.c.l.b16 %v241
  %v1989 = vunpack.c.l.b16 %v242
  %v1990 = vunpack.c.l.b16 %v243
  %v1991 = vunpack.c.l.b16 %v244
  %v1992 = vunpack.c.l.b16 %v245
  %v1993 = vunpack.c.l.b16 %v246
  %v1994 = vunpack.c.l.b16 %v247
  %v1995 = vunpack.c.l.b16 %v248
  %v1996 = vunpack.c.l.b16 %v249
  %v1997 = vunpack.c.l.b16 %v250
  %v1998 = vunpack.c.l.b16 %v251
  %v1999 = vunpack.c.l.b16 %v252
  %v2000 = vunpack.c.l.b16 %v253
  %v2001 = vunpack.c.l.b16 %v254
  %v2002 = vunpack.c.l.b16 %v255
  %v2003 = vunpack.c.l.b16 %v256
  %v2004 = vunpack.c.l.b16 %v257
  %v2005 = vunpack.c.l.b16 %v258
  %v2006 = vunpack.c.l.b16 %v259
  %v2007 = vunpack.c.l.b16 %v260
  %v2008 = vunpack.c.l.b16 %v261
  %v2009 = vunpack.c.l.b16 %v262
  %v2010 = vunpack.c.l.b16 %v263
  %v2011 = vunpack.c.l.b16 %v264
  %v2012 = vunpack.c.l.b16 %v265
  %v2013 = vunpack.c.l.b16 %v266
  %v2014 = vunpack.c.l.b16 %v267
  %v2015 = vunpack.c.l.b16 %v268
  %v2016 = vunpack.c.l.b16 %v269
  %v2017 = vunpack.c.l.b16 %v270
  %v2018 = vunpack.c.l.b16 %v271
  %v2019 = vunpack.c.l.b16 %v272
  %v2020 = vunpack.c.l.b16 %v273
  %v2021 = vunpack.c.l.b16 %v274
  %v2022 = vunpack.c.l.b16 %v275
  %v2023 = vunpack.c.l.b16 %v276
  %v2024 = vunpack.c.l.b16 %v277
  %v2025 = vunpack.c.l.b16 %v278
  %v2026 = vunpack.c.l.b16 %v279
  %v2027 = vunpack.c.l.b16 %v280
  %v2028 = vunpack.c.l.b16 %v281
  %v2029 = vunpack.c.l.b16 %v282
  %v2030 = vunpack.c.l.b16 %v283
  %v2031 = vunpack.c.l.b16 %v284
  %v2032 = vunpack.c.l.b16 %v285
  %v2033 = vunpack.c.l.b16 %v286
  %v2034 = vunpack.c.l.b16 %v287
  %v2035 = vunpack.c.l.b16 %v288
  %v2036 = vunpack.c.l.b16 %v289
  %v2037 = vunpack.c.l.b16 %v290
  %v2038 = vunpack.c.l.b16 %v291
  %v2039 = vunpack.c.l.b16 %v292
  %v2040 = vunpack.c.l.b16 %v293
  %v2041 = vunpack.c.l.b16 %v294
  %v2042 = vunpack.c.l.b16 %v295
  %v2043 = vunpack.c.l.b16 %v296
  %v2044 = vunpack.c.l.b16 %v297
  %v2045 = vunpack.c.l.b16 %v298
  %v2046 = vunpack.c.l.b16 %v299
  %v2047 = vunpack.c.l.b16 %v300
  %v2048 = vunpack.c.l.b16 %v301
  %v2049 = vunpack.c.l.b16 %v302
  %v2050 = vunpack.c.l.b16 %v303
  %v2051 = vunpack.c.l.b16 %v304
  %v2052 = vunpack.c.l.b16 %v305
  %v2053 = vunpack.c.l.b16 %v306
  %v2054 = vunpack.c.l.b16 %v307
  %v2055 = vunpack.c.l.b16 %v308
  %v2056 = vunpack.c.l.b16 %v309
  %v2057 = vunpack.c.l.b16 %v310
  %v2058 = vunpack.c.l.b16 %v311
  %v2059 = vunpack.c.l.b16 %v312
  %v2060 = vunpack.c.l.b16 %v313
  %v2061 = vunpack.c.l.b16 %v314
  %v2062 = vunpack.c.l.b16 %v315
  %v2063 = vunpack.c.l.b16 %v316
  %v2064 = vunpack.c.l.b16 %v317
  %v2065 = vunpack.c.l.b16 %v318
  %v2066 = vunpack.c.l.b16 %v319
  %v2067 = vunpack.c.l.b16 %v320
  %v2068 = vunpack.c.l.b16 %v321
  %v2069 = vunpack.c.l.b16 %v322
  %v2070 = vunpack.c.l.b16 %v323
  %v2071 = vunpack.c.l.b16 %v324
  %v2072 = vunpack.c.l.b16 %v325
  %v2073 = vunpack.c.l.b16 %v326
  %v2074 = vunpack.c.l.b16 %v327
  %v2075 = vunpack.c.l.b16 %v328
  %v2076 = vunpack.c.l.b16 %v329
  %v2077 = vunpack.c.l.b16 %v330
  %v2078 = vunpack.c.l.b16 %v331
  %v2079 = vunpack.c.l.b16 %v332
  %v2080 = vunpack.c.l.b16 %v333
  %v2081 = vunpack.c.l.b16 %v334
  %v2082 = vunpack.c.l.b16 %v335
  %v2083 = vunpack.c.l.b16 %v336
  %v2084 = vunpack.c.l.b16 %v337
  %v2085 = vunpack.c.l.b16 %v338
  %v2086 = vunpack.c.l.b16 %v339
  %v2087 = vunpack.c.l.b16 %v340
  %v2088 = vunpack.c.l.b16 %v341
  %v2089 = vunpack.c.l.b16 %v342
  %v2090 = vunpack.c.l.b16 %v343
  %v2091 = vunpack.c.l.b16 %v344
  %v2092 = vunpack.c.l.b16 %v345
  %v2093 = vunpack.c.l.b16 %v346
  %v2094 = vunpack.c.l.b16 %v347
  %v2095 = vunpack.c.l.b16 %v348
  %v2096 = vunpack.c.l.b16 %v349
  %v2097 = vunpack.c.l.b16 %v350
  %v2098 = vunpack.c.l.b16 %v351
  %v2099 = vunpack.c.l.b16 %v352
  %v2100 = vunpack.c.l.b16 %v353
  %v2101 = vunpack.c.l.b16 %v354
  %v2102 = vunpack.c.l.b16 %v355
  %v2103 = vunpack.c.l.b16 %v356
  %v2104 = vunpack.c.l.b16 %v357
  %v2105 = vunpack.c.l.b16 %v358
  %v2106 = vunpack.c.l.b16 %v359
  %v2107 = vunpack.c.l.b16 %v360
  %v2108 = vunpack.c.l.b16 %v361
  %v2109 = vunpack.c.l.b16 %v362
  %v2110 = vunpack.c.l.b16 %v363
  %v2111 = vunpack.c.l.b16 %v364
  %v2112 = vunpack.c.l.b16 %v365
  %v2113 = vunpack.c.l.b16 %v366
  %v2114 = vunpack.c.l.b16 %v367
  %v2115 = vunpack.c.l.b16 %v368
  %v2116 = vunpack.c.l.b16 %v369
  %v2117 = vunpack.c.l.b16 %v370
  %v2118 = vunpack.c.l.b16 %v371
  %v2119 = vunpack.c.l.b16 %v372
  %v2120 = vunpack.c.l.b16 %v373
  %v2121 = vunpack.c.l.b16 %v374
  %v2122 = vunpack.c.l.b16 %v375
  %v2123 = vunpack.c.l.b16 %v376
  %v2124 = vunpack.c.l.b16 %v377
  %v2125 = vunpack.c.l.b16 %v378
  %v2126 = vunpack.c.l.b16 %v379
  %v2127 = vunpack.c.l.b16 %v380
  %v2128 = vunpack.c.l.b16 %v381
  %v2129 = vunpack.c.l.b16 %v382
  %v2130 = vunpack.c.l.b16 %v383
  %v2131 = vunpack.c.l.b16 %v384
  %v2132 = vunpack.c.l.b16 %v385
  %v2133 = vunpack.c.l.b16 %v386
  %v2134 = vunpack.c.l.b16 %v387
  %v2135 = vunpack.c.l.b16 %v388
  %v2136 = vunpack.c.l.b16 %v389
  %v2137 = vunpack.c.l.b16 %v390
  %v2138 = vunpack.c.l.b16 %v391
  %v2139 = vunpack.c.l.b16 %v392
  %v2140 = vunpack.c.l.b16 %v393
  %v2141 = vunpack.c.l.b16 %v394
  %v2142 = vunpack.c.l.b16 %v395
  %v2143 = vunpack.c.l.b16 %v396
  %v2144 = vunpack.c.l.b16 %v397
  %v2145 = vunpack.c.l.b16 %v398
  %v2146 = vunpack.c.l.b16 %v399
  %v2147 = vunpack.c.l.b16 %v400
  %v2148 = vunpack.c.l.b16 %v401
  %v2149 = vunpack.c.l.b16 %v402
  %v2150 = vunpack.c.l.b16 %v403
  %v2151 = vunpack.c.l.b16 %v404
  %v2152 = vunpack.c.l.b16 %v405
  %v2153 = vunpack.c.l.b16 %v406
  %v2154 = vunpack.c.l.b16 %v407
  %v2155 = vunpack.c.l.b16 %v408
  %v2156 = vunpack.c.l.b16 %v409
  %v2157 = vunpack.c.l.b16 %v410
  %v2158 = vunpack.c.l.b16 %v411
  %v2159 = vunpack.c.l.b16 %v412
  %v2160 = vunpack.c.l.b16 %v413
  %v2161 = vunpack.c.l.b16 %v414
  %v2162 = vunpack.c.l.b16 %v415
  %v2163 = vunpack.c.l.b16 %v416
  %v2164 = vunpack.c.l.b16 %v417
  %v2165 = vunpack.c.l.b16 %v418
  %v2166 = vunpack.c.l.b16 %v419
  %v2167 = vunpack.c.l.b16 %v420
  %v2168 = vunpack.c.l.b16 %v421
  %v2169 = vunpack.c.l.b16 %v422
  %v2170 = vunpack.c.l.b16 %v423
  %v2171 = vunpack.c.l.b16 %v424
  %v2172 = vunpack.c.l.b16 %v425
  %v2173 = vunpack.c.l.b16 %v426
  %v2174 = vunpack.c.l.b16 %v427
  %v2175 = vunpack.c.l.b16 %v428
  %v2176 = vunpack.c.l.b16 %v429
  %v2177 = vunpack.c.l.b16 %v430
  %v2178 = vunpack.c.l.b16 %v431
  %v2179 = vunpack.c.l.b16 %v432
  %v2180 = vunpack.c.l.b16 %v433
  %v2181 = vunpack.c.l.b16 %v434
  %v2182 = vunpack.c.l.b16 %v435
  %v2183 = vunpack.c.l.b16 %v436
  %v2184 = vunpack.c.l.b16 %v437
  %v2185 = vunpack.c.l.b16 %v438
  %v2186 = vunpack.c.l.b16 %v439
  %v2187 = vunpack.c.l.b16 %v440
  %v2188 = vunpack.c.l.b16 %v441
  %v2189 = vunpack.c.l.b16 %v442
  %v2190 = vunpack.c.l.b16 %v443
  %v2191 = vunpack.c.l.b16 %v444
  %v2192 = vunpack.c.l.b16 %v445
  %v2193 = vunpack.c.l.b16 %v446
  %v2194 = vunpack.c.l.b16 %v447
  %v2195 = vunpack.c.l.b16 %v448
  %v2196 = vunpack.c.l.b16 %v449
  %v2197 = vunpack.c.l.b16 %v450
  %v2198 = vunpack.c.l.b16 %v451
  %v2199 = vunpack.c.l.b16 %v452
  %v2200 = vunpack.c.l.b16 %v453
  %v2201 = vunpack.c.l.b16 %v454
  %v2202 = vunpack.c.l.b16 %v455
  %v2203 = vunpack.c.l.b16 %v456
  %v2204 = vunpack.c.l.b16 %v457
  %v2205 = vunpack.c.l.b16 %v458
  %v2206 = vunpack.c.l.b16 %v459
  %v2207 = vunpack.c.l.b16 %v460
  %v2208 = vunpack.c.l.b16 %v461
  %v2209 = vunpack.c.l.b16 %v462
  %v2210 = vunpack.c.l.b16 %v463
  %v2211 = vunpack.c.l.b16 %v464
  %v2212 = vunpack.c.l.b16 %v465
  %v2213 = vunpack.c.l.b16 %v466
  %v2214 = vunpack.c.l.b16 %v467
  %v2215 = vunpack.c.l.b16 %v468
  %v2216 = vunpack.c.l.b16 %v469
  %v2217 = vunpack.c.l.b16 %v470
  %v2218 = vunpack.c.l.b16 %v471
  %v2219 = vunpack.c.l.b16 %v472
  %v2220 = vunpack.c.l.b16 %v473
  %v2221 = vunpack.c.l.b16 %v474
  %v2222 = vunpack.c.l.b16 %v475
  %v2223 = vunpack.c.l.b16 %v476
  %v2224 = vunpack.c.l.b16 %v477
  %v2225 = vunpack.c.l.b16 %v478
  %v2226 = vunpack.c.l.b16 %v479
  %v2227 = vunpack.c.l.b16 %v480
  %v2228 = vunpack.c.l.b16 %v481
  %v2229 = vunpack.c.l.b16 %v482
  %v2230 = vunpack.c.l.b16 %v483
  %v2231 = vunpack.c.l.b16 %v484
  %v2232 = vunpack.c.l.b16 %v485
  %v2233 = vunpack.c.l.b16 %v486
  %v2234 = vunpack.c.l.b16 %v487
  %v2235 = vunpack.c.l.b16 %v488
  %v2236 = vunpack.c.l.b16 %v489
  %v2237 = vunpack.c.l.b16 %v490
  %v2238 = vunpack.c.l.b16 %v491
  %v2239 = vunpack.c.l.b16 %v492
  %v2240 = vunpack.c.l.b16 %v493
  %v2241 = vunpack.c.l.b16 %v494
  %v2242 = vunpack.c.l.b16 %v495
  %v2243 = vunpack.c.l.b16 %v496
  %v2244 = vunpack.c.l.b16 %v497
  %v2245 = vunpack.c.l.b16 %v498
  %v2246 = vunpack.c.l.b16 %v499
  %v2247 = vunpack.c.l.b16 %v500
  %v2248 = vunpack.c.l.b16 %v501
  %v2249 = vunpack.c.l.b16 %v502
  %v2250 = vunpack.c.l.b16 %v503
  %v2251 = vunpack.c.l.b16 %v504
  %v2252 = vunpack.c.l.b16 %v505
  %v2253 = vunpack.c.l.b16 %v506
  %v2254 = vunpack.c.l.b16 %v507
  %v2255 = vunpack.c.l.b16 %v508
  %v2256 = vunpack.c.l.b16 %v509
  %v2257 = vunpack.c.l.b16 %v510
  %v2258 = vunpack.c.l.b16 %v511
  %v2259 = vunpack.c.l.b16 %v512
  %v2260 = vunpack.c.l.b16 %v513
  %v2261 = vunpack.c.l.b16 %v514
  %v2262 = vunpack.c.l.b16 %v515
  %v2263 = vunpack.c.l.b16 %v516
  %v2264 = vunpack.c.l.b16 %v517
  %v2265 = vunpack.c.l.b16 %v518
  %v2266 = vunpack.c.l.b16 %v519
  %v2267 = vunpack.c.l.b16 %v520
  %v2268 = vunpack.c.l.b16 %v521
  %v2269 = vunpack.c.l.b16 %v522
  %v2270 = vunpack.c.l.b16 %v523
  %v2271 = vunpack.c.l.b16 %v524
  %v2272 = vunpack.c.l.b16 %v525
  %v2273 = vunpack.c.l.b16 %v526
  %v2274 = vunpack.c.l.b16 %v527
  %v2275 = vunpack.c.l.b16 %v528
  %v2276 = vunpack.c.l.b16 %v529
  %v2277 = vunpack.c.l.b16 %v530
  %v2278 = vunpack.c.l.b16 %v531
  %v2279 = vunpack.c.l.b16 %v532
  %v2280 = vunpack.c.l.b16 %v533
  %v2281 = vunpack.c.l.b16 %v534
  %v2282 = vunpack.c.l.b16 %v535
  %v2283 = vunpack.c.l.b16 %v536
  %v2284 = vunpack.c.l.b16 %v537
  %v2285 = vunpack.c.l.b16 %v538
  %v2286 = vunpack.c.l.b16 %v539
  %v2287 = vunpack.c.l.b16 %v540
  %v2288 = vunpack.c.l.b16 %v541
  %v2289 = vunpack.c.l.b16 %v542
  %v2290 = vunpack.c.l.b16 %v543
  %v2291 = vunpack.c.l.b16 %v544
  %v2292 = vunpack.c.l.b16 %v545
  %v2293 = vunpack.c.l.b16 %v546
  %v2294 = vunpack.c.l.b16 %v547
  %v2295 = vunpack.c.l.b16 %v548
  %v2296 = vunpack.c.l.b16 %v549
  %v2297 = vunpack.c.l.b16 %v550
  %v2298 = vunpack.c.l.b16 %v551
  %v2299 = vunpack.c.l.b16 %v552
  %v2300 = vunpack.c.l.b16 %v553
  %v2301 = vunpack.c.l.b16 %v554
  %v2302 = vunpack.c.l.b16 %v555
  %v2303 = vunpack.c.l.b16 %v556
  %v2304 = vunpack.c.l.b16 %v557
  %v2305 = vunpack.c.l.b16 %v558
  %v2306 = vunpack.c.l.b16 %v559
  %v2307 = vunpack.c.l.b16 %v560
  %v2308 = vunpack.c.l.b16 %v561
  %v2309 = vunpack.c.l.b16 %v562
  %v2310 = vunpack.c.l.b16 %v563
  %v2311 = vunpack.c.l.b16 %v564
  %v2312 = vunpack.c.l.b16 %v565
  %v2313 = vunpack.c.l.b16 %v566
  %v2314 = vunpack.c.l.b16 %v567
  %v2315 = vunpack.c.l.b16 %v568
  %v2316 = vunpack.c.l.b16 %v569
  %v2317 = vunpack.c.l.b16 %v570
  %v2318 = vunpack.c.l.b16 %v571
  %v2319 = vunpack.c.l.b16 %v572
  %v2320 = vunpack.c.l.b16 %v573
  %v2321 = vunpack.c.l.b16 %v574
  %v2322 = vunpack.c.l.b16 %v575
  %v2323 = vunpack.c.l.b16 %v576
  %v2324 = vunpack.c.l.b16 %v577
  %v2325 = vunpack.c.l.b16 %v578
  %v2326 = vunpack.c.l.b16 %v579
  %v2327 = vunpack.c.l.b16 %v580
  %v2328 = vunpack.c.l.b16 %v581
  %v2329 = vunpack.c.l.b16 %v582
  %v2330 = vunpack.c.l.b16 %v583
  %v2331 = vunpack.c.l.b16 %v584
  %v2332 = vunpack.c.l.b16 %v585
  %v2333 = vunpack.c.l.b16 %v586
  %v2334 = vunpack.c.l.b16 %v587
  %v2335 = vunpack.c.l.b16 %v588
  %v2336 = vunpack.c.l.b16 %v589
  %v2337 = vunpack.c.l.b16 %v590
  %v2338 = vunpack.c.l.b16 %v591
  %v2339 = vunpack.c.l.b16 %v592
  %v2340 = vunpack.c.l.b16 %v593
  %v2341 = vunpack.c.l.b16 %v594
  %v2342 = vunpack.c.l.b16 %v595
  %v2343 = vunpack.c.l.b16 %v596
  %v2344 = vunpack.c.l.b16 %v597
  %v2345 = vunpack.c.l.b16 %v598
  %v2346 = vunpack.c.l.b16 %v599
  %v2347 = vunpack.c.l.b16 %v600
  %v2348 = vunpack.c.l.b16 %v601
  %v2349 = vunpack.c.l.b16 %v602
  %v2350 = vunpack.c.l.b16 %v603
  %v2351 = vunpack.c.l.b16 %v604
  %v2352 = vunpack.c.l.b16 %v605
  %v2353 = vunpack.c.l.b16 %v606
  %v2354 = vunpack.c.l.b16 %v607
  %v2355 = vunpack.c.l.b16 %v608
  %v2356 = vunpack.c.l.b16 %v609
  %v2357 = vunpack.c.l.b16 %v610
  %v2358 = vunpack.c.l.b16 %v611
  %v2359 = vunpack.c.l.b16 %v612
  %v2360 = vunpack.c.l.b16 %v613
  %v2361 = vunpack.c.l.b16 %v614
  %v2362 = vunpack.c.l.b16 %v615
  %v2363 = vunpack.c.l.b16 %v616
  %v2364 = vunpack.c.l.b16 %v617
  %v2365 = vunpack.c.l.b16 %v618
  %v2366 = vunpack.c.l.b16 %v619
  %v2367 = vunpack.c.l.b16 %v620
  %v2368 = vunpack.c.l.b16 %v621
  %v2369 = vunpack.c.l.b16 %v622
  %v2370 = vunpack.c.l.b16 %v623
  %v2371 = vunpack.c.l.b16 %v624
  %v2372 = vunpack.c.l.b16 %v625
  %v2373 = vunpack.c.l.b16 %v626
  %v2374 = vunpack.c.l.b16 %v627
  %v2375 = vunpack.c.l.b16 %v628
  %v2376 = vunpack.c.l.b16 %v629
  %v2377 = vunpack.c.l.b16 %v630
  %v2378 = vunpack.c.l.b16 %v631
  %v2379 = vunpack.c.l.b16 %v632
  %v2380 = vunpack.c.l.b16 %v633
  %v2381 = vunpack.c.l.b16 %v634
  %v2382 = vunpack.c.l.b16 %v635
  %v2383 = vunpack.c.l.b16 %v636
  %v2384 = vunpack.c.l.b16 %v637
  %v2385 = vunpack.c.l.b16 %v638
  %v2386 = vunpack.c.l.b16 %v639
  %v2387 = vunpack.c.l.b16 %v640
  %v2388 = vunpack.c.l.b16 %v641
  %v2389 = vunpack.c.l.b16 %v642
  %v2390 = vunpack.c.l.b16 %v643
  %v2391 = vunpack.c.l.b16 %v644
  %v2392 = vunpack.c.l.b16 %v645
  %v2393 = vunpack.c.l.b16 %v646
  %v2394 = vunpack.c.l.b16 %v647
  %v2395 = vunpack.c.l.b16 %v648
  %v2396 = vunpack.c.l.b16 %v649
  %v2397 = vunpack.c.l.b16 %v650
  %v2398 = vunpack.c.l.b16 %v651
  %v2399 = vunpack.c.l.b16 %v652
  %v2400 = vunpack.c.l.b16 %v653
  %v2401 = vunpack.c.l.b16 %v654
  %v2402 = vunpack.c.l.b16 %v655
  %v2403 = vunpack.c.l.b16 %v656
  %v2404 = vunpack.c.l.b16 %v657
  %v2405 = vunpack.c.l.b16 %v658
  %v2406 = vunpack.c.l.b16 %v659
  %v2407 = vunpack.c.l.b16 %v660
  %v2408 = vunpack.c.l.b16 %v661
  %v2409 = vunpack.c.l.b16 %v662
  %v2410 = vunpack.c.l.b16 %v663
  %v2411 = vunpack.c.l.b16 %v664
  %v2412 = vunpack.c.l.b16 %v665
  %v2413 = vunpack.c.l.b16 %v666
  %v2414 = vunpack.c.l.b16 %v667
  %v2415 = vunpack.c.l.b16 %v668
  %v2416 = vunpack.c.l.b16 %v669
  %v2417 = vunpack.c.l.b16 %v670
  %v2418 = vunpack.c.l.b16 %v671
  %v2419 = vunpack.c.l.b16 %v672
  %v2420 = vunpack.c.l.b16 %v673
  %v2421 = vunpack.c.l.b16 %v674
  %v2422 = vunpack.c.l.b16 %v675
  %v2423 = vunpack.c.l.b16 %v676
  %v2424 = vunpack.c.l.b16 %v677
  %v2425 = vunpack.c.l.b16 %v678
  %v2426 = vunpack.c.l.b16 %v679
  %v2427 = vunpack.c.l.b16 %v680
  %v2428 = vunpack.c.l.b16 %v681
  %v2429 = vunpack.c.l.b16 %v682
  %v2430 = vunpack.c.l.b16 %v683
  %v2431 = vunpack.c.l.b16 %v684
  %v2432 = vunpack.c.l.b16 %v685
  %v2433 = vunpack.c.l.b16 %v686
  %v2434 = vunpack.c.l.b16 %v687
  %v2435 = vunpack.c.l.b16 %v688
  %v2436 = vunpack.c.l.b16 %v689
  %v2437 = vunpack.c.l.b16 %v690
  %v2438 = vunpack.c.l.b16 %v691
  %v2439 = vunpack.c.l.b16 %v692
  %v2440 = vunpack.c.l.b16 %v693
  %v2441 = vunpack.c.l.b16 %v694
  %v2442 = vunpack.c.l.b16 %v695
  %v2443 = vunpack.c.l.b16 %v696
  %v2444 = vunpack.c.l.b16 %v697
  %v2445 = vunpack.c.l.b16 %v698
  %v2446 = vunpack.c.l.b16 %v699
  %v2447 = vunpack.c.l.b16 %v700
  %v2448 = vunpack.c.l.b16 %v701
  %v2449 = vunpack.c.l.b16 %v702
  %v2450 = vunpack.c.l.b16 %v703
  %v2451 = vunpack.c.l.b16 %v704
  %v2452 = vunpack.c.l.b16 %v705
  %v2453 = vunpack.c.l.b16 %v706
  %v2454 = vunpack.c.l.b16 %v707
  %v2455 = vunpack.c.l.b16 %v708
  %v2456 = vunpack.c.l.b16 %v709
  %v2457 = vunpack.c.l.b16 %v710
  %v2458 = vunpack.c.l.b16 %v711
  %v2459 = vunpack.c.l.b16 %v712
  %v2460 = vunpack.c.l.b16 %v713
  %v2461 = vunpack.c.l.b16 %v714
  %v2462 = vunpack.c.l.b16 %v715
  %v2463 = vunpack.c.l.b16 %v716
  %v2464 = vunpack.c.l.b16 %v717
  %v2465 = vunpack.c.l.b16 %v718
  %v2466 = vunpack.c.l.b16 %v719
  %v2467 = vunpack.c.l.b16 %v720
  %v2468 = vunpack.c.l.b16 %v721
  %v2469 = vunpack.c.l.b16 %v722
  %v2470 = vunpack.c.l.b16 %v723
  %v2471 = vunpack.c.l.b16 %v724
  %v2472 = vunpack.c.l.b16 %v725
  %v2473 = vunpack.c.l.b16 %v726
  %v2474 = vunpack.c.l.b16 %v727
  %v2475 = vunpack.c.l.b16 %v728
  %v2476 = vunpack.c.l.b16 %v729
  %v2477 = vunpack.c.l.b16 %v730
  %v2478 = vunpack.c.l.b16 %v731
  %v2479 = vunpack.c.l.b16 %v732
  %v2480 = vunpack.c.l.b16 %v733
  %v2481 = vunpack.c.l.b16 %v734
  %v2482 = vunpack.c.l.b16 %v735
  %v2483 = vunpack.c.l.b16 %v736
  %v2484 = vunpack.c.l.b16 %v737
  %v2485 = vunpack.c.l.b16 %v738
  %v2486 = vunpack.c.l.b16 %v739
  %v2487 = vunpack.c.l.b16 %v740
  %v2488 = vunpack.c.l.b16 %v741
  %v2489 = vunpack.c.l.b16 %v742
  %v2490 = vunpack.c.l.b16 %v743
  %v2491 = vunpack.c.l.b16 %v744
  %v2492 = vunpack.c.l.b16 %v745
  %v2493 = vunpack.c.l.b16 %v746
  %v2494 = vunpack.c.l.b16 %v747
  %v2495 = vunpack.c.l.b16 %v748
  %v2496 = vunpack.c.l.b16 %v749
  %v2497 = vunpack.c.l.b16 %v750
  %v2498 = vunpack.c.l.b16 %v751
  %v2499 = vunpack.c.l.b16 %v752
  %v2500 = vunpack.c.l.b16 %v753
  %v2501 = vunpack.c.l.b16 %v754
  %v2502 = vunpack.c.l.b16 %v755
  %v2503 = vunpack.c.l.b16 %v756
  %v2504 = vunpack.c.l.b16 %v757
  %v2505 = vunpack.c.l.b16 %v758
  %v2506 = vunpack.c.l.b16 %v759
  %v2507 = vunpack.c.l.b16 %v760
  %v2508 = vunpack.c.l.b16 %v761
  %v2509 = vunpack.c.l.b16 %v762
  %v2510 = vunpack.c.l.b16 %v763
  %v2511 = vunpack.c.l.b16 %v764
  %v2512 = vunpack.c.l.b16 %v765
  %v2513 = vunpack.c.l.b16 %v766
  %v2514 = vunpack.c.l.b16 %v767
  %v2515 = vunpack.c.l.b16 %v768
  %v2516 = vunpack.c.l.b16 %v769
  %v2517 = vunpack.c.l.b16 %v770
  %v2518 = vunpack.c.l.b16 %v771
  %v2519 = vunpack.c.l.b16 %v772
  %v2520 = vunpack.c.l.b16 %v773
  %v2521 = vunpack.c.l.b16 %v774
  %v2522 = vunpack.c.l.b16 %v775
  %v2523 = vunpack.c.l.b16 %v776
  %v2524 = vunpack.c.l.b16 %v777
  %v2525 = vunpack.c.l.b16 %v778
  %v2526 = vunpack.c.l.b16 %v779
  %v2527 = vunpack.c.l.b16 %v780
  %v2528 = vunpack.c.l.b16 %v781
  %v2529 = vunpack.c.l.b16 %v782
  %v2530 = vunpack.c.l.b16 %v783
  %v2531 = vunpack.c.l.b16 %v784
  %v2532 = vunpack.c.l.b16 %v785
  %v2533 = vunpack.c.l.b16 %v786
  %v2534 = vunpack.c.l.b16 %v787
  %v2535 = vunpack.c.l.b16 %v788
  %v2536 = vunpack.c.l.b16 %v789
  %v2537 = vunpack.c.l.b16 %v790
  %v2538 = vunpack.c.l.b16 %v791
  %v2539 = vunpack.c.l.b16 %v792
  %v2540 = vunpack.c.l.b16 %v793
  %v2541 = vunpack.c.l.b16 %v794
  %v2542 = vunpack.c.l.b16 %v795
  %v2543 = vunpack.c.l.b16 %v796
  %v2544 = vunpack.c.l.b16 %v797
  %v2545 = vunpack.c.l.b16 %v798
  %v2546 = vunpack.c.l.b16 %v799
  %v2547 = vunpack.c.l.b16 %v800
  %v2548 = vunpack.c.l.b16 %v801
  %v2549 = vunpack.c.l.b16 %v802
  %v2550 = vunpack.c.l.b16 %v803
  %v2551 = vunpack.c.l.b16 %v804
  %v2552 = vunpack.c.l.b16 %v805
  %v2553 = vunpack.c.l.b16 %v806
  %v2554 = vunpack.c.l.b16 %v807
  %v2555 = vunpack.c.l.b16 %v808
  %v2556 = vunpack.c.l.b16 %v809
  %v2557 = vunpack.c.l.b16 %v810
  %v2558 = vunpack.c.l.b16 %v811
  %v2559 = vunpack.c.l.b16 %v812
  %v2560 = vunpack.c.l.b16 %v813
  %v2561 = vunpack.c.l.b16 %v814
  %v2562 = vunpack.c.l.b16 %v815
  %v2563 = vunpack.c.l.b16 %v816
  %v2564 = vunpack.c.l.b16 %v817
  %v2565 = vunpack.c.l.b16 %v818
  %v2566 = vunpack.c.l.b16 %v819
  %v2567 = vunpack.c.l.b16 %v820
  %v2568 = vunpack.c.l.b16 %v821
  %v2569 = vunpack.c.l.b16 %v822
  %v2570 = vunpack.c.l.b16 %v823
  %v2571 = vunpack.c.l.b16 %v824
  %v2572 = vunpack.c.l.b16 %v825
  %v2573 = vunpack.c.l.b16 %v826
  %v2574 = vunpack.c.l.b16 %v827
  %v2575 = vunpack.c.l.b16 %v828
  %v2576 = vunpack.c.l.b16 %v829
  %v2577 = vpack.c.b16 %v1794, %v1793
  %v2578 = vpack.c.b16 %v1796, %v1795
  %v2579 = vpack.c.b16 %v1798, %v1797
  %v2580 = vpack.c.b16 %v1800, %v1799
  %v2581 = vpack.c.b16 %v1802, %v1801
  %v2582 = vpack.c.b16 %v1804, %v1803
  %v2583 = vpack.c.b16 %v1806, %v1805
  %v2584 = vpack.c.b16 %v1808, %v1807
  %v2585 = vpack.c.b16 %v1810, %v1809
  %v2586 = vpack.c.b16 %v1812, %v1811
  %v2587 = vpack.c.b16 %v1814, %v1813
  %v2588 = vpack.c.b16 %v1816, %v1815
  %v2589 = vpack.c.b16 %v1818, %v1817
  %v2590 = vpack.c.b16 %v1820, %v1819
  %v2591 = vpack.c.b16 %v1822, %v1821
  %v2592 = vpack.c.b16 %v1824, %v1823
  %v2593 = vpack.c.b16 %v1826, %v1825
  %v2594 = vpack.c.b16 %v1828, %v1827
  %v2595 = vpack.c.b16 %v1830, %v1829
  %v2596 = vpack.c.b16 %v1832, %v1831
  %v2597 = vpack.c.b16 %v1834, %v1833
  %v2598 = vpack.c.b16 %v1836, %v1835
  %v2599 = vpack.c.b16 %v1838, %v1837
  %v2600 = vpack.c.b16 %v1840, %v1839
  %v2601 = vpack.c.b16 %v1842, %v1841
  %v2602 = vpack.c.b16 %v1844, %v1843
  %v2603 = vpack.c.b16 %v1846, %v1845
  %v2604 = vpack.c.b16 %v1848, %v1847
  %v2605 = vpack.c.b16 %v1850, %v1849
  %v2606 = vpack.c.b16 %v1852, %v1851
  %v2607 = vpack.c.b16 %v1854, %v1853
  %v2608 = vpack.c.b16 %v1856, %v1855
  %v2609 = vpack.c.b16 %v1858, %v1857
  %v2610 = vpack.c.b16 %v1860, %v1859
  %v2611 = vpack.c.b16 %v1862, %v1861
  %v2612 = vpack.c.b16 %v1864, %v1863
  %v2613 = vpack.c.b16 %v1866, %v1865
  %v2614 = vpack.c.b16 %v1868, %v1867
  %v2615 = vpack.c.b16 %v1870, %v1869
  %v2616 = vpack.c.b16 %v1872, %v1871
  %v2617 = vpack.c.b16 %v1874, %v1873
  %v2618 = vpack.c.b16 %v1876, %v1875
  %v2619 = vpack.c.b16 %v1878, %v1877
  %v2620 = vpack.c.b16 %v1880, %v1879
  %v2621 = vpack.c.b16 %v1882, %v1881
  %v2622 = vpack.c.b16 %v1884, %v1883
  %v2623 = vpack.c.b16 %v1886, %v1885
  %v2624 = vpack.c.b16 %v1888, %v1887
  %v2625 = vpack.c.b16 %v1890, %v1889
  %v2626 = vpack.c.b16 %v1892, %v1891
  %v2627 = vpack.c.b16 %v1894, %v1893
  %v2628 = vpack.c.b16 %v1896, %v1895
  %v2629 = vpack.c.b16 %v1898, %v1897
  %v2630 = vpack.c.b16 %v1900, %v1899
  %v2631 = vpack.c.b16 %v1902, %v1901
  %v2632 = vpack.c.b16 %v1904, %v1903
  %v2633 = vpack.c.b16 %v1906, %v1905
  %v2634 = vpack.c.b16 %v1908, %v1907
  %v2635 = vpack.c.b16 %v1910, %v1909
  %v2636 = vpack.c.b16 %v1912, %v1911
  %v2637 = vpack.c.b16 %v1914, %v1913
  %v2638 = vpack.c.b16 %v1916, %v1915
  %v2639 = vpack.c.b16 %v1918, %v1917
  %v2640 = vpack.c.b16 %v1920, %v1919
  %v2641 = vpack.c.b16 %v1922, %v1921
  %v2642 = vpack.c.b16 %v1924, %v1923
  %v2643 = vpack.c.b16 %v1926, %v1925
  %v2644 = vpack.c.b16 %v1928, %v1927
  %v2645 = vpack.c.b16 %v1930, %v1929
  %v2646 = vpack.c.b16 %v1932, %v1931
  %v2647 = vpack.c.b16 %v1934, %v1933
  %v2648 = vpack.c.b16 %v1936, %v1935
  %v2649 = vpack.c.b16 %v1938, %v1937
  %v2650 = vpack.c.b16 %v1940, %v1939
  %v2651 = vpack.c.b16 %v1942, %v1941
  %v2652 = vpack.c.b16 %v1944, %v1943
  %v2653 = vpack.c.b16 %v1946, %v1945
  %v2654 = vpack.c.b16 %v1948, %v1947
  %v2655 = vpack.c.b16 %v1950, %v1949
  %v2656 = vpack.c.b16 %v1952, %v1951
  %v2657 = vpack.c.b16 %v1954, %v1953
  %v2658 = vpack.c.b16 %v1956, %v1955
  %v2659 = vpack.c.b16 %v1958, %v1957
  %v2660 = vpack.c.b16 %v1960, %v1959
  %v2661 = vpack.c.b16 %v1962, %v1961
  %v2662 = vpack.c.b16 %v1964, %v1963
  %v2663 = vpack.c.b16 %v1966, %v1965
  %v2664 = vpack.c.b16 %v1968, %v1967
  %v2665 = vpack.c.b16 %v1970, %v1969
  %v2666 = vpack.c.b16 %v1972, %v1971
  %v2667 = vpack.c.b16 %v1974, %v1973
  %v2668 = vpack.c.b16 %v1976, %v1975
  %v2669 = vpack.c.b16 %v1978, %v1977
  %v2670 = vpack.c.b16 %v1980, %v1979
  %v2671 = vpack.c.b16 %v1982, %v1981
  %v2672 = vpack.c.b16 %v1984, %v1983
  %v2673 = vpack.c.b16 %v1986, %v1985
  %v2674 = vpack.c.b16 %v1988, %v1987
  %v2675 = vpack.c.b16 %v1990, %v1989
  %v2676 = vpack.c.b16 %v1992, %v1991
  %v2677 = vpack.c.b16 %v1994, %v1993
  %v2678 = vpack.c.b16 %v1996, %v1995
  %v2679 = vpack.c.b16 %v1998, %v1997
  %v2680 = vpack.c.b16 %v2000, %v1999
  %v2681 = vpack.c.b16 %v2002, %v2001
  %v2682 = vpack.c.b16 %v2004, %v2003
  %v2683 = vpack.c.b16 %v2006, %v2005
  %v2684 = vpack.c.b16 %v2008, %v2007
  %v2685 = vpack.c.b16 %v2010, %v2009
  %v2686 = vpack.c.b16 %v2012, %v2011
  %v2687 = vpack.c.b16 %v2014, %v2013
  %v2688 = vpack.c.b16 %v2016, %v2015
  %v2689 = vpack.c.b16 %v2018, %v2017
  %v2690 = vpack.c.b16 %v2020, %v2019
  %v2691 = vpack.c.b16 %v2022, %v2021
  %v2692 = vpack.c.b16 %v2024, %v2023
  %v2693 = vpack.c.b16 %v2026, %v2025
  %v2694 = vpack.c.b16 %v2028, %v2027
  %v2695 = vpack.c.b16 %v2030, %v2029
  %v2696 = vpack.c.b16 %v2032, %v2031
  %v2697 = vpack.c.b16 %v2034, %v2033
  %v2698 = vpack.c.b16 %v2036, %v2035
  %v2699 = vpack.c.b16 %v2038, %v2037
  %v2700 = vpack.c.b16 %v2040, %v2039
  %v2701 = vpack.c.b16 %v2042, %v2041
  %v2702 = vpack.c.b16 %v2044, %v2043
  %v2703 = vpack.c.b16 %v2046, %v2045
  %v2704 = vpack.c.b16 %v2048, %v2047
  %v2705 = vpack.c.b16 %v2050, %v2049
  %v2706 = vpack.c.b16 %v2052, %v2051
  %v2707 = vpack.c.b16 %v2054, %v2053
  %v2708 = vpack.c.b16 %v2056, %v2055
  %v2709 = vpack.c.b16 %v2058, %v2057
  %v2710 = vpack.c.b16 %v2060, %v2059
  %v2711 = vpack.c.b16 %v2062, %v2061
  %v2712 = vpack.c.b16 %v2064, %v2063
  %v2713 = vpack.c.b16 %v2066, %v2065
  %v2714 = vpack.c.b16 %v2068, %v2067
  %v2715 = vpack.c.b16 %v2070, %v2069
  %v2716 = vpack.c.b16 %v2072, %v2071
  %v2717 = vpack.c.b16 %v2074, %v2073
  %v2718 = vpack.c.b16 %v2076, %v2075
  %v2719 = vpack.c.b16 %v2078, %v2077
  %v2720 = vpack.c.b16 %v2080, %v2079
  %v2721 = vpack.c.b16 %v2082, %v2081
  %v2722 = vpack.c.b16 %v2084, %v2083
  %v2723 = vpack.c.b16 %v2086, %v2085
  %v2724 = vpack.c.b16 %v2088, %v2087
  %v2725 = vpack.c.b16 %v2090, %v2089
  %v2726 = vpack.c.b16 %v2092, %v2091
  %v2727 = vpack.c.b16 %v2094, %v2093
  %v2728 = vpack.c.b16 %v2096, %v2095
  %v2729 = vpack.c.b16 %v2098, %v2097
  %v2730 = vpack.c.b16 %v2100, %v2099
  %v2731 = vpack.c.b16 %v2102, %v2101
  %v2732 = vpack.c.b16 %v2104, %v2103
  %v2733 = vpack.c.b16 %v2106, %v2105
  %v2734 = vpack.c.b16 %v2108, %v2107
  %v2735 = vpack.c.b16 %v2110, %v2109
  %v2736 = vpack.c.b16 %v2112, %v2111
  %v2737 = vpack.c.b16 %v2114, %v2113
  %v2738 = vpack.c.b16 %v2116, %v2115
  %v2739 = vpack.c.b16 %v2118, %v2117
  %v2740 = vpack.c.b16 %v2120, %v2119
  %v2741 = vpack.c.b16 %v2122, %v2121
  %v2742 = vpack.c.b16 %v2124, %v2123
  %v2743 = vpack.c.b16 %v2126, %v2125
  %v2744 = vpack.c.b16 %v2128, %v2127
  %v2745 = vpack.c.b16 %v2130, %v2129
  %v2746 = vpack.c.b16 %v2132, %v2131
  %v2747 = vpack.c.b16 %v2134, %v2133
  %v2748 = vpack.c.b16 %v2136, %v2135
  %v2749 = vpack.c.b16 %v2138, %v2137
  %v2750 = vpack.c.b16 %v2140, %v2139
  %v2751 = vpack.c.b16 %v2142, %v2141
  %v2752 = vpack.c.b16 %v2144, %v2143
  %v2753 = vpack.c.b16 %v2146, %v2145
  %v2754 = vpack.c.b16 %v2148, %v2147
  %v2755 = vpack.c.b16 %v2150, %v2149
  %v2756 = vpack.c.b16 %v2152, %v2151
  %v2757 = vpack.c.b16 %v2154, %v2153
  %v2758 = vpack.c.b16 %v2156, %v2155
  %v2759 = vpack.c.b16 %v2158, %v2157
  %v2760 = vpack.c.b16 %v2160, %v2159
  %v2761 = vpack.c.b16 %v2162, %v2161
  %v2762 = vpack.c.b16 %v2164, %v2163
  %v2763 = vpack.c.b16 %v2166, %v2165
  %v2764 = vpack.c.b16 %v2168, %v2167
  %v2765 = vpack.c.b16 %v2170, %v2169
  %v2766 = vpack.c.b16 %v2172, %v2171
  %v2767 = vpack.c.b16 %v2174, %v2173
  %v2768 = vpack.c.b16 %v2176, %v2175
  %v2769 = vpack.c.b16 %v2178, %v2177
  %v2770 = vpack.c.b16 %v2180, %v2179
  %v2771 = vpack.c.b16 %v2182, %v2181
  %v2772 = vpack.c.b16 %v2184, %v2183
  %v2773 = vpack.c.b16 %v2186, %v2185
  %v2774 = vpack.c.b16 %v2188, %v2187
  %v2775 = vpack.c.b16 %v2190, %v2189
  %v2776 = vpack.c.b16 %v2192, %v2191
  %v2777 = vpack.c.b16 %v2194, %v2193
  %v2778 = vpack.c.b16 %v2196, %v2195
  %v2779 = vpack.c.b16 %v2198, %v2197
  %v2780 = vpack.c.b16 %v2200, %v2199
  %v2781 = vpack.c.b16 %v2202, %v2201
  %v2782 = vpack.c.b16 %v2204, %v2203
  %v2783 = vpack.c.b16 %v2206, %v2205
  %v2784 = vpack.c.b16 %v2208, %v2207
  %v2785 = vpack.c.b16 %v2210, %v2209
  %v2786 = vpack.c.b16 %v2212, %v2211
  %v2787 = vpack.c.b16 %v2214, %v2213
  %v2788 = vpack.c.b16 %v2216, %v2215
  %v2789 = vpack.c.b16 %v2218, %v2217
  %v2790 = vpack.c.b16 %v2220, %v2219
  %v2791 = vpack.c.b16 %v2222, %v2221
  %v2792 = vpack.c.b16 %v2224, %v2223
  %v2793 = vpack.c.b16 %v2226, %v2225
  %v2794 = vpack.c.b16 %v2228, %v2227
  %v2795 = vpack.c.b16 %v2230, %v2229
  %v2796 = vpack.c.b16 %v2232, %v2231
  %v2797 = vpack.c.b16 %v2234, %v2233
  %v2798 = vpack.c.b16 %v2236, %v2235
  %v2799 = vpack.c.b16 %v2238, %v2237
  %v2800 = vpack.c.b16 %v2240, %v2239
  %v2801 = vpack.c.b16 %v2242, %v2241
  %v2802 = vpack.c.b16 %v2244, %v2243
  %v2803 = vpack.c.b16 %v2246, %v2245
  %v2804 = vpack.c.b16 %v2248, %v2247
  %v2805 = vpack.c.b16 %v2250, %v2249
  %v2806 = vpack.c.b16 %v2252, %v2251
  %v2807 = vpack.c.b16 %v2254, %v2253
  %v2808 = vpack.c.b16 %v2256, %v2255
  %v2809 = vpack.c.b16 %v2258, %v2257
  %v2810 = vpack.c.b16 %v2260, %v2259
  %v2811 = vpack.c.b16 %v2262, %v2261
  %v2812 = vpack.c.b16 %v2264, %v2263
  %v2813 = vpack.c.b16 %v2266, %v2265
  %v2814 = vpack.c.b16 %v2268, %v2267
  %v2815 = vpack.c.b16 %v2270, %v2269
  %v2816 = vpack.c.b16 %v2272, %v2271
  %v2817 = vpack.c.b16 %v2274, %v2273
  %v2818 = vpack.c.b16 %v2276, %v2275
  %v2819 = vpack.c.b16 %v2278, %v2277
  %v2820 = vpack.c.b16 %v2280, %v2279
  %v2821 = vpack.c.b16 %v2282, %v2281
  %v2822 = vpack.c.b16 %v2284, %v2283
  %v2823 = vpack.c.b16 %v2286, %v2285
  %v2824 = vpack.c.b16 %v2288, %v2287
  %v2825 = vpack.c.b16 %v2290, %v2289
  %v2826 = vpack.c.b16 %v2292, %v2291
  %v2827 = vpack.c.b16 %v2294, %v2293
  %v2828 = vpack.c.b16 %v2296, %v2295
  %v2829 = vpack.c.b16 %v2298, %v2297
  %v2830 = vpack.c.b16 %v2300, %v2299
  %v2831 = vpack.c.b16 %v2302, %v2301
  %v2832 = vpack.c.b16 %v2304, %v2303
  %v2833 = vpack.c.b16 %v2306, %v2305
  %v2834 = vpack.c.b16 %v2308, %v2307
  %v2835 = vpack.c.b16 %v2310, %v2309
  %v2836 = vpack.c.b16 %v2312, %v2311
  %v2837 = vpack.c.b16 %v2314, %v2313
  %v2838 = vpack.c.b16 %v2316, %v2315
  %v2839 = vpack.c.b16 %v2318, %v2317
  %v2840 = vpack.c.b16 %v2320, %v2319
  %v2841 = vpack.c.b16 %v2322, %v2321
  %v2842 = vpack.c.b16 %v2324, %v2323
  %v2843 = vpack.c.b16 %v2326, %v2325
  %v2844 = vpack.c.b16 %v2328, %v2327
  %v2845 = vpack.c.b16 %v2330, %v2329
  %v2846 = vpack.c.b16 %v2332, %v2331
  %v2847 = vpack.c.b16 %v2334, %v2333
  %v2848 = vpack.c.b16 %v2336, %v2335
  %v2849 = vpack.c.b16 %v2338, %v2337
  %v2850 = vpack.c.b16 %v2340, %v2339
  %v2851 = vpack.c.b16 %v2342, %v2341
  %v2852 = vpack.c.b16 %v2344, %v2343
  %v2853 = vpack.c.b16 %v2346, %v2345
  %v2854 = vpack.c.b16 %v2348, %v2347
  %v2855 = vpack.c.b16 %v2350, %v2349
  %v2856 = vpack.c.b16 %v2352, %v2351
  %v2857 = vpack.c.b16 %v2354, %v2353
  %v2858 = vpack.c.b16 %v2356, %v2355
  %v2859 = vpack.c.b16 %v2358, %v2357
  %v2860 = vpack.c.b16 %v2360, %v2359
  %v2861 = vpack.c.b16 %v2362, %v2361
  %v2862 = vpack.c.b16 %v2364, %v2363
  %v2863 = vpack.c.b16 %v2366, %v2365
  %v2864 = vpack.c.b16 %v2368, %v2367
  %v2865 = vpack.c.b16 %v2370, %v2369
  %v2866 = vpack.c.b16 %v2372, %v2371
  %v2867 = vpack.c.b16 %v2374, %v2373
  %v2868 = vpack.c.b16 %v2376, %v2375
  %v2869 = vpack.c.b16 %v2378, %v2377
  %v2870 = vpack.c.b16 %v2380, %v2379
  %v2871 = vpack.c.b16 %v2382, %v2381
  %v2872 = vpack.c.b16 %v2384, %v2383
  %v2873 = vpack.c.b16 %v2386, %v2385
  %v2874 = vpack.c.b16 %v2388, %v2387
  %v2875 = vpack.c.b16 %v2390, %v2389
  %v2876 = vpack.c.b16 %v2392, %v2391
  %v2877 = vpack.c.b16 %v2394, %v2393
  %v2878 = vpack.c.b16 %v2396, %v2395
  %v2879 = vpack.c.b16 %v2398, %v2397
  %v2880 = vpack.c.b16 %v2400, %v2399
  %v2881 = vpack.c.b16 %v2402, %v2401
  %v2882 = vpack.c.b16 %v2404, %v2403
  %v2883 = vpack.c.b16 %v2406, %v2405
  %v2884 = vpack.c.b16 %v2408, %v2407
  %v2885 = vpack.c.b16 %v2410, %v2409
  %v2886 = vpack.c.b16 %v2412, %v2411
  %v2887 = vpack.c.b16 %v2414, %v2413
  %v2888 = vpack.c.b16 %v2416, %v2415
  %v2889 = vpack.c.b16 %v2418, %v2417
  %v2890 = vpack.c.b16 %v2420, %v2419
  %v2891 = vpack.c.b16 %v2422, %v2421
  %v2892 = vpack.c.b16 %v2424, %v2423
  %v2893 = vpack.c.b16 %v2426, %v2425
  %v2894 = vpack.c.b16 %v2428, %v2427
  %v2895 = vpack.c.b16 %v2430, %v2429
  %v2896 = vpack.c.b16 %v2432, %v2431
  %v2897 = vpack.c.b16 %v2434, %v2433
  %v2898 = vpack.c.b16 %v2436, %v2435
  %v2899 = vpack.c.b16 %v2438, %v2437
  %v2900 = vpack.c.b16 %v2440, %v2439
  %v2901 = vpack.c.b16 %v2442, %v2441
  %v2902 = vpack.c.b16 %v2444, %v2443
  %v2903 = vpack.c.b16 %v2446, %v2445
  %v2904 = vpack.c.b16 %v2448, %v2447
  %v2905 = vpack.c.b16 %v2450, %v2449
  %v2906 = vpack.c.b16 %v2452, %v2451
  %v2907 = vpack.c.b16 %v2454, %v2453
  %v2908 = vpack.c.b16 %v2456, %v2455
  %v2909 = vpack.c.b16 %v2458, %v2457
  %v2910 = vpack.c.b16 %v2460, %v2459
  %v2911 = vpack.c.b16 %v2462, %v2461
  %v2912 = vpack.c.b16 %v2464, %v2463
  %v2913 = vpack.c.b16 %v2466, %v2465
  %v2914 = vpack.c.b16 %v2468, %v2467
  %v2915 = vpack.c.b16 %v2470, %v2469
  %v2916 = vpack.c.b16 %v2472, %v2471
  %v2917 = vpack.c.b16 %v2474, %v2473
  %v2918 = vpack.c.b16 %v2476, %v2475
  %v2919 = vpack.c.b16 %v2478, %v2477
  %v2920 = vpack.c.b16 %v2480, %v2479
  %v2921 = vpack.c.b16 %v2482, %v2481
  %v2922 = vpack.c.b16 %v2484, %v2483
  %v2923 = vpack.c.b16 %v2486, %v2485
  %v2924 = vpack.c.b16 %v2488, %v2487
  %v2925 = vpack.c.b16 %v2490, %v2489
  %v2926 = vpack.c.b16 %v2492, %v2491
  %v2927 = vpack.c.b16 %v2494, %v2493
  %v2928 = vpack.c.b16 %v2496, %v2495
  %v2929 = vpack.c.b16 %v2498, %v2497
  %v2930 = vpack.c.b16 %v2500, %v2499
  %v2931 = vpack.c.b16 %v2502, %v2501
  %v2932 = vpack.c.b16 %v2504, %v2503
  %v2933 = vpack.c.b16 %v2506, %v2505
  %v2934 = vpack.c.b16 %v2508, %v2507
  %v2935 = vpack.c.b16 %v2510, %v2509
  %v2936 = vpack.c.b16 %v2512, %v2511
  %v2937 = vpack.c.b16 %v2514, %v2513
  %v2938 = vpack.c.b16 %v2516, %v2515
  %v2939 = vpack.c.b16 %v2518, %v2517
  %v2940 = vpack.c.b16 %v2520, %v2519
  %v2941 = vpack.c.b16 %v2522, %v2521
  %v2942 = vpack.c.b16 %v2524, %v2523
  %v2943 = vpack.c.b16 %v2526, %v2525
  %v2944 = vpack.c.b16 %v2528, %v2527
  %v2945 = vpack.c.b16 %v2530, %v2529
  %v2946 = vpack.c.b16 %v2532, %v2531
  %v2947 = vpack.c.b16 %v2534, %v2533
  %v2948 = vpack.c.b16 %v2536, %v2535
  %v2949 = vpack.c.b16 %v2538, %v2537
  %v2950 = vpack.c.b16 %v2540, %v2539
  %v2951 = vpack.c.b16 %v2542, %v2541
  %v2952 = vpack.c.b16 %v2544, %v2543
  %v2953 = vpack.c.b16 %v2546, %v2545
  %v2954 = vpack.c.b16 %v2548, %v2547
  %v2955 = vpack.c.b16 %v2550, %v2549
  %v2956 = vpack.c.b16 %v2552, %v2551
  %v2957 = vpack.c.b16 %v2554, %v2553
  %v2958 = vpack.c.b16 %v2556, %v2555
  %v2959 = vpack.c.b16 %v2558, %v2557
  %v2960 = vpack.c.b16 %v2560, %v2559
  %v2961 = vpack.c.b16 %v2562, %v2561
  %v2962 = vpack.c.b16 %v2564, %v2563
  %v2963 = vpack.c.b16 %v2566, %v2565
  %v2964 = vpack.c.b16 %v2568, %v2567
  %v2965 = vpack.c.b16 %v2570, %v2569
  %v2966 = vpack.c.b16 %v2572, %v2571
  %v2967 = vpack.c.b16 %v2574, %v2573
  %v2968 = vpack.c.b16 %v2576, %v2575
  %3361 = vmatprep.subr.bf16.mxu0 0
  %3362 = vmatpush1.bf16.msra.mxu0 %v2584
  %3363 = vmatprep.subr.bf16.mxu0 0
  %3364 = vmatpush1.bf16.msra.mxu0 %v2583
  %3365 = vmatprep.subr.bf16.mxu0 0
  %3366 = vmatpush1.bf16.msra.mxu0 %v2582
  %3367 = vmatprep.subr.bf16.mxu0 0
  %3368 = vmatpush1.bf16.msra.mxu0 %v2581
  %3369 = vmatprep.subr.bf16.mxu0 0
  %3370 = vmatpush1.bf16.msra.mxu0 %v2580
  %3371 = vmatprep.subr.bf16.mxu0 0
  %3372 = vmatpush1.bf16.msra.mxu0 %v2579
  %3373 = vmatprep.subr.bf16.mxu0 0
  %3374 = vmatpush1.bf16.msra.mxu0 %v2578
  %3375 = vmatprep.subr.bf16.mxu0 0
  %3376 = vmatpush1.bf16.msra.mxu0 %v2577
  %3377 = vmatprep.subr.bf16.mxu0 0
  %3378 = vmatpush2.bf16.msra.mxu0 %v2592
  %3379 = vmatprep.subr.bf16.mxu0 0
  %3380 = vmatpush2.bf16.msra.mxu0 %v2591
  %3381 = vmatprep.subr.bf16.mxu0 0
  %3382 = vmatpush2.bf16.msra.mxu0 %v2590
  %3383 = vmatprep.subr.bf16.mxu0 0
  %3384 = vmatpush2.bf16.msra.mxu0 %v2589
  %3385 = vmatprep.subr.bf16.mxu0 0
  %3386 = vmatpush2.bf16.msra.mxu0 %v2588
  %3387 = vmatprep.subr.bf16.mxu0 0
  %3388 = vmatpush2.bf16.msra.mxu0 %v2587
  %3389 = vmatprep.subr.bf16.mxu0 0
  %3390 = vmatpush2.bf16.msra.mxu0 %v2586
  %3391 = vmatprep.subr.bf16.mxu0 0
  %3392 = vmatpush2.bf16.msra.mxu0 %v2585
  %3393 = vmatprep.mubr.bf16.mxu0 %v912
  %3394 = vmatmul.mubr.bf16.gmra.mxu0 %v911
  %v3395 = vpop.f32.mrf.mxu0
  %v3396 = vadd.f32 %v835, %v3395
  %v3397 = vpop.f32.mrf.mxu0
  %v3398 = vpop.f32.mrf.mxu0
  %v3399 = vpop.f32.mrf.mxu0
  %3400 = vdwg.mxu0
  %3401 = vmatprep.subr.bf16.mxu0 0
  %3402 = vmatpush1.bf16.msra.mxu0 %v2600
  %3403 = vmatprep.subr.bf16.mxu0 0
  %3404 = vmatpush1.bf16.msra.mxu0 %v2599
  %3405 = vmatprep.subr.bf16.mxu0 0
  %3406 = vmatpush1.bf16.msra.mxu0 %v2598
  %3407 = vmatprep.subr.bf16.mxu0 0
  %3408 = vmatpush1.bf16.msra.mxu0 %v2597
  %3409 = vmatprep.subr.bf16.mxu0 0
  %3410 = vmatpush1.bf16.msra.mxu0 %v2596
  %3411 = vmatprep.subr.bf16.mxu0 0
  %3412 = vmatpush1.bf16.msra.mxu0 %v2595
  %3413 = vmatprep.subr.bf16.mxu0 0
  %3414 = vmatpush1.bf16.msra.mxu0 %v2594
  %3415 = vmatprep.subr.bf16.mxu0 0
  %3416 = vmatpush1.bf16.msra.mxu0 %v2593
  %3417 = vmatprep.subr.bf16.mxu0 0
  %3418 = vmatpush2.bf16.msra.mxu0 %v2608
  %3419 = vmatprep.subr.bf16.mxu0 0
  %3420 = vmatpush2.bf16.msra.mxu0 %v2607
  %3421 = vmatprep.subr.bf16.mxu0 0
  %3422 = vmatpush2.bf16.msra.mxu0 %v2606
  %3423 = vmatprep.subr.bf16.mxu0 0
  %3424 = vmatpush2.bf16.msra.mxu0 %v2605
  %3425 = vmatprep.subr.bf16.mxu0 0
  %3426 = vmatpush2.bf16.msra.mxu0 %v2604
  %3427 = vmatprep.subr.bf16.mxu0 0
  %3428 = vmatpush2.bf16.msra.mxu0 %v2603
  %3429 = vmatprep.subr.bf16.mxu0 0
  %3430 = vmatpush2.bf16.msra.mxu0 %v2602
  %3431 = vmatprep.subr.bf16.mxu0 0
  %3432 = vmatpush2.bf16.msra.mxu0 %v2601
  %3433 = vmatprep.mubr.bf16.mxu0 %v914
  %3434 = vmatmul.mubr.bf16.gmra.mxu0 %v913
  %v3435 = vpop.f32.mrf.mxu0
  %v3436 = vadd.f32 %v3396, %v3435
  %v3437 = vpop.f32.mrf.mxu0
  %v3438 = vpop.f32.mrf.mxu0
  %v3439 = vpop.f32.mrf.mxu0
  %3440 = vdwg.mxu0
  %3441 = vmatprep.subr.bf16.mxu0 0
  %3442 = vmatpush1.bf16.msra.mxu0 %v2616
  %3443 = vmatprep.subr.bf16.mxu0 0
  %3444 = vmatpush1.bf16.msra.mxu0 %v2615
  %3445 = vmatprep.subr.bf16.mxu0 0
  %3446 = vmatpush1.bf16.msra.mxu0 %v2614
  %3447 = vmatprep.subr.bf16.mxu0 0
  %3448 = vmatpush1.bf16.msra.mxu0 %v2613
  %3449 = vmatprep.subr.bf16.mxu0 0
  %3450 = vmatpush1.bf16.msra.mxu0 %v2612
  %3451 = vmatprep.subr.bf16.mxu0 0
  %3452 = vmatpush1.bf16.msra.mxu0 %v2611
  %3453 = vmatprep.subr.bf16.mxu0 0
  %3454 = vmatpush1.bf16.msra.mxu0 %v2610
  %3455 = vmatprep.subr.bf16.mxu0 0
  %3456 = vmatpush1.bf16.msra.mxu0 %v2609
  %3457 = vmatprep.subr.bf16.mxu0 0
  %3458 = vmatpush2.bf16.msra.mxu0 %v2624
  %3459 = vmatprep.subr.bf16.mxu0 0
  %3460 = vmatpush2.bf16.msra.mxu0 %v2623
  %3461 = vmatprep.subr.bf16.mxu0 0
  %3462 = vmatpush2.bf16.msra.mxu0 %v2622
  %3463 = vmatprep.subr.bf16.mxu0 0
  %3464 = vmatpush2.bf16.msra.mxu0 %v2621
  %3465 = vmatprep.subr.bf16.mxu0 0
  %3466 = vmatpush2.bf16.msra.mxu0 %v2620
  %3467 = vmatprep.subr.bf16.mxu0 0
  %3468 = vmatpush2.bf16.msra.mxu0 %v2619
  %3469 = vmatprep.subr.bf16.mxu0 0
  %3470 = vmatpush2.bf16.msra.mxu0 %v2618
  %3471 = vmatprep.subr.bf16.mxu0 0
  %3472 = vmatpush2.bf16.msra.mxu0 %v2617
  %3473 = vmatprep.mubr.bf16.mxu0 %v916
  %3474 = vmatmul.mubr.bf16.gmra.mxu0 %v915
  %v3475 = vpop.f32.mrf.mxu0
  %v3476 = vadd.f32 %v3436, %v3475
  %v3477 = vpop.f32.mrf.mxu0
  %v3478 = vpop.f32.mrf.mxu0
  %v3479 = vpop.f32.mrf.mxu0
  %3480 = vdwg.mxu0
  %3481 = vmatprep.subr.bf16.mxu0 0
  %3482 = vmatpush1.bf16.msra.mxu0 %v2632
  %3483 = vmatprep.subr.bf16.mxu0 0
  %3484 = vmatpush1.bf16.msra.mxu0 %v2631
  %3485 = vmatprep.subr.bf16.mxu0 0
  %3486 = vmatpush1.bf16.msra.mxu0 %v2630
  %3487 = vmatprep.subr.bf16.mxu0 0
  %3488 = vmatpush1.bf16.msra.mxu0 %v2629
  %3489 = vmatprep.subr.bf16.mxu0 0
  %3490 = vmatpush1.bf16.msra.mxu0 %v2628
  %3491 = vmatprep.subr.bf16.mxu0 0
  %3492 = vmatpush1.bf16.msra.mxu0 %v2627
  %3493 = vmatprep.subr.bf16.mxu0 0
  %3494 = vmatpush1.bf16.msra.mxu0 %v2626
  %3495 = vmatprep.subr.bf16.mxu0 0
  %3496 = vmatpush1.bf16.msra.mxu0 %v2625
  %3497 = vmatprep.subr.bf16.mxu0 0
  %3498 = vmatpush2.bf16.msra.mxu0 %v2640
  %3499 = vmatprep.subr.bf16.mxu0 0
  %3500 = vmatpush2.bf16.msra.mxu0 %v2639
  %3501 = vmatprep.subr.bf16.mxu0 0
  %3502 = vmatpush2.bf16.msra.mxu0 %v2638
  %3503 = vmatprep.subr.bf16.mxu0 0
  %3504 = vmatpush2.bf16.msra.mxu0 %v2637
  %3505 = vmatprep.subr.bf16.mxu0 0
  %3506 = vmatpush2.bf16.msra.mxu0 %v2636
  %3507 = vmatprep.subr.bf16.mxu0 0
  %3508 = vmatpush2.bf16.msra.mxu0 %v2635
  %3509 = vmatprep.subr.bf16.mxu0 0
  %3510 = vmatpush2.bf16.msra.mxu0 %v2634
  %3511 = vmatprep.subr.bf16.mxu0 0
  %3512 = vmatpush2.bf16.msra.mxu0 %v2633
  %3513 = vmatprep.mubr.bf16.mxu0 %v918
  %3514 = vmatmul.mubr.bf16.gmra.mxu0 %v917
  %v3515 = vpop.f32.mrf.mxu0
  %v3516 = vadd.f32 %v3476, %v3515
  %v3517 = vpop.f32.mrf.mxu0
  %v3518 = vpop.f32.mrf.mxu0
  %v3519 = vpop.f32.mrf.mxu0
  %3520 = vdwg.mxu0
  %3521 = vmatprep.subr.bf16.mxu0 0
  %3522 = vmatpush1.bf16.msra.mxu0 %v2648
  %3523 = vmatprep.subr.bf16.mxu0 0
  %3524 = vmatpush1.bf16.msra.mxu0 %v2647
  %3525 = vmatprep.subr.bf16.mxu0 0
  %3526 = vmatpush1.bf16.msra.mxu0 %v2646
  %3527 = vmatprep.subr.bf16.mxu0 0
  %3528 = vmatpush1.bf16.msra.mxu0 %v2645
  %3529 = vmatprep.subr.bf16.mxu0 0
  %3530 = vmatpush1.bf16.msra.mxu0 %v2644
  %3531 = vmatprep.subr.bf16.mxu0 0
  %3532 = vmatpush1.bf16.msra.mxu0 %v2643
  %3533 = vmatprep.subr.bf16.mxu0 0
  %3534 = vmatpush1.bf16.msra.mxu0 %v2642
  %3535 = vmatprep.subr.bf16.mxu0 0
  %3536 = vmatpush1.bf16.msra.mxu0 %v2641
  %3537 = vmatprep.subr.bf16.mxu0 0
  %3538 = vmatpush2.bf16.msra.mxu0 %v2656
  %3539 = vmatprep.subr.bf16.mxu0 0
  %3540 = vmatpush2.bf16.msra.mxu0 %v2655
  %3541 = vmatprep.subr.bf16.mxu0 0
  %3542 = vmatpush2.bf16.msra.mxu0 %v2654
  %3543 = vmatprep.subr.bf16.mxu0 0
  %3544 = vmatpush2.bf16.msra.mxu0 %v2653
  %3545 = vmatprep.subr.bf16.mxu0 0
  %3546 = vmatpush2.bf16.msra.mxu0 %v2652
  %3547 = vmatprep.subr.bf16.mxu0 0
  %3548 = vmatpush2.bf16.msra.mxu0 %v2651
  %3549 = vmatprep.subr.bf16.mxu0 0
  %3550 = vmatpush2.bf16.msra.mxu0 %v2650
  %3551 = vmatprep.subr.bf16.mxu0 0
  %3552 = vmatpush2.bf16.msra.mxu0 %v2649
  %3553 = vmatprep.mubr.bf16.mxu0 %v920
  %3554 = vmatmul.mubr.bf16.gmra.mxu0 %v919
  %v3555 = vpop.f32.mrf.mxu0
  %v3556 = vadd.f32 %v3516, %v3555
  %v3557 = vpop.f32.mrf.mxu0
  %v3558 = vpop.f32.mrf.mxu0
  %v3559 = vpop.f32.mrf.mxu0
  %3560 = vdwg.mxu0
  %3561 = vmatprep.subr.bf16.mxu0 0
  %3562 = vmatpush1.bf16.msra.mxu0 %v2664
  %3563 = vmatprep.subr.bf16.mxu0 0
  %3564 = vmatpush1.bf16.msra.mxu0 %v2663
  %3565 = vmatprep.subr.bf16.mxu0 0
  %3566 = vmatpush1.bf16.msra.mxu0 %v2662
  %3567 = vmatprep.subr.bf16.mxu0 0
  %3568 = vmatpush1.bf16.msra.mxu0 %v2661
  %3569 = vmatprep.subr.bf16.mxu0 0
  %3570 = vmatpush1.bf16.msra.mxu0 %v2660
  %3571 = vmatprep.subr.bf16.mxu0 0
  %3572 = vmatpush1.bf16.msra.mxu0 %v2659
  %3573 = vmatprep.subr.bf16.mxu0 0
  %3574 = vmatpush1.bf16.msra.mxu0 %v2658
  %3575 = vmatprep.subr.bf16.mxu0 0
  %3576 = vmatpush1.bf16.msra.mxu0 %v2657
  %3577 = vmatprep.subr.bf16.mxu0 0
  %3578 = vmatpush2.bf16.msra.mxu0 %v2672
  %3579 = vmatprep.subr.bf16.mxu0 0
  %3580 = vmatpush2.bf16.msra.mxu0 %v2671
  %3581 = vmatprep.subr.bf16.mxu0 0
  %3582 = vmatpush2.bf16.msra.mxu0 %v2670
  %3583 = vmatprep.subr.bf16.mxu0 0
  %3584 = vmatpush2.bf16.msra.mxu0 %v2669
  %3585 = vmatprep.subr.bf16.mxu0 0
  %3586 = vmatpush2.bf16.msra.mxu0 %v2668
  %3587 = vmatprep.subr.bf16.mxu0 0
  %3588 = vmatpush2.bf16.msra.mxu0 %v2667
  %3589 = vmatprep.subr.bf16.mxu0 0
  %3590 = vmatpush2.bf16.msra.mxu0 %v2666
  %3591 = vmatprep.subr.bf16.mxu0 0
  %3592 = vmatpush2.bf16.msra.mxu0 %v2665
  %3593 = vmatprep.mubr.bf16.mxu0 %v922
  %3594 = vmatmul.mubr.bf16.gmra.mxu0 %v921
  %v3595 = vpop.f32.mrf.mxu0
  %v3596 = vadd.f32 %v3556, %v3595
  %v3597 = vpop.f32.mrf.mxu0
  %v3598 = vpop.f32.mrf.mxu0
  %v3599 = vpop.f32.mrf.mxu0
  %3600 = vdwg.mxu0
  %3601 = vmatprep.subr.bf16.mxu0 0
  %3602 = vmatpush1.bf16.msra.mxu0 %v2680
  %3603 = vmatprep.subr.bf16.mxu0 0
  %3604 = vmatpush1.bf16.msra.mxu0 %v2679
  %3605 = vmatprep.subr.bf16.mxu0 0
  %3606 = vmatpush1.bf16.msra.mxu0 %v2678
  %3607 = vmatprep.subr.bf16.mxu0 0
  %3608 = vmatpush1.bf16.msra.mxu0 %v2677
  %3609 = vmatprep.subr.bf16.mxu0 0
  %3610 = vmatpush1.bf16.msra.mxu0 %v2676
  %3611 = vmatprep.subr.bf16.mxu0 0
  %3612 = vmatpush1.bf16.msra.mxu0 %v2675
  %3613 = vmatprep.subr.bf16.mxu0 0
  %3614 = vmatpush1.bf16.msra.mxu0 %v2674
  %3615 = vmatprep.subr.bf16.mxu0 0
  %3616 = vmatpush1.bf16.msra.mxu0 %v2673
  %3617 = vmatprep.subr.bf16.mxu0 0
  %3618 = vmatpush2.bf16.msra.mxu0 %v2688
  %3619 = vmatprep.subr.bf16.mxu0 0
  %3620 = vmatpush2.bf16.msra.mxu0 %v2687
  %3621 = vmatprep.subr.bf16.mxu0 0
  %3622 = vmatpush2.bf16.msra.mxu0 %v2686
  %3623 = vmatprep.subr.bf16.mxu0 0
  %3624 = vmatpush2.bf16.msra.mxu0 %v2685
  %3625 = vmatprep.subr.bf16.mxu0 0
  %3626 = vmatpush2.bf16.msra.mxu0 %v2684
  %3627 = vmatprep.subr.bf16.mxu0 0
  %3628 = vmatpush2.bf16.msra.mxu0 %v2683
  %3629 = vmatprep.subr.bf16.mxu0 0
  %3630 = vmatpush2.bf16.msra.mxu0 %v2682
  %3631 = vmatprep.subr.bf16.mxu0 0
  %3632 = vmatpush2.bf16.msra.mxu0 %v2681
  %3633 = vmatprep.mubr.bf16.mxu0 %v924
  %3634 = vmatmul.mubr.bf16.gmra.mxu0 %v923
  %v3635 = vpop.f32.mrf.mxu0
  %v3636 = vadd.f32 %v3596, %v3635
  %v3637 = vpop.f32.mrf.mxu0
  %v3638 = vpop.f32.mrf.mxu0
  %v3639 = vpop.f32.mrf.mxu0
  %3640 = vdwg.mxu0
  %3641 = vmatprep.subr.bf16.mxu0 0
  %3642 = vmatpush1.bf16.msra.mxu0 %v2696
  %3643 = vmatprep.subr.bf16.mxu0 0
  %3644 = vmatpush1.bf16.msra.mxu0 %v2695
  %3645 = vmatprep.subr.bf16.mxu0 0
  %3646 = vmatpush1.bf16.msra.mxu0 %v2694
  %3647 = vmatprep.subr.bf16.mxu0 0
  %3648 = vmatpush1.bf16.msra.mxu0 %v2693
  %3649 = vmatprep.subr.bf16.mxu0 0
  %3650 = vmatpush1.bf16.msra.mxu0 %v2692
  %3651 = vmatprep.subr.bf16.mxu0 0
  %3652 = vmatpush1.bf16.msra.mxu0 %v2691
  %3653 = vmatprep.subr.bf16.mxu0 0
  %3654 = vmatpush1.bf16.msra.mxu0 %v2690
  %3655 = vmatprep.subr.bf16.mxu0 0
  %3656 = vmatpush1.bf16.msra.mxu0 %v2689
  %3657 = vmatprep.subr.bf16.mxu0 0
  %3658 = vmatpush2.bf16.msra.mxu0 %v2704
  %3659 = vmatprep.subr.bf16.mxu0 0
  %3660 = vmatpush2.bf16.msra.mxu0 %v2703
  %3661 = vmatprep.subr.bf16.mxu0 0
  %3662 = vmatpush2.bf16.msra.mxu0 %v2702
  %3663 = vmatprep.subr.bf16.mxu0 0
  %3664 = vmatpush2.bf16.msra.mxu0 %v2701
  %3665 = vmatprep.subr.bf16.mxu0 0
  %3666 = vmatpush2.bf16.msra.mxu0 %v2700
  %3667 = vmatprep.subr.bf16.mxu0 0
  %3668 = vmatpush2.bf16.msra.mxu0 %v2699
  %3669 = vmatprep.subr.bf16.mxu0 0
  %3670 = vmatpush2.bf16.msra.mxu0 %v2698
  %3671 = vmatprep.subr.bf16.mxu0 0
  %3672 = vmatpush2.bf16.msra.mxu0 %v2697
  %3673 = vmatprep.mubr.bf16.mxu0 %v926
  %3674 = vmatmul.mubr.bf16.gmra.mxu0 %v925
  %v3675 = vpop.f32.mrf.mxu0
  %v3676 = vadd.f32 %v3636, %v3675
  %v3677 = vpop.f32.mrf.mxu0
  %v3678 = vpop.f32.mrf.mxu0
  %v3679 = vpop.f32.mrf.mxu0
  %3680 = vdwg.mxu0
  %3681 = vmatprep.subr.bf16.mxu0 0
  %3682 = vmatpush1.bf16.msra.mxu0 %v2712
  %3683 = vmatprep.subr.bf16.mxu0 0
  %3684 = vmatpush1.bf16.msra.mxu0 %v2711
  %3685 = vmatprep.subr.bf16.mxu0 0
  %3686 = vmatpush1.bf16.msra.mxu0 %v2710
  %3687 = vmatprep.subr.bf16.mxu0 0
  %3688 = vmatpush1.bf16.msra.mxu0 %v2709
  %3689 = vmatprep.subr.bf16.mxu0 0
  %3690 = vmatpush1.bf16.msra.mxu0 %v2708
  %3691 = vmatprep.subr.bf16.mxu0 0
  %3692 = vmatpush1.bf16.msra.mxu0 %v2707
  %3693 = vmatprep.subr.bf16.mxu0 0
  %3694 = vmatpush1.bf16.msra.mxu0 %v2706
  %3695 = vmatprep.subr.bf16.mxu0 0
  %3696 = vmatpush1.bf16.msra.mxu0 %v2705
  %3697 = vmatprep.subr.bf16.mxu0 0
  %3698 = vmatpush2.bf16.msra.mxu0 %v2720
  %3699 = vmatprep.subr.bf16.mxu0 0
  %3700 = vmatpush2.bf16.msra.mxu0 %v2719
  %3701 = vmatprep.subr.bf16.mxu0 0
  %3702 = vmatpush2.bf16.msra.mxu0 %v2718
  %3703 = vmatprep.subr.bf16.mxu0 0
  %3704 = vmatpush2.bf16.msra.mxu0 %v2717
  %3705 = vmatprep.subr.bf16.mxu0 0
  %3706 = vmatpush2.bf16.msra.mxu0 %v2716
  %3707 = vmatprep.subr.bf16.mxu0 0
  %3708 = vmatpush2.bf16.msra.mxu0 %v2715
  %3709 = vmatprep.subr.bf16.mxu0 0
  %3710 = vmatpush2.bf16.msra.mxu0 %v2714
  %3711 = vmatprep.subr.bf16.mxu0 0
  %3712 = vmatpush2.bf16.msra.mxu0 %v2713
  %3713 = vmatprep.mubr.bf16.mxu0 %v928
  %3714 = vmatmul.mubr.bf16.gmra.mxu0 %v927
  %v3715 = vpop.f32.mrf.mxu0
  %v3716 = vadd.f32 %v3676, %v3715
  %v3717 = vpop.f32.mrf.mxu0
  %v3718 = vpop.f32.mrf.mxu0
  %v3719 = vpop.f32.mrf.mxu0
  %3720 = vdwg.mxu0
  %3721 = vmatprep.subr.bf16.mxu0 0
  %3722 = vmatpush1.bf16.msra.mxu0 %v2728
  %3723 = vmatprep.subr.bf16.mxu0 0
  %3724 = vmatpush1.bf16.msra.mxu0 %v2727
  %3725 = vmatprep.subr.bf16.mxu0 0
  %3726 = vmatpush1.bf16.msra.mxu0 %v2726
  %3727 = vmatprep.subr.bf16.mxu0 0
  %3728 = vmatpush1.bf16.msra.mxu0 %v2725
  %3729 = vmatprep.subr.bf16.mxu0 0
  %3730 = vmatpush1.bf16.msra.mxu0 %v2724
  %3731 = vmatprep.subr.bf16.mxu0 0
  %3732 = vmatpush1.bf16.msra.mxu0 %v2723
  %3733 = vmatprep.subr.bf16.mxu0 0
  %3734 = vmatpush1.bf16.msra.mxu0 %v2722
  %3735 = vmatprep.subr.bf16.mxu0 0
  %3736 = vmatpush1.bf16.msra.mxu0 %v2721
  %3737 = vmatprep.subr.bf16.mxu0 0
  %3738 = vmatpush2.bf16.msra.mxu0 %v2736
  %3739 = vmatprep.subr.bf16.mxu0 0
  %3740 = vmatpush2.bf16.msra.mxu0 %v2735
  %3741 = vmatprep.subr.bf16.mxu0 0
  %3742 = vmatpush2.bf16.msra.mxu0 %v2734
  %3743 = vmatprep.subr.bf16.mxu0 0
  %3744 = vmatpush2.bf16.msra.mxu0 %v2733
  %3745 = vmatprep.subr.bf16.mxu0 0
  %3746 = vmatpush2.bf16.msra.mxu0 %v2732
  %3747 = vmatprep.subr.bf16.mxu0 0
  %3748 = vmatpush2.bf16.msra.mxu0 %v2731
  %3749 = vmatprep.subr.bf16.mxu0 0
  %3750 = vmatpush2.bf16.msra.mxu0 %v2730
  %3751 = vmatprep.subr.bf16.mxu0 0
  %3752 = vmatpush2.bf16.msra.mxu0 %v2729
  %3753 = vmatprep.mubr.bf16.mxu0 %v930
  %3754 = vmatmul.mubr.bf16.gmra.mxu0 %v929
  %v3755 = vpop.f32.mrf.mxu0
  %v3756 = vadd.f32 %v3716, %v3755
  %v3757 = vpop.f32.mrf.mxu0
  %v3758 = vpop.f32.mrf.mxu0
  %v3759 = vpop.f32.mrf.mxu0
  %3760 = vdwg.mxu0
  %3761 = vmatprep.subr.bf16.mxu0 0
  %3762 = vmatpush1.bf16.msra.mxu0 %v2744
  %3763 = vmatprep.subr.bf16.mxu0 0
  %3764 = vmatpush1.bf16.msra.mxu0 %v2743
  %3765 = vmatprep.subr.bf16.mxu0 0
  %3766 = vmatpush1.bf16.msra.mxu0 %v2742
  %3767 = vmatprep.subr.bf16.mxu0 0
  %3768 = vmatpush1.bf16.msra.mxu0 %v2741
  %3769 = vmatprep.subr.bf16.mxu0 0
  %3770 = vmatpush1.bf16.msra.mxu0 %v2740
  %3771 = vmatprep.subr.bf16.mxu0 0
  %3772 = vmatpush1.bf16.msra.mxu0 %v2739
  %3773 = vmatprep.subr.bf16.mxu0 0
  %3774 = vmatpush1.bf16.msra.mxu0 %v2738
  %3775 = vmatprep.subr.bf16.mxu0 0
  %3776 = vmatpush1.bf16.msra.mxu0 %v2737
  %3777 = vmatprep.subr.bf16.mxu0 0
  %3778 = vmatpush2.bf16.msra.mxu0 %v2752
  %3779 = vmatprep.subr.bf16.mxu0 0
  %3780 = vmatpush2.bf16.msra.mxu0 %v2751
  %3781 = vmatprep.subr.bf16.mxu0 0
  %3782 = vmatpush2.bf16.msra.mxu0 %v2750
  %3783 = vmatprep.subr.bf16.mxu0 0
  %3784 = vmatpush2.bf16.msra.mxu0 %v2749
  %3785 = vmatprep.subr.bf16.mxu0 0
  %3786 = vmatpush2.bf16.msra.mxu0 %v2748
  %3787 = vmatprep.subr.bf16.mxu0 0
  %3788 = vmatpush2.bf16.msra.mxu0 %v2747
  %3789 = vmatprep.subr.bf16.mxu0 0
  %3790 = vmatpush2.bf16.msra.mxu0 %v2746
  %3791 = vmatprep.subr.bf16.mxu0 0
  %3792 = vmatpush2.bf16.msra.mxu0 %v2745
  %3793 = vmatprep.mubr.bf16.mxu0 %v932
  %3794 = vmatmul.mubr.bf16.gmra.mxu0 %v931
  %v3795 = vpop.f32.mrf.mxu0
  %v3796 = vadd.f32 %v3756, %v3795
  %v3797 = vpop.f32.mrf.mxu0
  %v3798 = vpop.f32.mrf.mxu0
  %v3799 = vpop.f32.mrf.mxu0
  %3800 = vdwg.mxu0
  %3801 = vmatprep.subr.bf16.mxu0 0
  %3802 = vmatpush1.bf16.msra.mxu0 %v2760
  %3803 = vmatprep.subr.bf16.mxu0 0
  %3804 = vmatpush1.bf16.msra.mxu0 %v2759
  %3805 = vmatprep.subr.bf16.mxu0 0
  %3806 = vmatpush1.bf16.msra.mxu0 %v2758
  %3807 = vmatprep.subr.bf16.mxu0 0
  %3808 = vmatpush1.bf16.msra.mxu0 %v2757
  %3809 = vmatprep.subr.bf16.mxu0 0
  %3810 = vmatpush1.bf16.msra.mxu0 %v2756
  %3811 = vmatprep.subr.bf16.mxu0 0
  %3812 = vmatpush1.bf16.msra.mxu0 %v2755
  %3813 = vmatprep.subr.bf16.mxu0 0
  %3814 = vmatpush1.bf16.msra.mxu0 %v2754
  %3815 = vmatprep.subr.bf16.mxu0 0
  %3816 = vmatpush1.bf16.msra.mxu0 %v2753
  %3817 = vmatprep.subr.bf16.mxu0 0
  %3818 = vmatpush2.bf16.msra.mxu0 %v2768
  %3819 = vmatprep.subr.bf16.mxu0 0
  %3820 = vmatpush2.bf16.msra.mxu0 %v2767
  %3821 = vmatprep.subr.bf16.mxu0 0
  %3822 = vmatpush2.bf16.msra.mxu0 %v2766
  %3823 = vmatprep.subr.bf16.mxu0 0
  %3824 = vmatpush2.bf16.msra.mxu0 %v2765
  %3825 = vmatprep.subr.bf16.mxu0 0
  %3826 = vmatpush2.bf16.msra.mxu0 %v2764
  %3827 = vmatprep.subr.bf16.mxu0 0
  %3828 = vmatpush2.bf16.msra.mxu0 %v2763
  %3829 = vmatprep.subr.bf16.mxu0 0
  %3830 = vmatpush2.bf16.msra.mxu0 %v2762
  %3831 = vmatprep.subr.bf16.mxu0 0
  %3832 = vmatpush2.bf16.msra.mxu0 %v2761
  %3833 = vmatprep.mubr.bf16.mxu0 %v934
  %3834 = vmatmul.mubr.bf16.gmra.mxu0 %v933
  %v3835 = vpop.f32.mrf.mxu0
  %v3836 = vadd.f32 %v3796, %v3835
  %v3837 = vpop.f32.mrf.mxu0
  %v3838 = vpop.f32.mrf.mxu0
  %v3839 = vpop.f32.mrf.mxu0
  %3840 = vdwg.mxu0
  %3841 = vmatprep.subr.bf16.mxu0 0
  %3842 = vmatpush1.bf16.msra.mxu0 %v2776
  %3843 = vmatprep.subr.bf16.mxu0 0
  %3844 = vmatpush1.bf16.msra.mxu0 %v2775
  %3845 = vmatprep.subr.bf16.mxu0 0
  %3846 = vmatpush1.bf16.msra.mxu0 %v2774
  %3847 = vmatprep.subr.bf16.mxu0 0
  %3848 = vmatpush1.bf16.msra.mxu0 %v2773
  %3849 = vmatprep.subr.bf16.mxu0 0
  %3850 = vmatpush1.bf16.msra.mxu0 %v2772
  %3851 = vmatprep.subr.bf16.mxu0 0
  %3852 = vmatpush1.bf16.msra.mxu0 %v2771
  %3853 = vmatprep.subr.bf16.mxu0 0
  %3854 = vmatpush1.bf16.msra.mxu0 %v2770
  %3855 = vmatprep.subr.bf16.mxu0 0
  %3856 = vmatpush1.bf16.msra.mxu0 %v2769
  %3857 = vmatprep.subr.bf16.mxu0 0
  %3858 = vmatpush2.bf16.msra.mxu0 %v2784
  %3859 = vmatprep.subr.bf16.mxu0 0
  %3860 = vmatpush2.bf16.msra.mxu0 %v2783
  %3861 = vmatprep.subr.bf16.mxu0 0
  %3862 = vmatpush2.bf16.msra.mxu0 %v2782
  %3863 = vmatprep.subr.bf16.mxu0 0
  %3864 = vmatpush2.bf16.msra.mxu0 %v2781
  %3865 = vmatprep.subr.bf16.mxu0 0
  %3866 = vmatpush2.bf16.msra.mxu0 %v2780
  %3867 = vmatprep.subr.bf16.mxu0 0
  %3868 = vmatpush2.bf16.msra.mxu0 %v2779
  %3869 = vmatprep.subr.bf16.mxu0 0
  %3870 = vmatpush2.bf16.msra.mxu0 %v2778
  %3871 = vmatprep.subr.bf16.mxu0 0
  %3872 = vmatpush2.bf16.msra.mxu0 %v2777
  %3873 = vmatprep.mubr.bf16.mxu0 %v936
  %3874 = vmatmul.mubr.bf16.gmra.mxu0 %v935
  %v3875 = vpop.f32.mrf.mxu0
  %v3876 = vadd.f32 %v3836, %v3875
  %v3877 = vpop.f32.mrf.mxu0
  %v3878 = vpop.f32.mrf.mxu0
  %v3879 = vpop.f32.mrf.mxu0
  %3880 = vdwg.mxu0
  %3881 = vmatprep.subr.bf16.mxu0 0
  %3882 = vmatpush1.bf16.msra.mxu0 %v2792
  %3883 = vmatprep.subr.bf16.mxu0 0
  %3884 = vmatpush1.bf16.msra.mxu0 %v2791
  %3885 = vmatprep.subr.bf16.mxu0 0
  %3886 = vmatpush1.bf16.msra.mxu0 %v2790
  %3887 = vmatprep.subr.bf16.mxu0 0
  %3888 = vmatpush1.bf16.msra.mxu0 %v2789
  %3889 = vmatprep.subr.bf16.mxu0 0
  %3890 = vmatpush1.bf16.msra.mxu0 %v2788
  %3891 = vmatprep.subr.bf16.mxu0 0
  %3892 = vmatpush1.bf16.msra.mxu0 %v2787
  %3893 = vmatprep.subr.bf16.mxu0 0
  %3894 = vmatpush1.bf16.msra.mxu0 %v2786
  %3895 = vmatprep.subr.bf16.mxu0 0
  %3896 = vmatpush1.bf16.msra.mxu0 %v2785
  %3897 = vmatprep.subr.bf16.mxu0 0
  %3898 = vmatpush2.bf16.msra.mxu0 %v2800
  %3899 = vmatprep.subr.bf16.mxu0 0
  %3900 = vmatpush2.bf16.msra.mxu0 %v2799
  %3901 = vmatprep.subr.bf16.mxu0 0
  %3902 = vmatpush2.bf16.msra.mxu0 %v2798
  %3903 = vmatprep.subr.bf16.mxu0 0
  %3904 = vmatpush2.bf16.msra.mxu0 %v2797
  %3905 = vmatprep.subr.bf16.mxu0 0
  %3906 = vmatpush2.bf16.msra.mxu0 %v2796
  %3907 = vmatprep.subr.bf16.mxu0 0
  %3908 = vmatpush2.bf16.msra.mxu0 %v2795
  %3909 = vmatprep.subr.bf16.mxu0 0
  %3910 = vmatpush2.bf16.msra.mxu0 %v2794
  %3911 = vmatprep.subr.bf16.mxu0 0
  %3912 = vmatpush2.bf16.msra.mxu0 %v2793
  %3913 = vmatprep.mubr.bf16.mxu0 %v938
  %3914 = vmatmul.mubr.bf16.gmra.mxu0 %v937
  %v3915 = vpop.f32.mrf.mxu0
  %v3916 = vadd.f32 %v3876, %v3915
  %v3917 = vpop.f32.mrf.mxu0
  %v3918 = vpop.f32.mrf.mxu0
  %v3919 = vpop.f32.mrf.mxu0
  %3920 = vdwg.mxu0
  %3921 = vmatprep.subr.bf16.mxu0 0
  %3922 = vmatpush1.bf16.msra.mxu0 %v2808
  %3923 = vmatprep.subr.bf16.mxu0 0
  %3924 = vmatpush1.bf16.msra.mxu0 %v2807
  %3925 = vmatprep.subr.bf16.mxu0 0
  %3926 = vmatpush1.bf16.msra.mxu0 %v2806
  %3927 = vmatprep.subr.bf16.mxu0 0
  %3928 = vmatpush1.bf16.msra.mxu0 %v2805
  %3929 = vmatprep.subr.bf16.mxu0 0
  %3930 = vmatpush1.bf16.msra.mxu0 %v2804
  %3931 = vmatprep.subr.bf16.mxu0 0
  %3932 = vmatpush1.bf16.msra.mxu0 %v2803
  %3933 = vmatprep.subr.bf16.mxu0 0
  %3934 = vmatpush1.bf16.msra.mxu0 %v2802
  %3935 = vmatprep.subr.bf16.mxu0 0
  %3936 = vmatpush1.bf16.msra.mxu0 %v2801
  %3937 = vmatprep.subr.bf16.mxu0 0
  %3938 = vmatpush2.bf16.msra.mxu0 %v2816
  %3939 = vmatprep.subr.bf16.mxu0 0
  %3940 = vmatpush2.bf16.msra.mxu0 %v2815
  %3941 = vmatprep.subr.bf16.mxu0 0
  %3942 = vmatpush2.bf16.msra.mxu0 %v2814
  %3943 = vmatprep.subr.bf16.mxu0 0
  %3944 = vmatpush2.bf16.msra.mxu0 %v2813
  %3945 = vmatprep.subr.bf16.mxu0 0
  %3946 = vmatpush2.bf16.msra.mxu0 %v2812
  %3947 = vmatprep.subr.bf16.mxu0 0
  %3948 = vmatpush2.bf16.msra.mxu0 %v2811
  %3949 = vmatprep.subr.bf16.mxu0 0
  %3950 = vmatpush2.bf16.msra.mxu0 %v2810
  %3951 = vmatprep.subr.bf16.mxu0 0
  %3952 = vmatpush2.bf16.msra.mxu0 %v2809
  %3953 = vmatprep.mubr.bf16.mxu0 %v940
  %3954 = vmatmul.mubr.bf16.gmra.mxu0 %v939
  %v3955 = vpop.f32.mrf.mxu0
  %v3956 = vadd.f32 %v3916, %v3955
  %v3957 = vpop.f32.mrf.mxu0
  %v3958 = vpop.f32.mrf.mxu0
  %v3959 = vpop.f32.mrf.mxu0
  %3960 = vdwg.mxu0
  %3961 = vmatprep.subr.bf16.mxu0 0
  %3962 = vmatpush1.bf16.msra.mxu0 %v2824
  %3963 = vmatprep.subr.bf16.mxu0 0
  %3964 = vmatpush1.bf16.msra.mxu0 %v2823
  %3965 = vmatprep.subr.bf16.mxu0 0
  %3966 = vmatpush1.bf16.msra.mxu0 %v2822
  %3967 = vmatprep.subr.bf16.mxu0 0
  %3968 = vmatpush1.bf16.msra.mxu0 %v2821
  %3969 = vmatprep.subr.bf16.mxu0 0
  %3970 = vmatpush1.bf16.msra.mxu0 %v2820
  %3971 = vmatprep.subr.bf16.mxu0 0
  %3972 = vmatpush1.bf16.msra.mxu0 %v2819
  %3973 = vmatprep.subr.bf16.mxu0 0
  %3974 = vmatpush1.bf16.msra.mxu0 %v2818
  %3975 = vmatprep.subr.bf16.mxu0 0
  %3976 = vmatpush1.bf16.msra.mxu0 %v2817
  %3977 = vmatprep.subr.bf16.mxu0 0
  %3978 = vmatpush2.bf16.msra.mxu0 %v2832
  %3979 = vmatprep.subr.bf16.mxu0 0
  %3980 = vmatpush2.bf16.msra.mxu0 %v2831
  %3981 = vmatprep.subr.bf16.mxu0 0
  %3982 = vmatpush2.bf16.msra.mxu0 %v2830
  %3983 = vmatprep.subr.bf16.mxu0 0
  %3984 = vmatpush2.bf16.msra.mxu0 %v2829
  %3985 = vmatprep.subr.bf16.mxu0 0
  %3986 = vmatpush2.bf16.msra.mxu0 %v2828
  %3987 = vmatprep.subr.bf16.mxu0 0
  %3988 = vmatpush2.bf16.msra.mxu0 %v2827
  %3989 = vmatprep.subr.bf16.mxu0 0
  %3990 = vmatpush2.bf16.msra.mxu0 %v2826
  %3991 = vmatprep.subr.bf16.mxu0 0
  %3992 = vmatpush2.bf16.msra.mxu0 %v2825
  %3993 = vmatprep.mubr.bf16.mxu0 %v942
  %3994 = vmatmul.mubr.bf16.gmra.mxu0 %v941
  %v3995 = vpop.f32.mrf.mxu0
  %v3996 = vadd.f32 %v3956, %v3995
  %v3997 = vpop.f32.mrf.mxu0
  %v3998 = vpop.f32.mrf.mxu0
  %v3999 = vpop.f32.mrf.mxu0
  %4000 = vdwg.mxu0
  %4001 = vmatprep.subr.bf16.mxu0 0
  %4002 = vmatpush1.bf16.msra.mxu0 %v2840
  %4003 = vmatprep.subr.bf16.mxu0 0
  %4004 = vmatpush1.bf16.msra.mxu0 %v2839
  %4005 = vmatprep.subr.bf16.mxu0 0
  %4006 = vmatpush1.bf16.msra.mxu0 %v2838
  %4007 = vmatprep.subr.bf16.mxu0 0
  %4008 = vmatpush1.bf16.msra.mxu0 %v2837
  %4009 = vmatprep.subr.bf16.mxu0 0
  %4010 = vmatpush1.bf16.msra.mxu0 %v2836
  %4011 = vmatprep.subr.bf16.mxu0 0
  %4012 = vmatpush1.bf16.msra.mxu0 %v2835
  %4013 = vmatprep.subr.bf16.mxu0 0
  %4014 = vmatpush1.bf16.msra.mxu0 %v2834
  %4015 = vmatprep.subr.bf16.mxu0 0
  %4016 = vmatpush1.bf16.msra.mxu0 %v2833
  %4017 = vmatprep.subr.bf16.mxu0 0
  %4018 = vmatpush2.bf16.msra.mxu0 %v2848
  %4019 = vmatprep.subr.bf16.mxu0 0
  %4020 = vmatpush2.bf16.msra.mxu0 %v2847
  %4021 = vmatprep.subr.bf16.mxu0 0
  %4022 = vmatpush2.bf16.msra.mxu0 %v2846
  %4023 = vmatprep.subr.bf16.mxu0 0
  %4024 = vmatpush2.bf16.msra.mxu0 %v2845
  %4025 = vmatprep.subr.bf16.mxu0 0
  %4026 = vmatpush2.bf16.msra.mxu0 %v2844
  %4027 = vmatprep.subr.bf16.mxu0 0
  %4028 = vmatpush2.bf16.msra.mxu0 %v2843
  %4029 = vmatprep.subr.bf16.mxu0 0
  %4030 = vmatpush2.bf16.msra.mxu0 %v2842
  %4031 = vmatprep.subr.bf16.mxu0 0
  %4032 = vmatpush2.bf16.msra.mxu0 %v2841
  %4033 = vmatprep.mubr.bf16.mxu0 %v944
  %4034 = vmatmul.mubr.bf16.gmra.mxu0 %v943
  %v4035 = vpop.f32.mrf.mxu0
  %v4036 = vadd.f32 %v3996, %v4035
  %v4037 = vpop.f32.mrf.mxu0
  %v4038 = vpop.f32.mrf.mxu0
  %v4039 = vpop.f32.mrf.mxu0
  %4040 = vdwg.mxu0
  %4041 = vmatprep.subr.bf16.mxu0 0
  %4042 = vmatpush1.bf16.msra.mxu0 %v2856
  %4043 = vmatprep.subr.bf16.mxu0 0
  %4044 = vmatpush1.bf16.msra.mxu0 %v2855
  %4045 = vmatprep.subr.bf16.mxu0 0
  %4046 = vmatpush1.bf16.msra.mxu0 %v2854
  %4047 = vmatprep.subr.bf16.mxu0 0
  %4048 = vmatpush1.bf16.msra.mxu0 %v2853
  %4049 = vmatprep.subr.bf16.mxu0 0
  %4050 = vmatpush1.bf16.msra.mxu0 %v2852
  %4051 = vmatprep.subr.bf16.mxu0 0
  %4052 = vmatpush1.bf16.msra.mxu0 %v2851
  %4053 = vmatprep.subr.bf16.mxu0 0
  %4054 = vmatpush1.bf16.msra.mxu0 %v2850
  %4055 = vmatprep.subr.bf16.mxu0 0
  %4056 = vmatpush1.bf16.msra.mxu0 %v2849
  %4057 = vmatprep.subr.bf16.mxu0 0
  %4058 = vmatpush2.bf16.msra.mxu0 %v2864
  %4059 = vmatprep.subr.bf16.mxu0 0
  %4060 = vmatpush2.bf16.msra.mxu0 %v2863
  %4061 = vmatprep.subr.bf16.mxu0 0
  %4062 = vmatpush2.bf16.msra.mxu0 %v2862
  %4063 = vmatprep.subr.bf16.mxu0 0
  %4064 = vmatpush2.bf16.msra.mxu0 %v2861
  %4065 = vmatprep.subr.bf16.mxu0 0
  %4066 = vmatpush2.bf16.msra.mxu0 %v2860
  %4067 = vmatprep.subr.bf16.mxu0 0
  %4068 = vmatpush2.bf16.msra.mxu0 %v2859
  %4069 = vmatprep.subr.bf16.mxu0 0
  %4070 = vmatpush2.bf16.msra.mxu0 %v2858
  %4071 = vmatprep.subr.bf16.mxu0 0
  %4072 = vmatpush2.bf16.msra.mxu0 %v2857
  %4073 = vmatprep.mubr.bf16.mxu0 %v946
  %4074 = vmatmul.mubr.bf16.gmra.mxu0 %v945
  %v4075 = vpop.f32.mrf.mxu0
  %v4076 = vadd.f32 %v4036, %v4075
  %v4077 = vpop.f32.mrf.mxu0
  %v4078 = vpop.f32.mrf.mxu0
  %v4079 = vpop.f32.mrf.mxu0
  %4080 = vdwg.mxu0
  %4081 = vmatprep.subr.bf16.mxu0 0
  %4082 = vmatpush1.bf16.msra.mxu0 %v2872
  %4083 = vmatprep.subr.bf16.mxu0 0
  %4084 = vmatpush1.bf16.msra.mxu0 %v2871
  %4085 = vmatprep.subr.bf16.mxu0 0
  %4086 = vmatpush1.bf16.msra.mxu0 %v2870
  %4087 = vmatprep.subr.bf16.mxu0 0
  %4088 = vmatpush1.bf16.msra.mxu0 %v2869
  %4089 = vmatprep.subr.bf16.mxu0 0
  %4090 = vmatpush1.bf16.msra.mxu0 %v2868
  %4091 = vmatprep.subr.bf16.mxu0 0
  %4092 = vmatpush1.bf16.msra.mxu0 %v2867
  %4093 = vmatprep.subr.bf16.mxu0 0
  %4094 = vmatpush1.bf16.msra.mxu0 %v2866
  %4095 = vmatprep.subr.bf16.mxu0 0
  %4096 = vmatpush1.bf16.msra.mxu0 %v2865
  %4097 = vmatprep.subr.bf16.mxu0 0
  %4098 = vmatpush2.bf16.msra.mxu0 %v2880
  %4099 = vmatprep.subr.bf16.mxu0 0
  %4100 = vmatpush2.bf16.msra.mxu0 %v2879
  %4101 = vmatprep.subr.bf16.mxu0 0
  %4102 = vmatpush2.bf16.msra.mxu0 %v2878
  %4103 = vmatprep.subr.bf16.mxu0 0
  %4104 = vmatpush2.bf16.msra.mxu0 %v2877
  %4105 = vmatprep.subr.bf16.mxu0 0
  %4106 = vmatpush2.bf16.msra.mxu0 %v2876
  %4107 = vmatprep.subr.bf16.mxu0 0
  %4108 = vmatpush2.bf16.msra.mxu0 %v2875
  %4109 = vmatprep.subr.bf16.mxu0 0
  %4110 = vmatpush2.bf16.msra.mxu0 %v2874
  %4111 = vmatprep.subr.bf16.mxu0 0
  %4112 = vmatpush2.bf16.msra.mxu0 %v2873
  %4113 = vmatprep.mubr.bf16.mxu0 %v948
  %4114 = vmatmul.mubr.bf16.gmra.mxu0 %v947
  %v4115 = vpop.f32.mrf.mxu0
  %v4116 = vadd.f32 %v4076, %v4115
  %v4117 = vpop.f32.mrf.mxu0
  %v4118 = vpop.f32.mrf.mxu0
  %v4119 = vpop.f32.mrf.mxu0
  %4120 = vdwg.mxu0
  %4121 = vmatprep.subr.bf16.mxu0 0
  %4122 = vmatpush1.bf16.msra.mxu0 %v2888
  %4123 = vmatprep.subr.bf16.mxu0 0
  %4124 = vmatpush1.bf16.msra.mxu0 %v2887
  %4125 = vmatprep.subr.bf16.mxu0 0
  %4126 = vmatpush1.bf16.msra.mxu0 %v2886
  %4127 = vmatprep.subr.bf16.mxu0 0
  %4128 = vmatpush1.bf16.msra.mxu0 %v2885
  %4129 = vmatprep.subr.bf16.mxu0 0
  %4130 = vmatpush1.bf16.msra.mxu0 %v2884
  %4131 = vmatprep.subr.bf16.mxu0 0
  %4132 = vmatpush1.bf16.msra.mxu0 %v2883
  %4133 = vmatprep.subr.bf16.mxu0 0
  %4134 = vmatpush1.bf16.msra.mxu0 %v2882
  %4135 = vmatprep.subr.bf16.mxu0 0
  %4136 = vmatpush1.bf16.msra.mxu0 %v2881
  %4137 = vmatprep.subr.bf16.mxu0 0
  %4138 = vmatpush2.bf16.msra.mxu0 %v2896
  %4139 = vmatprep.subr.bf16.mxu0 0
  %4140 = vmatpush2.bf16.msra.mxu0 %v2895
  %4141 = vmatprep.subr.bf16.mxu0 0
  %4142 = vmatpush2.bf16.msra.mxu0 %v2894
  %4143 = vmatprep.subr.bf16.mxu0 0
  %4144 = vmatpush2.bf16.msra.mxu0 %v2893
  %4145 = vmatprep.subr.bf16.mxu0 0
  %4146 = vmatpush2.bf16.msra.mxu0 %v2892
  %4147 = vmatprep.subr.bf16.mxu0 0
  %4148 = vmatpush2.bf16.msra.mxu0 %v2891
  %4149 = vmatprep.subr.bf16.mxu0 0
  %4150 = vmatpush2.bf16.msra.mxu0 %v2890
  %4151 = vmatprep.subr.bf16.mxu0 0
  %4152 = vmatpush2.bf16.msra.mxu0 %v2889
  %4153 = vmatprep.mubr.bf16.mxu0 %v950
  %4154 = vmatmul.mubr.bf16.gmra.mxu0 %v949
  %v4155 = vpop.f32.mrf.mxu0
  %v4156 = vadd.f32 %v4116, %v4155
  %v4157 = vpop.f32.mrf.mxu0
  %v4158 = vpop.f32.mrf.mxu0
  %v4159 = vpop.f32.mrf.mxu0
  %4160 = vdwg.mxu0
  %4161 = vmatprep.subr.bf16.mxu0 0
  %4162 = vmatpush1.bf16.msra.mxu0 %v2904
  %4163 = vmatprep.subr.bf16.mxu0 0
  %4164 = vmatpush1.bf16.msra.mxu0 %v2903
  %4165 = vmatprep.subr.bf16.mxu0 0
  %4166 = vmatpush1.bf16.msra.mxu0 %v2902
  %4167 = vmatprep.subr.bf16.mxu0 0
  %4168 = vmatpush1.bf16.msra.mxu0 %v2901
  %4169 = vmatprep.subr.bf16.mxu0 0
  %4170 = vmatpush1.bf16.msra.mxu0 %v2900
  %4171 = vmatprep.subr.bf16.mxu0 0
  %4172 = vmatpush1.bf16.msra.mxu0 %v2899
  %4173 = vmatprep.subr.bf16.mxu0 0
  %4174 = vmatpush1.bf16.msra.mxu0 %v2898
  %4175 = vmatprep.subr.bf16.mxu0 0
  %4176 = vmatpush1.bf16.msra.mxu0 %v2897
  %4177 = vmatprep.subr.bf16.mxu0 0
  %4178 = vmatpush2.bf16.msra.mxu0 %v2912
  %4179 = vmatprep.subr.bf16.mxu0 0
  %4180 = vmatpush2.bf16.msra.mxu0 %v2911
  %4181 = vmatprep.subr.bf16.mxu0 0
  %4182 = vmatpush2.bf16.msra.mxu0 %v2910
  %4183 = vmatprep.subr.bf16.mxu0 0
  %4184 = vmatpush2.bf16.msra.mxu0 %v2909
  %4185 = vmatprep.subr.bf16.mxu0 0
  %4186 = vmatpush2.bf16.msra.mxu0 %v2908
  %4187 = vmatprep.subr.bf16.mxu0 0
  %4188 = vmatpush2.bf16.msra.mxu0 %v2907
  %4189 = vmatprep.subr.bf16.mxu0 0
  %4190 = vmatpush2.bf16.msra.mxu0 %v2906
  %4191 = vmatprep.subr.bf16.mxu0 0
  %4192 = vmatpush2.bf16.msra.mxu0 %v2905
  %4193 = vmatprep.mubr.bf16.mxu0 %v952
  %4194 = vmatmul.mubr.bf16.gmra.mxu0 %v951
  %v4195 = vpop.f32.mrf.mxu0
  %v4196 = vadd.f32 %v4156, %v4195
  %v4197 = vpop.f32.mrf.mxu0
  %v4198 = vpop.f32.mrf.mxu0
  %v4199 = vpop.f32.mrf.mxu0
  %4200 = vdwg.mxu0
  %4201 = vmatprep.subr.bf16.mxu0 0
  %4202 = vmatpush1.bf16.msra.mxu0 %v2920
  %4203 = vmatprep.subr.bf16.mxu0 0
  %4204 = vmatpush1.bf16.msra.mxu0 %v2919
  %4205 = vmatprep.subr.bf16.mxu0 0
  %4206 = vmatpush1.bf16.msra.mxu0 %v2918
  %4207 = vmatprep.subr.bf16.mxu0 0
  %4208 = vmatpush1.bf16.msra.mxu0 %v2917
  %4209 = vmatprep.subr.bf16.mxu0 0
  %4210 = vmatpush1.bf16.msra.mxu0 %v2916
  %4211 = vmatprep.subr.bf16.mxu0 0
  %4212 = vmatpush1.bf16.msra.mxu0 %v2915
  %4213 = vmatprep.subr.bf16.mxu0 0
  %4214 = vmatpush1.bf16.msra.mxu0 %v2914
  %4215 = vmatprep.subr.bf16.mxu0 0
  %4216 = vmatpush1.bf16.msra.mxu0 %v2913
  %4217 = vmatprep.subr.bf16.mxu0 0
  %4218 = vmatpush2.bf16.msra.mxu0 %v2928
  %4219 = vmatprep.subr.bf16.mxu0 0
  %4220 = vmatpush2.bf16.msra.mxu0 %v2927
  %4221 = vmatprep.subr.bf16.mxu0 0
  %4222 = vmatpush2.bf16.msra.mxu0 %v2926
  %4223 = vmatprep.subr.bf16.mxu0 0
  %4224 = vmatpush2.bf16.msra.mxu0 %v2925
  %4225 = vmatprep.subr.bf16.mxu0 0
  %4226 = vmatpush2.bf16.msra.mxu0 %v2924
  %4227 = vmatprep.subr.bf16.mxu0 0
  %4228 = vmatpush2.bf16.msra.mxu0 %v2923
  %4229 = vmatprep.subr.bf16.mxu0 0
  %4230 = vmatpush2.bf16.msra.mxu0 %v2922
  %4231 = vmatprep.subr.bf16.mxu0 0
  %4232 = vmatpush2.bf16.msra.mxu0 %v2921
  %4233 = vmatprep.mubr.bf16.mxu0 %v954
  %4234 = vmatmul.mubr.bf16.gmra.mxu0 %v953
  %v4235 = vpop.f32.mrf.mxu0
  %v4236 = vadd.f32 %v4196, %v4235
  %v4237 = vpop.f32.mrf.mxu0
  %v4238 = vpop.f32.mrf.mxu0
  %v4239 = vpop.f32.mrf.mxu0
  %4240 = vdwg.mxu0
  %4241 = vmatprep.subr.bf16.mxu0 0
  %4242 = vmatpush1.bf16.msra.mxu0 %v2936
  %4243 = vmatprep.subr.bf16.mxu0 0
  %4244 = vmatpush1.bf16.msra.mxu0 %v2935
  %4245 = vmatprep.subr.bf16.mxu0 0
  %4246 = vmatpush1.bf16.msra.mxu0 %v2934
  %4247 = vmatprep.subr.bf16.mxu0 0
  %4248 = vmatpush1.bf16.msra.mxu0 %v2933
  %4249 = vmatprep.subr.bf16.mxu0 0
  %4250 = vmatpush1.bf16.msra.mxu0 %v2932
  %4251 = vmatprep.subr.bf16.mxu0 0
  %4252 = vmatpush1.bf16.msra.mxu0 %v2931
  %4253 = vmatprep.subr.bf16.mxu0 0
  %4254 = vmatpush1.bf16.msra.mxu0 %v2930
  %4255 = vmatprep.subr.bf16.mxu0 0
  %4256 = vmatpush1.bf16.msra.mxu0 %v2929
  %4257 = vmatprep.subr.bf16.mxu0 0
  %4258 = vmatpush2.bf16.msra.mxu0 %v2944
  %4259 = vmatprep.subr.bf16.mxu0 0
  %4260 = vmatpush2.bf16.msra.mxu0 %v2943
  %4261 = vmatprep.subr.bf16.mxu0 0
  %4262 = vmatpush2.bf16.msra.mxu0 %v2942
  %4263 = vmatprep.subr.bf16.mxu0 0
  %4264 = vmatpush2.bf16.msra.mxu0 %v2941
  %4265 = vmatprep.subr.bf16.mxu0 0
  %4266 = vmatpush2.bf16.msra.mxu0 %v2940
  %4267 = vmatprep.subr.bf16.mxu0 0
  %4268 = vmatpush2.bf16.msra.mxu0 %v2939
  %4269 = vmatprep.subr.bf16.mxu0 0
  %4270 = vmatpush2.bf16.msra.mxu0 %v2938
  %4271 = vmatprep.subr.bf16.mxu0 0
  %4272 = vmatpush2.bf16.msra.mxu0 %v2937
  %4273 = vmatprep.mubr.bf16.mxu0 %v956
  %4274 = vmatmul.mubr.bf16.gmra.mxu0 %v955
  %v4275 = vpop.f32.mrf.mxu0
  %v4276 = vadd.f32 %v4236, %v4275
  %v4277 = vpop.f32.mrf.mxu0
  %v4278 = vpop.f32.mrf.mxu0
  %v4279 = vpop.f32.mrf.mxu0
  %4280 = vdwg.mxu0
  %4281 = vmatprep.subr.bf16.mxu0 0
  %4282 = vmatpush1.bf16.msra.mxu0 %v2952
  %4283 = vmatprep.subr.bf16.mxu0 0
  %4284 = vmatpush1.bf16.msra.mxu0 %v2951
  %4285 = vmatprep.subr.bf16.mxu0 0
  %4286 = vmatpush1.bf16.msra.mxu0 %v2950
  %4287 = vmatprep.subr.bf16.mxu0 0
  %4288 = vmatpush1.bf16.msra.mxu0 %v2949
  %4289 = vmatprep.subr.bf16.mxu0 0
  %4290 = vmatpush1.bf16.msra.mxu0 %v2948
  %4291 = vmatprep.subr.bf16.mxu0 0
  %4292 = vmatpush1.bf16.msra.mxu0 %v2947
  %4293 = vmatprep.subr.bf16.mxu0 0
  %4294 = vmatpush1.bf16.msra.mxu0 %v2946
  %4295 = vmatprep.subr.bf16.mxu0 0
  %4296 = vmatpush1.bf16.msra.mxu0 %v2945
  %4297 = vmatprep.subr.bf16.mxu0 0
  %4298 = vmatpush2.bf16.msra.mxu0 %v2960
  %4299 = vmatprep.subr.bf16.mxu0 0
  %4300 = vmatpush2.bf16.msra.mxu0 %v2959
  %4301 = vmatprep.subr.bf16.mxu0 0
  %4302 = vmatpush2.bf16.msra.mxu0 %v2958
  %4303 = vmatprep.subr.bf16.mxu0 0
  %4304 = vmatpush2.bf16.msra.mxu0 %v2957
  %4305 = vmatprep.subr.bf16.mxu0 0
  %4306 = vmatpush2.bf16.msra.mxu0 %v2956
  %4307 = vmatprep.subr.bf16.mxu0 0
  %4308 = vmatpush2.bf16.msra.mxu0 %v2955
  %4309 = vmatprep.subr.bf16.mxu0 0
  %4310 = vmatpush2.bf16.msra.mxu0 %v2954
  %4311 = vmatprep.subr.bf16.mxu0 0
  %4312 = vmatpush2.bf16.msra.mxu0 %v2953
  %4313 = vmatprep.mubr.bf16.mxu0 %v958
  %4314 = vmatmul.mubr.bf16.gmra.mxu0 %v957
  %v4315 = vpop.f32.mrf.mxu0
  %v4316 = vadd.f32 %v4276, %v4315
  %v4317 = vpop.f32.mrf.mxu0
  %v4318 = vpop.f32.mrf.mxu0
  %v4319 = vpop.f32.mrf.mxu0
  %4320 = vdwg.mxu0
  %4321 = vmatprep.subr.bf16.mxu0 0
  %4322 = vmatpush1.bf16.msra.mxu0 %v2968
  %4323 = vmatprep.subr.bf16.mxu0 0
  %4324 = vmatpush1.bf16.msra.mxu0 %v2967
  %4325 = vmatprep.subr.bf16.mxu0 0
  %4326 = vmatpush1.bf16.msra.mxu0 %v2966
  %4327 = vmatprep.subr.bf16.mxu0 0
  %4328 = vmatpush1.bf16.msra.mxu0 %v2965
  %4329 = vmatprep.subr.bf16.mxu0 0
  %4330 = vmatpush1.bf16.msra.mxu0 %v2964
  %4331 = vmatprep.subr.bf16.mxu0 0
  %4332 = vmatpush1.bf16.msra.mxu0 %v2963
  %4333 = vmatprep.subr.bf16.mxu0 0
  %4334 = vmatpush1.bf16.msra.mxu0 %v2962
  %4335 = vmatprep.subr.bf16.mxu0 0
  %4336 = vmatpush1.bf16.msra.mxu0 %v2961
  %4337 = vmatprep.subr.bf16.mxu0 0
  %4338 = vmatpush2.bf16.msra.mxu0 0
  %4339 = vmatprep.subr.bf16.mxu0 0
  %4340 = vmatpush2.bf16.msra.mxu0 0
  %4341 = vmatprep.subr.bf16.mxu0 0
  %4342 = vmatpush2.bf16.msra.mxu0 0
  %4343 = vmatprep.subr.bf16.mxu0 0
  %4344 = vmatpush2.bf16.msra.mxu0 0
  %4345 = vmatprep.subr.bf16.mxu0 0
  %4346 = vmatpush2.bf16.msra.mxu0 0
  %4347 = vmatprep.subr.bf16.mxu0 0
  %4348 = vmatpush2.bf16.msra.mxu0 0
  %4349 = vmatprep.subr.bf16.mxu0 0
  %4350 = vmatpush2.bf16.msra.mxu0 0
  %4351 = vmatprep.subr.bf16.mxu0 0
  %4352 = vmatpush2.bf16.msra.mxu0 0
  %4353 = vmatprep.mubr.bf16.mxu0 0
  %4354 = vmatmul.mubr.bf16.gmra.mxu0 %v959
  %v4355 = vpop.f32.mrf.mxu0
  %v4356 = vadd.f32 %v4316, %v4355
  %v4357 = vpop.f32.mrf.mxu0
  %v4358 = vpop.f32.mrf.mxu0
  %v4359 = vpop.f32.mrf.mxu0
  %4360 = vdwg.mxu0
  %v4361 = vmax.f32 %v4356, 0.0
  %v4362 = vpack.c.bf16 %v4361, %v4361
  %v4363 = vld [vmem:[%s3] sm:$0xf]
  %v4364 = vld [vmem:[%s3 + $0x4] sm:$0xf]
  %v4365 = vld [vmem:[%s3 + $0x8] sm:$0xf]
  %v4366 = vld [vmem:[%s3 + $0xc] sm:$0xf]
  %v4367 = vld [vmem:[%s3 + $0x10] sm:$0xf]
  %v4368 = vld [vmem:[%s3 + $0x14] sm:$0xf]
  %v4369 = vld [vmem:[%s3 + $0x18] sm:$0xf]
  %v4370 = vld [vmem:[%s3 + $0x1c] sm:$0xf]
  %v4371 = vld [vmem:[%s3 + $0x20] sm:$0xf]
  %v4372 = vld [vmem:[%s3 + $0x24] sm:$0xf]
  %v4373 = vld [vmem:[%s3 + $0x28] sm:$0xf]
  %v4374 = vld [vmem:[%s3 + $0x2c] sm:$0xf]
  %v4375 = vld [vmem:[%s3 + $0x30] sm:$0xf]
  %v4376 = vld [vmem:[%s3 + $0x34] sm:$0xf]
  %v4377 = vld [vmem:[%s3 + $0x38] sm:$0xf]
  %v4378 = vld [vmem:[%s3 + $0x3c] sm:$0xf]
  %v4379 = vld [vmem:[%s4] sm:$0x1]
  %v4381 = vlaneseq
  %v4382 = vshrl.u32 %v4381, 7
  %v4383 = vsub.s32 0, %v4382
  %v4384 = vrot.slane %v4379, %v4383
  %v4402 = vunpack.c.l.b16 %v4363
  %v4403 = vunpack.c.l.b16 %v4364
  %v4404 = vunpack.c.l.b16 %v4365
  %v4405 = vunpack.c.l.b16 %v4366
  %v4406 = vunpack.c.l.b16 %v4367
  %v4407 = vunpack.c.l.b16 %v4368
  %v4408 = vunpack.c.l.b16 %v4369
  %v4409 = vunpack.c.l.b16 %v4370
  %v4410 = vunpack.c.l.b16 %v4371
  %v4411 = vunpack.c.l.b16 %v4372
  %v4412 = vunpack.c.l.b16 %v4373
  %v4413 = vunpack.c.l.b16 %v4374
  %v4414 = vunpack.c.l.b16 %v4375
  %v4415 = vunpack.c.l.b16 %v4376
  %v4416 = vunpack.c.l.b16 %v4377
  %v4417 = vunpack.c.l.b16 %v4378
  %v4418 = vpack.c.b16 %v4403, %v4402
  %v4419 = vpack.c.b16 %v4405, %v4404
  %v4420 = vpack.c.b16 %v4407, %v4406
  %v4421 = vpack.c.b16 %v4409, %v4408
  %v4422 = vpack.c.b16 %v4411, %v4410
  %v4423 = vpack.c.b16 %v4413, %v4412
  %v4424 = vpack.c.b16 %v4415, %v4414
  %v4425 = vpack.c.b16 %v4417, %v4416
  %4434 = vmatprep.subr.bf16.mxu0 0
  %4435 = vmatpush1.bf16.msra.mxu0 %v4425
  %4436 = vmatprep.subr.bf16.mxu0 0
  %4437 = vmatpush1.bf16.msra.mxu0 %v4424
  %4438 = vmatprep.subr.bf16.mxu0 0
  %4439 = vmatpush1.bf16.msra.mxu0 %v4423
  %4440 = vmatprep.subr.bf16.mxu0 0
  %4441 = vmatpush1.bf16.msra.mxu0 %v4422
  %4442 = vmatprep.subr.bf16.mxu0 0
  %4443 = vmatpush1.bf16.msra.mxu0 %v4421
  %4444 = vmatprep.subr.bf16.mxu0 0
  %4445 = vmatpush1.bf16.msra.mxu0 %v4420
  %4446 = vmatprep.subr.bf16.mxu0 0
  %4447 = vmatpush1.bf16.msra.mxu0 %v4419
  %4448 = vmatprep.subr.bf16.mxu0 0
  %4449 = vmatpush1.bf16.msra.mxu0 %v4418
  %4450 = vmatprep.subr.bf16.mxu0 0
  %4451 = vmatpush2.bf16.msra.mxu0 0
  %4452 = vmatprep.subr.bf16.mxu0 0
  %4453 = vmatpush2.bf16.msra.mxu0 0
  %4454 = vmatprep.subr.bf16.mxu0 0
  %4455 = vmatpush2.bf16.msra.mxu0 0
  %4456 = vmatprep.subr.bf16.mxu0 0
  %4457 = vmatpush2.bf16.msra.mxu0 0
  %4458 = vmatprep.subr.bf16.mxu0 0
  %4459 = vmatpush2.bf16.msra.mxu0 0
  %4460 = vmatprep.subr.bf16.mxu0 0
  %4461 = vmatpush2.bf16.msra.mxu0 0
  %4462 = vmatprep.subr.bf16.mxu0 0
  %4463 = vmatpush2.bf16.msra.mxu0 0
  %4464 = vmatprep.subr.bf16.mxu0 0
  %4465 = vmatpush2.bf16.msra.mxu0 0
  %4466 = vmatprep.mubr.bf16.mxu0 0
  %4467 = vmatmul.mubr.bf16.gmra.mxu0 %v4362
  %v4468 = vpop.f32.mrf.mxu0
  %v4469 = vadd.f32 %v4384, %v4468
  %v4470 = vpop.f32.mrf.mxu0
  %v4471 = vpop.f32.mrf.mxu0
  %v4472 = vpop.f32.mrf.mxu0
  %4473 = vdwg.mxu0
  %4474 = vst [vmem:[%s5] sm:$0xff] %v4469
  // Predicated region
  $region22: #{gcn_forward.5} parent=0 // pred_check
    _
  $region23: #{gcn_forward.5} parent=0 // pred_check_branch
    %4476 = sbr.rel (0) target = $region25
  $region24: #{gcn_forward.5} parent=0 // pred_region
    _
  $region25: #{gcn_forward.5} parent=0 // pred_fallthru
    _
  // Predicated region
  $region26: #{gcn_forward.5} parent=0 // pred_check
    _
  $region27: #{gcn_forward.5} parent=0 // pred_check_branch
    %4478 = sbr.rel (0) target = $region29
  $region28: #{gcn_forward.5} parent=0 // pred_region
    _
  $region29: #{gcn_forward.5} parent=0 // pred_fallthru
    _

</llo_original>
